<compile_context>
chip_gen: v7x
topology: tpu7x:2x2x1
jax: 0.10.0
libtpu: 0.0.40
codegen_flags: <defaults>
</compile_context>

<pallas_src>
import jax
import jax.numpy as jnp
from jax import lax
from jax.experimental import pallas as pl
from jax.experimental.pallas import tpu as pltpu

EPS = 1e-5  # nn.BatchNorm2d default


def _dense_conv_kernel(r0_ref, r1_ref, r2_ref, w_ref, b_ref, o_ref):
    # r*_ref: (N, TH, W+2, Cin) bf16 -- BN+ReLU'd, zero-padded activation rows,
    #                                   shifted by dh = 0 / 1 / 2 along padded H
    # w_ref : (9*Cin, Cout)     bf16 -- conv weight folded as (dh, dw, cin) x cout
    # b_ref : (1, Cout)         f32  -- conv bias
    # o_ref : (N, TH, W, Cout)  bf16 -- output rows for this tile
    n, th, wp2, cin = r0_ref.shape
    w = wp2 - 2
    cout = o_ref.shape[-1]
    m = n * th * w

    rows = (r0_ref[...], r1_ref[...], r2_ref[...])     # one VMEM load per input
    taps = []
    for dh in range(3):                                # fully unrolled 3x3 taps
        for dw in range(3):
            taps.append(rows[dh][:, :, dw:dw + w, :].reshape(m, cin))
    a = jnp.concatenate(taps, axis=-1)                 # (M, 9*Cin) bf16 operand
    acc = jnp.dot(a, w_ref[...], preferred_element_type=jnp.float32)  # single MXU pass
    acc = acc + b_ref[...]                             # f32 bias
    o_ref[...] = acc.astype(o_ref.dtype).reshape(n, th, w, cout)


def _choose_row_tile(N, H, W, Cin, Cout):
    """Largest divisor TH of H fitting a ~24 MiB block budget, keeping >=2 grid steps."""
    budget = 24 * 1024 * 1024
    best = 1
    for th in range(1, H + 1):
        if H % th != 0:
            continue
        if H >= 2 and H // th < 2:
            break                                  # keep >= 2 steps (v7x megacore balance)
        m = N * th * W
        vmem = (3 * 2 * N * th * (W + 2) * Cin * 2      # 3 shifted inputs, 2 bufs, bf16
                + 2 * N * th * W * Cout * 2             # output, 2 bufs, bf16
                + 2 * (m * 9 * Cin * 2 + m * Cout * 4)  # folded operand + f32 acc temps
                + 9 * Cin * Cout * 2 + 4 * Cout)        # resident weight + bias
        if vmem > budget:
            break
        best = th
        if m >= 1024:                              # MXU M-dim is well fed; stop growing
            break
    return best


def conv_block_pallas(x_nhwc, gamma, beta, w_hwio, bias):
    """One conv_block: BN(train stats) -> ReLU -> Conv2d(3x3, pad=1). x: (N,H,W,Cin) f32."""
    N, H, W, Cin = x_nhwc.shape
    Cout = w_hwio.shape[-1]

    # --- BN (batch statistics, biased variance) + ReLU in f32, outside the kernel
    #     (the mean/var are global full-tensor reductions and must not be tiled).
    mean = jnp.mean(x_nhwc, axis=(0, 1, 2))
    var = jnp.mean(jnp.square(x_nhwc - mean), axis=(0, 1, 2))
    scale = gamma * lax.rsqrt(var + EPS)
    shift = beta - mean * scale
    act = jnp.maximum(x_nhwc * scale + shift, 0.0)
    # Conv padding is applied AFTER the activation (matches the reference), so the
    # halo pixels are exactly zero -> no mask needed in the kernel.
    a_pad = jnp.pad(act, ((0, 0), (1, 1), (1, 1), (0, 0))).astype(jnp.bfloat16)
    # Three H-shifted views (dh = 0/1/2) so the TH-row blocks are plain,
    # non-overlapping Blocked BlockSpecs.
    a0 = a_pad[:, 0:H]
    a1 = a_pad[:, 1:H + 1]
    a2 = a_pad[:, 2:H + 2]

    # Folded weight: (3,3,Cin,Cout) -> (9*Cin, Cout), ordering (dh, dw, cin) matches
    # the tap concat order in the kernel.
    w_fold = w_hwio.reshape(9 * Cin, Cout).astype(jnp.bfloat16)
    b2 = bias.reshape(1, Cout).astype(jnp.float32)

    TH = _choose_row_tile(N, H, W, Cin, Cout)
    grid = (H // TH,)

    row_spec = pl.BlockSpec((N, TH, W + 2, Cin), lambda i: (0, i, 0, 0))
    y = pl.pallas_call(
        _dense_conv_kernel,
        out_shape=jax.ShapeDtypeStruct((N, H, W, Cout), jnp.bfloat16),
        grid=grid,
        in_specs=[
            row_spec, row_spec, row_spec,
            pl.BlockSpec((9 * Cin, Cout), lambda i: (0, 0)),   # resident folded weight
            pl.BlockSpec((1, Cout), lambda i: (0, 0)),         # resident bias
        ],
        out_specs=pl.BlockSpec((N, TH, W, Cout), lambda i: (0, i, 0, 0)),
        compiler_params=pltpu.CompilerParams(
            dimension_semantics=("parallel",),        # pipelined, v7x megacore-shardable
            vmem_limit_bytes=48 * 1024 * 1024,        # safe on v5e/v6e (128 MiB) and v7x (64 MiB)
        ),
    )(a0, a1, a2, w_fold, b2)
    return y                                          # bf16 (N, H, W, Cout)


def dense_block_forward(x_nchw, params):
    """DenseBlock forward. x_nchw: (N, C, H, W); returns (N, C + num_convs*growth, H, W)."""
    x = jnp.transpose(x_nchw, (0, 2, 3, 1)).astype(jnp.float32)   # NCHW -> NHWC
    for (gamma, beta, w_hwio, bias) in params:
        y = conv_block_pallas(x, gamma, beta, w_hwio, bias)       # bf16 output from kernel
        x = jnp.concatenate([x, y.astype(jnp.float32)], axis=-1)  # cat along channels
    return jnp.transpose(x, (0, 3, 1, 2))                         # back to NCHW (f32)


def dense_block_reference(x_nchw, params):
    """Pure-JAX f32 reference (same math, XLA conv) for a sanity check."""
    x = jnp.transpose(x_nchw, (0, 2, 3, 1)).astype(jnp.float32)
    for (gamma, beta, w, b) in params:
        mean = jnp.mean(x, axis=(0, 1, 2))
        var = jnp.mean((x - mean) ** 2, axis=(0, 1, 2))
        a = jnp.maximum((x - mean) * lax.rsqrt(var + EPS) * gamma + beta, 0.0)
        y = lax.conv_general_dilated(
            a, w, (1, 1), ((1, 1), (1, 1)),
            dimension_numbers=("NHWC", "HWIO", "NHWC"),
        ) + b
        x = jnp.concatenate([x, y], axis=-1)
    return jnp.transpose(x, (0, 3, 1, 2))


def init_params(key, num_convs, input_channels, num_channels):
    """Deterministic synthetic parameters matching the module's shapes."""
    params = []
    for i in range(num_convs):
        cin = input_channels + i * num_channels
        key, kw, kb = jax.random.split(key, 3)
        gamma = jnp.ones((cin,), jnp.float32)                     # BN default init
        beta = jnp.zeros((cin,), jnp.float32)
        w = 0.1 * jax.random.normal(kw, (3, 3, cin, num_channels), jnp.float32)  # HWIO
        b = 0.1 * jax.random.normal(kb, (num_channels,), jnp.float32)
        params.append((gamma, beta, w, b))
    return params


if __name__ == "__main__":
    num_convs, input_channels, num_channels = 2, 4, 4
    N, H, W = 2, 16, 16

    kx = jax.random.PRNGKey(0)
    x = jax.random.normal(kx, (N, input_channels, H, W), jnp.float32)
    params = init_params(jax.random.PRNGKey(1), num_convs, input_channels, num_channels)

    out = jax.jit(dense_block_forward)(x, params)
    out = jax.block_until_ready(out)

    expected_channels = input_channels + num_convs * num_channels
    assert out.shape == (N, expected_channels, H, W), out.shape

    ref = dense_block_reference(x, params)
    max_err = float(jnp.max(jnp.abs(out - ref)))
    # bf16 matmul operands + bf16 y storage between layers
    assert max_err < 5e-2, f"max abs error too large: {max_err}"

    print("KERNEL_OK")
</pallas_src>

<mosaic_0001>
module attributes {stable_mosaic.version = 11 : i64} {
  func.func @_dense_conv_kernel(%arg0: i32, %arg1: memref<2x8x18x4xbf16, #tpu.memory_space<vmem>>, %arg2: memref<2x8x18x4xbf16, #tpu.memory_space<vmem>>, %arg3: memref<2x8x18x4xbf16, #tpu.memory_space<vmem>>, %arg4: memref<36x4xbf16, #tpu.memory_space<vmem>>, %arg5: memref<1x4xf32, #tpu.memory_space<vmem>>, %arg6: memref<2x8x16x4xbf16, #tpu.memory_space<vmem>>) attributes {dimension_semantics = [#tpu.dimension_semantics<parallel>], iteration_bounds = array<i64: 2>, scalar_prefetch = 0 : i64, scratch_operands = 0 : i64, tpu.core_type = #tpu.core_type<tc>, window_params = [{transform_indices = @transform_0, window_bounds = array<i64: 2, 8, 18, 4>}, {transform_indices = @transform_1, window_bounds = array<i64: 2, 8, 18, 4>}, {transform_indices = @transform_2, window_bounds = array<i64: 2, 8, 18, 4>}, {pipeline_mode = #tpu.pipeline_mode<synchronous>, transform_indices = @transform_3, window_bounds = array<i64: 36, 4>}, {pipeline_mode = #tpu.pipeline_mode<synchronous>, transform_indices = @transform_4, window_bounds = array<i64: 1, 4>}, {transform_indices = @transform_5, window_bounds = array<i64: 2, 8, 16, 4>}]} {
    %c0 = arith.constant 0 : index
    %c0_0 = arith.constant 0 : index
    %c0_1 = arith.constant 0 : index
    %c0_2 = arith.constant 0 : index
    %0 = vector.load %arg1[%c0, %c0_0, %c0_1, %c0_2] : memref<2x8x18x4xbf16, #tpu.memory_space<vmem>>, vector<2x8x18x4xbf16>
    %c0_3 = arith.constant 0 : index
    %c0_4 = arith.constant 0 : index
    %c0_5 = arith.constant 0 : index
    %c0_6 = arith.constant 0 : index
    %1 = vector.load %arg2[%c0_3, %c0_4, %c0_5, %c0_6] : memref<2x8x18x4xbf16, #tpu.memory_space<vmem>>, vector<2x8x18x4xbf16>
    %c0_7 = arith.constant 0 : index
    %c0_8 = arith.constant 0 : index
    %c0_9 = arith.constant 0 : index
    %c0_10 = arith.constant 0 : index
    %2 = vector.load %arg3[%c0_7, %c0_8, %c0_9, %c0_10] : memref<2x8x18x4xbf16, #tpu.memory_space<vmem>>, vector<2x8x18x4xbf16>
    %3 = vector.extract_strided_slice %0 {offsets = [0, 0, 0, 0], sizes = [2, 8, 16, 4], strides = [1, 1, 1, 1]} : vector<2x8x18x4xbf16> to vector<2x8x16x4xbf16>
    %4 = vector.shape_cast %3 : vector<2x8x16x4xbf16> to vector<256x4xbf16>
    %5 = vector.extract_strided_slice %0 {offsets = [0, 0, 1, 0], sizes = [2, 8, 16, 4], strides = [1, 1, 1, 1]} : vector<2x8x18x4xbf16> to vector<2x8x16x4xbf16>
    %6 = vector.shape_cast %5 : vector<2x8x16x4xbf16> to vector<256x4xbf16>
    %7 = vector.extract_strided_slice %0 {offsets = [0, 0, 2, 0], sizes = [2, 8, 16, 4], strides = [1, 1, 1, 1]} : vector<2x8x18x4xbf16> to vector<2x8x16x4xbf16>
    %8 = vector.shape_cast %7 : vector<2x8x16x4xbf16> to vector<256x4xbf16>
    %9 = vector.extract_strided_slice %1 {offsets = [0, 0, 0, 0], sizes = [2, 8, 16, 4], strides = [1, 1, 1, 1]} : vector<2x8x18x4xbf16> to vector<2x8x16x4xbf16>
    %10 = vector.shape_cast %9 : vector<2x8x16x4xbf16> to vector<256x4xbf16>
    %11 = vector.extract_strided_slice %1 {offsets = [0, 0, 1, 0], sizes = [2, 8, 16, 4], strides = [1, 1, 1, 1]} : vector<2x8x18x4xbf16> to vector<2x8x16x4xbf16>
    %12 = vector.shape_cast %11 : vector<2x8x16x4xbf16> to vector<256x4xbf16>
    %13 = vector.extract_strided_slice %1 {offsets = [0, 0, 2, 0], sizes = [2, 8, 16, 4], strides = [1, 1, 1, 1]} : vector<2x8x18x4xbf16> to vector<2x8x16x4xbf16>
    %14 = vector.shape_cast %13 : vector<2x8x16x4xbf16> to vector<256x4xbf16>
    %15 = vector.extract_strided_slice %2 {offsets = [0, 0, 0, 0], sizes = [2, 8, 16, 4], strides = [1, 1, 1, 1]} : vector<2x8x18x4xbf16> to vector<2x8x16x4xbf16>
    %16 = vector.shape_cast %15 : vector<2x8x16x4xbf16> to vector<256x4xbf16>
    %17 = vector.extract_strided_slice %2 {offsets = [0, 0, 1, 0], sizes = [2, 8, 16, 4], strides = [1, 1, 1, 1]} : vector<2x8x18x4xbf16> to vector<2x8x16x4xbf16>
    %18 = vector.shape_cast %17 : vector<2x8x16x4xbf16> to vector<256x4xbf16>
    %19 = vector.extract_strided_slice %2 {offsets = [0, 0, 2, 0], sizes = [2, 8, 16, 4], strides = [1, 1, 1, 1]} : vector<2x8x18x4xbf16> to vector<2x8x16x4xbf16>
    %20 = vector.shape_cast %19 : vector<2x8x16x4xbf16> to vector<256x4xbf16>
    %21 = tpu.concatenate %4, %6, %8, %10, %12, %14, %16, %18, %20 in 1 : vector<256x4xbf16>, vector<256x4xbf16>, vector<256x4xbf16>, vector<256x4xbf16>, vector<256x4xbf16>, vector<256x4xbf16>, vector<256x4xbf16>, vector<256x4xbf16>, vector<256x4xbf16> -> vector<256x36xbf16>
    %c0_11 = arith.constant 0 : index
    %c0_12 = arith.constant 0 : index
    %22 = vector.load %arg4[%c0_11, %c0_12] : memref<36x4xbf16, #tpu.memory_space<vmem>>, vector<36x4xbf16>
    %cst = arith.constant dense<0.000000e+00> : vector<256x4xf32>
    %23 = tpu.matmul %21, %22, %cst {dimension_numbers = #tpu.dot_dimension_numbers<[1], [0], [0], [1], [0, 0, 1, 1], [], []>} : vector<256x36xbf16>, vector<36x4xbf16>, vector<256x4xf32> -> vector<256x4xf32>
    %c0_13 = arith.constant 0 : index
    %c0_14 = arith.constant 0 : index
    %24 = vector.load %arg5[%c0_13, %c0_14] : memref<1x4xf32, #tpu.memory_space<vmem>>, vector<1x4xf32>
    %25 = vector.broadcast %24 : vector<1x4xf32> to vector<256x4xf32>
    %26 = arith.addf %23, %25 : vector<256x4xf32>
    %27 = arith.truncf %26 : vector<256x4xf32> to vector<256x4xbf16>
    %28 = vector.shape_cast %27 : vector<256x4xbf16> to vector<2x8x16x4xbf16>
    %c0_15 = arith.constant 0 : index
    %c0_16 = arith.constant 0 : index
    %c0_17 = arith.constant 0 : index
    %c0_18 = arith.constant 0 : index
    %29 = vector.load %arg6[%c0_15, %c0_16, %c0_17, %c0_18] : memref<2x8x16x4xbf16, #tpu.memory_space<vmem>>, vector<2x8x16x4xbf16>
    tpu.vector_store %arg6[%c0_15, %c0_16, %c0_17, %c0_18], %28 {strides = array<i32>} : memref<2x8x16x4xbf16, #tpu.memory_space<vmem>>, vector<2x8x16x4xbf16>,
    return
  }
  func.func @transform_0(%arg0: i32) -> (i32, i32, i32, i32) {
    %c0_i32 = arith.constant 0 : i32
    %c0_i32_0 = arith.constant 0 : i32
    %c0_i32_1 = arith.constant 0 : i32
    %c0_i32_2 = arith.constant 0 : i32
    return %c0_i32, %arg0, %c0_i32_0, %c0_i32_1 : i32, i32, i32, i32
  }
  func.func @transform_1(%arg0: i32) -> (i32, i32, i32, i32) {
    %c0_i32 = arith.constant 0 : i32
    %c0_i32_0 = arith.constant 0 : i32
    %c0_i32_1 = arith.constant 0 : i32
    %c0_i32_2 = arith.constant 0 : i32
    return %c0_i32, %arg0, %c0_i32_0, %c0_i32_1 : i32, i32, i32, i32
  }
  func.func @transform_2(%arg0: i32) -> (i32, i32, i32, i32) {
    %c0_i32 = arith.constant 0 : i32
    %c0_i32_0 = arith.constant 0 : i32
    %c0_i32_1 = arith.constant 0 : i32
    %c0_i32_2 = arith.constant 0 : i32
    return %c0_i32, %arg0, %c0_i32_0, %c0_i32_1 : i32, i32, i32, i32
  }
  func.func @transform_3(%arg0: i32) -> (i32, i32) {
    %c0_i32 = arith.constant 0 : i32
    %c0_i32_0 = arith.constant 0 : i32
    %c0_i32_1 = arith.constant 0 : i32
    return %c0_i32, %c0_i32_0 : i32, i32
  }
  func.func @transform_4(%arg0: i32) -> (i32, i32) {
    %c0_i32 = arith.constant 0 : i32
    %c0_i32_0 = arith.constant 0 : i32
    %c0_i32_1 = arith.constant 0 : i32
    return %c0_i32, %c0_i32_0 : i32, i32
  }
  func.func @transform_5(%arg0: i32) -> (i32, i32, i32, i32) {
    %c0_i32 = arith.constant 0 : i32
    %c0_i32_0 = arith.constant 0 : i32
    %c0_i32_1 = arith.constant 0 : i32
    %c0_i32_2 = arith.constant 0 : i32
    return %c0_i32, %arg0, %c0_i32_0, %c0_i32_1 : i32, i32, i32, i32
  }
}

module attributes {stable_mosaic.version = 11 : i64} {
  func.func @_dense_conv_kernel(%arg0: i32, %arg1: memref<2x8x18x8xbf16, #tpu.memory_space<vmem>>, %arg2: memref<2x8x18x8xbf16, #tpu.memory_space<vmem>>, %arg3: memref<2x8x18x8xbf16, #tpu.memory_space<vmem>>, %arg4: memref<72x4xbf16, #tpu.memory_space<vmem>>, %arg5: memref<1x4xf32, #tpu.memory_space<vmem>>, %arg6: memref<2x8x16x4xbf16, #tpu.memory_space<vmem>>) attributes {dimension_semantics = [#tpu.dimension_semantics<parallel>], iteration_bounds = array<i64: 2>, scalar_prefetch = 0 : i64, scratch_operands = 0 : i64, tpu.core_type = #tpu.core_type<tc>, window_params = [{transform_indices = @transform_0, window_bounds = array<i64: 2, 8, 18, 8>}, {transform_indices = @transform_1, window_bounds = array<i64: 2, 8, 18, 8>}, {transform_indices = @transform_2, window_bounds = array<i64: 2, 8, 18, 8>}, {pipeline_mode = #tpu.pipeline_mode<synchronous>, transform_indices = @transform_3, window_bounds = array<i64: 72, 4>}, {pipeline_mode = #tpu.pipeline_mode<synchronous>, transform_indices = @transform_4, window_bounds = array<i64: 1, 4>}, {transform_indices = @transform_5, window_bounds = array<i64: 2, 8, 16, 4>}]} {
    %c0 = arith.constant 0 : index
    %c0_0 = arith.constant 0 : index
    %c0_1 = arith.constant 0 : index
    %c0_2 = arith.constant 0 : index
    %0 = vector.load %arg1[%c0, %c0_0, %c0_1, %c0_2] : memref<2x8x18x8xbf16, #tpu.memory_space<vmem>>, vector<2x8x18x8xbf16>
    %c0_3 = arith.constant 0 : index
    %c0_4 = arith.constant 0 : index
    %c0_5 = arith.constant 0 : index
    %c0_6 = arith.constant 0 : index
    %1 = vector.load %arg2[%c0_3, %c0_4, %c0_5, %c0_6] : memref<2x8x18x8xbf16, #tpu.memory_space<vmem>>, vector<2x8x18x8xbf16>
    %c0_7 = arith.constant 0 : index
    %c0_8 = arith.constant 0 : index
    %c0_9 = arith.constant 0 : index
    %c0_10 = arith.constant 0 : index
    %2 = vector.load %arg3[%c0_7, %c0_8, %c0_9, %c0_10] : memref<2x8x18x8xbf16, #tpu.memory_space<vmem>>, vector<2x8x18x8xbf16>
    %3 = vector.extract_strided_slice %0 {offsets = [0, 0, 0, 0], sizes = [2, 8, 16, 8], strides = [1, 1, 1, 1]} : vector<2x8x18x8xbf16> to vector<2x8x16x8xbf16>
    %4 = vector.shape_cast %3 : vector<2x8x16x8xbf16> to vector<256x8xbf16>
    %5 = vector.extract_strided_slice %0 {offsets = [0, 0, 1, 0], sizes = [2, 8, 16, 8], strides = [1, 1, 1, 1]} : vector<2x8x18x8xbf16> to vector<2x8x16x8xbf16>
    %6 = vector.shape_cast %5 : vector<2x8x16x8xbf16> to vector<256x8xbf16>
    %7 = vector.extract_strided_slice %0 {offsets = [0, 0, 2, 0], sizes = [2, 8, 16, 8], strides = [1, 1, 1, 1]} : vector<2x8x18x8xbf16> to vector<2x8x16x8xbf16>
    %8 = vector.shape_cast %7 : vector<2x8x16x8xbf16> to vector<256x8xbf16>
    %9 = vector.extract_strided_slice %1 {offsets = [0, 0, 0, 0], sizes = [2, 8, 16, 8], strides = [1, 1, 1, 1]} : vector<2x8x18x8xbf16> to vector<2x8x16x8xbf16>
    %10 = vector.shape_cast %9 : vector<2x8x16x8xbf16> to vector<256x8xbf16>
    %11 = vector.extract_strided_slice %1 {offsets = [0, 0, 1, 0], sizes = [2, 8, 16, 8], strides = [1, 1, 1, 1]} : vector<2x8x18x8xbf16> to vector<2x8x16x8xbf16>
    %12 = vector.shape_cast %11 : vector<2x8x16x8xbf16> to vector<256x8xbf16>
    %13 = vector.extract_strided_slice %1 {offsets = [0, 0, 2, 0], sizes = [2, 8, 16, 8], strides = [1, 1, 1, 1]} : vector<2x8x18x8xbf16> to vector<2x8x16x8xbf16>
    %14 = vector.shape_cast %13 : vector<2x8x16x8xbf16> to vector<256x8xbf16>
    %15 = vector.extract_strided_slice %2 {offsets = [0, 0, 0, 0], sizes = [2, 8, 16, 8], strides = [1, 1, 1, 1]} : vector<2x8x18x8xbf16> to vector<2x8x16x8xbf16>
    %16 = vector.shape_cast %15 : vector<2x8x16x8xbf16> to vector<256x8xbf16>
    %17 = vector.extract_strided_slice %2 {offsets = [0, 0, 1, 0], sizes = [2, 8, 16, 8], strides = [1, 1, 1, 1]} : vector<2x8x18x8xbf16> to vector<2x8x16x8xbf16>
    %18 = vector.shape_cast %17 : vector<2x8x16x8xbf16> to vector<256x8xbf16>
    %19 = vector.extract_strided_slice %2 {offsets = [0, 0, 2, 0], sizes = [2, 8, 16, 8], strides = [1, 1, 1, 1]} : vector<2x8x18x8xbf16> to vector<2x8x16x8xbf16>
    %20 = vector.shape_cast %19 : vector<2x8x16x8xbf16> to vector<256x8xbf16>
    %21 = tpu.concatenate %4, %6, %8, %10, %12, %14, %16, %18, %20 in 1 : vector<256x8xbf16>, vector<256x8xbf16>, vector<256x8xbf16>, vector<256x8xbf16>, vector<256x8xbf16>, vector<256x8xbf16>, vector<256x8xbf16>, vector<256x8xbf16>, vector<256x8xbf16> -> vector<256x72xbf16>
    %c0_11 = arith.constant 0 : index
    %c0_12 = arith.constant 0 : index
    %22 = vector.load %arg4[%c0_11, %c0_12] : memref<72x4xbf16, #tpu.memory_space<vmem>>, vector<72x4xbf16>
    %cst = arith.constant dense<0.000000e+00> : vector<256x4xf32>
    %23 = tpu.matmul %21, %22, %cst {dimension_numbers = #tpu.dot_dimension_numbers<[1], [0], [0], [1], [0, 0, 1, 1], [], []>} : vector<256x72xbf16>, vector<72x4xbf16>, vector<256x4xf32> -> vector<256x4xf32>
    %c0_13 = arith.constant 0 : index
    %c0_14 = arith.constant 0 : index
    %24 = vector.load %arg5[%c0_13, %c0_14] : memref<1x4xf32, #tpu.memory_space<vmem>>, vector<1x4xf32>
    %25 = vector.broadcast %24 : vector<1x4xf32> to vector<256x4xf32>
    %26 = arith.addf %23, %25 : vector<256x4xf32>
    %27 = arith.truncf %26 : vector<256x4xf32> to vector<256x4xbf16>
    %28 = vector.shape_cast %27 : vector<256x4xbf16> to vector<2x8x16x4xbf16>
    %c0_15 = arith.constant 0 : index
    %c0_16 = arith.constant 0 : index
    %c0_17 = arith.constant 0 : index
    %c0_18 = arith.constant 0 : index
    %29 = vector.load %arg6[%c0_15, %c0_16, %c0_17, %c0_18] : memref<2x8x16x4xbf16, #tpu.memory_space<vmem>>, vector<2x8x16x4xbf16>
    tpu.vector_store %arg6[%c0_15, %c0_16, %c0_17, %c0_18], %28 {strides = array<i32>} : memref<2x8x16x4xbf16, #tpu.memory_space<vmem>>, vector<2x8x16x4xbf16>,
    return
  }
  func.func @transform_0(%arg0: i32) -> (i32, i32, i32, i32) {
    %c0_i32 = arith.constant 0 : i32
    %c0_i32_0 = arith.constant 0 : i32
    %c0_i32_1 = arith.constant 0 : i32
    %c0_i32_2 = arith.constant 0 : i32
    return %c0_i32, %arg0, %c0_i32_0, %c0_i32_1 : i32, i32, i32, i32
  }
  func.func @transform_1(%arg0: i32) -> (i32, i32, i32, i32) {
    %c0_i32 = arith.constant 0 : i32
    %c0_i32_0 = arith.constant 0 : i32
    %c0_i32_1 = arith.constant 0 : i32
    %c0_i32_2 = arith.constant 0 : i32
    return %c0_i32, %arg0, %c0_i32_0, %c0_i32_1 : i32, i32, i32, i32
  }
  func.func @transform_2(%arg0: i32) -> (i32, i32, i32, i32) {
    %c0_i32 = arith.constant 0 : i32
    %c0_i32_0 = arith.constant 0 : i32
    %c0_i32_1 = arith.constant 0 : i32
    %c0_i32_2 = arith.constant 0 : i32
    return %c0_i32, %arg0, %c0_i32_0, %c0_i32_1 : i32, i32, i32, i32
  }
  func.func @transform_3(%arg0: i32) -> (i32, i32) {
    %c0_i32 = arith.constant 0 : i32
    %c0_i32_0 = arith.constant 0 : i32
    %c0_i32_1 = arith.constant 0 : i32
    return %c0_i32, %c0_i32_0 : i32, i32
  }
  func.func @transform_4(%arg0: i32) -> (i32, i32) {
    %c0_i32 = arith.constant 0 : i32
    %c0_i32_0 = arith.constant 0 : i32
    %c0_i32_1 = arith.constant 0 : i32
    return %c0_i32, %c0_i32_0 : i32, i32
  }
  func.func @transform_5(%arg0: i32) -> (i32, i32, i32, i32) {
    %c0_i32 = arith.constant 0 : i32
    %c0_i32_0 = arith.constant 0 : i32
    %c0_i32_1 = arith.constant 0 : i32
    %c0_i32_2 = arith.constant 0 : i32
    return %c0_i32, %arg0, %c0_i32_0, %c0_i32_1 : i32, i32, i32, i32
  }
}

</mosaic_0001>

<llo_original>
// kernel: dense_block_forward.2
$region0: #{dense_block_forward.2}
  #allocation0 [shape = 'u32[]', space=smem, size = 0x4, offset = 0x4, fixed_abs, tag = 'smem constant byte address 0x4 - core index']
  #allocation1 [shape = 'u32[144,128]{1,0:T(1,128)}', space=vmem, size = 0x12000, scoped, tag = 'internal scratch']
  %s0 = inlined_call_operand.vmem [shape: bf16[2,16,18,4], index: 0, kind: input, shape index: {}]
  %s1 = inlined_call_operand.vmem [shape: bf16[2,16,18,4], index: 1, kind: input, shape index: {}]
  %s2 = inlined_call_operand.vmem [shape: bf16[2,16,18,4], index: 2, kind: input, shape index: {}]
  %s3 = inlined_call_operand.vmem [shape: bf16[36,4], index: 3, kind: input, shape index: {}]
  %s4 = inlined_call_operand.vmem [shape: f32[1,4], index: 4, kind: input, shape index: {}]
  %s5 = inlined_call_operand.vmem [shape: bf16[2,16,16,4], index: 5, kind: output, shape index: {}]
  %s6 = sld [smem:[#allocation0]]
  $region213: #{dense_block_forward.2} parent=0
    _
  %s8 = ssub.s32 1, %s6
  %s9 = scalar_select 0, %s8, %s6
  $region1: #{dense_block_forward.2} parent=0
    #allocation2 [shape = 'u8[196608]{0}', space=vmem, size = 0x30000, scoped, tag = 'input window, operand 0']
    #allocation3 [shape = 'u8[196608]{0}', space=vmem, size = 0x30000, scoped, tag = 'input window, operand 1']
    #allocation4 [shape = 'u8[196608]{0}', space=vmem, size = 0x30000, scoped, tag = 'input window, operand 2']
    #allocation5 [shape = 'u8[131072]{0}', space=vmem, size = 0x20000, scoped, tag = 'output window, operand 0']
    loop: start=0, step=1, limit=4
    $region2: #{dense_block_forward.2} parent=1 // loop_pre_header
      _
    $region3: #{dense_block_forward.2} parent=1 // loop_header
      %s11 = sphi 0, %s15
      %p12 = scmp.ge.s32.totalorder %s11, 4
      %s21 = sphi 0, %s23
      %s24 = sphi 0, %s21
      %s25 = sphi 0, %s24
      %s41 = sphi 0, %s25
      %s47 = sphi 0, %s49
      %s50 = sphi 0, %s47
      %s51 = sphi 0, %s50
      %s67 = sphi 0, %s51
      %s73 = sphi 0, %s75
      %s76 = sphi 0, %s73
      %s77 = sphi 0, %s76
      %s93 = sphi 0, %s77
      %s97 = sphi 0, %s97
      %s99 = sphi 0, %s97
      %s100 = sphi 0, %s99
      %s114 = sphi 0, %s100
      %s118 = sphi 0, %s118
      %s120 = sphi 0, %s118
      %s121 = sphi 0, %s120
      %s135 = sphi 0, %s121
      %s141 = sphi 0, %s143
      %s144 = sphi 0, %s141
      %s145 = sphi 0, %s144
      %s161 = sphi 0, %s145
    $region4: #{dense_block_forward.2} parent=1 // loop_header_branch
      %14 = sbr.rel (%p12) target = $region8
    $region5: #{dense_block_forward.2} parent=1 // loop_body
      %s16 = ssub.s32 %s11, 1
      %s17 = ssub.s32 %s11, 2
      %s18 = sadd.s32 %s11, 1
      %s19 = ssub.s32 %s11, %s18
      %p20 = scmp.eq.s32.totalorder %s19, 0
      %s22 = sadd.s32 %s21, 1
      %s23 = scalar_select %p20, %s21, %s22
      %p26 = pneg %p20
      %p27 = scmp.eq.s32.totalorder %s11, 1
      %p28 = por %p26, %p27
      %p29 = scmp.ne.s32.totalorder %s21, %s24
      %p30 = scmp.eq.s32.totalorder %s11, 0
      %p31 = por %p29, %p30
      %p32 = scmp.ne.s32.totalorder %s21, %s24
      %p33 = scmp.eq.s32.totalorder %s16, 1
      %p34 = por %p32, %p33
      %p35 = scmp.ne.s32.totalorder %s24, %s25
      %p36 = scmp.eq.s32.totalorder %s16, 0
      %p37 = por %p35, %p36
      %p38 = scmp.ne.s32.totalorder %s24, %s25
      %p39 = scmp.eq.s32.totalorder %s17, 1
      %p40 = por %p38, %p39
      %p42 = scmp.ne.s32.totalorder %s25, %s41
      %p43 = scmp.eq.s32.totalorder %s17, 0
      %p44 = por %p42, %p43
      %s45 = ssub.s32 %s11, %s18
      %p46 = scmp.eq.s32.totalorder %s45, 0
      %s48 = sadd.s32 %s47, 1
      %s49 = scalar_select %p46, %s47, %s48
      %p52 = pneg %p46
      %p53 = scmp.eq.s32.totalorder %s11, 1
      %p54 = por %p52, %p53
      %p55 = scmp.ne.s32.totalorder %s47, %s50
      %p56 = scmp.eq.s32.totalorder %s11, 0
      %p57 = por %p55, %p56
      %p58 = scmp.ne.s32.totalorder %s47, %s50
      %p59 = scmp.eq.s32.totalorder %s16, 1
      %p60 = por %p58, %p59
      %p61 = scmp.ne.s32.totalorder %s50, %s51
      %p62 = scmp.eq.s32.totalorder %s16, 0
      %p63 = por %p61, %p62
      %p64 = scmp.ne.s32.totalorder %s50, %s51
      %p65 = scmp.eq.s32.totalorder %s17, 1
      %p66 = por %p64, %p65
      %p68 = scmp.ne.s32.totalorder %s51, %s67
      %p69 = scmp.eq.s32.totalorder %s17, 0
      %p70 = por %p68, %p69
      %s71 = ssub.s32 %s11, %s18
      %p72 = scmp.eq.s32.totalorder %s71, 0
      %s74 = sadd.s32 %s73, 1
      %s75 = scalar_select %p72, %s73, %s74
      %p78 = pneg %p72
      %p79 = scmp.eq.s32.totalorder %s11, 1
      %p80 = por %p78, %p79
      %p81 = scmp.ne.s32.totalorder %s73, %s76
      %p82 = scmp.eq.s32.totalorder %s11, 0
      %p83 = por %p81, %p82
      %p84 = scmp.ne.s32.totalorder %s73, %s76
      %p85 = scmp.eq.s32.totalorder %s16, 1
      %p86 = por %p84, %p85
      %p87 = scmp.ne.s32.totalorder %s76, %s77
      %p88 = scmp.eq.s32.totalorder %s16, 0
      %p89 = por %p87, %p88
      %p90 = scmp.ne.s32.totalorder %s76, %s77
      %p91 = scmp.eq.s32.totalorder %s17, 1
      %p92 = por %p90, %p91
      %p94 = scmp.ne.s32.totalorder %s77, %s93
      %p95 = scmp.eq.s32.totalorder %s17, 0
      %p96 = por %p94, %p95
      %s98 = sadd.s32 %s97, 1
      %p101 = scmp.eq.s32.totalorder %s11, 1
      %p102 = scmp.ne.s32.totalorder %s97, %s99
      %p103 = scmp.eq.s32.totalorder %s11, 0
      %p104 = por %p102, %p103
      %p105 = scmp.ne.s32.totalorder %s97, %s99
      %p106 = scmp.eq.s32.totalorder %s16, 1
      %p107 = por %p105, %p106
      %p108 = scmp.ne.s32.totalorder %s99, %s100
      %p109 = scmp.eq.s32.totalorder %s16, 0
      %p110 = por %p108, %p109
      %p111 = scmp.ne.s32.totalorder %s99, %s100
      %p112 = scmp.eq.s32.totalorder %s17, 1
      %p113 = por %p111, %p112
      %p115 = scmp.ne.s32.totalorder %s100, %s114
      %p116 = scmp.eq.s32.totalorder %s17, 0
      %p117 = por %p115, %p116
      %s119 = sadd.s32 %s118, 1
      %p122 = scmp.eq.s32.totalorder %s11, 1
      %p123 = scmp.ne.s32.totalorder %s118, %s120
      %p124 = scmp.eq.s32.totalorder %s11, 0
      %p125 = por %p123, %p124
      %p126 = scmp.ne.s32.totalorder %s118, %s120
      %p127 = scmp.eq.s32.totalorder %s16, 1
      %p128 = por %p126, %p127
      %p129 = scmp.ne.s32.totalorder %s120, %s121
      %p130 = scmp.eq.s32.totalorder %s16, 0
      %p131 = por %p129, %p130
      %p132 = scmp.ne.s32.totalorder %s120, %s121
      %p133 = scmp.eq.s32.totalorder %s17, 1
      %p134 = por %p132, %p133
      %p136 = scmp.ne.s32.totalorder %s121, %s135
      %p137 = scmp.eq.s32.totalorder %s17, 0
      %p138 = por %p136, %p137
      %s139 = ssub.s32 %s11, %s18
      %p140 = scmp.eq.s32.totalorder %s139, 0
      %s142 = sadd.s32 %s141, 1
      %s143 = scalar_select %p140, %s141, %s142
      %p146 = pneg %p140
      %p147 = scmp.eq.s32.totalorder %s11, 1
      %p148 = por %p146, %p147
      %p149 = scmp.ne.s32.totalorder %s141, %s144
      %p150 = scmp.eq.s32.totalorder %s11, 0
      %p151 = por %p149, %p150
      %p152 = scmp.ne.s32.totalorder %s141, %s144
      %p153 = scmp.eq.s32.totalorder %s16, 1
      %p154 = por %p152, %p153
      %p155 = scmp.ne.s32.totalorder %s144, %s145
      %p156 = scmp.eq.s32.totalorder %s16, 0
      %p157 = por %p155, %p156
      %p158 = scmp.ne.s32.totalorder %s144, %s145
      %p159 = scmp.eq.s32.totalorder %s17, 1
      %p160 = por %p158, %p159
      %p162 = scmp.ne.s32.totalorder %s145, %s161
      %p163 = scmp.eq.s32.totalorder %s17, 0
      %p164 = por %p162, %p163
      %p165 = scmp.le.s32.totalorder 1, %s11
      %p166 = scmp.lt.s32.totalorder %s11, 3
      %p167 = pnand %p165, %p166
      %p168 = pneg %p167
      // Predicated region
      $region9: #{dense_block_forward.2} parent=5 // pred_check
        _
      $region10: #{dense_block_forward.2} parent=5 // pred_check_branch
        %170 = sbr.rel (%p167) target = $region12
      $region11: #{dense_block_forward.2} parent=5 // pred_region
        %s171 = ssub.s32 %s11, 1
        // Predicated region
        $region13: #{dense_block_forward.2} parent=11 // pred_check
          %p172 = pneg %p110
        $region14: #{dense_block_forward.2} parent=11 // pred_check_branch
          %174 = sbr.rel (%p172) target = $region16
        $region15: #{dense_block_forward.2} parent=11 // pred_region
          _
        $region16: #{dense_block_forward.2} parent=11 // pred_fallthru
          _
        // Predicated region
        $region17: #{dense_block_forward.2} parent=11 // pred_check
          %p175 = pneg %p131
        $region18: #{dense_block_forward.2} parent=11 // pred_check_branch
          %177 = sbr.rel (%p175) target = $region20
        $region19: #{dense_block_forward.2} parent=11 // pred_region
          _
        $region20: #{dense_block_forward.2} parent=11 // pred_fallthru
          _
      $region12: #{dense_block_forward.2} parent=5 // pred_fallthru
        _
      %p178 = scmp.lt.s32.totalorder %s11, 2
      // Predicated region
      $region21: #{dense_block_forward.2} parent=5 // pred_check
        %p179 = pneg %p178
      $region22: #{dense_block_forward.2} parent=5 // pred_check_branch
        %181 = sbr.rel (%p179) target = $region24
      $region23: #{dense_block_forward.2} parent=5 // pred_region
        // Predicated region
        $region25: #{dense_block_forward.2} parent=23 // pred_check
          %p182 = pneg %p31
        $region26: #{dense_block_forward.2} parent=23 // pred_check_branch
          %184 = sbr.rel (%p182) target = $region28
        $region27: #{dense_block_forward.2} parent=23 // pred_region
          %s185 = sand.u32 %s21, 1
          %s186 = sand.u32 %s21, 1
          %s187 = smul.addr %s186, 192
          %s188 = scalar_lea.vmem [#allocation2], %s187
          %s189 = smul.u32 8, %s11
          %s190 = smul.addr %s189, 3
          %s191 = smul.addr %s190, 4
          %s192 = scalar_lea.vmem %s0, %s191
          // Predicated region
          $region29: #{dense_block_forward.2} parent=27 // pred_check
            _
          $region30: #{dense_block_forward.2} parent=27 // pred_check_branch
            %194 = sbr.rel (0) target = $region32
          $region31: #{dense_block_forward.2} parent=27 // pred_region
            // Predicated region
            $region33: #{dense_block_forward.2} parent=31 // pred_check
              _
            $region34: #{dense_block_forward.2} parent=31 // pred_check_branch
              %196 = sbr.rel target = $region36
            $region35: #{dense_block_forward.2} parent=31 // pred_region
              // Predicated region
              $region48: #{dense_block_forward.2} parent=35 // pred_check
                _
              $region49: #{dense_block_forward.2} parent=35 // pred_check_branch
                %305 = sbr.rel (0) target = $region51
              $region50: #{dense_block_forward.2} parent=35 // pred_region
                loop: start=0, step=1, limit=1
                $region52: #{dense_block_forward.2} parent=50 // loop_pre_header
                  _
                $region53: #{dense_block_forward.2} parent=50 // loop_header
                  %s307 = sphi 0, %s311
                  %p308 = scmp.ge.s32.totalorder %s307, 1
                  %s312 = sphi %s192, %s192
                  %s313 = sphi %s188, %s188
                $region54: #{dense_block_forward.2} parent=50 // loop_header_branch
                  %310 = sbr.rel (%p308) target = $region58
                $region55: #{dense_block_forward.2} parent=50 // loop_body
                  _
                $region56: #{dense_block_forward.2} parent=50 // loop_footer
                  %s311 = sadd.s32 1, %s307
                $region57: #{dense_block_forward.2} parent=50 // loop_footer_branch
                  %306 = sbr.rel target = $region53
                $region58: #{dense_block_forward.2} parent=50 // loop_exit
                  _
                loop: start=0, step=1, limit=1
                $region59: #{dense_block_forward.2} parent=50 // loop_pre_header
                  _
                $region60: #{dense_block_forward.2} parent=50 // loop_header
                  %s316 = sphi 0, %s320
                  %p317 = scmp.ge.s32.totalorder %s316, 1
                  %s321 = sphi %s192, %s192
                  %s322 = sphi %s188, %s188
                $region61: #{dense_block_forward.2} parent=50 // loop_header_branch
                  %319 = sbr.rel (%p317) target = $region65
                $region62: #{dense_block_forward.2} parent=50 // loop_body
                  %v323 = vld [vmem:[%s321] sm:$0xf]
                  %324 = vst [vmem:[%s322] sm:$0xf] %v323
                  %v325 = vld [vmem:[%s321 + $0x4] sm:$0xf]
                  %326 = vst [vmem:[%s322 + $0x4] sm:$0xf] %v325
                  %v327 = vld [vmem:[%s321 + $0x8] sm:$0xf]
                  %328 = vst [vmem:[%s322 + $0x8] sm:$0xf] %v327
                  %v329 = vld [vmem:[%s321 + $0xc] sm:$0xf]
                  %330 = vst [vmem:[%s322 + $0xc] sm:$0xf] %v329
                  %v331 = vld [vmem:[%s321 + $0x10] sm:$0xf]
                  %332 = vst [vmem:[%s322 + $0x10] sm:$0xf] %v331
                  %v333 = vld [vmem:[%s321 + $0x14] sm:$0xf]
                  %334 = vst [vmem:[%s322 + $0x14] sm:$0xf] %v333
                  %v335 = vld [vmem:[%s321 + $0x18] sm:$0xf]
                  %336 = vst [vmem:[%s322 + $0x18] sm:$0xf] %v335
                  %v337 = vld [vmem:[%s321 + $0x1c] sm:$0xf]
                  %338 = vst [vmem:[%s322 + $0x1c] sm:$0xf] %v337
                  %v339 = vld [vmem:[%s321 + $0x20] sm:$0xf]
                  %340 = vst [vmem:[%s322 + $0x20] sm:$0xf] %v339
                  %v341 = vld [vmem:[%s321 + $0x24] sm:$0xf]
                  %342 = vst [vmem:[%s322 + $0x24] sm:$0xf] %v341
                  %v343 = vld [vmem:[%s321 + $0x28] sm:$0xf]
                  %344 = vst [vmem:[%s322 + $0x28] sm:$0xf] %v343
                  %v345 = vld [vmem:[%s321 + $0x2c] sm:$0xf]
                  %346 = vst [vmem:[%s322 + $0x2c] sm:$0xf] %v345
                  %v347 = vld [vmem:[%s321 + $0x30] sm:$0xf]
                  %348 = vst [vmem:[%s322 + $0x30] sm:$0xf] %v347
                  %v349 = vld [vmem:[%s321 + $0x34] sm:$0xf]
                  %350 = vst [vmem:[%s322 + $0x34] sm:$0xf] %v349
                  %v351 = vld [vmem:[%s321 + $0x38] sm:$0xf]
                  %352 = vst [vmem:[%s322 + $0x38] sm:$0xf] %v351
                  %v353 = vld [vmem:[%s321 + $0x3c] sm:$0xf]
                  %354 = vst [vmem:[%s322 + $0x3c] sm:$0xf] %v353
                  %v355 = vld [vmem:[%s321 + $0x40] sm:$0xf]
                  %356 = vst [vmem:[%s322 + $0x40] sm:$0xf] %v355
                  %v357 = vld [vmem:[%s321 + $0x44] sm:$0xf]
                  %358 = vst [vmem:[%s322 + $0x44] sm:$0xf] %v357
                  %v359 = vld [vmem:[%s321 + $0x48] sm:$0xf]
                  %360 = vst [vmem:[%s322 + $0x48] sm:$0xf] %v359
                  %v361 = vld [vmem:[%s321 + $0x4c] sm:$0xf]
                  %362 = vst [vmem:[%s322 + $0x4c] sm:$0xf] %v361
                  %v363 = vld [vmem:[%s321 + $0x50] sm:$0xf]
                  %364 = vst [vmem:[%s322 + $0x50] sm:$0xf] %v363
                  %v365 = vld [vmem:[%s321 + $0x54] sm:$0xf]
                  %366 = vst [vmem:[%s322 + $0x54] sm:$0xf] %v365
                  %v367 = vld [vmem:[%s321 + $0x58] sm:$0xf]
                  %368 = vst [vmem:[%s322 + $0x58] sm:$0xf] %v367
                  %v369 = vld [vmem:[%s321 + $0x5c] sm:$0xf]
                  %370 = vst [vmem:[%s322 + $0x5c] sm:$0xf] %v369
                  %v371 = vld [vmem:[%s321 + $0xc0] sm:$0xf]
                  %372 = vst [vmem:[%s322 + $0x60] sm:$0xf] %v371
                  %v373 = vld [vmem:[%s321 + $0xc4] sm:$0xf]
                  %374 = vst [vmem:[%s322 + $0x64] sm:$0xf] %v373
                  %v375 = vld [vmem:[%s321 + $0xc8] sm:$0xf]
                  %376 = vst [vmem:[%s322 + $0x68] sm:$0xf] %v375
                  %v377 = vld [vmem:[%s321 + $0xcc] sm:$0xf]
                  %378 = vst [vmem:[%s322 + $0x6c] sm:$0xf] %v377
                  %v379 = vld [vmem:[%s321 + $0xd0] sm:$0xf]
                  %380 = vst [vmem:[%s322 + $0x70] sm:$0xf] %v379
                  %v381 = vld [vmem:[%s321 + $0xd4] sm:$0xf]
                  %382 = vst [vmem:[%s322 + $0x74] sm:$0xf] %v381
                  %v383 = vld [vmem:[%s321 + $0xd8] sm:$0xf]
                  %384 = vst [vmem:[%s322 + $0x78] sm:$0xf] %v383
                  %v385 = vld [vmem:[%s321 + $0xdc] sm:$0xf]
                  %386 = vst [vmem:[%s322 + $0x7c] sm:$0xf] %v385
                  %v387 = vld [vmem:[%s321 + $0xe0] sm:$0xf]
                  %388 = vst [vmem:[%s322 + $0x80] sm:$0xf] %v387
                  %v389 = vld [vmem:[%s321 + $0xe4] sm:$0xf]
                  %390 = vst [vmem:[%s322 + $0x84] sm:$0xf] %v389
                  %v391 = vld [vmem:[%s321 + $0xe8] sm:$0xf]
                  %392 = vst [vmem:[%s322 + $0x88] sm:$0xf] %v391
                  %v393 = vld [vmem:[%s321 + $0xec] sm:$0xf]
                  %394 = vst [vmem:[%s322 + $0x8c] sm:$0xf] %v393
                  %v395 = vld [vmem:[%s321 + $0xf0] sm:$0xf]
                  %396 = vst [vmem:[%s322 + $0x90] sm:$0xf] %v395
                  %v397 = vld [vmem:[%s321 + $0xf4] sm:$0xf]
                  %398 = vst [vmem:[%s322 + $0x94] sm:$0xf] %v397
                  %v399 = vld [vmem:[%s321 + $0xf8] sm:$0xf]
                  %400 = vst [vmem:[%s322 + $0x98] sm:$0xf] %v399
                  %v401 = vld [vmem:[%s321 + $0xfc] sm:$0xf]
                  %402 = vst [vmem:[%s322 + $0x9c] sm:$0xf] %v401
                  %v403 = vld [vmem:[%s321 + $0x100] sm:$0xf]
                  %404 = vst [vmem:[%s322 + $0xa0] sm:$0xf] %v403
                  %v405 = vld [vmem:[%s321 + $0x104] sm:$0xf]
                  %406 = vst [vmem:[%s322 + $0xa4] sm:$0xf] %v405
                  %v407 = vld [vmem:[%s321 + $0x108] sm:$0xf]
                  %408 = vst [vmem:[%s322 + $0xa8] sm:$0xf] %v407
                  %v409 = vld [vmem:[%s321 + $0x10c] sm:$0xf]
                  %410 = vst [vmem:[%s322 + $0xac] sm:$0xf] %v409
                  %v411 = vld [vmem:[%s321 + $0x110] sm:$0xf]
                  %412 = vst [vmem:[%s322 + $0xb0] sm:$0xf] %v411
                  %v413 = vld [vmem:[%s321 + $0x114] sm:$0xf]
                  %414 = vst [vmem:[%s322 + $0xb4] sm:$0xf] %v413
                  %v415 = vld [vmem:[%s321 + $0x118] sm:$0xf]
                  %416 = vst [vmem:[%s322 + $0xb8] sm:$0xf] %v415
                  %v417 = vld [vmem:[%s321 + $0x11c] sm:$0xf]
                  %418 = vst [vmem:[%s322 + $0xbc] sm:$0xf] %v417
                $region63: #{dense_block_forward.2} parent=50 // loop_footer
                  %s320 = sadd.s32 1, %s316
                $region64: #{dense_block_forward.2} parent=50 // loop_footer_branch
                  %315 = sbr.rel target = $region60
                $region65: #{dense_block_forward.2} parent=50 // loop_exit
                  _
              $region51: #{dense_block_forward.2} parent=35 // pred_fallthru
                _
            $region36: #{dense_block_forward.2} parent=31 // pred_fallthru
              _
            // Predicated region
            $region37: #{dense_block_forward.2} parent=31 // pred_check
              _
            $region38: #{dense_block_forward.2} parent=31 // pred_check_branch
              %198 = sbr.rel (0) target = $region40
            $region39: #{dense_block_forward.2} parent=31 // pred_region
              loop: start=0, step=1, limit=1
              $region41: #{dense_block_forward.2} parent=39 // loop_pre_header
                _
              $region42: #{dense_block_forward.2} parent=39 // loop_header
                %s201 = sphi 0, %s205
                %p202 = scmp.ge.s32.totalorder %s201, 1
                %s206 = sphi %s192, %s192
                %s207 = sphi %s188, %s188
              $region43: #{dense_block_forward.2} parent=39 // loop_header_branch
                %204 = sbr.rel (%p202) target = $region47
              $region44: #{dense_block_forward.2} parent=39 // loop_body
                %v208 = vld [vmem:[%s206] sm:$0xf]
                %209 = vst [vmem:[%s207] sm:$0xf] %v208
                %v210 = vld [vmem:[%s206 + $0x4] sm:$0xf]
                %211 = vst [vmem:[%s207 + $0x4] sm:$0xf] %v210
                %v212 = vld [vmem:[%s206 + $0x8] sm:$0xf]
                %213 = vst [vmem:[%s207 + $0x8] sm:$0xf] %v212
                %v214 = vld [vmem:[%s206 + $0xc] sm:$0xf]
                %215 = vst [vmem:[%s207 + $0xc] sm:$0xf] %v214
                %v216 = vld [vmem:[%s206 + $0x10] sm:$0xf]
                %217 = vst [vmem:[%s207 + $0x10] sm:$0xf] %v216
                %v218 = vld [vmem:[%s206 + $0x14] sm:$0xf]
                %219 = vst [vmem:[%s207 + $0x14] sm:$0xf] %v218
                %v220 = vld [vmem:[%s206 + $0x18] sm:$0xf]
                %221 = vst [vmem:[%s207 + $0x18] sm:$0xf] %v220
                %v222 = vld [vmem:[%s206 + $0x1c] sm:$0xf]
                %223 = vst [vmem:[%s207 + $0x1c] sm:$0xf] %v222
                %v224 = vld [vmem:[%s206 + $0x20] sm:$0xf]
                %225 = vst [vmem:[%s207 + $0x20] sm:$0xf] %v224
                %v226 = vld [vmem:[%s206 + $0x24] sm:$0xf]
                %227 = vst [vmem:[%s207 + $0x24] sm:$0xf] %v226
                %v228 = vld [vmem:[%s206 + $0x28] sm:$0xf]
                %229 = vst [vmem:[%s207 + $0x28] sm:$0xf] %v228
                %v230 = vld [vmem:[%s206 + $0x2c] sm:$0xf]
                %231 = vst [vmem:[%s207 + $0x2c] sm:$0xf] %v230
                %v232 = vld [vmem:[%s206 + $0x30] sm:$0xf]
                %233 = vst [vmem:[%s207 + $0x30] sm:$0xf] %v232
                %v234 = vld [vmem:[%s206 + $0x34] sm:$0xf]
                %235 = vst [vmem:[%s207 + $0x34] sm:$0xf] %v234
                %v236 = vld [vmem:[%s206 + $0x38] sm:$0xf]
                %237 = vst [vmem:[%s207 + $0x38] sm:$0xf] %v236
                %v238 = vld [vmem:[%s206 + $0x3c] sm:$0xf]
                %239 = vst [vmem:[%s207 + $0x3c] sm:$0xf] %v238
                %v240 = vld [vmem:[%s206 + $0x40] sm:$0xf]
                %241 = vst [vmem:[%s207 + $0x40] sm:$0xf] %v240
                %v242 = vld [vmem:[%s206 + $0x44] sm:$0xf]
                %243 = vst [vmem:[%s207 + $0x44] sm:$0xf] %v242
                %v244 = vld [vmem:[%s206 + $0x48] sm:$0xf]
                %245 = vst [vmem:[%s207 + $0x48] sm:$0xf] %v244
                %v246 = vld [vmem:[%s206 + $0x4c] sm:$0xf]
                %247 = vst [vmem:[%s207 + $0x4c] sm:$0xf] %v246
                %v248 = vld [vmem:[%s206 + $0x50] sm:$0xf]
                %249 = vst [vmem:[%s207 + $0x50] sm:$0xf] %v248
                %v250 = vld [vmem:[%s206 + $0x54] sm:$0xf]
                %251 = vst [vmem:[%s207 + $0x54] sm:$0xf] %v250
                %v252 = vld [vmem:[%s206 + $0x58] sm:$0xf]
                %253 = vst [vmem:[%s207 + $0x58] sm:$0xf] %v252
                %v254 = vld [vmem:[%s206 + $0x5c] sm:$0xf]
                %255 = vst [vmem:[%s207 + $0x5c] sm:$0xf] %v254
                %v256 = vld [vmem:[%s206 + $0xc0] sm:$0xf]
                %257 = vst [vmem:[%s207 + $0x60] sm:$0xf] %v256
                %v258 = vld [vmem:[%s206 + $0xc4] sm:$0xf]
                %259 = vst [vmem:[%s207 + $0x64] sm:$0xf] %v258
                %v260 = vld [vmem:[%s206 + $0xc8] sm:$0xf]
                %261 = vst [vmem:[%s207 + $0x68] sm:$0xf] %v260
                %v262 = vld [vmem:[%s206 + $0xcc] sm:$0xf]
                %263 = vst [vmem:[%s207 + $0x6c] sm:$0xf] %v262
                %v264 = vld [vmem:[%s206 + $0xd0] sm:$0xf]
                %265 = vst [vmem:[%s207 + $0x70] sm:$0xf] %v264
                %v266 = vld [vmem:[%s206 + $0xd4] sm:$0xf]
                %267 = vst [vmem:[%s207 + $0x74] sm:$0xf] %v266
                %v268 = vld [vmem:[%s206 + $0xd8] sm:$0xf]
                %269 = vst [vmem:[%s207 + $0x78] sm:$0xf] %v268
                %v270 = vld [vmem:[%s206 + $0xdc] sm:$0xf]
                %271 = vst [vmem:[%s207 + $0x7c] sm:$0xf] %v270
                %v272 = vld [vmem:[%s206 + $0xe0] sm:$0xf]
                %273 = vst [vmem:[%s207 + $0x80] sm:$0xf] %v272
                %v274 = vld [vmem:[%s206 + $0xe4] sm:$0xf]
                %275 = vst [vmem:[%s207 + $0x84] sm:$0xf] %v274
                %v276 = vld [vmem:[%s206 + $0xe8] sm:$0xf]
                %277 = vst [vmem:[%s207 + $0x88] sm:$0xf] %v276
                %v278 = vld [vmem:[%s206 + $0xec] sm:$0xf]
                %279 = vst [vmem:[%s207 + $0x8c] sm:$0xf] %v278
                %v280 = vld [vmem:[%s206 + $0xf0] sm:$0xf]
                %281 = vst [vmem:[%s207 + $0x90] sm:$0xf] %v280
                %v282 = vld [vmem:[%s206 + $0xf4] sm:$0xf]
                %283 = vst [vmem:[%s207 + $0x94] sm:$0xf] %v282
                %v284 = vld [vmem:[%s206 + $0xf8] sm:$0xf]
                %285 = vst [vmem:[%s207 + $0x98] sm:$0xf] %v284
                %v286 = vld [vmem:[%s206 + $0xfc] sm:$0xf]
                %287 = vst [vmem:[%s207 + $0x9c] sm:$0xf] %v286
                %v288 = vld [vmem:[%s206 + $0x100] sm:$0xf]
                %289 = vst [vmem:[%s207 + $0xa0] sm:$0xf] %v288
                %v290 = vld [vmem:[%s206 + $0x104] sm:$0xf]
                %291 = vst [vmem:[%s207 + $0xa4] sm:$0xf] %v290
                %v292 = vld [vmem:[%s206 + $0x108] sm:$0xf]
                %293 = vst [vmem:[%s207 + $0xa8] sm:$0xf] %v292
                %v294 = vld [vmem:[%s206 + $0x10c] sm:$0xf]
                %295 = vst [vmem:[%s207 + $0xac] sm:$0xf] %v294
                %v296 = vld [vmem:[%s206 + $0x110] sm:$0xf]
                %297 = vst [vmem:[%s207 + $0xb0] sm:$0xf] %v296
                %v298 = vld [vmem:[%s206 + $0x114] sm:$0xf]
                %299 = vst [vmem:[%s207 + $0xb4] sm:$0xf] %v298
                %v300 = vld [vmem:[%s206 + $0x118] sm:$0xf]
                %301 = vst [vmem:[%s207 + $0xb8] sm:$0xf] %v300
                %v302 = vld [vmem:[%s206 + $0x11c] sm:$0xf]
                %303 = vst [vmem:[%s207 + $0xbc] sm:$0xf] %v302
              $region45: #{dense_block_forward.2} parent=39 // loop_footer
                %s205 = sadd.s32 1, %s201
              $region46: #{dense_block_forward.2} parent=39 // loop_footer_branch
                %200 = sbr.rel target = $region42
              $region47: #{dense_block_forward.2} parent=39 // loop_exit
                _
            $region40: #{dense_block_forward.2} parent=31 // pred_fallthru
              _
          $region32: #{dense_block_forward.2} parent=27 // pred_fallthru
            _
          %419 = vnop
        $region28: #{dense_block_forward.2} parent=23 // pred_fallthru
          _
        // Predicated region
        $region66: #{dense_block_forward.2} parent=23 // pred_check
          %p420 = pneg %p57
        $region67: #{dense_block_forward.2} parent=23 // pred_check_branch
          %422 = sbr.rel (%p420) target = $region69
        $region68: #{dense_block_forward.2} parent=23 // pred_region
          %s423 = sand.u32 %s47, 1
          %s424 = sand.u32 %s47, 1
          %s425 = smul.addr %s424, 192
          %s426 = scalar_lea.vmem [#allocation3], %s425
          %s427 = smul.u32 8, %s11
          %s428 = smul.addr %s427, 3
          %s429 = smul.addr %s428, 4
          %s430 = scalar_lea.vmem %s1, %s429
          // Predicated region
          $region70: #{dense_block_forward.2} parent=68 // pred_check
            _
          $region71: #{dense_block_forward.2} parent=68 // pred_check_branch
            %432 = sbr.rel (0) target = $region73
          $region72: #{dense_block_forward.2} parent=68 // pred_region
            // Predicated region
            $region74: #{dense_block_forward.2} parent=72 // pred_check
              _
            $region75: #{dense_block_forward.2} parent=72 // pred_check_branch
              %434 = sbr.rel target = $region77
            $region76: #{dense_block_forward.2} parent=72 // pred_region
              // Predicated region
              $region89: #{dense_block_forward.2} parent=76 // pred_check
                _
              $region90: #{dense_block_forward.2} parent=76 // pred_check_branch
                %543 = sbr.rel (0) target = $region92
              $region91: #{dense_block_forward.2} parent=76 // pred_region
                loop: start=0, step=1, limit=1
                $region93: #{dense_block_forward.2} parent=91 // loop_pre_header
                  _
                $region94: #{dense_block_forward.2} parent=91 // loop_header
                  %s545 = sphi 0, %s549
                  %p546 = scmp.ge.s32.totalorder %s545, 1
                  %s550 = sphi %s430, %s430
                  %s551 = sphi %s426, %s426
                $region95: #{dense_block_forward.2} parent=91 // loop_header_branch
                  %548 = sbr.rel (%p546) target = $region99
                $region96: #{dense_block_forward.2} parent=91 // loop_body
                  _
                $region97: #{dense_block_forward.2} parent=91 // loop_footer
                  %s549 = sadd.s32 1, %s545
                $region98: #{dense_block_forward.2} parent=91 // loop_footer_branch
                  %544 = sbr.rel target = $region94
                $region99: #{dense_block_forward.2} parent=91 // loop_exit
                  _
                loop: start=0, step=1, limit=1
                $region100: #{dense_block_forward.2} parent=91 // loop_pre_header
                  _
                $region101: #{dense_block_forward.2} parent=91 // loop_header
                  %s554 = sphi 0, %s558
                  %p555 = scmp.ge.s32.totalorder %s554, 1
                  %s559 = sphi %s430, %s430
                  %s560 = sphi %s426, %s426
                $region102: #{dense_block_forward.2} parent=91 // loop_header_branch
                  %557 = sbr.rel (%p555) target = $region106
                $region103: #{dense_block_forward.2} parent=91 // loop_body
                  %v561 = vld [vmem:[%s559] sm:$0xf]
                  %562 = vst [vmem:[%s560] sm:$0xf] %v561
                  %v563 = vld [vmem:[%s559 + $0x4] sm:$0xf]
                  %564 = vst [vmem:[%s560 + $0x4] sm:$0xf] %v563
                  %v565 = vld [vmem:[%s559 + $0x8] sm:$0xf]
                  %566 = vst [vmem:[%s560 + $0x8] sm:$0xf] %v565
                  %v567 = vld [vmem:[%s559 + $0xc] sm:$0xf]
                  %568 = vst [vmem:[%s560 + $0xc] sm:$0xf] %v567
                  %v569 = vld [vmem:[%s559 + $0x10] sm:$0xf]
                  %570 = vst [vmem:[%s560 + $0x10] sm:$0xf] %v569
                  %v571 = vld [vmem:[%s559 + $0x14] sm:$0xf]
                  %572 = vst [vmem:[%s560 + $0x14] sm:$0xf] %v571
                  %v573 = vld [vmem:[%s559 + $0x18] sm:$0xf]
                  %574 = vst [vmem:[%s560 + $0x18] sm:$0xf] %v573
                  %v575 = vld [vmem:[%s559 + $0x1c] sm:$0xf]
                  %576 = vst [vmem:[%s560 + $0x1c] sm:$0xf] %v575
                  %v577 = vld [vmem:[%s559 + $0x20] sm:$0xf]
                  %578 = vst [vmem:[%s560 + $0x20] sm:$0xf] %v577
                  %v579 = vld [vmem:[%s559 + $0x24] sm:$0xf]
                  %580 = vst [vmem:[%s560 + $0x24] sm:$0xf] %v579
                  %v581 = vld [vmem:[%s559 + $0x28] sm:$0xf]
                  %582 = vst [vmem:[%s560 + $0x28] sm:$0xf] %v581
                  %v583 = vld [vmem:[%s559 + $0x2c] sm:$0xf]
                  %584 = vst [vmem:[%s560 + $0x2c] sm:$0xf] %v583
                  %v585 = vld [vmem:[%s559 + $0x30] sm:$0xf]
                  %586 = vst [vmem:[%s560 + $0x30] sm:$0xf] %v585
                  %v587 = vld [vmem:[%s559 + $0x34] sm:$0xf]
                  %588 = vst [vmem:[%s560 + $0x34] sm:$0xf] %v587
                  %v589 = vld [vmem:[%s559 + $0x38] sm:$0xf]
                  %590 = vst [vmem:[%s560 + $0x38] sm:$0xf] %v589
                  %v591 = vld [vmem:[%s559 + $0x3c] sm:$0xf]
                  %592 = vst [vmem:[%s560 + $0x3c] sm:$0xf] %v591
                  %v593 = vld [vmem:[%s559 + $0x40] sm:$0xf]
                  %594 = vst [vmem:[%s560 + $0x40] sm:$0xf] %v593
                  %v595 = vld [vmem:[%s559 + $0x44] sm:$0xf]
                  %596 = vst [vmem:[%s560 + $0x44] sm:$0xf] %v595
                  %v597 = vld [vmem:[%s559 + $0x48] sm:$0xf]
                  %598 = vst [vmem:[%s560 + $0x48] sm:$0xf] %v597
                  %v599 = vld [vmem:[%s559 + $0x4c] sm:$0xf]
                  %600 = vst [vmem:[%s560 + $0x4c] sm:$0xf] %v599
                  %v601 = vld [vmem:[%s559 + $0x50] sm:$0xf]
                  %602 = vst [vmem:[%s560 + $0x50] sm:$0xf] %v601
                  %v603 = vld [vmem:[%s559 + $0x54] sm:$0xf]
                  %604 = vst [vmem:[%s560 + $0x54] sm:$0xf] %v603
                  %v605 = vld [vmem:[%s559 + $0x58] sm:$0xf]
                  %606 = vst [vmem:[%s560 + $0x58] sm:$0xf] %v605
                  %v607 = vld [vmem:[%s559 + $0x5c] sm:$0xf]
                  %608 = vst [vmem:[%s560 + $0x5c] sm:$0xf] %v607
                  %v609 = vld [vmem:[%s559 + $0xc0] sm:$0xf]
                  %610 = vst [vmem:[%s560 + $0x60] sm:$0xf] %v609
                  %v611 = vld [vmem:[%s559 + $0xc4] sm:$0xf]
                  %612 = vst [vmem:[%s560 + $0x64] sm:$0xf] %v611
                  %v613 = vld [vmem:[%s559 + $0xc8] sm:$0xf]
                  %614 = vst [vmem:[%s560 + $0x68] sm:$0xf] %v613
                  %v615 = vld [vmem:[%s559 + $0xcc] sm:$0xf]
                  %616 = vst [vmem:[%s560 + $0x6c] sm:$0xf] %v615
                  %v617 = vld [vmem:[%s559 + $0xd0] sm:$0xf]
                  %618 = vst [vmem:[%s560 + $0x70] sm:$0xf] %v617
                  %v619 = vld [vmem:[%s559 + $0xd4] sm:$0xf]
                  %620 = vst [vmem:[%s560 + $0x74] sm:$0xf] %v619
                  %v621 = vld [vmem:[%s559 + $0xd8] sm:$0xf]
                  %622 = vst [vmem:[%s560 + $0x78] sm:$0xf] %v621
                  %v623 = vld [vmem:[%s559 + $0xdc] sm:$0xf]
                  %624 = vst [vmem:[%s560 + $0x7c] sm:$0xf] %v623
                  %v625 = vld [vmem:[%s559 + $0xe0] sm:$0xf]
                  %626 = vst [vmem:[%s560 + $0x80] sm:$0xf] %v625
                  %v627 = vld [vmem:[%s559 + $0xe4] sm:$0xf]
                  %628 = vst [vmem:[%s560 + $0x84] sm:$0xf] %v627
                  %v629 = vld [vmem:[%s559 + $0xe8] sm:$0xf]
                  %630 = vst [vmem:[%s560 + $0x88] sm:$0xf] %v629
                  %v631 = vld [vmem:[%s559 + $0xec] sm:$0xf]
                  %632 = vst [vmem:[%s560 + $0x8c] sm:$0xf] %v631
                  %v633 = vld [vmem:[%s559 + $0xf0] sm:$0xf]
                  %634 = vst [vmem:[%s560 + $0x90] sm:$0xf] %v633
                  %v635 = vld [vmem:[%s559 + $0xf4] sm:$0xf]
                  %636 = vst [vmem:[%s560 + $0x94] sm:$0xf] %v635
                  %v637 = vld [vmem:[%s559 + $0xf8] sm:$0xf]
                  %638 = vst [vmem:[%s560 + $0x98] sm:$0xf] %v637
                  %v639 = vld [vmem:[%s559 + $0xfc] sm:$0xf]
                  %640 = vst [vmem:[%s560 + $0x9c] sm:$0xf] %v639
                  %v641 = vld [vmem:[%s559 + $0x100] sm:$0xf]
                  %642 = vst [vmem:[%s560 + $0xa0] sm:$0xf] %v641
                  %v643 = vld [vmem:[%s559 + $0x104] sm:$0xf]
                  %644 = vst [vmem:[%s560 + $0xa4] sm:$0xf] %v643
                  %v645 = vld [vmem:[%s559 + $0x108] sm:$0xf]
                  %646 = vst [vmem:[%s560 + $0xa8] sm:$0xf] %v645
                  %v647 = vld [vmem:[%s559 + $0x10c] sm:$0xf]
                  %648 = vst [vmem:[%s560 + $0xac] sm:$0xf] %v647
                  %v649 = vld [vmem:[%s559 + $0x110] sm:$0xf]
                  %650 = vst [vmem:[%s560 + $0xb0] sm:$0xf] %v649
                  %v651 = vld [vmem:[%s559 + $0x114] sm:$0xf]
                  %652 = vst [vmem:[%s560 + $0xb4] sm:$0xf] %v651
                  %v653 = vld [vmem:[%s559 + $0x118] sm:$0xf]
                  %654 = vst [vmem:[%s560 + $0xb8] sm:$0xf] %v653
                  %v655 = vld [vmem:[%s559 + $0x11c] sm:$0xf]
                  %656 = vst [vmem:[%s560 + $0xbc] sm:$0xf] %v655
                $region104: #{dense_block_forward.2} parent=91 // loop_footer
                  %s558 = sadd.s32 1, %s554
                $region105: #{dense_block_forward.2} parent=91 // loop_footer_branch
                  %553 = sbr.rel target = $region101
                $region106: #{dense_block_forward.2} parent=91 // loop_exit
                  _
              $region92: #{dense_block_forward.2} parent=76 // pred_fallthru
                _
            $region77: #{dense_block_forward.2} parent=72 // pred_fallthru
              _
            // Predicated region
            $region78: #{dense_block_forward.2} parent=72 // pred_check
              _
            $region79: #{dense_block_forward.2} parent=72 // pred_check_branch
              %436 = sbr.rel (0) target = $region81
            $region80: #{dense_block_forward.2} parent=72 // pred_region
              loop: start=0, step=1, limit=1
              $region82: #{dense_block_forward.2} parent=80 // loop_pre_header
                _
              $region83: #{dense_block_forward.2} parent=80 // loop_header
                %s439 = sphi 0, %s443
                %p440 = scmp.ge.s32.totalorder %s439, 1
                %s444 = sphi %s430, %s430
                %s445 = sphi %s426, %s426
              $region84: #{dense_block_forward.2} parent=80 // loop_header_branch
                %442 = sbr.rel (%p440) target = $region88
              $region85: #{dense_block_forward.2} parent=80 // loop_body
                %v446 = vld [vmem:[%s444] sm:$0xf]
                %447 = vst [vmem:[%s445] sm:$0xf] %v446
                %v448 = vld [vmem:[%s444 + $0x4] sm:$0xf]
                %449 = vst [vmem:[%s445 + $0x4] sm:$0xf] %v448
                %v450 = vld [vmem:[%s444 + $0x8] sm:$0xf]
                %451 = vst [vmem:[%s445 + $0x8] sm:$0xf] %v450
                %v452 = vld [vmem:[%s444 + $0xc] sm:$0xf]
                %453 = vst [vmem:[%s445 + $0xc] sm:$0xf] %v452
                %v454 = vld [vmem:[%s444 + $0x10] sm:$0xf]
                %455 = vst [vmem:[%s445 + $0x10] sm:$0xf] %v454
                %v456 = vld [vmem:[%s444 + $0x14] sm:$0xf]
                %457 = vst [vmem:[%s445 + $0x14] sm:$0xf] %v456
                %v458 = vld [vmem:[%s444 + $0x18] sm:$0xf]
                %459 = vst [vmem:[%s445 + $0x18] sm:$0xf] %v458
                %v460 = vld [vmem:[%s444 + $0x1c] sm:$0xf]
                %461 = vst [vmem:[%s445 + $0x1c] sm:$0xf] %v460
                %v462 = vld [vmem:[%s444 + $0x20] sm:$0xf]
                %463 = vst [vmem:[%s445 + $0x20] sm:$0xf] %v462
                %v464 = vld [vmem:[%s444 + $0x24] sm:$0xf]
                %465 = vst [vmem:[%s445 + $0x24] sm:$0xf] %v464
                %v466 = vld [vmem:[%s444 + $0x28] sm:$0xf]
                %467 = vst [vmem:[%s445 + $0x28] sm:$0xf] %v466
                %v468 = vld [vmem:[%s444 + $0x2c] sm:$0xf]
                %469 = vst [vmem:[%s445 + $0x2c] sm:$0xf] %v468
                %v470 = vld [vmem:[%s444 + $0x30] sm:$0xf]
                %471 = vst [vmem:[%s445 + $0x30] sm:$0xf] %v470
                %v472 = vld [vmem:[%s444 + $0x34] sm:$0xf]
                %473 = vst [vmem:[%s445 + $0x34] sm:$0xf] %v472
                %v474 = vld [vmem:[%s444 + $0x38] sm:$0xf]
                %475 = vst [vmem:[%s445 + $0x38] sm:$0xf] %v474
                %v476 = vld [vmem:[%s444 + $0x3c] sm:$0xf]
                %477 = vst [vmem:[%s445 + $0x3c] sm:$0xf] %v476
                %v478 = vld [vmem:[%s444 + $0x40] sm:$0xf]
                %479 = vst [vmem:[%s445 + $0x40] sm:$0xf] %v478
                %v480 = vld [vmem:[%s444 + $0x44] sm:$0xf]
                %481 = vst [vmem:[%s445 + $0x44] sm:$0xf] %v480
                %v482 = vld [vmem:[%s444 + $0x48] sm:$0xf]
                %483 = vst [vmem:[%s445 + $0x48] sm:$0xf] %v482
                %v484 = vld [vmem:[%s444 + $0x4c] sm:$0xf]
                %485 = vst [vmem:[%s445 + $0x4c] sm:$0xf] %v484
                %v486 = vld [vmem:[%s444 + $0x50] sm:$0xf]
                %487 = vst [vmem:[%s445 + $0x50] sm:$0xf] %v486
                %v488 = vld [vmem:[%s444 + $0x54] sm:$0xf]
                %489 = vst [vmem:[%s445 + $0x54] sm:$0xf] %v488
                %v490 = vld [vmem:[%s444 + $0x58] sm:$0xf]
                %491 = vst [vmem:[%s445 + $0x58] sm:$0xf] %v490
                %v492 = vld [vmem:[%s444 + $0x5c] sm:$0xf]
                %493 = vst [vmem:[%s445 + $0x5c] sm:$0xf] %v492
                %v494 = vld [vmem:[%s444 + $0xc0] sm:$0xf]
                %495 = vst [vmem:[%s445 + $0x60] sm:$0xf] %v494
                %v496 = vld [vmem:[%s444 + $0xc4] sm:$0xf]
                %497 = vst [vmem:[%s445 + $0x64] sm:$0xf] %v496
                %v498 = vld [vmem:[%s444 + $0xc8] sm:$0xf]
                %499 = vst [vmem:[%s445 + $0x68] sm:$0xf] %v498
                %v500 = vld [vmem:[%s444 + $0xcc] sm:$0xf]
                %501 = vst [vmem:[%s445 + $0x6c] sm:$0xf] %v500
                %v502 = vld [vmem:[%s444 + $0xd0] sm:$0xf]
                %503 = vst [vmem:[%s445 + $0x70] sm:$0xf] %v502
                %v504 = vld [vmem:[%s444 + $0xd4] sm:$0xf]
                %505 = vst [vmem:[%s445 + $0x74] sm:$0xf] %v504
                %v506 = vld [vmem:[%s444 + $0xd8] sm:$0xf]
                %507 = vst [vmem:[%s445 + $0x78] sm:$0xf] %v506
                %v508 = vld [vmem:[%s444 + $0xdc] sm:$0xf]
                %509 = vst [vmem:[%s445 + $0x7c] sm:$0xf] %v508
                %v510 = vld [vmem:[%s444 + $0xe0] sm:$0xf]
                %511 = vst [vmem:[%s445 + $0x80] sm:$0xf] %v510
                %v512 = vld [vmem:[%s444 + $0xe4] sm:$0xf]
                %513 = vst [vmem:[%s445 + $0x84] sm:$0xf] %v512
                %v514 = vld [vmem:[%s444 + $0xe8] sm:$0xf]
                %515 = vst [vmem:[%s445 + $0x88] sm:$0xf] %v514
                %v516 = vld [vmem:[%s444 + $0xec] sm:$0xf]
                %517 = vst [vmem:[%s445 + $0x8c] sm:$0xf] %v516
                %v518 = vld [vmem:[%s444 + $0xf0] sm:$0xf]
                %519 = vst [vmem:[%s445 + $0x90] sm:$0xf] %v518
                %v520 = vld [vmem:[%s444 + $0xf4] sm:$0xf]
                %521 = vst [vmem:[%s445 + $0x94] sm:$0xf] %v520
                %v522 = vld [vmem:[%s444 + $0xf8] sm:$0xf]
                %523 = vst [vmem:[%s445 + $0x98] sm:$0xf] %v522
                %v524 = vld [vmem:[%s444 + $0xfc] sm:$0xf]
                %525 = vst [vmem:[%s445 + $0x9c] sm:$0xf] %v524
                %v526 = vld [vmem:[%s444 + $0x100] sm:$0xf]
                %527 = vst [vmem:[%s445 + $0xa0] sm:$0xf] %v526
                %v528 = vld [vmem:[%s444 + $0x104] sm:$0xf]
                %529 = vst [vmem:[%s445 + $0xa4] sm:$0xf] %v528
                %v530 = vld [vmem:[%s444 + $0x108] sm:$0xf]
                %531 = vst [vmem:[%s445 + $0xa8] sm:$0xf] %v530
                %v532 = vld [vmem:[%s444 + $0x10c] sm:$0xf]
                %533 = vst [vmem:[%s445 + $0xac] sm:$0xf] %v532
                %v534 = vld [vmem:[%s444 + $0x110] sm:$0xf]
                %535 = vst [vmem:[%s445 + $0xb0] sm:$0xf] %v534
                %v536 = vld [vmem:[%s444 + $0x114] sm:$0xf]
                %537 = vst [vmem:[%s445 + $0xb4] sm:$0xf] %v536
                %v538 = vld [vmem:[%s444 + $0x118] sm:$0xf]
                %539 = vst [vmem:[%s445 + $0xb8] sm:$0xf] %v538
                %v540 = vld [vmem:[%s444 + $0x11c] sm:$0xf]
                %541 = vst [vmem:[%s445 + $0xbc] sm:$0xf] %v540
              $region86: #{dense_block_forward.2} parent=80 // loop_footer
                %s443 = sadd.s32 1, %s439
              $region87: #{dense_block_forward.2} parent=80 // loop_footer_branch
                %438 = sbr.rel target = $region83
              $region88: #{dense_block_forward.2} parent=80 // loop_exit
                _
            $region81: #{dense_block_forward.2} parent=72 // pred_fallthru
              _
          $region73: #{dense_block_forward.2} parent=68 // pred_fallthru
            _
          %657 = vnop
        $region69: #{dense_block_forward.2} parent=23 // pred_fallthru
          _
        // Predicated region
        $region107: #{dense_block_forward.2} parent=23 // pred_check
          %p658 = pneg %p83
        $region108: #{dense_block_forward.2} parent=23 // pred_check_branch
          %660 = sbr.rel (%p658) target = $region110
        $region109: #{dense_block_forward.2} parent=23 // pred_region
          %s661 = sand.u32 %s73, 1
          %s662 = sand.u32 %s73, 1
          %s663 = smul.addr %s662, 192
          %s664 = scalar_lea.vmem [#allocation4], %s663
          %s665 = smul.u32 8, %s11
          %s666 = smul.addr %s665, 3
          %s667 = smul.addr %s666, 4
          %s668 = scalar_lea.vmem %s2, %s667
          // Predicated region
          $region111: #{dense_block_forward.2} parent=109 // pred_check
            _
          $region112: #{dense_block_forward.2} parent=109 // pred_check_branch
            %670 = sbr.rel (0) target = $region114
          $region113: #{dense_block_forward.2} parent=109 // pred_region
            // Predicated region
            $region115: #{dense_block_forward.2} parent=113 // pred_check
              _
            $region116: #{dense_block_forward.2} parent=113 // pred_check_branch
              %672 = sbr.rel target = $region118
            $region117: #{dense_block_forward.2} parent=113 // pred_region
              // Predicated region
              $region130: #{dense_block_forward.2} parent=117 // pred_check
                _
              $region131: #{dense_block_forward.2} parent=117 // pred_check_branch
                %781 = sbr.rel (0) target = $region133
              $region132: #{dense_block_forward.2} parent=117 // pred_region
                loop: start=0, step=1, limit=1
                $region134: #{dense_block_forward.2} parent=132 // loop_pre_header
                  _
                $region135: #{dense_block_forward.2} parent=132 // loop_header
                  %s783 = sphi 0, %s787
                  %p784 = scmp.ge.s32.totalorder %s783, 1
                  %s788 = sphi %s668, %s668
                  %s789 = sphi %s664, %s664
                $region136: #{dense_block_forward.2} parent=132 // loop_header_branch
                  %786 = sbr.rel (%p784) target = $region140
                $region137: #{dense_block_forward.2} parent=132 // loop_body
                  _
                $region138: #{dense_block_forward.2} parent=132 // loop_footer
                  %s787 = sadd.s32 1, %s783
                $region139: #{dense_block_forward.2} parent=132 // loop_footer_branch
                  %782 = sbr.rel target = $region135
                $region140: #{dense_block_forward.2} parent=132 // loop_exit
                  _
                loop: start=0, step=1, limit=1
                $region141: #{dense_block_forward.2} parent=132 // loop_pre_header
                  _
                $region142: #{dense_block_forward.2} parent=132 // loop_header
                  %s792 = sphi 0, %s796
                  %p793 = scmp.ge.s32.totalorder %s792, 1
                  %s797 = sphi %s668, %s668
                  %s798 = sphi %s664, %s664
                $region143: #{dense_block_forward.2} parent=132 // loop_header_branch
                  %795 = sbr.rel (%p793) target = $region147
                $region144: #{dense_block_forward.2} parent=132 // loop_body
                  %v799 = vld [vmem:[%s797] sm:$0xf]
                  %800 = vst [vmem:[%s798] sm:$0xf] %v799
                  %v801 = vld [vmem:[%s797 + $0x4] sm:$0xf]
                  %802 = vst [vmem:[%s798 + $0x4] sm:$0xf] %v801
                  %v803 = vld [vmem:[%s797 + $0x8] sm:$0xf]
                  %804 = vst [vmem:[%s798 + $0x8] sm:$0xf] %v803
                  %v805 = vld [vmem:[%s797 + $0xc] sm:$0xf]
                  %806 = vst [vmem:[%s798 + $0xc] sm:$0xf] %v805
                  %v807 = vld [vmem:[%s797 + $0x10] sm:$0xf]
                  %808 = vst [vmem:[%s798 + $0x10] sm:$0xf] %v807
                  %v809 = vld [vmem:[%s797 + $0x14] sm:$0xf]
                  %810 = vst [vmem:[%s798 + $0x14] sm:$0xf] %v809
                  %v811 = vld [vmem:[%s797 + $0x18] sm:$0xf]
                  %812 = vst [vmem:[%s798 + $0x18] sm:$0xf] %v811
                  %v813 = vld [vmem:[%s797 + $0x1c] sm:$0xf]
                  %814 = vst [vmem:[%s798 + $0x1c] sm:$0xf] %v813
                  %v815 = vld [vmem:[%s797 + $0x20] sm:$0xf]
                  %816 = vst [vmem:[%s798 + $0x20] sm:$0xf] %v815
                  %v817 = vld [vmem:[%s797 + $0x24] sm:$0xf]
                  %818 = vst [vmem:[%s798 + $0x24] sm:$0xf] %v817
                  %v819 = vld [vmem:[%s797 + $0x28] sm:$0xf]
                  %820 = vst [vmem:[%s798 + $0x28] sm:$0xf] %v819
                  %v821 = vld [vmem:[%s797 + $0x2c] sm:$0xf]
                  %822 = vst [vmem:[%s798 + $0x2c] sm:$0xf] %v821
                  %v823 = vld [vmem:[%s797 + $0x30] sm:$0xf]
                  %824 = vst [vmem:[%s798 + $0x30] sm:$0xf] %v823
                  %v825 = vld [vmem:[%s797 + $0x34] sm:$0xf]
                  %826 = vst [vmem:[%s798 + $0x34] sm:$0xf] %v825
                  %v827 = vld [vmem:[%s797 + $0x38] sm:$0xf]
                  %828 = vst [vmem:[%s798 + $0x38] sm:$0xf] %v827
                  %v829 = vld [vmem:[%s797 + $0x3c] sm:$0xf]
                  %830 = vst [vmem:[%s798 + $0x3c] sm:$0xf] %v829
                  %v831 = vld [vmem:[%s797 + $0x40] sm:$0xf]
                  %832 = vst [vmem:[%s798 + $0x40] sm:$0xf] %v831
                  %v833 = vld [vmem:[%s797 + $0x44] sm:$0xf]
                  %834 = vst [vmem:[%s798 + $0x44] sm:$0xf] %v833
                  %v835 = vld [vmem:[%s797 + $0x48] sm:$0xf]
                  %836 = vst [vmem:[%s798 + $0x48] sm:$0xf] %v835
                  %v837 = vld [vmem:[%s797 + $0x4c] sm:$0xf]
                  %838 = vst [vmem:[%s798 + $0x4c] sm:$0xf] %v837
                  %v839 = vld [vmem:[%s797 + $0x50] sm:$0xf]
                  %840 = vst [vmem:[%s798 + $0x50] sm:$0xf] %v839
                  %v841 = vld [vmem:[%s797 + $0x54] sm:$0xf]
                  %842 = vst [vmem:[%s798 + $0x54] sm:$0xf] %v841
                  %v843 = vld [vmem:[%s797 + $0x58] sm:$0xf]
                  %844 = vst [vmem:[%s798 + $0x58] sm:$0xf] %v843
                  %v845 = vld [vmem:[%s797 + $0x5c] sm:$0xf]
                  %846 = vst [vmem:[%s798 + $0x5c] sm:$0xf] %v845
                  %v847 = vld [vmem:[%s797 + $0xc0] sm:$0xf]
                  %848 = vst [vmem:[%s798 + $0x60] sm:$0xf] %v847
                  %v849 = vld [vmem:[%s797 + $0xc4] sm:$0xf]
                  %850 = vst [vmem:[%s798 + $0x64] sm:$0xf] %v849
                  %v851 = vld [vmem:[%s797 + $0xc8] sm:$0xf]
                  %852 = vst [vmem:[%s798 + $0x68] sm:$0xf] %v851
                  %v853 = vld [vmem:[%s797 + $0xcc] sm:$0xf]
                  %854 = vst [vmem:[%s798 + $0x6c] sm:$0xf] %v853
                  %v855 = vld [vmem:[%s797 + $0xd0] sm:$0xf]
                  %856 = vst [vmem:[%s798 + $0x70] sm:$0xf] %v855
                  %v857 = vld [vmem:[%s797 + $0xd4] sm:$0xf]
                  %858 = vst [vmem:[%s798 + $0x74] sm:$0xf] %v857
                  %v859 = vld [vmem:[%s797 + $0xd8] sm:$0xf]
                  %860 = vst [vmem:[%s798 + $0x78] sm:$0xf] %v859
                  %v861 = vld [vmem:[%s797 + $0xdc] sm:$0xf]
                  %862 = vst [vmem:[%s798 + $0x7c] sm:$0xf] %v861
                  %v863 = vld [vmem:[%s797 + $0xe0] sm:$0xf]
                  %864 = vst [vmem:[%s798 + $0x80] sm:$0xf] %v863
                  %v865 = vld [vmem:[%s797 + $0xe4] sm:$0xf]
                  %866 = vst [vmem:[%s798 + $0x84] sm:$0xf] %v865
                  %v867 = vld [vmem:[%s797 + $0xe8] sm:$0xf]
                  %868 = vst [vmem:[%s798 + $0x88] sm:$0xf] %v867
                  %v869 = vld [vmem:[%s797 + $0xec] sm:$0xf]
                  %870 = vst [vmem:[%s798 + $0x8c] sm:$0xf] %v869
                  %v871 = vld [vmem:[%s797 + $0xf0] sm:$0xf]
                  %872 = vst [vmem:[%s798 + $0x90] sm:$0xf] %v871
                  %v873 = vld [vmem:[%s797 + $0xf4] sm:$0xf]
                  %874 = vst [vmem:[%s798 + $0x94] sm:$0xf] %v873
                  %v875 = vld [vmem:[%s797 + $0xf8] sm:$0xf]
                  %876 = vst [vmem:[%s798 + $0x98] sm:$0xf] %v875
                  %v877 = vld [vmem:[%s797 + $0xfc] sm:$0xf]
                  %878 = vst [vmem:[%s798 + $0x9c] sm:$0xf] %v877
                  %v879 = vld [vmem:[%s797 + $0x100] sm:$0xf]
                  %880 = vst [vmem:[%s798 + $0xa0] sm:$0xf] %v879
                  %v881 = vld [vmem:[%s797 + $0x104] sm:$0xf]
                  %882 = vst [vmem:[%s798 + $0xa4] sm:$0xf] %v881
                  %v883 = vld [vmem:[%s797 + $0x108] sm:$0xf]
                  %884 = vst [vmem:[%s798 + $0xa8] sm:$0xf] %v883
                  %v885 = vld [vmem:[%s797 + $0x10c] sm:$0xf]
                  %886 = vst [vmem:[%s798 + $0xac] sm:$0xf] %v885
                  %v887 = vld [vmem:[%s797 + $0x110] sm:$0xf]
                  %888 = vst [vmem:[%s798 + $0xb0] sm:$0xf] %v887
                  %v889 = vld [vmem:[%s797 + $0x114] sm:$0xf]
                  %890 = vst [vmem:[%s798 + $0xb4] sm:$0xf] %v889
                  %v891 = vld [vmem:[%s797 + $0x118] sm:$0xf]
                  %892 = vst [vmem:[%s798 + $0xb8] sm:$0xf] %v891
                  %v893 = vld [vmem:[%s797 + $0x11c] sm:$0xf]
                  %894 = vst [vmem:[%s798 + $0xbc] sm:$0xf] %v893
                $region145: #{dense_block_forward.2} parent=132 // loop_footer
                  %s796 = sadd.s32 1, %s792
                $region146: #{dense_block_forward.2} parent=132 // loop_footer_branch
                  %791 = sbr.rel target = $region142
                $region147: #{dense_block_forward.2} parent=132 // loop_exit
                  _
              $region133: #{dense_block_forward.2} parent=117 // pred_fallthru
                _
            $region118: #{dense_block_forward.2} parent=113 // pred_fallthru
              _
            // Predicated region
            $region119: #{dense_block_forward.2} parent=113 // pred_check
              _
            $region120: #{dense_block_forward.2} parent=113 // pred_check_branch
              %674 = sbr.rel (0) target = $region122
            $region121: #{dense_block_forward.2} parent=113 // pred_region
              loop: start=0, step=1, limit=1
              $region123: #{dense_block_forward.2} parent=121 // loop_pre_header
                _
              $region124: #{dense_block_forward.2} parent=121 // loop_header
                %s677 = sphi 0, %s681
                %p678 = scmp.ge.s32.totalorder %s677, 1
                %s682 = sphi %s668, %s668
                %s683 = sphi %s664, %s664
              $region125: #{dense_block_forward.2} parent=121 // loop_header_branch
                %680 = sbr.rel (%p678) target = $region129
              $region126: #{dense_block_forward.2} parent=121 // loop_body
                %v684 = vld [vmem:[%s682] sm:$0xf]
                %685 = vst [vmem:[%s683] sm:$0xf] %v684
                %v686 = vld [vmem:[%s682 + $0x4] sm:$0xf]
                %687 = vst [vmem:[%s683 + $0x4] sm:$0xf] %v686
                %v688 = vld [vmem:[%s682 + $0x8] sm:$0xf]
                %689 = vst [vmem:[%s683 + $0x8] sm:$0xf] %v688
                %v690 = vld [vmem:[%s682 + $0xc] sm:$0xf]
                %691 = vst [vmem:[%s683 + $0xc] sm:$0xf] %v690
                %v692 = vld [vmem:[%s682 + $0x10] sm:$0xf]
                %693 = vst [vmem:[%s683 + $0x10] sm:$0xf] %v692
                %v694 = vld [vmem:[%s682 + $0x14] sm:$0xf]
                %695 = vst [vmem:[%s683 + $0x14] sm:$0xf] %v694
                %v696 = vld [vmem:[%s682 + $0x18] sm:$0xf]
                %697 = vst [vmem:[%s683 + $0x18] sm:$0xf] %v696
                %v698 = vld [vmem:[%s682 + $0x1c] sm:$0xf]
                %699 = vst [vmem:[%s683 + $0x1c] sm:$0xf] %v698
                %v700 = vld [vmem:[%s682 + $0x20] sm:$0xf]
                %701 = vst [vmem:[%s683 + $0x20] sm:$0xf] %v700
                %v702 = vld [vmem:[%s682 + $0x24] sm:$0xf]
                %703 = vst [vmem:[%s683 + $0x24] sm:$0xf] %v702
                %v704 = vld [vmem:[%s682 + $0x28] sm:$0xf]
                %705 = vst [vmem:[%s683 + $0x28] sm:$0xf] %v704
                %v706 = vld [vmem:[%s682 + $0x2c] sm:$0xf]
                %707 = vst [vmem:[%s683 + $0x2c] sm:$0xf] %v706
                %v708 = vld [vmem:[%s682 + $0x30] sm:$0xf]
                %709 = vst [vmem:[%s683 + $0x30] sm:$0xf] %v708
                %v710 = vld [vmem:[%s682 + $0x34] sm:$0xf]
                %711 = vst [vmem:[%s683 + $0x34] sm:$0xf] %v710
                %v712 = vld [vmem:[%s682 + $0x38] sm:$0xf]
                %713 = vst [vmem:[%s683 + $0x38] sm:$0xf] %v712
                %v714 = vld [vmem:[%s682 + $0x3c] sm:$0xf]
                %715 = vst [vmem:[%s683 + $0x3c] sm:$0xf] %v714
                %v716 = vld [vmem:[%s682 + $0x40] sm:$0xf]
                %717 = vst [vmem:[%s683 + $0x40] sm:$0xf] %v716
                %v718 = vld [vmem:[%s682 + $0x44] sm:$0xf]
                %719 = vst [vmem:[%s683 + $0x44] sm:$0xf] %v718
                %v720 = vld [vmem:[%s682 + $0x48] sm:$0xf]
                %721 = vst [vmem:[%s683 + $0x48] sm:$0xf] %v720
                %v722 = vld [vmem:[%s682 + $0x4c] sm:$0xf]
                %723 = vst [vmem:[%s683 + $0x4c] sm:$0xf] %v722
                %v724 = vld [vmem:[%s682 + $0x50] sm:$0xf]
                %725 = vst [vmem:[%s683 + $0x50] sm:$0xf] %v724
                %v726 = vld [vmem:[%s682 + $0x54] sm:$0xf]
                %727 = vst [vmem:[%s683 + $0x54] sm:$0xf] %v726
                %v728 = vld [vmem:[%s682 + $0x58] sm:$0xf]
                %729 = vst [vmem:[%s683 + $0x58] sm:$0xf] %v728
                %v730 = vld [vmem:[%s682 + $0x5c] sm:$0xf]
                %731 = vst [vmem:[%s683 + $0x5c] sm:$0xf] %v730
                %v732 = vld [vmem:[%s682 + $0xc0] sm:$0xf]
                %733 = vst [vmem:[%s683 + $0x60] sm:$0xf] %v732
                %v734 = vld [vmem:[%s682 + $0xc4] sm:$0xf]
                %735 = vst [vmem:[%s683 + $0x64] sm:$0xf] %v734
                %v736 = vld [vmem:[%s682 + $0xc8] sm:$0xf]
                %737 = vst [vmem:[%s683 + $0x68] sm:$0xf] %v736
                %v738 = vld [vmem:[%s682 + $0xcc] sm:$0xf]
                %739 = vst [vmem:[%s683 + $0x6c] sm:$0xf] %v738
                %v740 = vld [vmem:[%s682 + $0xd0] sm:$0xf]
                %741 = vst [vmem:[%s683 + $0x70] sm:$0xf] %v740
                %v742 = vld [vmem:[%s682 + $0xd4] sm:$0xf]
                %743 = vst [vmem:[%s683 + $0x74] sm:$0xf] %v742
                %v744 = vld [vmem:[%s682 + $0xd8] sm:$0xf]
                %745 = vst [vmem:[%s683 + $0x78] sm:$0xf] %v744
                %v746 = vld [vmem:[%s682 + $0xdc] sm:$0xf]
                %747 = vst [vmem:[%s683 + $0x7c] sm:$0xf] %v746
                %v748 = vld [vmem:[%s682 + $0xe0] sm:$0xf]
                %749 = vst [vmem:[%s683 + $0x80] sm:$0xf] %v748
                %v750 = vld [vmem:[%s682 + $0xe4] sm:$0xf]
                %751 = vst [vmem:[%s683 + $0x84] sm:$0xf] %v750
                %v752 = vld [vmem:[%s682 + $0xe8] sm:$0xf]
                %753 = vst [vmem:[%s683 + $0x88] sm:$0xf] %v752
                %v754 = vld [vmem:[%s682 + $0xec] sm:$0xf]
                %755 = vst [vmem:[%s683 + $0x8c] sm:$0xf] %v754
                %v756 = vld [vmem:[%s682 + $0xf0] sm:$0xf]
                %757 = vst [vmem:[%s683 + $0x90] sm:$0xf] %v756
                %v758 = vld [vmem:[%s682 + $0xf4] sm:$0xf]
                %759 = vst [vmem:[%s683 + $0x94] sm:$0xf] %v758
                %v760 = vld [vmem:[%s682 + $0xf8] sm:$0xf]
                %761 = vst [vmem:[%s683 + $0x98] sm:$0xf] %v760
                %v762 = vld [vmem:[%s682 + $0xfc] sm:$0xf]
                %763 = vst [vmem:[%s683 + $0x9c] sm:$0xf] %v762
                %v764 = vld [vmem:[%s682 + $0x100] sm:$0xf]
                %765 = vst [vmem:[%s683 + $0xa0] sm:$0xf] %v764
                %v766 = vld [vmem:[%s682 + $0x104] sm:$0xf]
                %767 = vst [vmem:[%s683 + $0xa4] sm:$0xf] %v766
                %v768 = vld [vmem:[%s682 + $0x108] sm:$0xf]
                %769 = vst [vmem:[%s683 + $0xa8] sm:$0xf] %v768
                %v770 = vld [vmem:[%s682 + $0x10c] sm:$0xf]
                %771 = vst [vmem:[%s683 + $0xac] sm:$0xf] %v770
                %v772 = vld [vmem:[%s682 + $0x110] sm:$0xf]
                %773 = vst [vmem:[%s683 + $0xb0] sm:$0xf] %v772
                %v774 = vld [vmem:[%s682 + $0x114] sm:$0xf]
                %775 = vst [vmem:[%s683 + $0xb4] sm:$0xf] %v774
                %v776 = vld [vmem:[%s682 + $0x118] sm:$0xf]
                %777 = vst [vmem:[%s683 + $0xb8] sm:$0xf] %v776
                %v778 = vld [vmem:[%s682 + $0x11c] sm:$0xf]
                %779 = vst [vmem:[%s683 + $0xbc] sm:$0xf] %v778
              $region127: #{dense_block_forward.2} parent=121 // loop_footer
                %s681 = sadd.s32 1, %s677
              $region128: #{dense_block_forward.2} parent=121 // loop_footer_branch
                %676 = sbr.rel target = $region124
              $region129: #{dense_block_forward.2} parent=121 // loop_exit
                _
            $region122: #{dense_block_forward.2} parent=113 // pred_fallthru
              _
          $region114: #{dense_block_forward.2} parent=109 // pred_fallthru
            _
          %895 = vnop
        $region110: #{dense_block_forward.2} parent=23 // pred_fallthru
          _
      $region24: #{dense_block_forward.2} parent=5 // pred_fallthru
        _
      %p896 = scmp.le.s32.totalorder 1, %s11
      %p897 = scmp.lt.s32.totalorder %s11, 3
      %p898 = pnand %p896, %p897
      %p899 = pneg %p898
      // Predicated region
      $region148: #{dense_block_forward.2} parent=5 // pred_check
        _
      $region149: #{dense_block_forward.2} parent=5 // pred_check_branch
        %901 = sbr.rel (%p898) target = $region151
      $region150: #{dense_block_forward.2} parent=5 // pred_region
        %s902 = ssub.s32 %s11, 1
        %s903 = sand.u32 %s24, 1
        %s904 = sand.u32 %s24, 1
        %s905 = smul.addr %s904, 192
        %s906 = scalar_lea.vmem [#allocation2], %s905
        // Predicated region
        $region152: #{dense_block_forward.2} parent=150 // pred_check
          %p907 = pneg %p37
        $region153: #{dense_block_forward.2} parent=150 // pred_check_branch
          %909 = sbr.rel (%p907) target = $region155
        $region154: #{dense_block_forward.2} parent=150 // pred_region
          _
        $region155: #{dense_block_forward.2} parent=150 // pred_fallthru
          _
        %s910 = sand.u32 %s50, 1
        %s911 = sand.u32 %s50, 1
        %s912 = smul.addr %s911, 192
        %s913 = scalar_lea.vmem [#allocation3], %s912
        // Predicated region
        $region156: #{dense_block_forward.2} parent=150 // pred_check
          %p914 = pneg %p63
        $region157: #{dense_block_forward.2} parent=150 // pred_check_branch
          %916 = sbr.rel (%p914) target = $region159
        $region158: #{dense_block_forward.2} parent=150 // pred_region
          _
        $region159: #{dense_block_forward.2} parent=150 // pred_fallthru
          _
        %s917 = sand.u32 %s76, 1
        %s918 = sand.u32 %s76, 1
        %s919 = smul.addr %s918, 192
        %s920 = scalar_lea.vmem [#allocation4], %s919
        // Predicated region
        $region160: #{dense_block_forward.2} parent=150 // pred_check
          %p921 = pneg %p89
        $region161: #{dense_block_forward.2} parent=150 // pred_check_branch
          %923 = sbr.rel (%p921) target = $region163
        $region162: #{dense_block_forward.2} parent=150 // pred_region
          _
        $region163: #{dense_block_forward.2} parent=150 // pred_fallthru
          _
        %s924 = sand.u32 %s24, 1
        %s925 = sand.u32 %s24, 1
        %s926 = smul.addr %s925, 192
        %s927 = scalar_lea.vmem [#allocation2], %s926
        %p928 = pneg %p37
        %p929 = pneg %p34
        %s930 = sand.u32 %s50, 1
        %s931 = sand.u32 %s50, 1
        %s932 = smul.addr %s931, 192
        %s933 = scalar_lea.vmem [#allocation3], %s932
        %p934 = pneg %p63
        %p935 = pneg %p60
        %s936 = sand.u32 %s76, 1
        %s937 = sand.u32 %s76, 1
        %s938 = smul.addr %s937, 192
        %s939 = scalar_lea.vmem [#allocation4], %s938
        %p940 = pneg %p89
        %p941 = pneg %p86
        %p942 = pneg %p110
        %p943 = pneg %p107
        %p944 = pneg %p131
        %p945 = pneg %p128
        %p946 = pneg %p157
        %p947 = pneg %p154
        %s948 = sand.u32 %s144, 1
        %s949 = sand.u32 %s144, 1
        %s950 = smul.addr %s949, 128
        %s951 = scalar_lea.vmem [#allocation5], %s950
        %s952 = smul.u32 8, %s16
        %s953 = smul.u32 8, %s16
        %s954 = smul.u32 8, %s16
        %s955 = smul.u32 8, %s16
        %v957 = vld [vmem:[%s906] sm:$0xf]
        %v958 = vld [vmem:[%s906 + $0x4] sm:$0xf]
        %v959 = vld [vmem:[%s906 + $0x8] sm:$0x1]
        %v960 = vld [vmem:[%s906 + $0xc] sm:$0xf]
        %v961 = vld [vmem:[%s906 + $0x10] sm:$0xf]
        %v962 = vld [vmem:[%s906 + $0x14] sm:$0x1]
        %v963 = vld [vmem:[%s906 + $0x18] sm:$0xf]
        %v964 = vld [vmem:[%s906 + $0x1c] sm:$0xf]
        %v965 = vld [vmem:[%s906 + $0x20] sm:$0x1]
        %v966 = vld [vmem:[%s906 + $0x24] sm:$0xf]
        %v967 = vld [vmem:[%s906 + $0x28] sm:$0xf]
        %v968 = vld [vmem:[%s906 + $0x2c] sm:$0x1]
        %v969 = vld [vmem:[%s906 + $0x30] sm:$0xf]
        %v970 = vld [vmem:[%s906 + $0x34] sm:$0xf]
        %v971 = vld [vmem:[%s906 + $0x38] sm:$0x1]
        %v972 = vld [vmem:[%s906 + $0x3c] sm:$0xf]
        %v973 = vld [vmem:[%s906 + $0x40] sm:$0xf]
        %v974 = vld [vmem:[%s906 + $0x44] sm:$0x1]
        %v975 = vld [vmem:[%s906 + $0x48] sm:$0xf]
        %v976 = vld [vmem:[%s906 + $0x4c] sm:$0xf]
        %v977 = vld [vmem:[%s906 + $0x50] sm:$0x1]
        %v978 = vld [vmem:[%s906 + $0x54] sm:$0xf]
        %v979 = vld [vmem:[%s906 + $0x58] sm:$0xf]
        %v980 = vld [vmem:[%s906 + $0x5c] sm:$0x1]
        %v981 = vld [vmem:[%s906 + $0x60] sm:$0xf]
        %v982 = vld [vmem:[%s906 + $0x64] sm:$0xf]
        %v983 = vld [vmem:[%s906 + $0x68] sm:$0x1]
        %v984 = vld [vmem:[%s906 + $0x6c] sm:$0xf]
        %v985 = vld [vmem:[%s906 + $0x70] sm:$0xf]
        %v986 = vld [vmem:[%s906 + $0x74] sm:$0x1]
        %v987 = vld [vmem:[%s906 + $0x78] sm:$0xf]
        %v988 = vld [vmem:[%s906 + $0x7c] sm:$0xf]
        %v989 = vld [vmem:[%s906 + $0x80] sm:$0x1]
        %v990 = vld [vmem:[%s906 + $0x84] sm:$0xf]
        %v991 = vld [vmem:[%s906 + $0x88] sm:$0xf]
        %v992 = vld [vmem:[%s906 + $0x8c] sm:$0x1]
        %v993 = vld [vmem:[%s906 + $0x90] sm:$0xf]
        %v994 = vld [vmem:[%s906 + $0x94] sm:$0xf]
        %v995 = vld [vmem:[%s906 + $0x98] sm:$0x1]
        %v996 = vld [vmem:[%s906 + $0x9c] sm:$0xf]
        %v997 = vld [vmem:[%s906 + $0xa0] sm:$0xf]
        %v998 = vld [vmem:[%s906 + $0xa4] sm:$0x1]
        %v999 = vld [vmem:[%s906 + $0xa8] sm:$0xf]
        %v1000 = vld [vmem:[%s906 + $0xac] sm:$0xf]
        %v1001 = vld [vmem:[%s906 + $0xb0] sm:$0x1]
        %v1002 = vld [vmem:[%s906 + $0xb4] sm:$0xf]
        %v1003 = vld [vmem:[%s906 + $0xb8] sm:$0xf]
        %v1004 = vld [vmem:[%s906 + $0xbc] sm:$0x1]
        %v1005 = vld [vmem:[%s913] sm:$0xf]
        %v1006 = vld [vmem:[%s913 + $0x4] sm:$0xf]
        %v1007 = vld [vmem:[%s913 + $0x8] sm:$0x1]
        %v1008 = vld [vmem:[%s913 + $0xc] sm:$0xf]
        %v1009 = vld [vmem:[%s913 + $0x10] sm:$0xf]
        %v1010 = vld [vmem:[%s913 + $0x14] sm:$0x1]
        %v1011 = vld [vmem:[%s913 + $0x18] sm:$0xf]
        %v1012 = vld [vmem:[%s913 + $0x1c] sm:$0xf]
        %v1013 = vld [vmem:[%s913 + $0x20] sm:$0x1]
        %v1014 = vld [vmem:[%s913 + $0x24] sm:$0xf]
        %v1015 = vld [vmem:[%s913 + $0x28] sm:$0xf]
        %v1016 = vld [vmem:[%s913 + $0x2c] sm:$0x1]
        %v1017 = vld [vmem:[%s913 + $0x30] sm:$0xf]
        %v1018 = vld [vmem:[%s913 + $0x34] sm:$0xf]
        %v1019 = vld [vmem:[%s913 + $0x38] sm:$0x1]
        %v1020 = vld [vmem:[%s913 + $0x3c] sm:$0xf]
        %v1021 = vld [vmem:[%s913 + $0x40] sm:$0xf]
        %v1022 = vld [vmem:[%s913 + $0x44] sm:$0x1]
        %v1023 = vld [vmem:[%s913 + $0x48] sm:$0xf]
        %v1024 = vld [vmem:[%s913 + $0x4c] sm:$0xf]
        %v1025 = vld [vmem:[%s913 + $0x50] sm:$0x1]
        %v1026 = vld [vmem:[%s913 + $0x54] sm:$0xf]
        %v1027 = vld [vmem:[%s913 + $0x58] sm:$0xf]
        %v1028 = vld [vmem:[%s913 + $0x5c] sm:$0x1]
        %v1029 = vld [vmem:[%s913 + $0x60] sm:$0xf]
        %v1030 = vld [vmem:[%s913 + $0x64] sm:$0xf]
        %v1031 = vld [vmem:[%s913 + $0x68] sm:$0x1]
        %v1032 = vld [vmem:[%s913 + $0x6c] sm:$0xf]
        %v1033 = vld [vmem:[%s913 + $0x70] sm:$0xf]
        %v1034 = vld [vmem:[%s913 + $0x74] sm:$0x1]
        %v1035 = vld [vmem:[%s913 + $0x78] sm:$0xf]
        %v1036 = vld [vmem:[%s913 + $0x7c] sm:$0xf]
        %v1037 = vld [vmem:[%s913 + $0x80] sm:$0x1]
        %v1038 = vld [vmem:[%s913 + $0x84] sm:$0xf]
        %v1039 = vld [vmem:[%s913 + $0x88] sm:$0xf]
        %v1040 = vld [vmem:[%s913 + $0x8c] sm:$0x1]
        %v1041 = vld [vmem:[%s913 + $0x90] sm:$0xf]
        %v1042 = vld [vmem:[%s913 + $0x94] sm:$0xf]
        %v1043 = vld [vmem:[%s913 + $0x98] sm:$0x1]
        %v1044 = vld [vmem:[%s913 + $0x9c] sm:$0xf]
        %v1045 = vld [vmem:[%s913 + $0xa0] sm:$0xf]
        %v1046 = vld [vmem:[%s913 + $0xa4] sm:$0x1]
        %v1047 = vld [vmem:[%s913 + $0xa8] sm:$0xf]
        %v1048 = vld [vmem:[%s913 + $0xac] sm:$0xf]
        %v1049 = vld [vmem:[%s913 + $0xb0] sm:$0x1]
        %v1050 = vld [vmem:[%s913 + $0xb4] sm:$0xf]
        %v1051 = vld [vmem:[%s913 + $0xb8] sm:$0xf]
        %v1052 = vld [vmem:[%s913 + $0xbc] sm:$0x1]
        %v1053 = vld [vmem:[%s920] sm:$0xf]
        %v1054 = vld [vmem:[%s920 + $0x4] sm:$0xf]
        %v1055 = vld [vmem:[%s920 + $0x8] sm:$0x1]
        %v1056 = vld [vmem:[%s920 + $0xc] sm:$0xf]
        %v1057 = vld [vmem:[%s920 + $0x10] sm:$0xf]
        %v1058 = vld [vmem:[%s920 + $0x14] sm:$0x1]
        %v1059 = vld [vmem:[%s920 + $0x18] sm:$0xf]
        %v1060 = vld [vmem:[%s920 + $0x1c] sm:$0xf]
        %v1061 = vld [vmem:[%s920 + $0x20] sm:$0x1]
        %v1062 = vld [vmem:[%s920 + $0x24] sm:$0xf]
        %v1063 = vld [vmem:[%s920 + $0x28] sm:$0xf]
        %v1064 = vld [vmem:[%s920 + $0x2c] sm:$0x1]
        %v1065 = vld [vmem:[%s920 + $0x30] sm:$0xf]
        %v1066 = vld [vmem:[%s920 + $0x34] sm:$0xf]
        %v1067 = vld [vmem:[%s920 + $0x38] sm:$0x1]
        %v1068 = vld [vmem:[%s920 + $0x3c] sm:$0xf]
        %v1069 = vld [vmem:[%s920 + $0x40] sm:$0xf]
        %v1070 = vld [vmem:[%s920 + $0x44] sm:$0x1]
        %v1071 = vld [vmem:[%s920 + $0x48] sm:$0xf]
        %v1072 = vld [vmem:[%s920 + $0x4c] sm:$0xf]
        %v1073 = vld [vmem:[%s920 + $0x50] sm:$0x1]
        %v1074 = vld [vmem:[%s920 + $0x54] sm:$0xf]
        %v1075 = vld [vmem:[%s920 + $0x58] sm:$0xf]
        %v1076 = vld [vmem:[%s920 + $0x5c] sm:$0x1]
        %v1077 = vld [vmem:[%s920 + $0x60] sm:$0xf]
        %v1078 = vld [vmem:[%s920 + $0x64] sm:$0xf]
        %v1079 = vld [vmem:[%s920 + $0x68] sm:$0x1]
        %v1080 = vld [vmem:[%s920 + $0x6c] sm:$0xf]
        %v1081 = vld [vmem:[%s920 + $0x70] sm:$0xf]
        %v1082 = vld [vmem:[%s920 + $0x74] sm:$0x1]
        %v1083 = vld [vmem:[%s920 + $0x78] sm:$0xf]
        %v1084 = vld [vmem:[%s920 + $0x7c] sm:$0xf]
        %v1085 = vld [vmem:[%s920 + $0x80] sm:$0x1]
        %v1086 = vld [vmem:[%s920 + $0x84] sm:$0xf]
        %v1087 = vld [vmem:[%s920 + $0x88] sm:$0xf]
        %v1088 = vld [vmem:[%s920 + $0x8c] sm:$0x1]
        %v1089 = vld [vmem:[%s920 + $0x90] sm:$0xf]
        %v1090 = vld [vmem:[%s920 + $0x94] sm:$0xf]
        %v1091 = vld [vmem:[%s920 + $0x98] sm:$0x1]
        %v1092 = vld [vmem:[%s920 + $0x9c] sm:$0xf]
        %v1093 = vld [vmem:[%s920 + $0xa0] sm:$0xf]
        %v1094 = vld [vmem:[%s920 + $0xa4] sm:$0x1]
        %v1095 = vld [vmem:[%s920 + $0xa8] sm:$0xf]
        %v1096 = vld [vmem:[%s920 + $0xac] sm:$0xf]
        %v1097 = vld [vmem:[%s920 + $0xb0] sm:$0x1]
        %v1098 = vld [vmem:[%s920 + $0xb4] sm:$0xf]
        %v1099 = vld [vmem:[%s920 + $0xb8] sm:$0xf]
        %v1100 = vld [vmem:[%s920 + $0xbc] sm:$0x1]
        %vm1101 = vsmask.f32 3328
        %vm1102 = vsmask.f32 7440
        %vm1103 = vmor %vm1101, %vm1102
        %v1105 = vshrl.u32 %v957, 16
        %v1107 = vrot.slane %v1105, 4
        %v1108 = vshll.u32 %v957, 16
        %v1110 = vrot.slane %v1108, 5
        %v1111 = vor.u32 %v1107, %v1110
        %v1112 = vrot.slane %v1111, 4
        %v1114 = vshll.u32 %v958, 16
        %v1116 = vrot.slane %v1114, 5
        %v1117 = vsel %vm1103, %v1112, %v1116
        %v1118 = vshrl.u32 %v958, 16
        %v1120 = vrot.slane %v1118, 4
        %v1121 = vor.u32 %v1120, %v1116
        %v1122 = vrot.slane %v1121, 4
        %v1124 = vshll.u32 %v959, 16
        %v1126 = vrot.slane %v1124, 5
        %v1127 = vsel %vm1103, %v1122, %v1126
        %v1129 = vshrl.u32 %v960, 16
        %v1131 = vrot.slane %v1129, 4
        %v1132 = vshll.u32 %v960, 16
        %v1134 = vrot.slane %v1132, 5
        %v1135 = vor.u32 %v1131, %v1134
        %v1136 = vrot.slane %v1135, 4
        %v1138 = vshll.u32 %v961, 16
        %v1140 = vrot.slane %v1138, 5
        %v1141 = vsel %vm1103, %v1136, %v1140
        %v1142 = vshrl.u32 %v961, 16
        %v1144 = vrot.slane %v1142, 4
        %v1145 = vor.u32 %v1144, %v1140
        %v1146 = vrot.slane %v1145, 4
        %v1148 = vshll.u32 %v962, 16
        %v1150 = vrot.slane %v1148, 5
        %v1151 = vsel %vm1103, %v1146, %v1150
        %v1153 = vshrl.u32 %v963, 16
        %v1155 = vrot.slane %v1153, 4
        %v1156 = vshll.u32 %v963, 16
        %v1158 = vrot.slane %v1156, 5
        %v1159 = vor.u32 %v1155, %v1158
        %v1160 = vrot.slane %v1159, 4
        %v1162 = vshll.u32 %v964, 16
        %v1164 = vrot.slane %v1162, 5
        %v1165 = vsel %vm1103, %v1160, %v1164
        %v1166 = vshrl.u32 %v964, 16
        %v1168 = vrot.slane %v1166, 4
        %v1169 = vor.u32 %v1168, %v1164
        %v1170 = vrot.slane %v1169, 4
        %v1172 = vshll.u32 %v965, 16
        %v1174 = vrot.slane %v1172, 5
        %v1175 = vsel %vm1103, %v1170, %v1174
        %v1177 = vshrl.u32 %v966, 16
        %v1179 = vrot.slane %v1177, 4
        %v1180 = vshll.u32 %v966, 16
        %v1182 = vrot.slane %v1180, 5
        %v1183 = vor.u32 %v1179, %v1182
        %v1184 = vrot.slane %v1183, 4
        %v1186 = vshll.u32 %v967, 16
        %v1188 = vrot.slane %v1186, 5
        %v1189 = vsel %vm1103, %v1184, %v1188
        %v1190 = vshrl.u32 %v967, 16
        %v1192 = vrot.slane %v1190, 4
        %v1193 = vor.u32 %v1192, %v1188
        %v1194 = vrot.slane %v1193, 4
        %v1196 = vshll.u32 %v968, 16
        %v1198 = vrot.slane %v1196, 5
        %v1199 = vsel %vm1103, %v1194, %v1198
        %v1201 = vshrl.u32 %v969, 16
        %v1203 = vrot.slane %v1201, 4
        %v1204 = vshll.u32 %v969, 16
        %v1206 = vrot.slane %v1204, 5
        %v1207 = vor.u32 %v1203, %v1206
        %v1208 = vrot.slane %v1207, 4
        %v1210 = vshll.u32 %v970, 16
        %v1212 = vrot.slane %v1210, 5
        %v1213 = vsel %vm1103, %v1208, %v1212
        %v1214 = vshrl.u32 %v970, 16
        %v1216 = vrot.slane %v1214, 4
        %v1217 = vor.u32 %v1216, %v1212
        %v1218 = vrot.slane %v1217, 4
        %v1220 = vshll.u32 %v971, 16
        %v1222 = vrot.slane %v1220, 5
        %v1223 = vsel %vm1103, %v1218, %v1222
        %v1225 = vshrl.u32 %v972, 16
        %v1227 = vrot.slane %v1225, 4
        %v1228 = vshll.u32 %v972, 16
        %v1230 = vrot.slane %v1228, 5
        %v1231 = vor.u32 %v1227, %v1230
        %v1232 = vrot.slane %v1231, 4
        %v1234 = vshll.u32 %v973, 16
        %v1236 = vrot.slane %v1234, 5
        %v1237 = vsel %vm1103, %v1232, %v1236
        %v1238 = vshrl.u32 %v973, 16
        %v1240 = vrot.slane %v1238, 4
        %v1241 = vor.u32 %v1240, %v1236
        %v1242 = vrot.slane %v1241, 4
        %v1244 = vshll.u32 %v974, 16
        %v1246 = vrot.slane %v1244, 5
        %v1247 = vsel %vm1103, %v1242, %v1246
        %v1249 = vshrl.u32 %v975, 16
        %v1251 = vrot.slane %v1249, 4
        %v1252 = vshll.u32 %v975, 16
        %v1254 = vrot.slane %v1252, 5
        %v1255 = vor.u32 %v1251, %v1254
        %v1256 = vrot.slane %v1255, 4
        %v1258 = vshll.u32 %v976, 16
        %v1260 = vrot.slane %v1258, 5
        %v1261 = vsel %vm1103, %v1256, %v1260
        %v1262 = vshrl.u32 %v976, 16
        %v1264 = vrot.slane %v1262, 4
        %v1265 = vor.u32 %v1264, %v1260
        %v1266 = vrot.slane %v1265, 4
        %v1268 = vshll.u32 %v977, 16
        %v1270 = vrot.slane %v1268, 5
        %v1271 = vsel %vm1103, %v1266, %v1270
        %v1273 = vshrl.u32 %v978, 16
        %v1275 = vrot.slane %v1273, 4
        %v1276 = vshll.u32 %v978, 16
        %v1278 = vrot.slane %v1276, 5
        %v1279 = vor.u32 %v1275, %v1278
        %v1280 = vrot.slane %v1279, 4
        %v1282 = vshll.u32 %v979, 16
        %v1284 = vrot.slane %v1282, 5
        %v1285 = vsel %vm1103, %v1280, %v1284
        %v1286 = vshrl.u32 %v979, 16
        %v1288 = vrot.slane %v1286, 4
        %v1289 = vor.u32 %v1288, %v1284
        %v1290 = vrot.slane %v1289, 4
        %v1292 = vshll.u32 %v980, 16
        %v1294 = vrot.slane %v1292, 5
        %v1295 = vsel %vm1103, %v1290, %v1294
        %v1297 = vshrl.u32 %v981, 16
        %v1299 = vrot.slane %v1297, 4
        %v1300 = vshll.u32 %v981, 16
        %v1302 = vrot.slane %v1300, 5
        %v1303 = vor.u32 %v1299, %v1302
        %v1304 = vrot.slane %v1303, 4
        %v1306 = vshll.u32 %v982, 16
        %v1308 = vrot.slane %v1306, 5
        %v1309 = vsel %vm1103, %v1304, %v1308
        %v1310 = vshrl.u32 %v982, 16
        %v1312 = vrot.slane %v1310, 4
        %v1313 = vor.u32 %v1312, %v1308
        %v1314 = vrot.slane %v1313, 4
        %v1316 = vshll.u32 %v983, 16
        %v1318 = vrot.slane %v1316, 5
        %v1319 = vsel %vm1103, %v1314, %v1318
        %v1321 = vshrl.u32 %v984, 16
        %v1323 = vrot.slane %v1321, 4
        %v1324 = vshll.u32 %v984, 16
        %v1326 = vrot.slane %v1324, 5
        %v1327 = vor.u32 %v1323, %v1326
        %v1328 = vrot.slane %v1327, 4
        %v1330 = vshll.u32 %v985, 16
        %v1332 = vrot.slane %v1330, 5
        %v1333 = vsel %vm1103, %v1328, %v1332
        %v1334 = vshrl.u32 %v985, 16
        %v1336 = vrot.slane %v1334, 4
        %v1337 = vor.u32 %v1336, %v1332
        %v1338 = vrot.slane %v1337, 4
        %v1340 = vshll.u32 %v986, 16
        %v1342 = vrot.slane %v1340, 5
        %v1343 = vsel %vm1103, %v1338, %v1342
        %v1345 = vshrl.u32 %v987, 16
        %v1347 = vrot.slane %v1345, 4
        %v1348 = vshll.u32 %v987, 16
        %v1350 = vrot.slane %v1348, 5
        %v1351 = vor.u32 %v1347, %v1350
        %v1352 = vrot.slane %v1351, 4
        %v1354 = vshll.u32 %v988, 16
        %v1356 = vrot.slane %v1354, 5
        %v1357 = vsel %vm1103, %v1352, %v1356
        %v1358 = vshrl.u32 %v988, 16
        %v1360 = vrot.slane %v1358, 4
        %v1361 = vor.u32 %v1360, %v1356
        %v1362 = vrot.slane %v1361, 4
        %v1364 = vshll.u32 %v989, 16
        %v1366 = vrot.slane %v1364, 5
        %v1367 = vsel %vm1103, %v1362, %v1366
        %v1369 = vshrl.u32 %v990, 16
        %v1371 = vrot.slane %v1369, 4
        %v1372 = vshll.u32 %v990, 16
        %v1374 = vrot.slane %v1372, 5
        %v1375 = vor.u32 %v1371, %v1374
        %v1376 = vrot.slane %v1375, 4
        %v1378 = vshll.u32 %v991, 16
        %v1380 = vrot.slane %v1378, 5
        %v1381 = vsel %vm1103, %v1376, %v1380
        %v1382 = vshrl.u32 %v991, 16
        %v1384 = vrot.slane %v1382, 4
        %v1385 = vor.u32 %v1384, %v1380
        %v1386 = vrot.slane %v1385, 4
        %v1388 = vshll.u32 %v992, 16
        %v1390 = vrot.slane %v1388, 5
        %v1391 = vsel %vm1103, %v1386, %v1390
        %v1393 = vshrl.u32 %v993, 16
        %v1395 = vrot.slane %v1393, 4
        %v1396 = vshll.u32 %v993, 16
        %v1398 = vrot.slane %v1396, 5
        %v1399 = vor.u32 %v1395, %v1398
        %v1400 = vrot.slane %v1399, 4
        %v1402 = vshll.u32 %v994, 16
        %v1404 = vrot.slane %v1402, 5
        %v1405 = vsel %vm1103, %v1400, %v1404
        %v1406 = vshrl.u32 %v994, 16
        %v1408 = vrot.slane %v1406, 4
        %v1409 = vor.u32 %v1408, %v1404
        %v1410 = vrot.slane %v1409, 4
        %v1412 = vshll.u32 %v995, 16
        %v1414 = vrot.slane %v1412, 5
        %v1415 = vsel %vm1103, %v1410, %v1414
        %v1417 = vshrl.u32 %v996, 16
        %v1419 = vrot.slane %v1417, 4
        %v1420 = vshll.u32 %v996, 16
        %v1422 = vrot.slane %v1420, 5
        %v1423 = vor.u32 %v1419, %v1422
        %v1424 = vrot.slane %v1423, 4
        %v1426 = vshll.u32 %v997, 16
        %v1428 = vrot.slane %v1426, 5
        %v1429 = vsel %vm1103, %v1424, %v1428
        %v1430 = vshrl.u32 %v997, 16
        %v1432 = vrot.slane %v1430, 4
        %v1433 = vor.u32 %v1432, %v1428
        %v1434 = vrot.slane %v1433, 4
        %v1436 = vshll.u32 %v998, 16
        %v1438 = vrot.slane %v1436, 5
        %v1439 = vsel %vm1103, %v1434, %v1438
        %v1441 = vshrl.u32 %v999, 16
        %v1443 = vrot.slane %v1441, 4
        %v1444 = vshll.u32 %v999, 16
        %v1446 = vrot.slane %v1444, 5
        %v1447 = vor.u32 %v1443, %v1446
        %v1448 = vrot.slane %v1447, 4
        %v1450 = vshll.u32 %v1000, 16
        %v1452 = vrot.slane %v1450, 5
        %v1453 = vsel %vm1103, %v1448, %v1452
        %v1454 = vshrl.u32 %v1000, 16
        %v1456 = vrot.slane %v1454, 4
        %v1457 = vor.u32 %v1456, %v1452
        %v1458 = vrot.slane %v1457, 4
        %v1460 = vshll.u32 %v1001, 16
        %v1462 = vrot.slane %v1460, 5
        %v1463 = vsel %vm1103, %v1458, %v1462
        %v1465 = vshrl.u32 %v1002, 16
        %v1467 = vrot.slane %v1465, 4
        %v1468 = vshll.u32 %v1002, 16
        %v1470 = vrot.slane %v1468, 5
        %v1471 = vor.u32 %v1467, %v1470
        %v1472 = vrot.slane %v1471, 4
        %v1474 = vshll.u32 %v1003, 16
        %v1476 = vrot.slane %v1474, 5
        %v1477 = vsel %vm1103, %v1472, %v1476
        %v1478 = vshrl.u32 %v1003, 16
        %v1480 = vrot.slane %v1478, 4
        %v1481 = vor.u32 %v1480, %v1476
        %v1482 = vrot.slane %v1481, 4
        %v1484 = vshll.u32 %v1004, 16
        %v1486 = vrot.slane %v1484, 5
        %v1487 = vsel %vm1103, %v1482, %v1486
        %vm1536 = vcmask 1042432
        %vm1537 = vcmask 1046532
        %vm1538 = vmor %vm1536, %vm1537
        %v1539 = vrot.slane %v957, 5
        %v1540 = vrot.slane %v1539, 4
        %v1541 = vrot.slane %v958, 5
        %v1542 = vsel %vm1538, %v1540, %v1541
        %v1543 = vrot.slane %v1541, 4
        %v1544 = vrot.slane %v959, 5
        %v1545 = vsel %vm1538, %v1543, %v1544
        %v1546 = vrot.slane %v960, 5
        %v1547 = vrot.slane %v1546, 4
        %v1548 = vrot.slane %v961, 5
        %v1549 = vsel %vm1538, %v1547, %v1548
        %v1550 = vrot.slane %v1548, 4
        %v1551 = vrot.slane %v962, 5
        %v1552 = vsel %vm1538, %v1550, %v1551
        %v1553 = vrot.slane %v963, 5
        %v1554 = vrot.slane %v1553, 4
        %v1555 = vrot.slane %v964, 5
        %v1556 = vsel %vm1538, %v1554, %v1555
        %v1557 = vrot.slane %v1555, 4
        %v1558 = vrot.slane %v965, 5
        %v1559 = vsel %vm1538, %v1557, %v1558
        %v1560 = vrot.slane %v966, 5
        %v1561 = vrot.slane %v1560, 4
        %v1562 = vrot.slane %v967, 5
        %v1563 = vsel %vm1538, %v1561, %v1562
        %v1564 = vrot.slane %v1562, 4
        %v1565 = vrot.slane %v968, 5
        %v1566 = vsel %vm1538, %v1564, %v1565
        %v1567 = vrot.slane %v969, 5
        %v1568 = vrot.slane %v1567, 4
        %v1569 = vrot.slane %v970, 5
        %v1570 = vsel %vm1538, %v1568, %v1569
        %v1571 = vrot.slane %v1569, 4
        %v1572 = vrot.slane %v971, 5
        %v1573 = vsel %vm1538, %v1571, %v1572
        %v1574 = vrot.slane %v972, 5
        %v1575 = vrot.slane %v1574, 4
        %v1576 = vrot.slane %v973, 5
        %v1577 = vsel %vm1538, %v1575, %v1576
        %v1578 = vrot.slane %v1576, 4
        %v1579 = vrot.slane %v974, 5
        %v1580 = vsel %vm1538, %v1578, %v1579
        %v1581 = vrot.slane %v975, 5
        %v1582 = vrot.slane %v1581, 4
        %v1583 = vrot.slane %v976, 5
        %v1584 = vsel %vm1538, %v1582, %v1583
        %v1585 = vrot.slane %v1583, 4
        %v1586 = vrot.slane %v977, 5
        %v1587 = vsel %vm1538, %v1585, %v1586
        %v1588 = vrot.slane %v978, 5
        %v1589 = vrot.slane %v1588, 4
        %v1590 = vrot.slane %v979, 5
        %v1591 = vsel %vm1538, %v1589, %v1590
        %v1592 = vrot.slane %v1590, 4
        %v1593 = vrot.slane %v980, 5
        %v1594 = vsel %vm1538, %v1592, %v1593
        %v1595 = vrot.slane %v981, 5
        %v1596 = vrot.slane %v1595, 4
        %v1597 = vrot.slane %v982, 5
        %v1598 = vsel %vm1538, %v1596, %v1597
        %v1599 = vrot.slane %v1597, 4
        %v1600 = vrot.slane %v983, 5
        %v1601 = vsel %vm1538, %v1599, %v1600
        %v1602 = vrot.slane %v984, 5
        %v1603 = vrot.slane %v1602, 4
        %v1604 = vrot.slane %v985, 5
        %v1605 = vsel %vm1538, %v1603, %v1604
        %v1606 = vrot.slane %v1604, 4
        %v1607 = vrot.slane %v986, 5
        %v1608 = vsel %vm1538, %v1606, %v1607
        %v1609 = vrot.slane %v987, 5
        %v1610 = vrot.slane %v1609, 4
        %v1611 = vrot.slane %v988, 5
        %v1612 = vsel %vm1538, %v1610, %v1611
        %v1613 = vrot.slane %v1611, 4
        %v1614 = vrot.slane %v989, 5
        %v1615 = vsel %vm1538, %v1613, %v1614
        %v1616 = vrot.slane %v990, 5
        %v1617 = vrot.slane %v1616, 4
        %v1618 = vrot.slane %v991, 5
        %v1619 = vsel %vm1538, %v1617, %v1618
        %v1620 = vrot.slane %v1618, 4
        %v1621 = vrot.slane %v992, 5
        %v1622 = vsel %vm1538, %v1620, %v1621
        %v1623 = vrot.slane %v993, 5
        %v1624 = vrot.slane %v1623, 4
        %v1625 = vrot.slane %v994, 5
        %v1626 = vsel %vm1538, %v1624, %v1625
        %v1627 = vrot.slane %v1625, 4
        %v1628 = vrot.slane %v995, 5
        %v1629 = vsel %vm1538, %v1627, %v1628
        %v1630 = vrot.slane %v996, 5
        %v1631 = vrot.slane %v1630, 4
        %v1632 = vrot.slane %v997, 5
        %v1633 = vsel %vm1538, %v1631, %v1632
        %v1634 = vrot.slane %v1632, 4
        %v1635 = vrot.slane %v998, 5
        %v1636 = vsel %vm1538, %v1634, %v1635
        %v1637 = vrot.slane %v999, 5
        %v1638 = vrot.slane %v1637, 4
        %v1639 = vrot.slane %v1000, 5
        %v1640 = vsel %vm1538, %v1638, %v1639
        %v1641 = vrot.slane %v1639, 4
        %v1642 = vrot.slane %v1001, 5
        %v1643 = vsel %vm1538, %v1641, %v1642
        %v1644 = vrot.slane %v1002, 5
        %v1645 = vrot.slane %v1644, 4
        %v1646 = vrot.slane %v1003, 5
        %v1647 = vsel %vm1538, %v1645, %v1646
        %v1648 = vrot.slane %v1646, 4
        %v1649 = vrot.slane %v1004, 5
        %v1650 = vsel %vm1538, %v1648, %v1649
        %v1652 = vshrl.u32 %v1005, 16
        %v1654 = vrot.slane %v1652, 4
        %v1655 = vshll.u32 %v1005, 16
        %v1657 = vrot.slane %v1655, 5
        %v1658 = vor.u32 %v1654, %v1657
        %v1659 = vrot.slane %v1658, 4
        %v1661 = vshll.u32 %v1006, 16
        %v1663 = vrot.slane %v1661, 5
        %v1664 = vsel %vm1103, %v1659, %v1663
        %v1665 = vshrl.u32 %v1006, 16
        %v1667 = vrot.slane %v1665, 4
        %v1668 = vor.u32 %v1667, %v1663
        %v1669 = vrot.slane %v1668, 4
        %v1671 = vshll.u32 %v1007, 16
        %v1673 = vrot.slane %v1671, 5
        %v1674 = vsel %vm1103, %v1669, %v1673
        %v1676 = vshrl.u32 %v1008, 16
        %v1678 = vrot.slane %v1676, 4
        %v1679 = vshll.u32 %v1008, 16
        %v1681 = vrot.slane %v1679, 5
        %v1682 = vor.u32 %v1678, %v1681
        %v1683 = vrot.slane %v1682, 4
        %v1685 = vshll.u32 %v1009, 16
        %v1687 = vrot.slane %v1685, 5
        %v1688 = vsel %vm1103, %v1683, %v1687
        %v1689 = vshrl.u32 %v1009, 16
        %v1691 = vrot.slane %v1689, 4
        %v1692 = vor.u32 %v1691, %v1687
        %v1693 = vrot.slane %v1692, 4
        %v1695 = vshll.u32 %v1010, 16
        %v1697 = vrot.slane %v1695, 5
        %v1698 = vsel %vm1103, %v1693, %v1697
        %v1700 = vshrl.u32 %v1011, 16
        %v1702 = vrot.slane %v1700, 4
        %v1703 = vshll.u32 %v1011, 16
        %v1705 = vrot.slane %v1703, 5
        %v1706 = vor.u32 %v1702, %v1705
        %v1707 = vrot.slane %v1706, 4
        %v1709 = vshll.u32 %v1012, 16
        %v1711 = vrot.slane %v1709, 5
        %v1712 = vsel %vm1103, %v1707, %v1711
        %v1713 = vshrl.u32 %v1012, 16
        %v1715 = vrot.slane %v1713, 4
        %v1716 = vor.u32 %v1715, %v1711
        %v1717 = vrot.slane %v1716, 4
        %v1719 = vshll.u32 %v1013, 16
        %v1721 = vrot.slane %v1719, 5
        %v1722 = vsel %vm1103, %v1717, %v1721
        %v1724 = vshrl.u32 %v1014, 16
        %v1726 = vrot.slane %v1724, 4
        %v1727 = vshll.u32 %v1014, 16
        %v1729 = vrot.slane %v1727, 5
        %v1730 = vor.u32 %v1726, %v1729
        %v1731 = vrot.slane %v1730, 4
        %v1733 = vshll.u32 %v1015, 16
        %v1735 = vrot.slane %v1733, 5
        %v1736 = vsel %vm1103, %v1731, %v1735
        %v1737 = vshrl.u32 %v1015, 16
        %v1739 = vrot.slane %v1737, 4
        %v1740 = vor.u32 %v1739, %v1735
        %v1741 = vrot.slane %v1740, 4
        %v1743 = vshll.u32 %v1016, 16
        %v1745 = vrot.slane %v1743, 5
        %v1746 = vsel %vm1103, %v1741, %v1745
        %v1748 = vshrl.u32 %v1017, 16
        %v1750 = vrot.slane %v1748, 4
        %v1751 = vshll.u32 %v1017, 16
        %v1753 = vrot.slane %v1751, 5
        %v1754 = vor.u32 %v1750, %v1753
        %v1755 = vrot.slane %v1754, 4
        %v1757 = vshll.u32 %v1018, 16
        %v1759 = vrot.slane %v1757, 5
        %v1760 = vsel %vm1103, %v1755, %v1759
        %v1761 = vshrl.u32 %v1018, 16
        %v1763 = vrot.slane %v1761, 4
        %v1764 = vor.u32 %v1763, %v1759
        %v1765 = vrot.slane %v1764, 4
        %v1767 = vshll.u32 %v1019, 16
        %v1769 = vrot.slane %v1767, 5
        %v1770 = vsel %vm1103, %v1765, %v1769
        %v1772 = vshrl.u32 %v1020, 16
        %v1774 = vrot.slane %v1772, 4
        %v1775 = vshll.u32 %v1020, 16
        %v1777 = vrot.slane %v1775, 5
        %v1778 = vor.u32 %v1774, %v1777
        %v1779 = vrot.slane %v1778, 4
        %v1781 = vshll.u32 %v1021, 16
        %v1783 = vrot.slane %v1781, 5
        %v1784 = vsel %vm1103, %v1779, %v1783
        %v1785 = vshrl.u32 %v1021, 16
        %v1787 = vrot.slane %v1785, 4
        %v1788 = vor.u32 %v1787, %v1783
        %v1789 = vrot.slane %v1788, 4
        %v1791 = vshll.u32 %v1022, 16
        %v1793 = vrot.slane %v1791, 5
        %v1794 = vsel %vm1103, %v1789, %v1793
        %v1796 = vshrl.u32 %v1023, 16
        %v1798 = vrot.slane %v1796, 4
        %v1799 = vshll.u32 %v1023, 16
        %v1801 = vrot.slane %v1799, 5
        %v1802 = vor.u32 %v1798, %v1801
        %v1803 = vrot.slane %v1802, 4
        %v1805 = vshll.u32 %v1024, 16
        %v1807 = vrot.slane %v1805, 5
        %v1808 = vsel %vm1103, %v1803, %v1807
        %v1809 = vshrl.u32 %v1024, 16
        %v1811 = vrot.slane %v1809, 4
        %v1812 = vor.u32 %v1811, %v1807
        %v1813 = vrot.slane %v1812, 4
        %v1815 = vshll.u32 %v1025, 16
        %v1817 = vrot.slane %v1815, 5
        %v1818 = vsel %vm1103, %v1813, %v1817
        %v1820 = vshrl.u32 %v1026, 16
        %v1822 = vrot.slane %v1820, 4
        %v1823 = vshll.u32 %v1026, 16
        %v1825 = vrot.slane %v1823, 5
        %v1826 = vor.u32 %v1822, %v1825
        %v1827 = vrot.slane %v1826, 4
        %v1829 = vshll.u32 %v1027, 16
        %v1831 = vrot.slane %v1829, 5
        %v1832 = vsel %vm1103, %v1827, %v1831
        %v1833 = vshrl.u32 %v1027, 16
        %v1835 = vrot.slane %v1833, 4
        %v1836 = vor.u32 %v1835, %v1831
        %v1837 = vrot.slane %v1836, 4
        %v1839 = vshll.u32 %v1028, 16
        %v1841 = vrot.slane %v1839, 5
        %v1842 = vsel %vm1103, %v1837, %v1841
        %v1844 = vshrl.u32 %v1029, 16
        %v1846 = vrot.slane %v1844, 4
        %v1847 = vshll.u32 %v1029, 16
        %v1849 = vrot.slane %v1847, 5
        %v1850 = vor.u32 %v1846, %v1849
        %v1851 = vrot.slane %v1850, 4
        %v1853 = vshll.u32 %v1030, 16
        %v1855 = vrot.slane %v1853, 5
        %v1856 = vsel %vm1103, %v1851, %v1855
        %v1857 = vshrl.u32 %v1030, 16
        %v1859 = vrot.slane %v1857, 4
        %v1860 = vor.u32 %v1859, %v1855
        %v1861 = vrot.slane %v1860, 4
        %v1863 = vshll.u32 %v1031, 16
        %v1865 = vrot.slane %v1863, 5
        %v1866 = vsel %vm1103, %v1861, %v1865
        %v1868 = vshrl.u32 %v1032, 16
        %v1870 = vrot.slane %v1868, 4
        %v1871 = vshll.u32 %v1032, 16
        %v1873 = vrot.slane %v1871, 5
        %v1874 = vor.u32 %v1870, %v1873
        %v1875 = vrot.slane %v1874, 4
        %v1877 = vshll.u32 %v1033, 16
        %v1879 = vrot.slane %v1877, 5
        %v1880 = vsel %vm1103, %v1875, %v1879
        %v1881 = vshrl.u32 %v1033, 16
        %v1883 = vrot.slane %v1881, 4
        %v1884 = vor.u32 %v1883, %v1879
        %v1885 = vrot.slane %v1884, 4
        %v1887 = vshll.u32 %v1034, 16
        %v1889 = vrot.slane %v1887, 5
        %v1890 = vsel %vm1103, %v1885, %v1889
        %v1892 = vshrl.u32 %v1035, 16
        %v1894 = vrot.slane %v1892, 4
        %v1895 = vshll.u32 %v1035, 16
        %v1897 = vrot.slane %v1895, 5
        %v1898 = vor.u32 %v1894, %v1897
        %v1899 = vrot.slane %v1898, 4
        %v1901 = vshll.u32 %v1036, 16
        %v1903 = vrot.slane %v1901, 5
        %v1904 = vsel %vm1103, %v1899, %v1903
        %v1905 = vshrl.u32 %v1036, 16
        %v1907 = vrot.slane %v1905, 4
        %v1908 = vor.u32 %v1907, %v1903
        %v1909 = vrot.slane %v1908, 4
        %v1911 = vshll.u32 %v1037, 16
        %v1913 = vrot.slane %v1911, 5
        %v1914 = vsel %vm1103, %v1909, %v1913
        %v1916 = vshrl.u32 %v1038, 16
        %v1918 = vrot.slane %v1916, 4
        %v1919 = vshll.u32 %v1038, 16
        %v1921 = vrot.slane %v1919, 5
        %v1922 = vor.u32 %v1918, %v1921
        %v1923 = vrot.slane %v1922, 4
        %v1925 = vshll.u32 %v1039, 16
        %v1927 = vrot.slane %v1925, 5
        %v1928 = vsel %vm1103, %v1923, %v1927
        %v1929 = vshrl.u32 %v1039, 16
        %v1931 = vrot.slane %v1929, 4
        %v1932 = vor.u32 %v1931, %v1927
        %v1933 = vrot.slane %v1932, 4
        %v1935 = vshll.u32 %v1040, 16
        %v1937 = vrot.slane %v1935, 5
        %v1938 = vsel %vm1103, %v1933, %v1937
        %v1940 = vshrl.u32 %v1041, 16
        %v1942 = vrot.slane %v1940, 4
        %v1943 = vshll.u32 %v1041, 16
        %v1945 = vrot.slane %v1943, 5
        %v1946 = vor.u32 %v1942, %v1945
        %v1947 = vrot.slane %v1946, 4
        %v1949 = vshll.u32 %v1042, 16
        %v1951 = vrot.slane %v1949, 5
        %v1952 = vsel %vm1103, %v1947, %v1951
        %v1953 = vshrl.u32 %v1042, 16
        %v1955 = vrot.slane %v1953, 4
        %v1956 = vor.u32 %v1955, %v1951
        %v1957 = vrot.slane %v1956, 4
        %v1959 = vshll.u32 %v1043, 16
        %v1961 = vrot.slane %v1959, 5
        %v1962 = vsel %vm1103, %v1957, %v1961
        %v1964 = vshrl.u32 %v1044, 16
        %v1966 = vrot.slane %v1964, 4
        %v1967 = vshll.u32 %v1044, 16
        %v1969 = vrot.slane %v1967, 5
        %v1970 = vor.u32 %v1966, %v1969
        %v1971 = vrot.slane %v1970, 4
        %v1973 = vshll.u32 %v1045, 16
        %v1975 = vrot.slane %v1973, 5
        %v1976 = vsel %vm1103, %v1971, %v1975
        %v1977 = vshrl.u32 %v1045, 16
        %v1979 = vrot.slane %v1977, 4
        %v1980 = vor.u32 %v1979, %v1975
        %v1981 = vrot.slane %v1980, 4
        %v1983 = vshll.u32 %v1046, 16
        %v1985 = vrot.slane %v1983, 5
        %v1986 = vsel %vm1103, %v1981, %v1985
        %v1988 = vshrl.u32 %v1047, 16
        %v1990 = vrot.slane %v1988, 4
        %v1991 = vshll.u32 %v1047, 16
        %v1993 = vrot.slane %v1991, 5
        %v1994 = vor.u32 %v1990, %v1993
        %v1995 = vrot.slane %v1994, 4
        %v1997 = vshll.u32 %v1048, 16
        %v1999 = vrot.slane %v1997, 5
        %v2000 = vsel %vm1103, %v1995, %v1999
        %v2001 = vshrl.u32 %v1048, 16
        %v2003 = vrot.slane %v2001, 4
        %v2004 = vor.u32 %v2003, %v1999
        %v2005 = vrot.slane %v2004, 4
        %v2007 = vshll.u32 %v1049, 16
        %v2009 = vrot.slane %v2007, 5
        %v2010 = vsel %vm1103, %v2005, %v2009
        %v2012 = vshrl.u32 %v1050, 16
        %v2014 = vrot.slane %v2012, 4
        %v2015 = vshll.u32 %v1050, 16
        %v2017 = vrot.slane %v2015, 5
        %v2018 = vor.u32 %v2014, %v2017
        %v2019 = vrot.slane %v2018, 4
        %v2021 = vshll.u32 %v1051, 16
        %v2023 = vrot.slane %v2021, 5
        %v2024 = vsel %vm1103, %v2019, %v2023
        %v2025 = vshrl.u32 %v1051, 16
        %v2027 = vrot.slane %v2025, 4
        %v2028 = vor.u32 %v2027, %v2023
        %v2029 = vrot.slane %v2028, 4
        %v2031 = vshll.u32 %v1052, 16
        %v2033 = vrot.slane %v2031, 5
        %v2034 = vsel %vm1103, %v2029, %v2033
        %v2083 = vrot.slane %v1005, 5
        %v2084 = vrot.slane %v2083, 4
        %v2085 = vrot.slane %v1006, 5
        %v2086 = vsel %vm1538, %v2084, %v2085
        %v2087 = vrot.slane %v2085, 4
        %v2088 = vrot.slane %v1007, 5
        %v2089 = vsel %vm1538, %v2087, %v2088
        %v2090 = vrot.slane %v1008, 5
        %v2091 = vrot.slane %v2090, 4
        %v2092 = vrot.slane %v1009, 5
        %v2093 = vsel %vm1538, %v2091, %v2092
        %v2094 = vrot.slane %v2092, 4
        %v2095 = vrot.slane %v1010, 5
        %v2096 = vsel %vm1538, %v2094, %v2095
        %v2097 = vrot.slane %v1011, 5
        %v2098 = vrot.slane %v2097, 4
        %v2099 = vrot.slane %v1012, 5
        %v2100 = vsel %vm1538, %v2098, %v2099
        %v2101 = vrot.slane %v2099, 4
        %v2102 = vrot.slane %v1013, 5
        %v2103 = vsel %vm1538, %v2101, %v2102
        %v2104 = vrot.slane %v1014, 5
        %v2105 = vrot.slane %v2104, 4
        %v2106 = vrot.slane %v1015, 5
        %v2107 = vsel %vm1538, %v2105, %v2106
        %v2108 = vrot.slane %v2106, 4
        %v2109 = vrot.slane %v1016, 5
        %v2110 = vsel %vm1538, %v2108, %v2109
        %v2111 = vrot.slane %v1017, 5
        %v2112 = vrot.slane %v2111, 4
        %v2113 = vrot.slane %v1018, 5
        %v2114 = vsel %vm1538, %v2112, %v2113
        %v2115 = vrot.slane %v2113, 4
        %v2116 = vrot.slane %v1019, 5
        %v2117 = vsel %vm1538, %v2115, %v2116
        %v2118 = vrot.slane %v1020, 5
        %v2119 = vrot.slane %v2118, 4
        %v2120 = vrot.slane %v1021, 5
        %v2121 = vsel %vm1538, %v2119, %v2120
        %v2122 = vrot.slane %v2120, 4
        %v2123 = vrot.slane %v1022, 5
        %v2124 = vsel %vm1538, %v2122, %v2123
        %v2125 = vrot.slane %v1023, 5
        %v2126 = vrot.slane %v2125, 4
        %v2127 = vrot.slane %v1024, 5
        %v2128 = vsel %vm1538, %v2126, %v2127
        %v2129 = vrot.slane %v2127, 4
        %v2130 = vrot.slane %v1025, 5
        %v2131 = vsel %vm1538, %v2129, %v2130
        %v2132 = vrot.slane %v1026, 5
        %v2133 = vrot.slane %v2132, 4
        %v2134 = vrot.slane %v1027, 5
        %v2135 = vsel %vm1538, %v2133, %v2134
        %v2136 = vrot.slane %v2134, 4
        %v2137 = vrot.slane %v1028, 5
        %v2138 = vsel %vm1538, %v2136, %v2137
        %v2139 = vrot.slane %v1029, 5
        %v2140 = vrot.slane %v2139, 4
        %v2141 = vrot.slane %v1030, 5
        %v2142 = vsel %vm1538, %v2140, %v2141
        %v2143 = vrot.slane %v2141, 4
        %v2144 = vrot.slane %v1031, 5
        %v2145 = vsel %vm1538, %v2143, %v2144
        %v2146 = vrot.slane %v1032, 5
        %v2147 = vrot.slane %v2146, 4
        %v2148 = vrot.slane %v1033, 5
        %v2149 = vsel %vm1538, %v2147, %v2148
        %v2150 = vrot.slane %v2148, 4
        %v2151 = vrot.slane %v1034, 5
        %v2152 = vsel %vm1538, %v2150, %v2151
        %v2153 = vrot.slane %v1035, 5
        %v2154 = vrot.slane %v2153, 4
        %v2155 = vrot.slane %v1036, 5
        %v2156 = vsel %vm1538, %v2154, %v2155
        %v2157 = vrot.slane %v2155, 4
        %v2158 = vrot.slane %v1037, 5
        %v2159 = vsel %vm1538, %v2157, %v2158
        %v2160 = vrot.slane %v1038, 5
        %v2161 = vrot.slane %v2160, 4
        %v2162 = vrot.slane %v1039, 5
        %v2163 = vsel %vm1538, %v2161, %v2162
        %v2164 = vrot.slane %v2162, 4
        %v2165 = vrot.slane %v1040, 5
        %v2166 = vsel %vm1538, %v2164, %v2165
        %v2167 = vrot.slane %v1041, 5
        %v2168 = vrot.slane %v2167, 4
        %v2169 = vrot.slane %v1042, 5
        %v2170 = vsel %vm1538, %v2168, %v2169
        %v2171 = vrot.slane %v2169, 4
        %v2172 = vrot.slane %v1043, 5
        %v2173 = vsel %vm1538, %v2171, %v2172
        %v2174 = vrot.slane %v1044, 5
        %v2175 = vrot.slane %v2174, 4
        %v2176 = vrot.slane %v1045, 5
        %v2177 = vsel %vm1538, %v2175, %v2176
        %v2178 = vrot.slane %v2176, 4
        %v2179 = vrot.slane %v1046, 5
        %v2180 = vsel %vm1538, %v2178, %v2179
        %v2181 = vrot.slane %v1047, 5
        %v2182 = vrot.slane %v2181, 4
        %v2183 = vrot.slane %v1048, 5
        %v2184 = vsel %vm1538, %v2182, %v2183
        %v2185 = vrot.slane %v2183, 4
        %v2186 = vrot.slane %v1049, 5
        %v2187 = vsel %vm1538, %v2185, %v2186
        %v2188 = vrot.slane %v1050, 5
        %v2189 = vrot.slane %v2188, 4
        %v2190 = vrot.slane %v1051, 5
        %v2191 = vsel %vm1538, %v2189, %v2190
        %v2192 = vrot.slane %v2190, 4
        %v2193 = vrot.slane %v1052, 5
        %v2194 = vsel %vm1538, %v2192, %v2193
        %v2196 = vshrl.u32 %v1053, 16
        %v2198 = vrot.slane %v2196, 4
        %v2199 = vshll.u32 %v1053, 16
        %v2201 = vrot.slane %v2199, 5
        %v2202 = vor.u32 %v2198, %v2201
        %v2203 = vrot.slane %v2202, 4
        %v2205 = vshll.u32 %v1054, 16
        %v2207 = vrot.slane %v2205, 5
        %v2208 = vsel %vm1103, %v2203, %v2207
        %v2209 = vshrl.u32 %v1054, 16
        %v2211 = vrot.slane %v2209, 4
        %v2212 = vor.u32 %v2211, %v2207
        %v2213 = vrot.slane %v2212, 4
        %v2215 = vshll.u32 %v1055, 16
        %v2217 = vrot.slane %v2215, 5
        %v2218 = vsel %vm1103, %v2213, %v2217
        %v2220 = vshrl.u32 %v1056, 16
        %v2222 = vrot.slane %v2220, 4
        %v2223 = vshll.u32 %v1056, 16
        %v2225 = vrot.slane %v2223, 5
        %v2226 = vor.u32 %v2222, %v2225
        %v2227 = vrot.slane %v2226, 4
        %v2229 = vshll.u32 %v1057, 16
        %v2231 = vrot.slane %v2229, 5
        %v2232 = vsel %vm1103, %v2227, %v2231
        %v2233 = vshrl.u32 %v1057, 16
        %v2235 = vrot.slane %v2233, 4
        %v2236 = vor.u32 %v2235, %v2231
        %v2237 = vrot.slane %v2236, 4
        %v2239 = vshll.u32 %v1058, 16
        %v2241 = vrot.slane %v2239, 5
        %v2242 = vsel %vm1103, %v2237, %v2241
        %v2244 = vshrl.u32 %v1059, 16
        %v2246 = vrot.slane %v2244, 4
        %v2247 = vshll.u32 %v1059, 16
        %v2249 = vrot.slane %v2247, 5
        %v2250 = vor.u32 %v2246, %v2249
        %v2251 = vrot.slane %v2250, 4
        %v2253 = vshll.u32 %v1060, 16
        %v2255 = vrot.slane %v2253, 5
        %v2256 = vsel %vm1103, %v2251, %v2255
        %v2257 = vshrl.u32 %v1060, 16
        %v2259 = vrot.slane %v2257, 4
        %v2260 = vor.u32 %v2259, %v2255
        %v2261 = vrot.slane %v2260, 4
        %v2263 = vshll.u32 %v1061, 16
        %v2265 = vrot.slane %v2263, 5
        %v2266 = vsel %vm1103, %v2261, %v2265
        %v2268 = vshrl.u32 %v1062, 16
        %v2270 = vrot.slane %v2268, 4
        %v2271 = vshll.u32 %v1062, 16
        %v2273 = vrot.slane %v2271, 5
        %v2274 = vor.u32 %v2270, %v2273
        %v2275 = vrot.slane %v2274, 4
        %v2277 = vshll.u32 %v1063, 16
        %v2279 = vrot.slane %v2277, 5
        %v2280 = vsel %vm1103, %v2275, %v2279
        %v2281 = vshrl.u32 %v1063, 16
        %v2283 = vrot.slane %v2281, 4
        %v2284 = vor.u32 %v2283, %v2279
        %v2285 = vrot.slane %v2284, 4
        %v2287 = vshll.u32 %v1064, 16
        %v2289 = vrot.slane %v2287, 5
        %v2290 = vsel %vm1103, %v2285, %v2289
        %v2292 = vshrl.u32 %v1065, 16
        %v2294 = vrot.slane %v2292, 4
        %v2295 = vshll.u32 %v1065, 16
        %v2297 = vrot.slane %v2295, 5
        %v2298 = vor.u32 %v2294, %v2297
        %v2299 = vrot.slane %v2298, 4
        %v2301 = vshll.u32 %v1066, 16
        %v2303 = vrot.slane %v2301, 5
        %v2304 = vsel %vm1103, %v2299, %v2303
        %v2305 = vshrl.u32 %v1066, 16
        %v2307 = vrot.slane %v2305, 4
        %v2308 = vor.u32 %v2307, %v2303
        %v2309 = vrot.slane %v2308, 4
        %v2311 = vshll.u32 %v1067, 16
        %v2313 = vrot.slane %v2311, 5
        %v2314 = vsel %vm1103, %v2309, %v2313
        %v2316 = vshrl.u32 %v1068, 16
        %v2318 = vrot.slane %v2316, 4
        %v2319 = vshll.u32 %v1068, 16
        %v2321 = vrot.slane %v2319, 5
        %v2322 = vor.u32 %v2318, %v2321
        %v2323 = vrot.slane %v2322, 4
        %v2325 = vshll.u32 %v1069, 16
        %v2327 = vrot.slane %v2325, 5
        %v2328 = vsel %vm1103, %v2323, %v2327
        %v2329 = vshrl.u32 %v1069, 16
        %v2331 = vrot.slane %v2329, 4
        %v2332 = vor.u32 %v2331, %v2327
        %v2333 = vrot.slane %v2332, 4
        %v2335 = vshll.u32 %v1070, 16
        %v2337 = vrot.slane %v2335, 5
        %v2338 = vsel %vm1103, %v2333, %v2337
        %v2340 = vshrl.u32 %v1071, 16
        %v2342 = vrot.slane %v2340, 4
        %v2343 = vshll.u32 %v1071, 16
        %v2345 = vrot.slane %v2343, 5
        %v2346 = vor.u32 %v2342, %v2345
        %v2347 = vrot.slane %v2346, 4
        %v2349 = vshll.u32 %v1072, 16
        %v2351 = vrot.slane %v2349, 5
        %v2352 = vsel %vm1103, %v2347, %v2351
        %v2353 = vshrl.u32 %v1072, 16
        %v2355 = vrot.slane %v2353, 4
        %v2356 = vor.u32 %v2355, %v2351
        %v2357 = vrot.slane %v2356, 4
        %v2359 = vshll.u32 %v1073, 16
        %v2361 = vrot.slane %v2359, 5
        %v2362 = vsel %vm1103, %v2357, %v2361
        %v2364 = vshrl.u32 %v1074, 16
        %v2366 = vrot.slane %v2364, 4
        %v2367 = vshll.u32 %v1074, 16
        %v2369 = vrot.slane %v2367, 5
        %v2370 = vor.u32 %v2366, %v2369
        %v2371 = vrot.slane %v2370, 4
        %v2373 = vshll.u32 %v1075, 16
        %v2375 = vrot.slane %v2373, 5
        %v2376 = vsel %vm1103, %v2371, %v2375
        %v2377 = vshrl.u32 %v1075, 16
        %v2379 = vrot.slane %v2377, 4
        %v2380 = vor.u32 %v2379, %v2375
        %v2381 = vrot.slane %v2380, 4
        %v2383 = vshll.u32 %v1076, 16
        %v2385 = vrot.slane %v2383, 5
        %v2386 = vsel %vm1103, %v2381, %v2385
        %v2388 = vshrl.u32 %v1077, 16
        %v2390 = vrot.slane %v2388, 4
        %v2391 = vshll.u32 %v1077, 16
        %v2393 = vrot.slane %v2391, 5
        %v2394 = vor.u32 %v2390, %v2393
        %v2395 = vrot.slane %v2394, 4
        %v2397 = vshll.u32 %v1078, 16
        %v2399 = vrot.slane %v2397, 5
        %v2400 = vsel %vm1103, %v2395, %v2399
        %v2401 = vshrl.u32 %v1078, 16
        %v2403 = vrot.slane %v2401, 4
        %v2404 = vor.u32 %v2403, %v2399
        %v2405 = vrot.slane %v2404, 4
        %v2407 = vshll.u32 %v1079, 16
        %v2409 = vrot.slane %v2407, 5
        %v2410 = vsel %vm1103, %v2405, %v2409
        %v2412 = vshrl.u32 %v1080, 16
        %v2414 = vrot.slane %v2412, 4
        %v2415 = vshll.u32 %v1080, 16
        %v2417 = vrot.slane %v2415, 5
        %v2418 = vor.u32 %v2414, %v2417
        %v2419 = vrot.slane %v2418, 4
        %v2421 = vshll.u32 %v1081, 16
        %v2423 = vrot.slane %v2421, 5
        %v2424 = vsel %vm1103, %v2419, %v2423
        %v2425 = vshrl.u32 %v1081, 16
        %v2427 = vrot.slane %v2425, 4
        %v2428 = vor.u32 %v2427, %v2423
        %v2429 = vrot.slane %v2428, 4
        %v2431 = vshll.u32 %v1082, 16
        %v2433 = vrot.slane %v2431, 5
        %v2434 = vsel %vm1103, %v2429, %v2433
        %v2436 = vshrl.u32 %v1083, 16
        %v2438 = vrot.slane %v2436, 4
        %v2439 = vshll.u32 %v1083, 16
        %v2441 = vrot.slane %v2439, 5
        %v2442 = vor.u32 %v2438, %v2441
        %v2443 = vrot.slane %v2442, 4
        %v2445 = vshll.u32 %v1084, 16
        %v2447 = vrot.slane %v2445, 5
        %v2448 = vsel %vm1103, %v2443, %v2447
        %v2449 = vshrl.u32 %v1084, 16
        %v2451 = vrot.slane %v2449, 4
        %v2452 = vor.u32 %v2451, %v2447
        %v2453 = vrot.slane %v2452, 4
        %v2455 = vshll.u32 %v1085, 16
        %v2457 = vrot.slane %v2455, 5
        %v2458 = vsel %vm1103, %v2453, %v2457
        %v2460 = vshrl.u32 %v1086, 16
        %v2462 = vrot.slane %v2460, 4
        %v2463 = vshll.u32 %v1086, 16
        %v2465 = vrot.slane %v2463, 5
        %v2466 = vor.u32 %v2462, %v2465
        %v2467 = vrot.slane %v2466, 4
        %v2469 = vshll.u32 %v1087, 16
        %v2471 = vrot.slane %v2469, 5
        %v2472 = vsel %vm1103, %v2467, %v2471
        %v2473 = vshrl.u32 %v1087, 16
        %v2475 = vrot.slane %v2473, 4
        %v2476 = vor.u32 %v2475, %v2471
        %v2477 = vrot.slane %v2476, 4
        %v2479 = vshll.u32 %v1088, 16
        %v2481 = vrot.slane %v2479, 5
        %v2482 = vsel %vm1103, %v2477, %v2481
        %v2484 = vshrl.u32 %v1089, 16
        %v2486 = vrot.slane %v2484, 4
        %v2487 = vshll.u32 %v1089, 16
        %v2489 = vrot.slane %v2487, 5
        %v2490 = vor.u32 %v2486, %v2489
        %v2491 = vrot.slane %v2490, 4
        %v2493 = vshll.u32 %v1090, 16
        %v2495 = vrot.slane %v2493, 5
        %v2496 = vsel %vm1103, %v2491, %v2495
        %v2497 = vshrl.u32 %v1090, 16
        %v2499 = vrot.slane %v2497, 4
        %v2500 = vor.u32 %v2499, %v2495
        %v2501 = vrot.slane %v2500, 4
        %v2503 = vshll.u32 %v1091, 16
        %v2505 = vrot.slane %v2503, 5
        %v2506 = vsel %vm1103, %v2501, %v2505
        %v2508 = vshrl.u32 %v1092, 16
        %v2510 = vrot.slane %v2508, 4
        %v2511 = vshll.u32 %v1092, 16
        %v2513 = vrot.slane %v2511, 5
        %v2514 = vor.u32 %v2510, %v2513
        %v2515 = vrot.slane %v2514, 4
        %v2517 = vshll.u32 %v1093, 16
        %v2519 = vrot.slane %v2517, 5
        %v2520 = vsel %vm1103, %v2515, %v2519
        %v2521 = vshrl.u32 %v1093, 16
        %v2523 = vrot.slane %v2521, 4
        %v2524 = vor.u32 %v2523, %v2519
        %v2525 = vrot.slane %v2524, 4
        %v2527 = vshll.u32 %v1094, 16
        %v2529 = vrot.slane %v2527, 5
        %v2530 = vsel %vm1103, %v2525, %v2529
        %v2532 = vshrl.u32 %v1095, 16
        %v2534 = vrot.slane %v2532, 4
        %v2535 = vshll.u32 %v1095, 16
        %v2537 = vrot.slane %v2535, 5
        %v2538 = vor.u32 %v2534, %v2537
        %v2539 = vrot.slane %v2538, 4
        %v2541 = vshll.u32 %v1096, 16
        %v2543 = vrot.slane %v2541, 5
        %v2544 = vsel %vm1103, %v2539, %v2543
        %v2545 = vshrl.u32 %v1096, 16
        %v2547 = vrot.slane %v2545, 4
        %v2548 = vor.u32 %v2547, %v2543
        %v2549 = vrot.slane %v2548, 4
        %v2551 = vshll.u32 %v1097, 16
        %v2553 = vrot.slane %v2551, 5
        %v2554 = vsel %vm1103, %v2549, %v2553
        %v2556 = vshrl.u32 %v1098, 16
        %v2558 = vrot.slane %v2556, 4
        %v2559 = vshll.u32 %v1098, 16
        %v2561 = vrot.slane %v2559, 5
        %v2562 = vor.u32 %v2558, %v2561
        %v2563 = vrot.slane %v2562, 4
        %v2565 = vshll.u32 %v1099, 16
        %v2567 = vrot.slane %v2565, 5
        %v2568 = vsel %vm1103, %v2563, %v2567
        %v2569 = vshrl.u32 %v1099, 16
        %v2571 = vrot.slane %v2569, 4
        %v2572 = vor.u32 %v2571, %v2567
        %v2573 = vrot.slane %v2572, 4
        %v2575 = vshll.u32 %v1100, 16
        %v2577 = vrot.slane %v2575, 5
        %v2578 = vsel %vm1103, %v2573, %v2577
        %v2627 = vrot.slane %v1053, 5
        %v2628 = vrot.slane %v2627, 4
        %v2629 = vrot.slane %v1054, 5
        %v2630 = vsel %vm1538, %v2628, %v2629
        %v2631 = vrot.slane %v2629, 4
        %v2632 = vrot.slane %v1055, 5
        %v2633 = vsel %vm1538, %v2631, %v2632
        %v2634 = vrot.slane %v1056, 5
        %v2635 = vrot.slane %v2634, 4
        %v2636 = vrot.slane %v1057, 5
        %v2637 = vsel %vm1538, %v2635, %v2636
        %v2638 = vrot.slane %v2636, 4
        %v2639 = vrot.slane %v1058, 5
        %v2640 = vsel %vm1538, %v2638, %v2639
        %v2641 = vrot.slane %v1059, 5
        %v2642 = vrot.slane %v2641, 4
        %v2643 = vrot.slane %v1060, 5
        %v2644 = vsel %vm1538, %v2642, %v2643
        %v2645 = vrot.slane %v2643, 4
        %v2646 = vrot.slane %v1061, 5
        %v2647 = vsel %vm1538, %v2645, %v2646
        %v2648 = vrot.slane %v1062, 5
        %v2649 = vrot.slane %v2648, 4
        %v2650 = vrot.slane %v1063, 5
        %v2651 = vsel %vm1538, %v2649, %v2650
        %v2652 = vrot.slane %v2650, 4
        %v2653 = vrot.slane %v1064, 5
        %v2654 = vsel %vm1538, %v2652, %v2653
        %v2655 = vrot.slane %v1065, 5
        %v2656 = vrot.slane %v2655, 4
        %v2657 = vrot.slane %v1066, 5
        %v2658 = vsel %vm1538, %v2656, %v2657
        %v2659 = vrot.slane %v2657, 4
        %v2660 = vrot.slane %v1067, 5
        %v2661 = vsel %vm1538, %v2659, %v2660
        %v2662 = vrot.slane %v1068, 5
        %v2663 = vrot.slane %v2662, 4
        %v2664 = vrot.slane %v1069, 5
        %v2665 = vsel %vm1538, %v2663, %v2664
        %v2666 = vrot.slane %v2664, 4
        %v2667 = vrot.slane %v1070, 5
        %v2668 = vsel %vm1538, %v2666, %v2667
        %v2669 = vrot.slane %v1071, 5
        %v2670 = vrot.slane %v2669, 4
        %v2671 = vrot.slane %v1072, 5
        %v2672 = vsel %vm1538, %v2670, %v2671
        %v2673 = vrot.slane %v2671, 4
        %v2674 = vrot.slane %v1073, 5
        %v2675 = vsel %vm1538, %v2673, %v2674
        %v2676 = vrot.slane %v1074, 5
        %v2677 = vrot.slane %v2676, 4
        %v2678 = vrot.slane %v1075, 5
        %v2679 = vsel %vm1538, %v2677, %v2678
        %v2680 = vrot.slane %v2678, 4
        %v2681 = vrot.slane %v1076, 5
        %v2682 = vsel %vm1538, %v2680, %v2681
        %v2683 = vrot.slane %v1077, 5
        %v2684 = vrot.slane %v2683, 4
        %v2685 = vrot.slane %v1078, 5
        %v2686 = vsel %vm1538, %v2684, %v2685
        %v2687 = vrot.slane %v2685, 4
        %v2688 = vrot.slane %v1079, 5
        %v2689 = vsel %vm1538, %v2687, %v2688
        %v2690 = vrot.slane %v1080, 5
        %v2691 = vrot.slane %v2690, 4
        %v2692 = vrot.slane %v1081, 5
        %v2693 = vsel %vm1538, %v2691, %v2692
        %v2694 = vrot.slane %v2692, 4
        %v2695 = vrot.slane %v1082, 5
        %v2696 = vsel %vm1538, %v2694, %v2695
        %v2697 = vrot.slane %v1083, 5
        %v2698 = vrot.slane %v2697, 4
        %v2699 = vrot.slane %v1084, 5
        %v2700 = vsel %vm1538, %v2698, %v2699
        %v2701 = vrot.slane %v2699, 4
        %v2702 = vrot.slane %v1085, 5
        %v2703 = vsel %vm1538, %v2701, %v2702
        %v2704 = vrot.slane %v1086, 5
        %v2705 = vrot.slane %v2704, 4
        %v2706 = vrot.slane %v1087, 5
        %v2707 = vsel %vm1538, %v2705, %v2706
        %v2708 = vrot.slane %v2706, 4
        %v2709 = vrot.slane %v1088, 5
        %v2710 = vsel %vm1538, %v2708, %v2709
        %v2711 = vrot.slane %v1089, 5
        %v2712 = vrot.slane %v2711, 4
        %v2713 = vrot.slane %v1090, 5
        %v2714 = vsel %vm1538, %v2712, %v2713
        %v2715 = vrot.slane %v2713, 4
        %v2716 = vrot.slane %v1091, 5
        %v2717 = vsel %vm1538, %v2715, %v2716
        %v2718 = vrot.slane %v1092, 5
        %v2719 = vrot.slane %v2718, 4
        %v2720 = vrot.slane %v1093, 5
        %v2721 = vsel %vm1538, %v2719, %v2720
        %v2722 = vrot.slane %v2720, 4
        %v2723 = vrot.slane %v1094, 5
        %v2724 = vsel %vm1538, %v2722, %v2723
        %v2725 = vrot.slane %v1095, 5
        %v2726 = vrot.slane %v2725, 4
        %v2727 = vrot.slane %v1096, 5
        %v2728 = vsel %vm1538, %v2726, %v2727
        %v2729 = vrot.slane %v2727, 4
        %v2730 = vrot.slane %v1097, 5
        %v2731 = vsel %vm1538, %v2729, %v2730
        %v2732 = vrot.slane %v1098, 5
        %v2733 = vrot.slane %v2732, 4
        %v2734 = vrot.slane %v1099, 5
        %v2735 = vsel %vm1538, %v2733, %v2734
        %v2736 = vrot.slane %v2734, 4
        %v2737 = vrot.slane %v1100, 5
        %v2738 = vsel %vm1538, %v2736, %v2737
        %v2739 = vunpack.c.l.b16 %v957
        %v2740 = vunpack.c.l.b16 %v958
        %v2741 = vunpack.c.l.b16 %v960
        %v2742 = vunpack.c.l.b16 %v961
        %v2743 = vunpack.c.l.b16 %v963
        %v2744 = vunpack.c.l.b16 %v964
        %v2745 = vunpack.c.l.b16 %v966
        %v2746 = vunpack.c.l.b16 %v967
        %v2747 = vunpack.c.l.b16 %v969
        %v2748 = vunpack.c.l.b16 %v970
        %v2749 = vunpack.c.l.b16 %v972
        %v2750 = vunpack.c.l.b16 %v973
        %v2751 = vunpack.c.l.b16 %v975
        %v2752 = vunpack.c.l.b16 %v976
        %v2753 = vunpack.c.l.b16 %v978
        %v2754 = vunpack.c.l.b16 %v979
        %v2755 = vunpack.c.l.b16 %v981
        %v2756 = vunpack.c.l.b16 %v982
        %v2757 = vunpack.c.l.b16 %v984
        %v2758 = vunpack.c.l.b16 %v985
        %v2759 = vunpack.c.l.b16 %v987
        %v2760 = vunpack.c.l.b16 %v988
        %v2761 = vunpack.c.l.b16 %v990
        %v2762 = vunpack.c.l.b16 %v991
        %v2763 = vunpack.c.l.b16 %v993
        %v2764 = vunpack.c.l.b16 %v994
        %v2765 = vunpack.c.l.b16 %v996
        %v2766 = vunpack.c.l.b16 %v997
        %v2767 = vunpack.c.l.b16 %v999
        %v2768 = vunpack.c.l.b16 %v1000
        %v2769 = vunpack.c.l.b16 %v1002
        %v2770 = vunpack.c.l.b16 %v1003
        %v2771 = vpack.c.b16 %v2740, %v2739
        %v2772 = vpack.c.b16 %v2742, %v2741
        %v2773 = vpack.c.b16 %v2744, %v2743
        %v2774 = vpack.c.b16 %v2746, %v2745
        %v2775 = vpack.c.b16 %v2748, %v2747
        %v2776 = vpack.c.b16 %v2750, %v2749
        %v2777 = vpack.c.b16 %v2752, %v2751
        %v2778 = vpack.c.b16 %v2754, %v2753
        %v2779 = vpack.c.b16 %v2756, %v2755
        %v2780 = vpack.c.b16 %v2758, %v2757
        %v2781 = vpack.c.b16 %v2760, %v2759
        %v2782 = vpack.c.b16 %v2762, %v2761
        %v2783 = vpack.c.b16 %v2764, %v2763
        %v2784 = vpack.c.b16 %v2766, %v2765
        %v2785 = vpack.c.b16 %v2768, %v2767
        %v2786 = vpack.c.b16 %v2770, %v2769
        %v2787 = vunpack.c.l.b16 %v1117
        %v2788 = vunpack.c.l.b16 %v1127
        %v2789 = vunpack.c.l.b16 %v1141
        %v2790 = vunpack.c.l.b16 %v1151
        %v2791 = vunpack.c.l.b16 %v1165
        %v2792 = vunpack.c.l.b16 %v1175
        %v2793 = vunpack.c.l.b16 %v1189
        %v2794 = vunpack.c.l.b16 %v1199
        %v2795 = vunpack.c.l.b16 %v1213
        %v2796 = vunpack.c.l.b16 %v1223
        %v2797 = vunpack.c.l.b16 %v1237
        %v2798 = vunpack.c.l.b16 %v1247
        %v2799 = vunpack.c.l.b16 %v1261
        %v2800 = vunpack.c.l.b16 %v1271
        %v2801 = vunpack.c.l.b16 %v1285
        %v2802 = vunpack.c.l.b16 %v1295
        %v2803 = vunpack.c.l.b16 %v1309
        %v2804 = vunpack.c.l.b16 %v1319
        %v2805 = vunpack.c.l.b16 %v1333
        %v2806 = vunpack.c.l.b16 %v1343
        %v2807 = vunpack.c.l.b16 %v1357
        %v2808 = vunpack.c.l.b16 %v1367
        %v2809 = vunpack.c.l.b16 %v1381
        %v2810 = vunpack.c.l.b16 %v1391
        %v2811 = vunpack.c.l.b16 %v1405
        %v2812 = vunpack.c.l.b16 %v1415
        %v2813 = vunpack.c.l.b16 %v1429
        %v2814 = vunpack.c.l.b16 %v1439
        %v2815 = vunpack.c.l.b16 %v1453
        %v2816 = vunpack.c.l.b16 %v1463
        %v2817 = vunpack.c.l.b16 %v1477
        %v2818 = vunpack.c.l.b16 %v1487
        %v2819 = vpack.c.b16 %v2788, %v2787
        %v2820 = vpack.c.b16 %v2790, %v2789
        %v2821 = vpack.c.b16 %v2792, %v2791
        %v2822 = vpack.c.b16 %v2794, %v2793
        %v2823 = vpack.c.b16 %v2796, %v2795
        %v2824 = vpack.c.b16 %v2798, %v2797
        %v2825 = vpack.c.b16 %v2800, %v2799
        %v2826 = vpack.c.b16 %v2802, %v2801
        %v2827 = vpack.c.b16 %v2804, %v2803
        %v2828 = vpack.c.b16 %v2806, %v2805
        %v2829 = vpack.c.b16 %v2808, %v2807
        %v2830 = vpack.c.b16 %v2810, %v2809
        %v2831 = vpack.c.b16 %v2812, %v2811
        %v2832 = vpack.c.b16 %v2814, %v2813
        %v2833 = vpack.c.b16 %v2816, %v2815
        %v2834 = vpack.c.b16 %v2818, %v2817
        %2835 = vrot.lane.b32.xlu0 %v2819, 4
        %v2836 = vpop.permute.xlu0 %2835
        %2837 = vrot.lane.b32.xlu0 %v2820, 4
        %v2838 = vpop.permute.xlu0 %2837
        %2839 = vrot.lane.b32.xlu0 %v2821, 4
        %v2840 = vpop.permute.xlu0 %2839
        %2841 = vrot.lane.b32.xlu0 %v2822, 4
        %v2842 = vpop.permute.xlu0 %2841
        %2843 = vrot.lane.b32.xlu0 %v2823, 4
        %v2844 = vpop.permute.xlu0 %2843
        %2845 = vrot.lane.b32.xlu0 %v2824, 4
        %v2846 = vpop.permute.xlu0 %2845
        %2847 = vrot.lane.b32.xlu0 %v2825, 4
        %v2848 = vpop.permute.xlu0 %2847
        %2849 = vrot.lane.b32.xlu0 %v2826, 4
        %v2850 = vpop.permute.xlu0 %2849
        %2851 = vrot.lane.b32.xlu0 %v2827, 4
        %v2852 = vpop.permute.xlu0 %2851
        %2853 = vrot.lane.b32.xlu0 %v2828, 4
        %v2854 = vpop.permute.xlu0 %2853
        %2855 = vrot.lane.b32.xlu0 %v2829, 4
        %v2856 = vpop.permute.xlu0 %2855
        %2857 = vrot.lane.b32.xlu0 %v2830, 4
        %v2858 = vpop.permute.xlu0 %2857
        %2859 = vrot.lane.b32.xlu0 %v2831, 4
        %v2860 = vpop.permute.xlu0 %2859
        %2861 = vrot.lane.b32.xlu0 %v2832, 4
        %v2862 = vpop.permute.xlu0 %2861
        %2863 = vrot.lane.b32.xlu0 %v2833, 4
        %v2864 = vpop.permute.xlu0 %2863
        %2865 = vrot.lane.b32.xlu0 %v2834, 4
        %v2866 = vpop.permute.xlu0 %2865
        %v2867 = vunpack.c.l.b16 %v1542
        %v2868 = vunpack.c.l.b16 %v1545
        %v2869 = vunpack.c.l.b16 %v1549
        %v2870 = vunpack.c.l.b16 %v1552
        %v2871 = vunpack.c.l.b16 %v1556
        %v2872 = vunpack.c.l.b16 %v1559
        %v2873 = vunpack.c.l.b16 %v1563
        %v2874 = vunpack.c.l.b16 %v1566
        %v2875 = vunpack.c.l.b16 %v1570
        %v2876 = vunpack.c.l.b16 %v1573
        %v2877 = vunpack.c.l.b16 %v1577
        %v2878 = vunpack.c.l.b16 %v1580
        %v2879 = vunpack.c.l.b16 %v1584
        %v2880 = vunpack.c.l.b16 %v1587
        %v2881 = vunpack.c.l.b16 %v1591
        %v2882 = vunpack.c.l.b16 %v1594
        %v2883 = vunpack.c.l.b16 %v1598
        %v2884 = vunpack.c.l.b16 %v1601
        %v2885 = vunpack.c.l.b16 %v1605
        %v2886 = vunpack.c.l.b16 %v1608
        %v2887 = vunpack.c.l.b16 %v1612
        %v2888 = vunpack.c.l.b16 %v1615
        %v2889 = vunpack.c.l.b16 %v1619
        %v2890 = vunpack.c.l.b16 %v1622
        %v2891 = vunpack.c.l.b16 %v1626
        %v2892 = vunpack.c.l.b16 %v1629
        %v2893 = vunpack.c.l.b16 %v1633
        %v2894 = vunpack.c.l.b16 %v1636
        %v2895 = vunpack.c.l.b16 %v1640
        %v2896 = vunpack.c.l.b16 %v1643
        %v2897 = vunpack.c.l.b16 %v1647
        %v2898 = vunpack.c.l.b16 %v1650
        %v2899 = vpack.c.b16 %v2868, %v2867
        %v2900 = vpack.c.b16 %v2870, %v2869
        %v2901 = vpack.c.b16 %v2872, %v2871
        %v2902 = vpack.c.b16 %v2874, %v2873
        %v2903 = vpack.c.b16 %v2876, %v2875
        %v2904 = vpack.c.b16 %v2878, %v2877
        %v2905 = vpack.c.b16 %v2880, %v2879
        %v2906 = vpack.c.b16 %v2882, %v2881
        %v2907 = vpack.c.b16 %v2884, %v2883
        %v2908 = vpack.c.b16 %v2886, %v2885
        %v2909 = vpack.c.b16 %v2888, %v2887
        %v2910 = vpack.c.b16 %v2890, %v2889
        %v2911 = vpack.c.b16 %v2892, %v2891
        %v2912 = vpack.c.b16 %v2894, %v2893
        %v2913 = vpack.c.b16 %v2896, %v2895
        %v2914 = vpack.c.b16 %v2898, %v2897
        %2915 = vrot.lane.b32.xlu0 %v2899, 8
        %v2916 = vpop.permute.xlu0 %2915
        %2917 = vrot.lane.b32.xlu0 %v2900, 8
        %v2918 = vpop.permute.xlu0 %2917
        %2919 = vrot.lane.b32.xlu0 %v2901, 8
        %v2920 = vpop.permute.xlu0 %2919
        %2921 = vrot.lane.b32.xlu0 %v2902, 8
        %v2922 = vpop.permute.xlu0 %2921
        %2923 = vrot.lane.b32.xlu0 %v2903, 8
        %v2924 = vpop.permute.xlu0 %2923
        %2925 = vrot.lane.b32.xlu0 %v2904, 8
        %v2926 = vpop.permute.xlu0 %2925
        %2927 = vrot.lane.b32.xlu0 %v2905, 8
        %v2928 = vpop.permute.xlu0 %2927
        %2929 = vrot.lane.b32.xlu0 %v2906, 8
        %v2930 = vpop.permute.xlu0 %2929
        %2931 = vrot.lane.b32.xlu0 %v2907, 8
        %v2932 = vpop.permute.xlu0 %2931
        %2933 = vrot.lane.b32.xlu0 %v2908, 8
        %v2934 = vpop.permute.xlu0 %2933
        %2935 = vrot.lane.b32.xlu0 %v2909, 8
        %v2936 = vpop.permute.xlu0 %2935
        %2937 = vrot.lane.b32.xlu0 %v2910, 8
        %v2938 = vpop.permute.xlu0 %2937
        %2939 = vrot.lane.b32.xlu0 %v2911, 8
        %v2940 = vpop.permute.xlu0 %2939
        %2941 = vrot.lane.b32.xlu0 %v2912, 8
        %v2942 = vpop.permute.xlu0 %2941
        %2943 = vrot.lane.b32.xlu0 %v2913, 8
        %v2944 = vpop.permute.xlu0 %2943
        %2945 = vrot.lane.b32.xlu0 %v2914, 8
        %v2946 = vpop.permute.xlu0 %2945
        %v2947 = vunpack.c.l.b16 %v1005
        %v2948 = vunpack.c.l.b16 %v1006
        %v2949 = vunpack.c.l.b16 %v1008
        %v2950 = vunpack.c.l.b16 %v1009
        %v2951 = vunpack.c.l.b16 %v1011
        %v2952 = vunpack.c.l.b16 %v1012
        %v2953 = vunpack.c.l.b16 %v1014
        %v2954 = vunpack.c.l.b16 %v1015
        %v2955 = vunpack.c.l.b16 %v1017
        %v2956 = vunpack.c.l.b16 %v1018
        %v2957 = vunpack.c.l.b16 %v1020
        %v2958 = vunpack.c.l.b16 %v1021
        %v2959 = vunpack.c.l.b16 %v1023
        %v2960 = vunpack.c.l.b16 %v1024
        %v2961 = vunpack.c.l.b16 %v1026
        %v2962 = vunpack.c.l.b16 %v1027
        %v2963 = vunpack.c.l.b16 %v1029
        %v2964 = vunpack.c.l.b16 %v1030
        %v2965 = vunpack.c.l.b16 %v1032
        %v2966 = vunpack.c.l.b16 %v1033
        %v2967 = vunpack.c.l.b16 %v1035
        %v2968 = vunpack.c.l.b16 %v1036
        %v2969 = vunpack.c.l.b16 %v1038
        %v2970 = vunpack.c.l.b16 %v1039
        %v2971 = vunpack.c.l.b16 %v1041
        %v2972 = vunpack.c.l.b16 %v1042
        %v2973 = vunpack.c.l.b16 %v1044
        %v2974 = vunpack.c.l.b16 %v1045
        %v2975 = vunpack.c.l.b16 %v1047
        %v2976 = vunpack.c.l.b16 %v1048
        %v2977 = vunpack.c.l.b16 %v1050
        %v2978 = vunpack.c.l.b16 %v1051
        %v2979 = vpack.c.b16 %v2948, %v2947
        %v2980 = vpack.c.b16 %v2950, %v2949
        %v2981 = vpack.c.b16 %v2952, %v2951
        %v2982 = vpack.c.b16 %v2954, %v2953
        %v2983 = vpack.c.b16 %v2956, %v2955
        %v2984 = vpack.c.b16 %v2958, %v2957
        %v2985 = vpack.c.b16 %v2960, %v2959
        %v2986 = vpack.c.b16 %v2962, %v2961
        %v2987 = vpack.c.b16 %v2964, %v2963
        %v2988 = vpack.c.b16 %v2966, %v2965
        %v2989 = vpack.c.b16 %v2968, %v2967
        %v2990 = vpack.c.b16 %v2970, %v2969
        %v2991 = vpack.c.b16 %v2972, %v2971
        %v2992 = vpack.c.b16 %v2974, %v2973
        %v2993 = vpack.c.b16 %v2976, %v2975
        %v2994 = vpack.c.b16 %v2978, %v2977
        %2995 = vrot.lane.b32.xlu0 %v2979, 12
        %v2996 = vpop.permute.xlu0 %2995
        %2997 = vrot.lane.b32.xlu0 %v2980, 12
        %v2998 = vpop.permute.xlu0 %2997
        %2999 = vrot.lane.b32.xlu0 %v2981, 12
        %v3000 = vpop.permute.xlu0 %2999
        %3001 = vrot.lane.b32.xlu0 %v2982, 12
        %v3002 = vpop.permute.xlu0 %3001
        %3003 = vrot.lane.b32.xlu0 %v2983, 12
        %v3004 = vpop.permute.xlu0 %3003
        %3005 = vrot.lane.b32.xlu0 %v2984, 12
        %v3006 = vpop.permute.xlu0 %3005
        %3007 = vrot.lane.b32.xlu0 %v2985, 12
        %v3008 = vpop.permute.xlu0 %3007
        %3009 = vrot.lane.b32.xlu0 %v2986, 12
        %v3010 = vpop.permute.xlu0 %3009
        %3011 = vrot.lane.b32.xlu0 %v2987, 12
        %v3012 = vpop.permute.xlu0 %3011
        %3013 = vrot.lane.b32.xlu0 %v2988, 12
        %v3014 = vpop.permute.xlu0 %3013
        %3015 = vrot.lane.b32.xlu0 %v2989, 12
        %v3016 = vpop.permute.xlu0 %3015
        %3017 = vrot.lane.b32.xlu0 %v2990, 12
        %v3018 = vpop.permute.xlu0 %3017
        %3019 = vrot.lane.b32.xlu0 %v2991, 12
        %v3020 = vpop.permute.xlu0 %3019
        %3021 = vrot.lane.b32.xlu0 %v2992, 12
        %v3022 = vpop.permute.xlu0 %3021
        %3023 = vrot.lane.b32.xlu0 %v2993, 12
        %v3024 = vpop.permute.xlu0 %3023
        %3025 = vrot.lane.b32.xlu0 %v2994, 12
        %v3026 = vpop.permute.xlu0 %3025
        %v3027 = vunpack.c.l.b16 %v1664
        %v3028 = vunpack.c.l.b16 %v1674
        %v3029 = vunpack.c.l.b16 %v1688
        %v3030 = vunpack.c.l.b16 %v1698
        %v3031 = vunpack.c.l.b16 %v1712
        %v3032 = vunpack.c.l.b16 %v1722
        %v3033 = vunpack.c.l.b16 %v1736
        %v3034 = vunpack.c.l.b16 %v1746
        %v3035 = vunpack.c.l.b16 %v1760
        %v3036 = vunpack.c.l.b16 %v1770
        %v3037 = vunpack.c.l.b16 %v1784
        %v3038 = vunpack.c.l.b16 %v1794
        %v3039 = vunpack.c.l.b16 %v1808
        %v3040 = vunpack.c.l.b16 %v1818
        %v3041 = vunpack.c.l.b16 %v1832
        %v3042 = vunpack.c.l.b16 %v1842
        %v3043 = vunpack.c.l.b16 %v1856
        %v3044 = vunpack.c.l.b16 %v1866
        %v3045 = vunpack.c.l.b16 %v1880
        %v3046 = vunpack.c.l.b16 %v1890
        %v3047 = vunpack.c.l.b16 %v1904
        %v3048 = vunpack.c.l.b16 %v1914
        %v3049 = vunpack.c.l.b16 %v1928
        %v3050 = vunpack.c.l.b16 %v1938
        %v3051 = vunpack.c.l.b16 %v1952
        %v3052 = vunpack.c.l.b16 %v1962
        %v3053 = vunpack.c.l.b16 %v1976
        %v3054 = vunpack.c.l.b16 %v1986
        %v3055 = vunpack.c.l.b16 %v2000
        %v3056 = vunpack.c.l.b16 %v2010
        %v3057 = vunpack.c.l.b16 %v2024
        %v3058 = vunpack.c.l.b16 %v2034
        %v3059 = vpack.c.b16 %v3028, %v3027
        %v3060 = vpack.c.b16 %v3030, %v3029
        %v3061 = vpack.c.b16 %v3032, %v3031
        %v3062 = vpack.c.b16 %v3034, %v3033
        %v3063 = vpack.c.b16 %v3036, %v3035
        %v3064 = vpack.c.b16 %v3038, %v3037
        %v3065 = vpack.c.b16 %v3040, %v3039
        %v3066 = vpack.c.b16 %v3042, %v3041
        %v3067 = vpack.c.b16 %v3044, %v3043
        %v3068 = vpack.c.b16 %v3046, %v3045
        %v3069 = vpack.c.b16 %v3048, %v3047
        %v3070 = vpack.c.b16 %v3050, %v3049
        %v3071 = vpack.c.b16 %v3052, %v3051
        %v3072 = vpack.c.b16 %v3054, %v3053
        %v3073 = vpack.c.b16 %v3056, %v3055
        %v3074 = vpack.c.b16 %v3058, %v3057
        %3075 = vrot.lane.b32.xlu0 %v3059, 16
        %v3076 = vpop.permute.xlu0 %3075
        %3077 = vrot.lane.b32.xlu0 %v3060, 16
        %v3078 = vpop.permute.xlu0 %3077
        %3079 = vrot.lane.b32.xlu0 %v3061, 16
        %v3080 = vpop.permute.xlu0 %3079
        %3081 = vrot.lane.b32.xlu0 %v3062, 16
        %v3082 = vpop.permute.xlu0 %3081
        %3083 = vrot.lane.b32.xlu0 %v3063, 16
        %v3084 = vpop.permute.xlu0 %3083
        %3085 = vrot.lane.b32.xlu0 %v3064, 16
        %v3086 = vpop.permute.xlu0 %3085
        %3087 = vrot.lane.b32.xlu0 %v3065, 16
        %v3088 = vpop.permute.xlu0 %3087
        %3089 = vrot.lane.b32.xlu0 %v3066, 16
        %v3090 = vpop.permute.xlu0 %3089
        %3091 = vrot.lane.b32.xlu0 %v3067, 16
        %v3092 = vpop.permute.xlu0 %3091
        %3093 = vrot.lane.b32.xlu0 %v3068, 16
        %v3094 = vpop.permute.xlu0 %3093
        %3095 = vrot.lane.b32.xlu0 %v3069, 16
        %v3096 = vpop.permute.xlu0 %3095
        %3097 = vrot.lane.b32.xlu0 %v3070, 16
        %v3098 = vpop.permute.xlu0 %3097
        %3099 = vrot.lane.b32.xlu0 %v3071, 16
        %v3100 = vpop.permute.xlu0 %3099
        %3101 = vrot.lane.b32.xlu0 %v3072, 16
        %v3102 = vpop.permute.xlu0 %3101
        %3103 = vrot.lane.b32.xlu0 %v3073, 16
        %v3104 = vpop.permute.xlu0 %3103
        %3105 = vrot.lane.b32.xlu0 %v3074, 16
        %v3106 = vpop.permute.xlu0 %3105
        %v3107 = vunpack.c.l.b16 %v2086
        %v3108 = vunpack.c.l.b16 %v2089
        %v3109 = vunpack.c.l.b16 %v2093
        %v3110 = vunpack.c.l.b16 %v2096
        %v3111 = vunpack.c.l.b16 %v2100
        %v3112 = vunpack.c.l.b16 %v2103
        %v3113 = vunpack.c.l.b16 %v2107
        %v3114 = vunpack.c.l.b16 %v2110
        %v3115 = vunpack.c.l.b16 %v2114
        %v3116 = vunpack.c.l.b16 %v2117
        %v3117 = vunpack.c.l.b16 %v2121
        %v3118 = vunpack.c.l.b16 %v2124
        %v3119 = vunpack.c.l.b16 %v2128
        %v3120 = vunpack.c.l.b16 %v2131
        %v3121 = vunpack.c.l.b16 %v2135
        %v3122 = vunpack.c.l.b16 %v2138
        %v3123 = vunpack.c.l.b16 %v2142
        %v3124 = vunpack.c.l.b16 %v2145
        %v3125 = vunpack.c.l.b16 %v2149
        %v3126 = vunpack.c.l.b16 %v2152
        %v3127 = vunpack.c.l.b16 %v2156
        %v3128 = vunpack.c.l.b16 %v2159
        %v3129 = vunpack.c.l.b16 %v2163
        %v3130 = vunpack.c.l.b16 %v2166
        %v3131 = vunpack.c.l.b16 %v2170
        %v3132 = vunpack.c.l.b16 %v2173
        %v3133 = vunpack.c.l.b16 %v2177
        %v3134 = vunpack.c.l.b16 %v2180
        %v3135 = vunpack.c.l.b16 %v2184
        %v3136 = vunpack.c.l.b16 %v2187
        %v3137 = vunpack.c.l.b16 %v2191
        %v3138 = vunpack.c.l.b16 %v2194
        %v3139 = vpack.c.b16 %v3108, %v3107
        %v3140 = vpack.c.b16 %v3110, %v3109
        %v3141 = vpack.c.b16 %v3112, %v3111
        %v3142 = vpack.c.b16 %v3114, %v3113
        %v3143 = vpack.c.b16 %v3116, %v3115
        %v3144 = vpack.c.b16 %v3118, %v3117
        %v3145 = vpack.c.b16 %v3120, %v3119
        %v3146 = vpack.c.b16 %v3122, %v3121
        %v3147 = vpack.c.b16 %v3124, %v3123
        %v3148 = vpack.c.b16 %v3126, %v3125
        %v3149 = vpack.c.b16 %v3128, %v3127
        %v3150 = vpack.c.b16 %v3130, %v3129
        %v3151 = vpack.c.b16 %v3132, %v3131
        %v3152 = vpack.c.b16 %v3134, %v3133
        %v3153 = vpack.c.b16 %v3136, %v3135
        %v3154 = vpack.c.b16 %v3138, %v3137
        %3155 = vrot.lane.b32.xlu0 %v3139, 20
        %v3156 = vpop.permute.xlu0 %3155
        %3157 = vrot.lane.b32.xlu0 %v3140, 20
        %v3158 = vpop.permute.xlu0 %3157
        %3159 = vrot.lane.b32.xlu0 %v3141, 20
        %v3160 = vpop.permute.xlu0 %3159
        %3161 = vrot.lane.b32.xlu0 %v3142, 20
        %v3162 = vpop.permute.xlu0 %3161
        %3163 = vrot.lane.b32.xlu0 %v3143, 20
        %v3164 = vpop.permute.xlu0 %3163
        %3165 = vrot.lane.b32.xlu0 %v3144, 20
        %v3166 = vpop.permute.xlu0 %3165
        %3167 = vrot.lane.b32.xlu0 %v3145, 20
        %v3168 = vpop.permute.xlu0 %3167
        %3169 = vrot.lane.b32.xlu0 %v3146, 20
        %v3170 = vpop.permute.xlu0 %3169
        %3171 = vrot.lane.b32.xlu0 %v3147, 20
        %v3172 = vpop.permute.xlu0 %3171
        %3173 = vrot.lane.b32.xlu0 %v3148, 20
        %v3174 = vpop.permute.xlu0 %3173
        %3175 = vrot.lane.b32.xlu0 %v3149, 20
        %v3176 = vpop.permute.xlu0 %3175
        %3177 = vrot.lane.b32.xlu0 %v3150, 20
        %v3178 = vpop.permute.xlu0 %3177
        %3179 = vrot.lane.b32.xlu0 %v3151, 20
        %v3180 = vpop.permute.xlu0 %3179
        %3181 = vrot.lane.b32.xlu0 %v3152, 20
        %v3182 = vpop.permute.xlu0 %3181
        %3183 = vrot.lane.b32.xlu0 %v3153, 20
        %v3184 = vpop.permute.xlu0 %3183
        %3185 = vrot.lane.b32.xlu0 %v3154, 20
        %v3186 = vpop.permute.xlu0 %3185
        %v3187 = vunpack.c.l.b16 %v1053
        %v3188 = vunpack.c.l.b16 %v1054
        %v3189 = vunpack.c.l.b16 %v1056
        %v3190 = vunpack.c.l.b16 %v1057
        %v3191 = vunpack.c.l.b16 %v1059
        %v3192 = vunpack.c.l.b16 %v1060
        %v3193 = vunpack.c.l.b16 %v1062
        %v3194 = vunpack.c.l.b16 %v1063
        %v3195 = vunpack.c.l.b16 %v1065
        %v3196 = vunpack.c.l.b16 %v1066
        %v3197 = vunpack.c.l.b16 %v1068
        %v3198 = vunpack.c.l.b16 %v1069
        %v3199 = vunpack.c.l.b16 %v1071
        %v3200 = vunpack.c.l.b16 %v1072
        %v3201 = vunpack.c.l.b16 %v1074
        %v3202 = vunpack.c.l.b16 %v1075
        %v3203 = vunpack.c.l.b16 %v1077
        %v3204 = vunpack.c.l.b16 %v1078
        %v3205 = vunpack.c.l.b16 %v1080
        %v3206 = vunpack.c.l.b16 %v1081
        %v3207 = vunpack.c.l.b16 %v1083
        %v3208 = vunpack.c.l.b16 %v1084
        %v3209 = vunpack.c.l.b16 %v1086
        %v3210 = vunpack.c.l.b16 %v1087
        %v3211 = vunpack.c.l.b16 %v1089
        %v3212 = vunpack.c.l.b16 %v1090
        %v3213 = vunpack.c.l.b16 %v1092
        %v3214 = vunpack.c.l.b16 %v1093
        %v3215 = vunpack.c.l.b16 %v1095
        %v3216 = vunpack.c.l.b16 %v1096
        %v3217 = vunpack.c.l.b16 %v1098
        %v3218 = vunpack.c.l.b16 %v1099
        %v3219 = vpack.c.b16 %v3188, %v3187
        %v3220 = vpack.c.b16 %v3190, %v3189
        %v3221 = vpack.c.b16 %v3192, %v3191
        %v3222 = vpack.c.b16 %v3194, %v3193
        %v3223 = vpack.c.b16 %v3196, %v3195
        %v3224 = vpack.c.b16 %v3198, %v3197
        %v3225 = vpack.c.b16 %v3200, %v3199
        %v3226 = vpack.c.b16 %v3202, %v3201
        %v3227 = vpack.c.b16 %v3204, %v3203
        %v3228 = vpack.c.b16 %v3206, %v3205
        %v3229 = vpack.c.b16 %v3208, %v3207
        %v3230 = vpack.c.b16 %v3210, %v3209
        %v3231 = vpack.c.b16 %v3212, %v3211
        %v3232 = vpack.c.b16 %v3214, %v3213
        %v3233 = vpack.c.b16 %v3216, %v3215
        %v3234 = vpack.c.b16 %v3218, %v3217
        %3235 = vrot.lane.b32.xlu0 %v3219, 24
        %v3236 = vpop.permute.xlu0 %3235
        %3237 = vrot.lane.b32.xlu0 %v3220, 24
        %v3238 = vpop.permute.xlu0 %3237
        %3239 = vrot.lane.b32.xlu0 %v3221, 24
        %v3240 = vpop.permute.xlu0 %3239
        %3241 = vrot.lane.b32.xlu0 %v3222, 24
        %v3242 = vpop.permute.xlu0 %3241
        %3243 = vrot.lane.b32.xlu0 %v3223, 24
        %v3244 = vpop.permute.xlu0 %3243
        %3245 = vrot.lane.b32.xlu0 %v3224, 24
        %v3246 = vpop.permute.xlu0 %3245
        %3247 = vrot.lane.b32.xlu0 %v3225, 24
        %v3248 = vpop.permute.xlu0 %3247
        %3249 = vrot.lane.b32.xlu0 %v3226, 24
        %v3250 = vpop.permute.xlu0 %3249
        %3251 = vrot.lane.b32.xlu0 %v3227, 24
        %v3252 = vpop.permute.xlu0 %3251
        %3253 = vrot.lane.b32.xlu0 %v3228, 24
        %v3254 = vpop.permute.xlu0 %3253
        %3255 = vrot.lane.b32.xlu0 %v3229, 24
        %v3256 = vpop.permute.xlu0 %3255
        %3257 = vrot.lane.b32.xlu0 %v3230, 24
        %v3258 = vpop.permute.xlu0 %3257
        %3259 = vrot.lane.b32.xlu0 %v3231, 24
        %v3260 = vpop.permute.xlu0 %3259
        %3261 = vrot.lane.b32.xlu0 %v3232, 24
        %v3262 = vpop.permute.xlu0 %3261
        %3263 = vrot.lane.b32.xlu0 %v3233, 24
        %v3264 = vpop.permute.xlu0 %3263
        %3265 = vrot.lane.b32.xlu0 %v3234, 24
        %v3266 = vpop.permute.xlu0 %3265
        %v3267 = vunpack.c.l.b16 %v2208
        %v3268 = vunpack.c.l.b16 %v2218
        %v3269 = vunpack.c.l.b16 %v2232
        %v3270 = vunpack.c.l.b16 %v2242
        %v3271 = vunpack.c.l.b16 %v2256
        %v3272 = vunpack.c.l.b16 %v2266
        %v3273 = vunpack.c.l.b16 %v2280
        %v3274 = vunpack.c.l.b16 %v2290
        %v3275 = vunpack.c.l.b16 %v2304
        %v3276 = vunpack.c.l.b16 %v2314
        %v3277 = vunpack.c.l.b16 %v2328
        %v3278 = vunpack.c.l.b16 %v2338
        %v3279 = vunpack.c.l.b16 %v2352
        %v3280 = vunpack.c.l.b16 %v2362
        %v3281 = vunpack.c.l.b16 %v2376
        %v3282 = vunpack.c.l.b16 %v2386
        %v3283 = vunpack.c.l.b16 %v2400
        %v3284 = vunpack.c.l.b16 %v2410
        %v3285 = vunpack.c.l.b16 %v2424
        %v3286 = vunpack.c.l.b16 %v2434
        %v3287 = vunpack.c.l.b16 %v2448
        %v3288 = vunpack.c.l.b16 %v2458
        %v3289 = vunpack.c.l.b16 %v2472
        %v3290 = vunpack.c.l.b16 %v2482
        %v3291 = vunpack.c.l.b16 %v2496
        %v3292 = vunpack.c.l.b16 %v2506
        %v3293 = vunpack.c.l.b16 %v2520
        %v3294 = vunpack.c.l.b16 %v2530
        %v3295 = vunpack.c.l.b16 %v2544
        %v3296 = vunpack.c.l.b16 %v2554
        %v3297 = vunpack.c.l.b16 %v2568
        %v3298 = vunpack.c.l.b16 %v2578
        %v3299 = vpack.c.b16 %v3268, %v3267
        %v3300 = vpack.c.b16 %v3270, %v3269
        %v3301 = vpack.c.b16 %v3272, %v3271
        %v3302 = vpack.c.b16 %v3274, %v3273
        %v3303 = vpack.c.b16 %v3276, %v3275
        %v3304 = vpack.c.b16 %v3278, %v3277
        %v3305 = vpack.c.b16 %v3280, %v3279
        %v3306 = vpack.c.b16 %v3282, %v3281
        %v3307 = vpack.c.b16 %v3284, %v3283
        %v3308 = vpack.c.b16 %v3286, %v3285
        %v3309 = vpack.c.b16 %v3288, %v3287
        %v3310 = vpack.c.b16 %v3290, %v3289
        %v3311 = vpack.c.b16 %v3292, %v3291
        %v3312 = vpack.c.b16 %v3294, %v3293
        %v3313 = vpack.c.b16 %v3296, %v3295
        %v3314 = vpack.c.b16 %v3298, %v3297
        %3315 = vrot.lane.b32.xlu0 %v3299, 28
        %v3316 = vpop.permute.xlu0 %3315
        %3317 = vrot.lane.b32.xlu0 %v3300, 28
        %v3318 = vpop.permute.xlu0 %3317
        %3319 = vrot.lane.b32.xlu0 %v3301, 28
        %v3320 = vpop.permute.xlu0 %3319
        %3321 = vrot.lane.b32.xlu0 %v3302, 28
        %v3322 = vpop.permute.xlu0 %3321
        %3323 = vrot.lane.b32.xlu0 %v3303, 28
        %v3324 = vpop.permute.xlu0 %3323
        %3325 = vrot.lane.b32.xlu0 %v3304, 28
        %v3326 = vpop.permute.xlu0 %3325
        %3327 = vrot.lane.b32.xlu0 %v3305, 28
        %v3328 = vpop.permute.xlu0 %3327
        %3329 = vrot.lane.b32.xlu0 %v3306, 28
        %v3330 = vpop.permute.xlu0 %3329
        %3331 = vrot.lane.b32.xlu0 %v3307, 28
        %v3332 = vpop.permute.xlu0 %3331
        %3333 = vrot.lane.b32.xlu0 %v3308, 28
        %v3334 = vpop.permute.xlu0 %3333
        %3335 = vrot.lane.b32.xlu0 %v3309, 28
        %v3336 = vpop.permute.xlu0 %3335
        %3337 = vrot.lane.b32.xlu0 %v3310, 28
        %v3338 = vpop.permute.xlu0 %3337
        %3339 = vrot.lane.b32.xlu0 %v3311, 28
        %v3340 = vpop.permute.xlu0 %3339
        %3341 = vrot.lane.b32.xlu0 %v3312, 28
        %v3342 = vpop.permute.xlu0 %3341
        %3343 = vrot.lane.b32.xlu0 %v3313, 28
        %v3344 = vpop.permute.xlu0 %3343
        %3345 = vrot.lane.b32.xlu0 %v3314, 28
        %v3346 = vpop.permute.xlu0 %3345
        %v3347 = vunpack.c.l.b16 %v2630
        %v3348 = vunpack.c.l.b16 %v2633
        %v3349 = vunpack.c.l.b16 %v2637
        %v3350 = vunpack.c.l.b16 %v2640
        %v3351 = vunpack.c.l.b16 %v2644
        %v3352 = vunpack.c.l.b16 %v2647
        %v3353 = vunpack.c.l.b16 %v2651
        %v3354 = vunpack.c.l.b16 %v2654
        %v3355 = vunpack.c.l.b16 %v2658
        %v3356 = vunpack.c.l.b16 %v2661
        %v3357 = vunpack.c.l.b16 %v2665
        %v3358 = vunpack.c.l.b16 %v2668
        %v3359 = vunpack.c.l.b16 %v2672
        %v3360 = vunpack.c.l.b16 %v2675
        %v3361 = vunpack.c.l.b16 %v2679
        %v3362 = vunpack.c.l.b16 %v2682
        %v3363 = vunpack.c.l.b16 %v2686
        %v3364 = vunpack.c.l.b16 %v2689
        %v3365 = vunpack.c.l.b16 %v2693
        %v3366 = vunpack.c.l.b16 %v2696
        %v3367 = vunpack.c.l.b16 %v2700
        %v3368 = vunpack.c.l.b16 %v2703
        %v3369 = vunpack.c.l.b16 %v2707
        %v3370 = vunpack.c.l.b16 %v2710
        %v3371 = vunpack.c.l.b16 %v2714
        %v3372 = vunpack.c.l.b16 %v2717
        %v3373 = vunpack.c.l.b16 %v2721
        %v3374 = vunpack.c.l.b16 %v2724
        %v3375 = vunpack.c.l.b16 %v2728
        %v3376 = vunpack.c.l.b16 %v2731
        %v3377 = vunpack.c.l.b16 %v2735
        %v3378 = vunpack.c.l.b16 %v2738
        %v3379 = vpack.c.b16 %v3348, %v3347
        %v3380 = vpack.c.b16 %v3350, %v3349
        %v3381 = vpack.c.b16 %v3352, %v3351
        %v3382 = vpack.c.b16 %v3354, %v3353
        %v3383 = vpack.c.b16 %v3356, %v3355
        %v3384 = vpack.c.b16 %v3358, %v3357
        %v3385 = vpack.c.b16 %v3360, %v3359
        %v3386 = vpack.c.b16 %v3362, %v3361
        %v3387 = vpack.c.b16 %v3364, %v3363
        %v3388 = vpack.c.b16 %v3366, %v3365
        %v3389 = vpack.c.b16 %v3368, %v3367
        %v3390 = vpack.c.b16 %v3370, %v3369
        %v3391 = vpack.c.b16 %v3372, %v3371
        %v3392 = vpack.c.b16 %v3374, %v3373
        %v3393 = vpack.c.b16 %v3376, %v3375
        %v3394 = vpack.c.b16 %v3378, %v3377
        %3395 = vrot.lane.b32.xlu0 %v3379, 32
        %v3396 = vpop.permute.xlu0 %3395
        %3397 = vrot.lane.b32.xlu0 %v3380, 32
        %v3398 = vpop.permute.xlu0 %3397
        %3399 = vrot.lane.b32.xlu0 %v3381, 32
        %v3400 = vpop.permute.xlu0 %3399
        %3401 = vrot.lane.b32.xlu0 %v3382, 32
        %v3402 = vpop.permute.xlu0 %3401
        %3403 = vrot.lane.b32.xlu0 %v3383, 32
        %v3404 = vpop.permute.xlu0 %3403
        %3405 = vrot.lane.b32.xlu0 %v3384, 32
        %v3406 = vpop.permute.xlu0 %3405
        %3407 = vrot.lane.b32.xlu0 %v3385, 32
        %v3408 = vpop.permute.xlu0 %3407
        %3409 = vrot.lane.b32.xlu0 %v3386, 32
        %v3410 = vpop.permute.xlu0 %3409
        %3411 = vrot.lane.b32.xlu0 %v3387, 32
        %v3412 = vpop.permute.xlu0 %3411
        %3413 = vrot.lane.b32.xlu0 %v3388, 32
        %v3414 = vpop.permute.xlu0 %3413
        %3415 = vrot.lane.b32.xlu0 %v3389, 32
        %v3416 = vpop.permute.xlu0 %3415
        %3417 = vrot.lane.b32.xlu0 %v3390, 32
        %v3418 = vpop.permute.xlu0 %3417
        %3419 = vrot.lane.b32.xlu0 %v3391, 32
        %v3420 = vpop.permute.xlu0 %3419
        %3421 = vrot.lane.b32.xlu0 %v3392, 32
        %v3422 = vpop.permute.xlu0 %3421
        %3423 = vrot.lane.b32.xlu0 %v3393, 32
        %v3424 = vpop.permute.xlu0 %3423
        %3425 = vrot.lane.b32.xlu0 %v3394, 32
        %v3426 = vpop.permute.xlu0 %3425
        %vm3427 = vcmask 31744
        %v3430 = vsel %vm3427, %v2771, %v2836
        %v3433 = vsel %vm3427, %v2772, %v2838
        %v3436 = vsel %vm3427, %v2773, %v2840
        %v3439 = vsel %vm3427, %v2774, %v2842
        %v3442 = vsel %vm3427, %v2775, %v2844
        %v3445 = vsel %vm3427, %v2776, %v2846
        %v3448 = vsel %vm3427, %v2777, %v2848
        %v3451 = vsel %vm3427, %v2778, %v2850
        %v3454 = vsel %vm3427, %v2779, %v2852
        %v3457 = vsel %vm3427, %v2780, %v2854
        %v3460 = vsel %vm3427, %v2781, %v2856
        %v3463 = vsel %vm3427, %v2782, %v2858
        %v3466 = vsel %vm3427, %v2783, %v2860
        %v3469 = vsel %vm3427, %v2784, %v2862
        %v3472 = vsel %vm3427, %v2785, %v2864
        %v3475 = vsel %vm3427, %v2786, %v2866
        %vm3476 = vcmask 64512
        %v3478 = vsel %vm3476, %v3430, %v2916
        %v3480 = vsel %vm3476, %v3433, %v2918
        %v3482 = vsel %vm3476, %v3436, %v2920
        %v3484 = vsel %vm3476, %v3439, %v2922
        %v3486 = vsel %vm3476, %v3442, %v2924
        %v3488 = vsel %vm3476, %v3445, %v2926
        %v3490 = vsel %vm3476, %v3448, %v2928
        %v3492 = vsel %vm3476, %v3451, %v2930
        %v3494 = vsel %vm3476, %v3454, %v2932
        %v3496 = vsel %vm3476, %v3457, %v2934
        %v3498 = vsel %vm3476, %v3460, %v2936
        %v3500 = vsel %vm3476, %v3463, %v2938
        %v3502 = vsel %vm3476, %v3466, %v2940
        %v3504 = vsel %vm3476, %v3469, %v2942
        %v3506 = vsel %vm3476, %v3472, %v2944
        %v3508 = vsel %vm3476, %v3475, %v2946
        %vm3509 = vcmask 97280
        %v3511 = vsel %vm3509, %v3478, %v2996
        %v3513 = vsel %vm3509, %v3480, %v2998
        %v3515 = vsel %vm3509, %v3482, %v3000
        %v3517 = vsel %vm3509, %v3484, %v3002
        %v3519 = vsel %vm3509, %v3486, %v3004
        %v3521 = vsel %vm3509, %v3488, %v3006
        %v3523 = vsel %vm3509, %v3490, %v3008
        %v3525 = vsel %vm3509, %v3492, %v3010
        %v3527 = vsel %vm3509, %v3494, %v3012
        %v3529 = vsel %vm3509, %v3496, %v3014
        %v3531 = vsel %vm3509, %v3498, %v3016
        %v3533 = vsel %vm3509, %v3500, %v3018
        %v3535 = vsel %vm3509, %v3502, %v3020
        %v3537 = vsel %vm3509, %v3504, %v3022
        %v3539 = vsel %vm3509, %v3506, %v3024
        %v3541 = vsel %vm3509, %v3508, %v3026
        %vm3542 = vcmask 130048
        %v3544 = vsel %vm3542, %v3511, %v3076
        %v3546 = vsel %vm3542, %v3513, %v3078
        %v3548 = vsel %vm3542, %v3515, %v3080
        %v3550 = vsel %vm3542, %v3517, %v3082
        %v3552 = vsel %vm3542, %v3519, %v3084
        %v3554 = vsel %vm3542, %v3521, %v3086
        %v3556 = vsel %vm3542, %v3523, %v3088
        %v3558 = vsel %vm3542, %v3525, %v3090
        %v3560 = vsel %vm3542, %v3527, %v3092
        %v3562 = vsel %vm3542, %v3529, %v3094
        %v3564 = vsel %vm3542, %v3531, %v3096
        %v3566 = vsel %vm3542, %v3533, %v3098
        %v3568 = vsel %vm3542, %v3535, %v3100
        %v3570 = vsel %vm3542, %v3537, %v3102
        %v3572 = vsel %vm3542, %v3539, %v3104
        %v3574 = vsel %vm3542, %v3541, %v3106
        %vm3575 = vcmask 162816
        %v3577 = vsel %vm3575, %v3544, %v3156
        %v3579 = vsel %vm3575, %v3546, %v3158
        %v3581 = vsel %vm3575, %v3548, %v3160
        %v3583 = vsel %vm3575, %v3550, %v3162
        %v3585 = vsel %vm3575, %v3552, %v3164
        %v3587 = vsel %vm3575, %v3554, %v3166
        %v3589 = vsel %vm3575, %v3556, %v3168
        %v3591 = vsel %vm3575, %v3558, %v3170
        %v3593 = vsel %vm3575, %v3560, %v3172
        %v3595 = vsel %vm3575, %v3562, %v3174
        %v3597 = vsel %vm3575, %v3564, %v3176
        %v3599 = vsel %vm3575, %v3566, %v3178
        %v3601 = vsel %vm3575, %v3568, %v3180
        %v3603 = vsel %vm3575, %v3570, %v3182
        %v3605 = vsel %vm3575, %v3572, %v3184
        %v3607 = vsel %vm3575, %v3574, %v3186
        %vm3608 = vcmask 195584
        %v3610 = vsel %vm3608, %v3577, %v3236
        %v3612 = vsel %vm3608, %v3579, %v3238
        %v3614 = vsel %vm3608, %v3581, %v3240
        %v3616 = vsel %vm3608, %v3583, %v3242
        %v3618 = vsel %vm3608, %v3585, %v3244
        %v3620 = vsel %vm3608, %v3587, %v3246
        %v3622 = vsel %vm3608, %v3589, %v3248
        %v3624 = vsel %vm3608, %v3591, %v3250
        %v3626 = vsel %vm3608, %v3593, %v3252
        %v3628 = vsel %vm3608, %v3595, %v3254
        %v3630 = vsel %vm3608, %v3597, %v3256
        %v3632 = vsel %vm3608, %v3599, %v3258
        %v3634 = vsel %vm3608, %v3601, %v3260
        %v3636 = vsel %vm3608, %v3603, %v3262
        %v3638 = vsel %vm3608, %v3605, %v3264
        %v3640 = vsel %vm3608, %v3607, %v3266
        %vm3641 = vcmask 228352
        %v3643 = vsel %vm3641, %v3610, %v3316
        %v3645 = vsel %vm3641, %v3612, %v3318
        %v3647 = vsel %vm3641, %v3614, %v3320
        %v3649 = vsel %vm3641, %v3616, %v3322
        %v3651 = vsel %vm3641, %v3618, %v3324
        %v3653 = vsel %vm3641, %v3620, %v3326
        %v3655 = vsel %vm3641, %v3622, %v3328
        %v3657 = vsel %vm3641, %v3624, %v3330
        %v3659 = vsel %vm3641, %v3626, %v3332
        %v3661 = vsel %vm3641, %v3628, %v3334
        %v3663 = vsel %vm3641, %v3630, %v3336
        %v3665 = vsel %vm3641, %v3632, %v3338
        %v3667 = vsel %vm3641, %v3634, %v3340
        %v3669 = vsel %vm3641, %v3636, %v3342
        %v3671 = vsel %vm3641, %v3638, %v3344
        %v3673 = vsel %vm3641, %v3640, %v3346
        %vm3674 = vcmask 261120
        %v3676 = vsel %vm3674, %v3643, %v3396
        %v3678 = vsel %vm3674, %v3645, %v3398
        %v3680 = vsel %vm3674, %v3647, %v3400
        %v3682 = vsel %vm3674, %v3649, %v3402
        %v3684 = vsel %vm3674, %v3651, %v3404
        %v3686 = vsel %vm3674, %v3653, %v3406
        %v3688 = vsel %vm3674, %v3655, %v3408
        %v3690 = vsel %vm3674, %v3657, %v3410
        %v3692 = vsel %vm3674, %v3659, %v3412
        %v3694 = vsel %vm3674, %v3661, %v3414
        %v3696 = vsel %vm3674, %v3663, %v3416
        %v3698 = vsel %vm3674, %v3665, %v3418
        %v3700 = vsel %vm3674, %v3667, %v3420
        %v3702 = vsel %vm3674, %v3669, %v3422
        %v3704 = vsel %vm3674, %v3671, %v3424
        %v3706 = vsel %vm3674, %v3673, %v3426
        %v3707 = vld [vmem:[%s3] sm:$0xf]
        %v3708 = vld [vmem:[%s3 + $0x4] sm:$0xf]
        %v3709 = vld [vmem:[%s3 + $0x8] sm:$0xf]
        %v3710 = vld [vmem:[%s3 + $0xc] sm:$0xf]
        %v3711 = vld [vmem:[%s3 + $0x10] sm:$0x3]
        %v3712 = vld [vmem:[%s4] sm:$0x1]
        %v3714 = vlaneseq
        %v3715 = vshrl.u32 %v3714, 7
        %v3716 = vsub.s32 0, %v3715
        %v3717 = vrot.slane %v3712, %v3716
        %v3724 = vunpack.c.l.b16 %v3707
        %v3725 = vunpack.c.l.b16 %v3708
        %v3726 = vunpack.c.l.b16 %v3709
        %v3727 = vunpack.c.l.b16 %v3710
        %v3728 = vunpack.c.l.b16 %v3711
        %v3729 = vpack.c.b16 %v3725, %v3724
        %v3730 = vpack.c.b16 %v3727, %v3726
        %v3731 = vpack.c.b16 %v3728, %v3728
        %vm3734 = vcmask 293888
        %v3735 = vsel %vm3734, %v3676, 0
        %v3737 = vsel %vm3734, %v3678, 0
        %v3739 = vsel %vm3734, %v3680, 0
        %v3741 = vsel %vm3734, %v3682, 0
        %v3743 = vsel %vm3734, %v3684, 0
        %v3745 = vsel %vm3734, %v3686, 0
        %v3747 = vsel %vm3734, %v3688, 0
        %v3749 = vsel %vm3734, %v3690, 0
        %v3751 = vsel %vm3734, %v3692, 0
        %v3753 = vsel %vm3734, %v3694, 0
        %v3755 = vsel %vm3734, %v3696, 0
        %v3757 = vsel %vm3734, %v3698, 0
        %v3759 = vsel %vm3734, %v3700, 0
        %v3761 = vsel %vm3734, %v3702, 0
        %v3763 = vsel %vm3734, %v3704, 0
        %v3765 = vsel %vm3734, %v3706, 0
        %vm3767 = vcmask 1041408
        %v3769 = vsel %vm3767, %v3731, 0
        %3771 = vmatprep.subr.bf16.mxu0 0
        %3772 = vmatpush1.bf16.msra.mxu0 %v3729
        %3773 = vmatprep.subr.bf16.mxu0 0
        %3774 = vmatpush1.bf16.msra.mxu0 %v3730
        %3775 = vmatprep.subr.bf16.mxu0 0
        %3776 = vmatpush1.bf16.msra.mxu0 %v3769
        %3777 = vmatprep.subr.bf16.mxu0 0
        %3778 = vmatpush1.bf16.msra.mxu0 0
        %3779 = vmatprep.subr.bf16.mxu0 0
        %3780 = vmatpush1.bf16.msra.mxu0 0
        %3781 = vmatprep.subr.bf16.mxu0 0
        %3782 = vmatpush1.bf16.msra.mxu0 0
        %3783 = vmatprep.subr.bf16.mxu0 0
        %3784 = vmatpush1.bf16.msra.mxu0 0
        %3785 = vmatprep.subr.bf16.mxu0 0
        %3786 = vmatpush1.bf16.msra.mxu0 0
        %3787 = vmatprep.subr.bf16.mxu0 0
        %3788 = vmatpush1.bf16.msra.mxu0 0
        %3789 = vmatprep.subr.bf16.mxu0 0
        %3790 = vmatpush1.bf16.msra.mxu0 0
        %3791 = vmatprep.subr.bf16.mxu0 0
        %3792 = vmatpush1.bf16.msra.mxu0 0
        %3793 = vmatprep.subr.bf16.mxu0 0
        %3794 = vmatpush1.bf16.msra.mxu0 0
        %3795 = vmatprep.subr.bf16.mxu0 0
        %3796 = vmatpush1.bf16.msra.mxu0 0
        %3797 = vmatprep.subr.bf16.mxu0 0
        %3798 = vmatpush1.bf16.msra.mxu0 0
        %3799 = vmatprep.subr.bf16.mxu0 0
        %3800 = vmatpush1.bf16.msra.mxu0 0
        %3801 = vmatprep.subr.bf16.mxu0 0
        %3802 = vmatpush1.bf16.msra.mxu0 0
        %3803 = vmatprep.mubr.bf16.mxu0 0
        %3804 = vmatmul.mubr.bf16.gmra.mrb[0].mxu0 %v3735
        %v3805 = vpop.f32.mrb[0].mxu0
        %v3806 = vadd.f32 %v3717, %v3805
        %v3807 = vpop.f32.mrb[0].mxu0
        %v3808 = vpop.f32.mrb[0].mxu0
        %v3809 = vadd.f32 %v3717, %v3808
        %v3810 = vpop.f32.mrb[0].mxu0
        %3811 = vmatprep.mubr.bf16.mxu0 0
        %3812 = vmatmul.mubr.bf16.gmra.mrb[0].mxu0 %v3737
        %v3813 = vpop.f32.mrb[0].mxu0
        %v3814 = vadd.f32 %v3717, %v3813
        %v3815 = vpop.f32.mrb[0].mxu0
        %v3816 = vpop.f32.mrb[0].mxu0
        %v3817 = vadd.f32 %v3717, %v3816
        %v3818 = vpop.f32.mrb[0].mxu0
        %3819 = vmatprep.mubr.bf16.mxu0 0
        %3820 = vmatmul.mubr.bf16.gmra.mrb[0].mxu0 %v3739
        %v3821 = vpop.f32.mrb[0].mxu0
        %v3822 = vadd.f32 %v3717, %v3821
        %v3823 = vpop.f32.mrb[0].mxu0
        %v3824 = vpop.f32.mrb[0].mxu0
        %v3825 = vadd.f32 %v3717, %v3824
        %v3826 = vpop.f32.mrb[0].mxu0
        %3827 = vmatprep.mubr.bf16.mxu0 0
        %3828 = vmatmul.mubr.bf16.gmra.mrb[0].mxu0 %v3741
        %v3829 = vpop.f32.mrb[0].mxu0
        %v3830 = vadd.f32 %v3717, %v3829
        %v3831 = vpop.f32.mrb[0].mxu0
        %v3832 = vpop.f32.mrb[0].mxu0
        %v3833 = vadd.f32 %v3717, %v3832
        %v3834 = vpop.f32.mrb[0].mxu0
        %3835 = vmatprep.mubr.bf16.mxu0 0
        %3836 = vmatmul.mubr.bf16.gmra.mrb[0].mxu0 %v3743
        %v3837 = vpop.f32.mrb[0].mxu0
        %v3838 = vadd.f32 %v3717, %v3837
        %v3839 = vpop.f32.mrb[0].mxu0
        %v3840 = vpop.f32.mrb[0].mxu0
        %v3841 = vadd.f32 %v3717, %v3840
        %v3842 = vpop.f32.mrb[0].mxu0
        %3843 = vmatprep.mubr.bf16.mxu0 0
        %3844 = vmatmul.mubr.bf16.gmra.mrb[0].mxu0 %v3745
        %v3845 = vpop.f32.mrb[0].mxu0
        %v3846 = vadd.f32 %v3717, %v3845
        %v3847 = vpop.f32.mrb[0].mxu0
        %v3848 = vpop.f32.mrb[0].mxu0
        %v3849 = vadd.f32 %v3717, %v3848
        %v3850 = vpop.f32.mrb[0].mxu0
        %3851 = vmatprep.mubr.bf16.mxu0 0
        %3852 = vmatmul.mubr.bf16.gmra.mrb[0].mxu0 %v3747
        %v3853 = vpop.f32.mrb[0].mxu0
        %v3854 = vadd.f32 %v3717, %v3853
        %v3855 = vpop.f32.mrb[0].mxu0
        %v3856 = vpop.f32.mrb[0].mxu0
        %v3857 = vadd.f32 %v3717, %v3856
        %v3858 = vpop.f32.mrb[0].mxu0
        %3859 = vmatprep.mubr.bf16.mxu0 0
        %3860 = vmatmul.mubr.bf16.gmra.mrb[0].mxu0 %v3749
        %v3861 = vpop.f32.mrb[0].mxu0
        %v3862 = vadd.f32 %v3717, %v3861
        %v3863 = vpop.f32.mrb[0].mxu0
        %v3864 = vpop.f32.mrb[0].mxu0
        %v3865 = vadd.f32 %v3717, %v3864
        %v3866 = vpop.f32.mrb[0].mxu0
        %3867 = vmatprep.mubr.bf16.mxu0 0
        %3868 = vmatmul.mubr.bf16.gmra.mrb[0].mxu0 %v3751
        %v3869 = vpop.f32.mrb[0].mxu0
        %v3870 = vadd.f32 %v3717, %v3869
        %v3871 = vpop.f32.mrb[0].mxu0
        %v3872 = vpop.f32.mrb[0].mxu0
        %v3873 = vadd.f32 %v3717, %v3872
        %v3874 = vpop.f32.mrb[0].mxu0
        %3875 = vmatprep.mubr.bf16.mxu0 0
        %3876 = vmatmul.mubr.bf16.gmra.mrb[0].mxu0 %v3753
        %v3877 = vpop.f32.mrb[0].mxu0
        %v3878 = vadd.f32 %v3717, %v3877
        %v3879 = vpop.f32.mrb[0].mxu0
        %v3880 = vpop.f32.mrb[0].mxu0
        %v3881 = vadd.f32 %v3717, %v3880
        %v3882 = vpop.f32.mrb[0].mxu0
        %3883 = vmatprep.mubr.bf16.mxu0 0
        %3884 = vmatmul.mubr.bf16.gmra.mrb[0].mxu0 %v3755
        %v3885 = vpop.f32.mrb[0].mxu0
        %v3886 = vadd.f32 %v3717, %v3885
        %v3887 = vpop.f32.mrb[0].mxu0
        %v3888 = vpop.f32.mrb[0].mxu0
        %v3889 = vadd.f32 %v3717, %v3888
        %v3890 = vpop.f32.mrb[0].mxu0
        %3891 = vmatprep.mubr.bf16.mxu0 0
        %3892 = vmatmul.mubr.bf16.gmra.mrb[0].mxu0 %v3757
        %v3893 = vpop.f32.mrb[0].mxu0
        %v3894 = vadd.f32 %v3717, %v3893
        %v3895 = vpop.f32.mrb[0].mxu0
        %v3896 = vpop.f32.mrb[0].mxu0
        %v3897 = vadd.f32 %v3717, %v3896
        %v3898 = vpop.f32.mrb[0].mxu0
        %3899 = vmatprep.mubr.bf16.mxu0 0
        %3900 = vmatmul.mubr.bf16.gmra.mrb[0].mxu0 %v3759
        %v3901 = vpop.f32.mrb[0].mxu0
        %v3902 = vadd.f32 %v3717, %v3901
        %v3903 = vpop.f32.mrb[0].mxu0
        %v3904 = vpop.f32.mrb[0].mxu0
        %v3905 = vadd.f32 %v3717, %v3904
        %v3906 = vpop.f32.mrb[0].mxu0
        %3907 = vmatprep.mubr.bf16.mxu0 0
        %3908 = vmatmul.mubr.bf16.gmra.mrb[0].mxu0 %v3761
        %v3909 = vpop.f32.mrb[0].mxu0
        %v3910 = vadd.f32 %v3717, %v3909
        %v3911 = vpop.f32.mrb[0].mxu0
        %v3912 = vpop.f32.mrb[0].mxu0
        %v3913 = vadd.f32 %v3717, %v3912
        %v3914 = vpop.f32.mrb[0].mxu0
        %3915 = vmatprep.mubr.bf16.mxu0 0
        %3916 = vmatmul.mubr.bf16.gmra.mrb[0].mxu0 %v3763
        %v3917 = vpop.f32.mrb[0].mxu0
        %v3918 = vadd.f32 %v3717, %v3917
        %v3919 = vpop.f32.mrb[0].mxu0
        %v3920 = vpop.f32.mrb[0].mxu0
        %v3921 = vadd.f32 %v3717, %v3920
        %v3922 = vpop.f32.mrb[0].mxu0
        %3923 = vmatprep.mubr.bf16.mxu0 0
        %3924 = vmatmul.mubr.bf16.gmra.mrb[0].mxu0 %v3765
        %v3925 = vpop.f32.mrb[0].mxu0
        %v3926 = vadd.f32 %v3717, %v3925
        %v3927 = vpop.f32.mrb[0].mxu0
        %v3928 = vpop.f32.mrb[0].mxu0
        %v3929 = vadd.f32 %v3717, %v3928
        %v3930 = vpop.f32.mrb[0].mxu0
        %3931 = vdwg.mxu0
        %v3932 = vpack.c.bf16 %v3809, %v3806
        %v3933 = vpack.c.bf16 %v3817, %v3814
        %v3934 = vpack.c.bf16 %v3825, %v3822
        %v3935 = vpack.c.bf16 %v3833, %v3830
        %v3936 = vpack.c.bf16 %v3841, %v3838
        %v3937 = vpack.c.bf16 %v3849, %v3846
        %v3938 = vpack.c.bf16 %v3857, %v3854
        %v3939 = vpack.c.bf16 %v3865, %v3862
        %v3940 = vpack.c.bf16 %v3873, %v3870
        %v3941 = vpack.c.bf16 %v3881, %v3878
        %v3942 = vpack.c.bf16 %v3889, %v3886
        %v3943 = vpack.c.bf16 %v3897, %v3894
        %v3944 = vpack.c.bf16 %v3905, %v3902
        %v3945 = vpack.c.bf16 %v3913, %v3910
        %v3946 = vpack.c.bf16 %v3921, %v3918
        %v3947 = vpack.c.bf16 %v3929, %v3926
        %v3964 = vunpack.c.l.b16 %v3932
        %v3965 = vunpack.c.h.b16 %v3932
        %v3966 = vunpack.c.l.b16 %v3933
        %v3967 = vunpack.c.h.b16 %v3933
        %v3968 = vunpack.c.l.b16 %v3934
        %v3969 = vunpack.c.h.b16 %v3934
        %v3970 = vunpack.c.l.b16 %v3935
        %v3971 = vunpack.c.h.b16 %v3935
        %v3972 = vunpack.c.l.b16 %v3936
        %v3973 = vunpack.c.h.b16 %v3936
        %v3974 = vunpack.c.l.b16 %v3937
        %v3975 = vunpack.c.h.b16 %v3937
        %v3976 = vunpack.c.l.b16 %v3938
        %v3977 = vunpack.c.h.b16 %v3938
        %v3978 = vunpack.c.l.b16 %v3939
        %v3979 = vunpack.c.h.b16 %v3939
        %v3980 = vunpack.c.l.b16 %v3940
        %v3981 = vunpack.c.h.b16 %v3940
        %v3982 = vunpack.c.l.b16 %v3941
        %v3983 = vunpack.c.h.b16 %v3941
        %v3984 = vunpack.c.l.b16 %v3942
        %v3985 = vunpack.c.h.b16 %v3942
        %v3986 = vunpack.c.l.b16 %v3943
        %v3987 = vunpack.c.h.b16 %v3943
        %v3988 = vunpack.c.l.b16 %v3944
        %v3989 = vunpack.c.h.b16 %v3944
        %v3990 = vunpack.c.l.b16 %v3945
        %v3991 = vunpack.c.h.b16 %v3945
        %v3992 = vunpack.c.l.b16 %v3946
        %v3993 = vunpack.c.h.b16 %v3946
        %v3994 = vunpack.c.l.b16 %v3947
        %v3995 = vunpack.c.h.b16 %v3947
        %v3996 = vpack.c.b16 %v3964, %v3964
        %v3997 = vpack.c.b16 %v3965, %v3965
        %v3998 = vpack.c.b16 %v3966, %v3966
        %v3999 = vpack.c.b16 %v3967, %v3967
        %v4000 = vpack.c.b16 %v3968, %v3968
        %v4001 = vpack.c.b16 %v3969, %v3969
        %v4002 = vpack.c.b16 %v3970, %v3970
        %v4003 = vpack.c.b16 %v3971, %v3971
        %v4004 = vpack.c.b16 %v3972, %v3972
        %v4005 = vpack.c.b16 %v3973, %v3973
        %v4006 = vpack.c.b16 %v3974, %v3974
        %v4007 = vpack.c.b16 %v3975, %v3975
        %v4008 = vpack.c.b16 %v3976, %v3976
        %v4009 = vpack.c.b16 %v3977, %v3977
        %v4010 = vpack.c.b16 %v3978, %v3978
        %v4011 = vpack.c.b16 %v3979, %v3979
        %v4012 = vpack.c.b16 %v3980, %v3980
        %v4013 = vpack.c.b16 %v3981, %v3981
        %v4014 = vpack.c.b16 %v3982, %v3982
        %v4015 = vpack.c.b16 %v3983, %v3983
        %v4016 = vpack.c.b16 %v3984, %v3984
        %v4017 = vpack.c.b16 %v3985, %v3985
        %v4018 = vpack.c.b16 %v3986, %v3986
        %v4019 = vpack.c.b16 %v3987, %v3987
        %v4020 = vpack.c.b16 %v3988, %v3988
        %v4021 = vpack.c.b16 %v3989, %v3989
        %v4022 = vpack.c.b16 %v3990, %v3990
        %v4023 = vpack.c.b16 %v3991, %v3991
        %v4024 = vpack.c.b16 %v3992, %v3992
        %v4025 = vpack.c.b16 %v3993, %v3993
        %v4026 = vpack.c.b16 %v3994, %v3994
        %v4027 = vpack.c.b16 %v3995, %v3995
        %vm4060 = vcmask 27648
        %4061 = vst.msk [vmem:[%s951] sm:$0xf] %vm4060, %v3996
        %4062 = vst.msk [vmem:[%s951 + $0x4] sm:$0xf] %vm4060, %v3997
        %4063 = vst.msk [vmem:[%s951 + $0x8] sm:$0xf] %vm4060, %v3998
        %4064 = vst.msk [vmem:[%s951 + $0xc] sm:$0xf] %vm4060, %v3999
        %4065 = vst.msk [vmem:[%s951 + $0x10] sm:$0xf] %vm4060, %v4000
        %4066 = vst.msk [vmem:[%s951 + $0x14] sm:$0xf] %vm4060, %v4001
        %4067 = vst.msk [vmem:[%s951 + $0x18] sm:$0xf] %vm4060, %v4002
        %4068 = vst.msk [vmem:[%s951 + $0x1c] sm:$0xf] %vm4060, %v4003
        %4069 = vst.msk [vmem:[%s951 + $0x20] sm:$0xf] %vm4060, %v4004
        %4070 = vst.msk [vmem:[%s951 + $0x24] sm:$0xf] %vm4060, %v4005
        %4071 = vst.msk [vmem:[%s951 + $0x28] sm:$0xf] %vm4060, %v4006
        %4072 = vst.msk [vmem:[%s951 + $0x2c] sm:$0xf] %vm4060, %v4007
        %4073 = vst.msk [vmem:[%s951 + $0x30] sm:$0xf] %vm4060, %v4008
        %4074 = vst.msk [vmem:[%s951 + $0x34] sm:$0xf] %vm4060, %v4009
        %4075 = vst.msk [vmem:[%s951 + $0x38] sm:$0xf] %vm4060, %v4010
        %4076 = vst.msk [vmem:[%s951 + $0x3c] sm:$0xf] %vm4060, %v4011
        %4077 = vst.msk [vmem:[%s951 + $0x40] sm:$0xf] %vm4060, %v4012
        %4078 = vst.msk [vmem:[%s951 + $0x44] sm:$0xf] %vm4060, %v4013
        %4079 = vst.msk [vmem:[%s951 + $0x48] sm:$0xf] %vm4060, %v4014
        %4080 = vst.msk [vmem:[%s951 + $0x4c] sm:$0xf] %vm4060, %v4015
        %4081 = vst.msk [vmem:[%s951 + $0x50] sm:$0xf] %vm4060, %v4016
        %4082 = vst.msk [vmem:[%s951 + $0x54] sm:$0xf] %vm4060, %v4017
        %4083 = vst.msk [vmem:[%s951 + $0x58] sm:$0xf] %vm4060, %v4018
        %4084 = vst.msk [vmem:[%s951 + $0x5c] sm:$0xf] %vm4060, %v4019
        %4085 = vst.msk [vmem:[%s951 + $0x60] sm:$0xf] %vm4060, %v4020
        %4086 = vst.msk [vmem:[%s951 + $0x64] sm:$0xf] %vm4060, %v4021
        %4087 = vst.msk [vmem:[%s951 + $0x68] sm:$0xf] %vm4060, %v4022
        %4088 = vst.msk [vmem:[%s951 + $0x6c] sm:$0xf] %vm4060, %v4023
        %4089 = vst.msk [vmem:[%s951 + $0x70] sm:$0xf] %vm4060, %v4024
        %4090 = vst.msk [vmem:[%s951 + $0x74] sm:$0xf] %vm4060, %v4025
        %4091 = vst.msk [vmem:[%s951 + $0x78] sm:$0xf] %vm4060, %v4026
        %4092 = vst.msk [vmem:[%s951 + $0x7c] sm:$0xf] %vm4060, %v4027
        %s4093 = sand.u32 %s144, 1
        %s4094 = sand.u32 %s144, 1
        %s4095 = smul.addr %s4094, 128
        %s4096 = scalar_lea.vmem [#allocation5], %s4095
        // Predicated region
        $region164: #{dense_block_forward.2} parent=150 // pred_check
          %p4097 = pneg %p154
        $region165: #{dense_block_forward.2} parent=150 // pred_check_branch
          %4099 = sbr.rel (%p4097) target = $region167
        $region166: #{dense_block_forward.2} parent=150 // pred_region
          %s4100 = smul.u32 8, %s16
          %s4101 = smul.addr %s4100, 2
          %s4102 = smul.addr %s4101, 4
          %s4103 = scalar_lea.vmem %s5, %s4102
          // Predicated region
          $region168: #{dense_block_forward.2} parent=166 // pred_check
            _
          $region169: #{dense_block_forward.2} parent=166 // pred_check_branch
            %4105 = sbr.rel (0) target = $region171
          $region170: #{dense_block_forward.2} parent=166 // pred_region
            // Predicated region
            $region172: #{dense_block_forward.2} parent=170 // pred_check
              _
            $region173: #{dense_block_forward.2} parent=170 // pred_check_branch
              %4107 = sbr.rel target = $region175
            $region174: #{dense_block_forward.2} parent=170 // pred_region
              // Predicated region
              $region187: #{dense_block_forward.2} parent=174 // pred_check
                _
              $region188: #{dense_block_forward.2} parent=174 // pred_check_branch
                %4184 = sbr.rel (0) target = $region190
              $region189: #{dense_block_forward.2} parent=174 // pred_region
                loop: start=0, step=1, limit=1
                $region191: #{dense_block_forward.2} parent=189 // loop_pre_header
                  _
                $region192: #{dense_block_forward.2} parent=189 // loop_header
                  %s4186 = sphi 0, %s4190
                  %p4187 = scmp.ge.s32.totalorder %s4186, 1
                  %s4191 = sphi %s4096, %s4096
                  %s4192 = sphi %s4103, %s4103
                $region193: #{dense_block_forward.2} parent=189 // loop_header_branch
                  %4189 = sbr.rel (%p4187) target = $region197
                $region194: #{dense_block_forward.2} parent=189 // loop_body
                  _
                $region195: #{dense_block_forward.2} parent=189 // loop_footer
                  %s4190 = sadd.s32 1, %s4186
                $region196: #{dense_block_forward.2} parent=189 // loop_footer_branch
                  %4185 = sbr.rel target = $region192
                $region197: #{dense_block_forward.2} parent=189 // loop_exit
                  _
                loop: start=0, step=1, limit=1
                $region198: #{dense_block_forward.2} parent=189 // loop_pre_header
                  _
                $region199: #{dense_block_forward.2} parent=189 // loop_header
                  %s4195 = sphi 0, %s4199
                  %p4196 = scmp.ge.s32.totalorder %s4195, 1
                  %s4200 = sphi %s4096, %s4096
                  %s4201 = sphi %s4103, %s4103
                $region200: #{dense_block_forward.2} parent=189 // loop_header_branch
                  %4198 = sbr.rel (%p4196) target = $region204
                $region201: #{dense_block_forward.2} parent=189 // loop_body
                  %v4202 = vld [vmem:[%s4200] sm:$0xf]
                  %4203 = vst [vmem:[%s4201] sm:$0xf] %v4202
                  %v4204 = vld [vmem:[%s4200 + $0x4] sm:$0xf]
                  %4205 = vst [vmem:[%s4201 + $0x4] sm:$0xf] %v4204
                  %v4206 = vld [vmem:[%s4200 + $0x8] sm:$0xf]
                  %4207 = vst [vmem:[%s4201 + $0x8] sm:$0xf] %v4206
                  %v4208 = vld [vmem:[%s4200 + $0xc] sm:$0xf]
                  %4209 = vst [vmem:[%s4201 + $0xc] sm:$0xf] %v4208
                  %v4210 = vld [vmem:[%s4200 + $0x10] sm:$0xf]
                  %4211 = vst [vmem:[%s4201 + $0x10] sm:$0xf] %v4210
                  %v4212 = vld [vmem:[%s4200 + $0x14] sm:$0xf]
                  %4213 = vst [vmem:[%s4201 + $0x14] sm:$0xf] %v4212
                  %v4214 = vld [vmem:[%s4200 + $0x18] sm:$0xf]
                  %4215 = vst [vmem:[%s4201 + $0x18] sm:$0xf] %v4214
                  %v4216 = vld [vmem:[%s4200 + $0x1c] sm:$0xf]
                  %4217 = vst [vmem:[%s4201 + $0x1c] sm:$0xf] %v4216
                  %v4218 = vld [vmem:[%s4200 + $0x20] sm:$0xf]
                  %4219 = vst [vmem:[%s4201 + $0x20] sm:$0xf] %v4218
                  %v4220 = vld [vmem:[%s4200 + $0x24] sm:$0xf]
                  %4221 = vst [vmem:[%s4201 + $0x24] sm:$0xf] %v4220
                  %v4222 = vld [vmem:[%s4200 + $0x28] sm:$0xf]
                  %4223 = vst [vmem:[%s4201 + $0x28] sm:$0xf] %v4222
                  %v4224 = vld [vmem:[%s4200 + $0x2c] sm:$0xf]
                  %4225 = vst [vmem:[%s4201 + $0x2c] sm:$0xf] %v4224
                  %v4226 = vld [vmem:[%s4200 + $0x30] sm:$0xf]
                  %4227 = vst [vmem:[%s4201 + $0x30] sm:$0xf] %v4226
                  %v4228 = vld [vmem:[%s4200 + $0x34] sm:$0xf]
                  %4229 = vst [vmem:[%s4201 + $0x34] sm:$0xf] %v4228
                  %v4230 = vld [vmem:[%s4200 + $0x38] sm:$0xf]
                  %4231 = vst [vmem:[%s4201 + $0x38] sm:$0xf] %v4230
                  %v4232 = vld [vmem:[%s4200 + $0x3c] sm:$0xf]
                  %4233 = vst [vmem:[%s4201 + $0x3c] sm:$0xf] %v4232
                  %v4234 = vld [vmem:[%s4200 + $0x40] sm:$0xf]
                  %4235 = vst [vmem:[%s4201 + $0x80] sm:$0xf] %v4234
                  %v4236 = vld [vmem:[%s4200 + $0x44] sm:$0xf]
                  %4237 = vst [vmem:[%s4201 + $0x84] sm:$0xf] %v4236
                  %v4238 = vld [vmem:[%s4200 + $0x48] sm:$0xf]
                  %4239 = vst [vmem:[%s4201 + $0x88] sm:$0xf] %v4238
                  %v4240 = vld [vmem:[%s4200 + $0x4c] sm:$0xf]
                  %4241 = vst [vmem:[%s4201 + $0x8c] sm:$0xf] %v4240
                  %v4242 = vld [vmem:[%s4200 + $0x50] sm:$0xf]
                  %4243 = vst [vmem:[%s4201 + $0x90] sm:$0xf] %v4242
                  %v4244 = vld [vmem:[%s4200 + $0x54] sm:$0xf]
                  %4245 = vst [vmem:[%s4201 + $0x94] sm:$0xf] %v4244
                  %v4246 = vld [vmem:[%s4200 + $0x58] sm:$0xf]
                  %4247 = vst [vmem:[%s4201 + $0x98] sm:$0xf] %v4246
                  %v4248 = vld [vmem:[%s4200 + $0x5c] sm:$0xf]
                  %4249 = vst [vmem:[%s4201 + $0x9c] sm:$0xf] %v4248
                  %v4250 = vld [vmem:[%s4200 + $0x60] sm:$0xf]
                  %4251 = vst [vmem:[%s4201 + $0xa0] sm:$0xf] %v4250
                  %v4252 = vld [vmem:[%s4200 + $0x64] sm:$0xf]
                  %4253 = vst [vmem:[%s4201 + $0xa4] sm:$0xf] %v4252
                  %v4254 = vld [vmem:[%s4200 + $0x68] sm:$0xf]
                  %4255 = vst [vmem:[%s4201 + $0xa8] sm:$0xf] %v4254
                  %v4256 = vld [vmem:[%s4200 + $0x6c] sm:$0xf]
                  %4257 = vst [vmem:[%s4201 + $0xac] sm:$0xf] %v4256
                  %v4258 = vld [vmem:[%s4200 + $0x70] sm:$0xf]
                  %4259 = vst [vmem:[%s4201 + $0xb0] sm:$0xf] %v4258
                  %v4260 = vld [vmem:[%s4200 + $0x74] sm:$0xf]
                  %4261 = vst [vmem:[%s4201 + $0xb4] sm:$0xf] %v4260
                  %v4262 = vld [vmem:[%s4200 + $0x78] sm:$0xf]
                  %4263 = vst [vmem:[%s4201 + $0xb8] sm:$0xf] %v4262
                  %v4264 = vld [vmem:[%s4200 + $0x7c] sm:$0xf]
                  %4265 = vst [vmem:[%s4201 + $0xbc] sm:$0xf] %v4264
                $region202: #{dense_block_forward.2} parent=189 // loop_footer
                  %s4199 = sadd.s32 1, %s4195
                $region203: #{dense_block_forward.2} parent=189 // loop_footer_branch
                  %4194 = sbr.rel target = $region199
                $region204: #{dense_block_forward.2} parent=189 // loop_exit
                  _
              $region190: #{dense_block_forward.2} parent=174 // pred_fallthru
                _
            $region175: #{dense_block_forward.2} parent=170 // pred_fallthru
              _
            // Predicated region
            $region176: #{dense_block_forward.2} parent=170 // pred_check
              _
            $region177: #{dense_block_forward.2} parent=170 // pred_check_branch
              %4109 = sbr.rel (0) target = $region179
            $region178: #{dense_block_forward.2} parent=170 // pred_region
              loop: start=0, step=1, limit=1
              $region180: #{dense_block_forward.2} parent=178 // loop_pre_header
                _
              $region181: #{dense_block_forward.2} parent=178 // loop_header
                %s4112 = sphi 0, %s4116
                %p4113 = scmp.ge.s32.totalorder %s4112, 1
                %s4117 = sphi %s4096, %s4096
                %s4118 = sphi %s4103, %s4103
              $region182: #{dense_block_forward.2} parent=178 // loop_header_branch
                %4115 = sbr.rel (%p4113) target = $region186
              $region183: #{dense_block_forward.2} parent=178 // loop_body
                %v4119 = vld [vmem:[%s4117] sm:$0xf]
                %4120 = vst [vmem:[%s4118] sm:$0xf] %v4119
                %v4121 = vld [vmem:[%s4117 + $0x4] sm:$0xf]
                %4122 = vst [vmem:[%s4118 + $0x4] sm:$0xf] %v4121
                %v4123 = vld [vmem:[%s4117 + $0x8] sm:$0xf]
                %4124 = vst [vmem:[%s4118 + $0x8] sm:$0xf] %v4123
                %v4125 = vld [vmem:[%s4117 + $0xc] sm:$0xf]
                %4126 = vst [vmem:[%s4118 + $0xc] sm:$0xf] %v4125
                %v4127 = vld [vmem:[%s4117 + $0x10] sm:$0xf]
                %4128 = vst [vmem:[%s4118 + $0x10] sm:$0xf] %v4127
                %v4129 = vld [vmem:[%s4117 + $0x14] sm:$0xf]
                %4130 = vst [vmem:[%s4118 + $0x14] sm:$0xf] %v4129
                %v4131 = vld [vmem:[%s4117 + $0x18] sm:$0xf]
                %4132 = vst [vmem:[%s4118 + $0x18] sm:$0xf] %v4131
                %v4133 = vld [vmem:[%s4117 + $0x1c] sm:$0xf]
                %4134 = vst [vmem:[%s4118 + $0x1c] sm:$0xf] %v4133
                %v4135 = vld [vmem:[%s4117 + $0x20] sm:$0xf]
                %4136 = vst [vmem:[%s4118 + $0x20] sm:$0xf] %v4135
                %v4137 = vld [vmem:[%s4117 + $0x24] sm:$0xf]
                %4138 = vst [vmem:[%s4118 + $0x24] sm:$0xf] %v4137
                %v4139 = vld [vmem:[%s4117 + $0x28] sm:$0xf]
                %4140 = vst [vmem:[%s4118 + $0x28] sm:$0xf] %v4139
                %v4141 = vld [vmem:[%s4117 + $0x2c] sm:$0xf]
                %4142 = vst [vmem:[%s4118 + $0x2c] sm:$0xf] %v4141
                %v4143 = vld [vmem:[%s4117 + $0x30] sm:$0xf]
                %4144 = vst [vmem:[%s4118 + $0x30] sm:$0xf] %v4143
                %v4145 = vld [vmem:[%s4117 + $0x34] sm:$0xf]
                %4146 = vst [vmem:[%s4118 + $0x34] sm:$0xf] %v4145
                %v4147 = vld [vmem:[%s4117 + $0x38] sm:$0xf]
                %4148 = vst [vmem:[%s4118 + $0x38] sm:$0xf] %v4147
                %v4149 = vld [vmem:[%s4117 + $0x3c] sm:$0xf]
                %4150 = vst [vmem:[%s4118 + $0x3c] sm:$0xf] %v4149
                %v4151 = vld [vmem:[%s4117 + $0x40] sm:$0xf]
                %4152 = vst [vmem:[%s4118 + $0x80] sm:$0xf] %v4151
                %v4153 = vld [vmem:[%s4117 + $0x44] sm:$0xf]
                %4154 = vst [vmem:[%s4118 + $0x84] sm:$0xf] %v4153
                %v4155 = vld [vmem:[%s4117 + $0x48] sm:$0xf]
                %4156 = vst [vmem:[%s4118 + $0x88] sm:$0xf] %v4155
                %v4157 = vld [vmem:[%s4117 + $0x4c] sm:$0xf]
                %4158 = vst [vmem:[%s4118 + $0x8c] sm:$0xf] %v4157
                %v4159 = vld [vmem:[%s4117 + $0x50] sm:$0xf]
                %4160 = vst [vmem:[%s4118 + $0x90] sm:$0xf] %v4159
                %v4161 = vld [vmem:[%s4117 + $0x54] sm:$0xf]
                %4162 = vst [vmem:[%s4118 + $0x94] sm:$0xf] %v4161
                %v4163 = vld [vmem:[%s4117 + $0x58] sm:$0xf]
                %4164 = vst [vmem:[%s4118 + $0x98] sm:$0xf] %v4163
                %v4165 = vld [vmem:[%s4117 + $0x5c] sm:$0xf]
                %4166 = vst [vmem:[%s4118 + $0x9c] sm:$0xf] %v4165
                %v4167 = vld [vmem:[%s4117 + $0x60] sm:$0xf]
                %4168 = vst [vmem:[%s4118 + $0xa0] sm:$0xf] %v4167
                %v4169 = vld [vmem:[%s4117 + $0x64] sm:$0xf]
                %4170 = vst [vmem:[%s4118 + $0xa4] sm:$0xf] %v4169
                %v4171 = vld [vmem:[%s4117 + $0x68] sm:$0xf]
                %4172 = vst [vmem:[%s4118 + $0xa8] sm:$0xf] %v4171
                %v4173 = vld [vmem:[%s4117 + $0x6c] sm:$0xf]
                %4174 = vst [vmem:[%s4118 + $0xac] sm:$0xf] %v4173
                %v4175 = vld [vmem:[%s4117 + $0x70] sm:$0xf]
                %4176 = vst [vmem:[%s4118 + $0xb0] sm:$0xf] %v4175
                %v4177 = vld [vmem:[%s4117 + $0x74] sm:$0xf]
                %4178 = vst [vmem:[%s4118 + $0xb4] sm:$0xf] %v4177
                %v4179 = vld [vmem:[%s4117 + $0x78] sm:$0xf]
                %4180 = vst [vmem:[%s4118 + $0xb8] sm:$0xf] %v4179
                %v4181 = vld [vmem:[%s4117 + $0x7c] sm:$0xf]
                %4182 = vst [vmem:[%s4118 + $0xbc] sm:$0xf] %v4181
              $region184: #{dense_block_forward.2} parent=178 // loop_footer
                %s4116 = sadd.s32 1, %s4112
              $region185: #{dense_block_forward.2} parent=178 // loop_footer_branch
                %4111 = sbr.rel target = $region181
              $region186: #{dense_block_forward.2} parent=178 // loop_exit
                _
            $region179: #{dense_block_forward.2} parent=170 // pred_fallthru
              _
          $region171: #{dense_block_forward.2} parent=166 // pred_fallthru
            _
          %4266 = vnop
        $region167: #{dense_block_forward.2} parent=150 // pred_fallthru
          _
      $region151: #{dense_block_forward.2} parent=5 // pred_fallthru
        _
      %p4267 = scmp.le.s32.totalorder 2, %s11
      // Predicated region
      $region205: #{dense_block_forward.2} parent=5 // pred_check
        %p4268 = pneg %p4267
      $region206: #{dense_block_forward.2} parent=5 // pred_check_branch
        %4270 = sbr.rel (%p4268) target = $region208
      $region207: #{dense_block_forward.2} parent=5 // pred_region
        %s4271 = ssub.s32 %s11, 2
        // Predicated region
        $region209: #{dense_block_forward.2} parent=207 // pred_check
          %p4272 = pneg %p160
        $region210: #{dense_block_forward.2} parent=207 // pred_check_branch
          %4274 = sbr.rel (%p4272) target = $region212
        $region211: #{dense_block_forward.2} parent=207 // pred_region
          %s4275 = sand.u32 %s145, 1
          %s4276 = sand.u32 %s145, 1
          %s4277 = smul.addr %s4276, 128
          %s4278 = scalar_lea.vmem [#allocation5], %s4277
        $region212: #{dense_block_forward.2} parent=207 // pred_fallthru
          _
      $region208: #{dense_block_forward.2} parent=5 // pred_fallthru
        _
    $region6: #{dense_block_forward.2} parent=1 // loop_footer
      %s15 = sadd.s32 1, %s11
    $region7: #{dense_block_forward.2} parent=1 // loop_footer_branch
      %10 = sbr.rel target = $region3
    $region8: #{dense_block_forward.2} parent=1 // loop_exit
      _

// kernel: dense_block_forward.3
$region0: #{dense_block_forward.3}
  #allocation0 [shape = 'u32[]', space=smem, size = 0x4, offset = 0x4, fixed_abs, tag = 'smem constant byte address 0x4 - core index']
  #allocation1 [shape = 'u32[144,128]{1,0:T(1,128)}', space=vmem, size = 0x12000, scoped, tag = 'internal scratch']
  %s0 = inlined_call_operand.vmem [shape: bf16[2,16,18,8], index: 0, kind: input, shape index: {}]
  %s1 = inlined_call_operand.vmem [shape: bf16[2,16,18,8], index: 1, kind: input, shape index: {}]
  %s2 = inlined_call_operand.vmem [shape: bf16[2,16,18,8], index: 2, kind: input, shape index: {}]
  %s3 = inlined_call_operand.vmem [shape: bf16[72,4], index: 3, kind: input, shape index: {}]
  %s4 = inlined_call_operand.vmem [shape: f32[1,4], index: 4, kind: input, shape index: {}]
  %s5 = inlined_call_operand.vmem [shape: bf16[2,16,16,4], index: 5, kind: output, shape index: {}]
  %s6 = sld [smem:[#allocation0]]
  $region213: #{dense_block_forward.3} parent=0
    _
  %s8 = ssub.s32 1, %s6
  %s9 = scalar_select 0, %s8, %s6
  $region1: #{dense_block_forward.3} parent=0
    #allocation2 [shape = 'u8[196608]{0}', space=vmem, size = 0x30000, scoped, tag = 'input window, operand 0']
    #allocation3 [shape = 'u8[196608]{0}', space=vmem, size = 0x30000, scoped, tag = 'input window, operand 1']
    #allocation4 [shape = 'u8[196608]{0}', space=vmem, size = 0x30000, scoped, tag = 'input window, operand 2']
    #allocation5 [shape = 'u8[131072]{0}', space=vmem, size = 0x20000, scoped, tag = 'output window, operand 0']
    loop: start=0, step=1, limit=4
    $region2: #{dense_block_forward.3} parent=1 // loop_pre_header
      _
    $region3: #{dense_block_forward.3} parent=1 // loop_header
      %s11 = sphi 0, %s15
      %p12 = scmp.ge.s32.totalorder %s11, 4
      %s21 = sphi 0, %s23
      %s24 = sphi 0, %s21
      %s25 = sphi 0, %s24
      %s41 = sphi 0, %s25
      %s47 = sphi 0, %s49
      %s50 = sphi 0, %s47
      %s51 = sphi 0, %s50
      %s67 = sphi 0, %s51
      %s73 = sphi 0, %s75
      %s76 = sphi 0, %s73
      %s77 = sphi 0, %s76
      %s93 = sphi 0, %s77
      %s97 = sphi 0, %s97
      %s99 = sphi 0, %s97
      %s100 = sphi 0, %s99
      %s114 = sphi 0, %s100
      %s118 = sphi 0, %s118
      %s120 = sphi 0, %s118
      %s121 = sphi 0, %s120
      %s135 = sphi 0, %s121
      %s141 = sphi 0, %s143
      %s144 = sphi 0, %s141
      %s145 = sphi 0, %s144
      %s161 = sphi 0, %s145
    $region4: #{dense_block_forward.3} parent=1 // loop_header_branch
      %14 = sbr.rel (%p12) target = $region8
    $region5: #{dense_block_forward.3} parent=1 // loop_body
      %s16 = ssub.s32 %s11, 1
      %s17 = ssub.s32 %s11, 2
      %s18 = sadd.s32 %s11, 1
      %s19 = ssub.s32 %s11, %s18
      %p20 = scmp.eq.s32.totalorder %s19, 0
      %s22 = sadd.s32 %s21, 1
      %s23 = scalar_select %p20, %s21, %s22
      %p26 = pneg %p20
      %p27 = scmp.eq.s32.totalorder %s11, 1
      %p28 = por %p26, %p27
      %p29 = scmp.ne.s32.totalorder %s21, %s24
      %p30 = scmp.eq.s32.totalorder %s11, 0
      %p31 = por %p29, %p30
      %p32 = scmp.ne.s32.totalorder %s21, %s24
      %p33 = scmp.eq.s32.totalorder %s16, 1
      %p34 = por %p32, %p33
      %p35 = scmp.ne.s32.totalorder %s24, %s25
      %p36 = scmp.eq.s32.totalorder %s16, 0
      %p37 = por %p35, %p36
      %p38 = scmp.ne.s32.totalorder %s24, %s25
      %p39 = scmp.eq.s32.totalorder %s17, 1
      %p40 = por %p38, %p39
      %p42 = scmp.ne.s32.totalorder %s25, %s41
      %p43 = scmp.eq.s32.totalorder %s17, 0
      %p44 = por %p42, %p43
      %s45 = ssub.s32 %s11, %s18
      %p46 = scmp.eq.s32.totalorder %s45, 0
      %s48 = sadd.s32 %s47, 1
      %s49 = scalar_select %p46, %s47, %s48
      %p52 = pneg %p46
      %p53 = scmp.eq.s32.totalorder %s11, 1
      %p54 = por %p52, %p53
      %p55 = scmp.ne.s32.totalorder %s47, %s50
      %p56 = scmp.eq.s32.totalorder %s11, 0
      %p57 = por %p55, %p56
      %p58 = scmp.ne.s32.totalorder %s47, %s50
      %p59 = scmp.eq.s32.totalorder %s16, 1
      %p60 = por %p58, %p59
      %p61 = scmp.ne.s32.totalorder %s50, %s51
      %p62 = scmp.eq.s32.totalorder %s16, 0
      %p63 = por %p61, %p62
      %p64 = scmp.ne.s32.totalorder %s50, %s51
      %p65 = scmp.eq.s32.totalorder %s17, 1
      %p66 = por %p64, %p65
      %p68 = scmp.ne.s32.totalorder %s51, %s67
      %p69 = scmp.eq.s32.totalorder %s17, 0
      %p70 = por %p68, %p69
      %s71 = ssub.s32 %s11, %s18
      %p72 = scmp.eq.s32.totalorder %s71, 0
      %s74 = sadd.s32 %s73, 1
      %s75 = scalar_select %p72, %s73, %s74
      %p78 = pneg %p72
      %p79 = scmp.eq.s32.totalorder %s11, 1
      %p80 = por %p78, %p79
      %p81 = scmp.ne.s32.totalorder %s73, %s76
      %p82 = scmp.eq.s32.totalorder %s11, 0
      %p83 = por %p81, %p82
      %p84 = scmp.ne.s32.totalorder %s73, %s76
      %p85 = scmp.eq.s32.totalorder %s16, 1
      %p86 = por %p84, %p85
      %p87 = scmp.ne.s32.totalorder %s76, %s77
      %p88 = scmp.eq.s32.totalorder %s16, 0
      %p89 = por %p87, %p88
      %p90 = scmp.ne.s32.totalorder %s76, %s77
      %p91 = scmp.eq.s32.totalorder %s17, 1
      %p92 = por %p90, %p91
      %p94 = scmp.ne.s32.totalorder %s77, %s93
      %p95 = scmp.eq.s32.totalorder %s17, 0
      %p96 = por %p94, %p95
      %s98 = sadd.s32 %s97, 1
      %p101 = scmp.eq.s32.totalorder %s11, 1
      %p102 = scmp.ne.s32.totalorder %s97, %s99
      %p103 = scmp.eq.s32.totalorder %s11, 0
      %p104 = por %p102, %p103
      %p105 = scmp.ne.s32.totalorder %s97, %s99
      %p106 = scmp.eq.s32.totalorder %s16, 1
      %p107 = por %p105, %p106
      %p108 = scmp.ne.s32.totalorder %s99, %s100
      %p109 = scmp.eq.s32.totalorder %s16, 0
      %p110 = por %p108, %p109
      %p111 = scmp.ne.s32.totalorder %s99, %s100
      %p112 = scmp.eq.s32.totalorder %s17, 1
      %p113 = por %p111, %p112
      %p115 = scmp.ne.s32.totalorder %s100, %s114
      %p116 = scmp.eq.s32.totalorder %s17, 0
      %p117 = por %p115, %p116
      %s119 = sadd.s32 %s118, 1
      %p122 = scmp.eq.s32.totalorder %s11, 1
      %p123 = scmp.ne.s32.totalorder %s118, %s120
      %p124 = scmp.eq.s32.totalorder %s11, 0
      %p125 = por %p123, %p124
      %p126 = scmp.ne.s32.totalorder %s118, %s120
      %p127 = scmp.eq.s32.totalorder %s16, 1
      %p128 = por %p126, %p127
      %p129 = scmp.ne.s32.totalorder %s120, %s121
      %p130 = scmp.eq.s32.totalorder %s16, 0
      %p131 = por %p129, %p130
      %p132 = scmp.ne.s32.totalorder %s120, %s121
      %p133 = scmp.eq.s32.totalorder %s17, 1
      %p134 = por %p132, %p133
      %p136 = scmp.ne.s32.totalorder %s121, %s135
      %p137 = scmp.eq.s32.totalorder %s17, 0
      %p138 = por %p136, %p137
      %s139 = ssub.s32 %s11, %s18
      %p140 = scmp.eq.s32.totalorder %s139, 0
      %s142 = sadd.s32 %s141, 1
      %s143 = scalar_select %p140, %s141, %s142
      %p146 = pneg %p140
      %p147 = scmp.eq.s32.totalorder %s11, 1
      %p148 = por %p146, %p147
      %p149 = scmp.ne.s32.totalorder %s141, %s144
      %p150 = scmp.eq.s32.totalorder %s11, 0
      %p151 = por %p149, %p150
      %p152 = scmp.ne.s32.totalorder %s141, %s144
      %p153 = scmp.eq.s32.totalorder %s16, 1
      %p154 = por %p152, %p153
      %p155 = scmp.ne.s32.totalorder %s144, %s145
      %p156 = scmp.eq.s32.totalorder %s16, 0
      %p157 = por %p155, %p156
      %p158 = scmp.ne.s32.totalorder %s144, %s145
      %p159 = scmp.eq.s32.totalorder %s17, 1
      %p160 = por %p158, %p159
      %p162 = scmp.ne.s32.totalorder %s145, %s161
      %p163 = scmp.eq.s32.totalorder %s17, 0
      %p164 = por %p162, %p163
      %p165 = scmp.le.s32.totalorder 1, %s11
      %p166 = scmp.lt.s32.totalorder %s11, 3
      %p167 = pnand %p165, %p166
      %p168 = pneg %p167
      // Predicated region
      $region9: #{dense_block_forward.3} parent=5 // pred_check
        _
      $region10: #{dense_block_forward.3} parent=5 // pred_check_branch
        %170 = sbr.rel (%p167) target = $region12
      $region11: #{dense_block_forward.3} parent=5 // pred_region
        %s171 = ssub.s32 %s11, 1
        // Predicated region
        $region13: #{dense_block_forward.3} parent=11 // pred_check
          %p172 = pneg %p110
        $region14: #{dense_block_forward.3} parent=11 // pred_check_branch
          %174 = sbr.rel (%p172) target = $region16
        $region15: #{dense_block_forward.3} parent=11 // pred_region
          _
        $region16: #{dense_block_forward.3} parent=11 // pred_fallthru
          _
        // Predicated region
        $region17: #{dense_block_forward.3} parent=11 // pred_check
          %p175 = pneg %p131
        $region18: #{dense_block_forward.3} parent=11 // pred_check_branch
          %177 = sbr.rel (%p175) target = $region20
        $region19: #{dense_block_forward.3} parent=11 // pred_region
          _
        $region20: #{dense_block_forward.3} parent=11 // pred_fallthru
          _
      $region12: #{dense_block_forward.3} parent=5 // pred_fallthru
        _
      %p178 = scmp.lt.s32.totalorder %s11, 2
      // Predicated region
      $region21: #{dense_block_forward.3} parent=5 // pred_check
        %p179 = pneg %p178
      $region22: #{dense_block_forward.3} parent=5 // pred_check_branch
        %181 = sbr.rel (%p179) target = $region24
      $region23: #{dense_block_forward.3} parent=5 // pred_region
        // Predicated region
        $region25: #{dense_block_forward.3} parent=23 // pred_check
          %p182 = pneg %p31
        $region26: #{dense_block_forward.3} parent=23 // pred_check_branch
          %184 = sbr.rel (%p182) target = $region28
        $region27: #{dense_block_forward.3} parent=23 // pred_region
          %s185 = sand.u32 %s21, 1
          %s186 = sand.u32 %s21, 1
          %s187 = smul.addr %s186, 192
          %s188 = scalar_lea.vmem [#allocation2], %s187
          %s189 = smul.u32 8, %s11
          %s190 = smul.addr %s189, 3
          %s191 = smul.addr %s190, 4
          %s192 = scalar_lea.vmem %s0, %s191
          // Predicated region
          $region29: #{dense_block_forward.3} parent=27 // pred_check
            _
          $region30: #{dense_block_forward.3} parent=27 // pred_check_branch
            %194 = sbr.rel (0) target = $region32
          $region31: #{dense_block_forward.3} parent=27 // pred_region
            // Predicated region
            $region33: #{dense_block_forward.3} parent=31 // pred_check
              _
            $region34: #{dense_block_forward.3} parent=31 // pred_check_branch
              %196 = sbr.rel target = $region36
            $region35: #{dense_block_forward.3} parent=31 // pred_region
              // Predicated region
              $region48: #{dense_block_forward.3} parent=35 // pred_check
                _
              $region49: #{dense_block_forward.3} parent=35 // pred_check_branch
                %305 = sbr.rel (0) target = $region51
              $region50: #{dense_block_forward.3} parent=35 // pred_region
                loop: start=0, step=1, limit=1
                $region52: #{dense_block_forward.3} parent=50 // loop_pre_header
                  _
                $region53: #{dense_block_forward.3} parent=50 // loop_header
                  %s307 = sphi 0, %s311
                  %p308 = scmp.ge.s32.totalorder %s307, 1
                  %s312 = sphi %s192, %s192
                  %s313 = sphi %s188, %s188
                $region54: #{dense_block_forward.3} parent=50 // loop_header_branch
                  %310 = sbr.rel (%p308) target = $region58
                $region55: #{dense_block_forward.3} parent=50 // loop_body
                  _
                $region56: #{dense_block_forward.3} parent=50 // loop_footer
                  %s311 = sadd.s32 1, %s307
                $region57: #{dense_block_forward.3} parent=50 // loop_footer_branch
                  %306 = sbr.rel target = $region53
                $region58: #{dense_block_forward.3} parent=50 // loop_exit
                  _
                loop: start=0, step=1, limit=1
                $region59: #{dense_block_forward.3} parent=50 // loop_pre_header
                  _
                $region60: #{dense_block_forward.3} parent=50 // loop_header
                  %s316 = sphi 0, %s320
                  %p317 = scmp.ge.s32.totalorder %s316, 1
                  %s321 = sphi %s192, %s192
                  %s322 = sphi %s188, %s188
                $region61: #{dense_block_forward.3} parent=50 // loop_header_branch
                  %319 = sbr.rel (%p317) target = $region65
                $region62: #{dense_block_forward.3} parent=50 // loop_body
                  %v323 = vld [vmem:[%s321] sm:$0xf]
                  %324 = vst [vmem:[%s322] sm:$0xf] %v323
                  %v325 = vld [vmem:[%s321 + $0x4] sm:$0xf]
                  %326 = vst [vmem:[%s322 + $0x4] sm:$0xf] %v325
                  %v327 = vld [vmem:[%s321 + $0x8] sm:$0xf]
                  %328 = vst [vmem:[%s322 + $0x8] sm:$0xf] %v327
                  %v329 = vld [vmem:[%s321 + $0xc] sm:$0xf]
                  %330 = vst [vmem:[%s322 + $0xc] sm:$0xf] %v329
                  %v331 = vld [vmem:[%s321 + $0x10] sm:$0xf]
                  %332 = vst [vmem:[%s322 + $0x10] sm:$0xf] %v331
                  %v333 = vld [vmem:[%s321 + $0x14] sm:$0xf]
                  %334 = vst [vmem:[%s322 + $0x14] sm:$0xf] %v333
                  %v335 = vld [vmem:[%s321 + $0x18] sm:$0xf]
                  %336 = vst [vmem:[%s322 + $0x18] sm:$0xf] %v335
                  %v337 = vld [vmem:[%s321 + $0x1c] sm:$0xf]
                  %338 = vst [vmem:[%s322 + $0x1c] sm:$0xf] %v337
                  %v339 = vld [vmem:[%s321 + $0x20] sm:$0xf]
                  %340 = vst [vmem:[%s322 + $0x20] sm:$0xf] %v339
                  %v341 = vld [vmem:[%s321 + $0x24] sm:$0xf]
                  %342 = vst [vmem:[%s322 + $0x24] sm:$0xf] %v341
                  %v343 = vld [vmem:[%s321 + $0x28] sm:$0xf]
                  %344 = vst [vmem:[%s322 + $0x28] sm:$0xf] %v343
                  %v345 = vld [vmem:[%s321 + $0x2c] sm:$0xf]
                  %346 = vst [vmem:[%s322 + $0x2c] sm:$0xf] %v345
                  %v347 = vld [vmem:[%s321 + $0x30] sm:$0xf]
                  %348 = vst [vmem:[%s322 + $0x30] sm:$0xf] %v347
                  %v349 = vld [vmem:[%s321 + $0x34] sm:$0xf]
                  %350 = vst [vmem:[%s322 + $0x34] sm:$0xf] %v349
                  %v351 = vld [vmem:[%s321 + $0x38] sm:$0xf]
                  %352 = vst [vmem:[%s322 + $0x38] sm:$0xf] %v351
                  %v353 = vld [vmem:[%s321 + $0x3c] sm:$0xf]
                  %354 = vst [vmem:[%s322 + $0x3c] sm:$0xf] %v353
                  %v355 = vld [vmem:[%s321 + $0x40] sm:$0xf]
                  %356 = vst [vmem:[%s322 + $0x40] sm:$0xf] %v355
                  %v357 = vld [vmem:[%s321 + $0x44] sm:$0xf]
                  %358 = vst [vmem:[%s322 + $0x44] sm:$0xf] %v357
                  %v359 = vld [vmem:[%s321 + $0x48] sm:$0xf]
                  %360 = vst [vmem:[%s322 + $0x48] sm:$0xf] %v359
                  %v361 = vld [vmem:[%s321 + $0x4c] sm:$0xf]
                  %362 = vst [vmem:[%s322 + $0x4c] sm:$0xf] %v361
                  %v363 = vld [vmem:[%s321 + $0x50] sm:$0xf]
                  %364 = vst [vmem:[%s322 + $0x50] sm:$0xf] %v363
                  %v365 = vld [vmem:[%s321 + $0x54] sm:$0xf]
                  %366 = vst [vmem:[%s322 + $0x54] sm:$0xf] %v365
                  %v367 = vld [vmem:[%s321 + $0x58] sm:$0xf]
                  %368 = vst [vmem:[%s322 + $0x58] sm:$0xf] %v367
                  %v369 = vld [vmem:[%s321 + $0x5c] sm:$0xf]
                  %370 = vst [vmem:[%s322 + $0x5c] sm:$0xf] %v369
                  %v371 = vld [vmem:[%s321 + $0xc0] sm:$0xf]
                  %372 = vst [vmem:[%s322 + $0x60] sm:$0xf] %v371
                  %v373 = vld [vmem:[%s321 + $0xc4] sm:$0xf]
                  %374 = vst [vmem:[%s322 + $0x64] sm:$0xf] %v373
                  %v375 = vld [vmem:[%s321 + $0xc8] sm:$0xf]
                  %376 = vst [vmem:[%s322 + $0x68] sm:$0xf] %v375
                  %v377 = vld [vmem:[%s321 + $0xcc] sm:$0xf]
                  %378 = vst [vmem:[%s322 + $0x6c] sm:$0xf] %v377
                  %v379 = vld [vmem:[%s321 + $0xd0] sm:$0xf]
                  %380 = vst [vmem:[%s322 + $0x70] sm:$0xf] %v379
                  %v381 = vld [vmem:[%s321 + $0xd4] sm:$0xf]
                  %382 = vst [vmem:[%s322 + $0x74] sm:$0xf] %v381
                  %v383 = vld [vmem:[%s321 + $0xd8] sm:$0xf]
                  %384 = vst [vmem:[%s322 + $0x78] sm:$0xf] %v383
                  %v385 = vld [vmem:[%s321 + $0xdc] sm:$0xf]
                  %386 = vst [vmem:[%s322 + $0x7c] sm:$0xf] %v385
                  %v387 = vld [vmem:[%s321 + $0xe0] sm:$0xf]
                  %388 = vst [vmem:[%s322 + $0x80] sm:$0xf] %v387
                  %v389 = vld [vmem:[%s321 + $0xe4] sm:$0xf]
                  %390 = vst [vmem:[%s322 + $0x84] sm:$0xf] %v389
                  %v391 = vld [vmem:[%s321 + $0xe8] sm:$0xf]
                  %392 = vst [vmem:[%s322 + $0x88] sm:$0xf] %v391
                  %v393 = vld [vmem:[%s321 + $0xec] sm:$0xf]
                  %394 = vst [vmem:[%s322 + $0x8c] sm:$0xf] %v393
                  %v395 = vld [vmem:[%s321 + $0xf0] sm:$0xf]
                  %396 = vst [vmem:[%s322 + $0x90] sm:$0xf] %v395
                  %v397 = vld [vmem:[%s321 + $0xf4] sm:$0xf]
                  %398 = vst [vmem:[%s322 + $0x94] sm:$0xf] %v397
                  %v399 = vld [vmem:[%s321 + $0xf8] sm:$0xf]
                  %400 = vst [vmem:[%s322 + $0x98] sm:$0xf] %v399
                  %v401 = vld [vmem:[%s321 + $0xfc] sm:$0xf]
                  %402 = vst [vmem:[%s322 + $0x9c] sm:$0xf] %v401
                  %v403 = vld [vmem:[%s321 + $0x100] sm:$0xf]
                  %404 = vst [vmem:[%s322 + $0xa0] sm:$0xf] %v403
                  %v405 = vld [vmem:[%s321 + $0x104] sm:$0xf]
                  %406 = vst [vmem:[%s322 + $0xa4] sm:$0xf] %v405
                  %v407 = vld [vmem:[%s321 + $0x108] sm:$0xf]
                  %408 = vst [vmem:[%s322 + $0xa8] sm:$0xf] %v407
                  %v409 = vld [vmem:[%s321 + $0x10c] sm:$0xf]
                  %410 = vst [vmem:[%s322 + $0xac] sm:$0xf] %v409
                  %v411 = vld [vmem:[%s321 + $0x110] sm:$0xf]
                  %412 = vst [vmem:[%s322 + $0xb0] sm:$0xf] %v411
                  %v413 = vld [vmem:[%s321 + $0x114] sm:$0xf]
                  %414 = vst [vmem:[%s322 + $0xb4] sm:$0xf] %v413
                  %v415 = vld [vmem:[%s321 + $0x118] sm:$0xf]
                  %416 = vst [vmem:[%s322 + $0xb8] sm:$0xf] %v415
                  %v417 = vld [vmem:[%s321 + $0x11c] sm:$0xf]
                  %418 = vst [vmem:[%s322 + $0xbc] sm:$0xf] %v417
                $region63: #{dense_block_forward.3} parent=50 // loop_footer
                  %s320 = sadd.s32 1, %s316
                $region64: #{dense_block_forward.3} parent=50 // loop_footer_branch
                  %315 = sbr.rel target = $region60
                $region65: #{dense_block_forward.3} parent=50 // loop_exit
                  _
              $region51: #{dense_block_forward.3} parent=35 // pred_fallthru
                _
            $region36: #{dense_block_forward.3} parent=31 // pred_fallthru
              _
            // Predicated region
            $region37: #{dense_block_forward.3} parent=31 // pred_check
              _
            $region38: #{dense_block_forward.3} parent=31 // pred_check_branch
              %198 = sbr.rel (0) target = $region40
            $region39: #{dense_block_forward.3} parent=31 // pred_region
              loop: start=0, step=1, limit=1
              $region41: #{dense_block_forward.3} parent=39 // loop_pre_header
                _
              $region42: #{dense_block_forward.3} parent=39 // loop_header
                %s201 = sphi 0, %s205
                %p202 = scmp.ge.s32.totalorder %s201, 1
                %s206 = sphi %s192, %s192
                %s207 = sphi %s188, %s188
              $region43: #{dense_block_forward.3} parent=39 // loop_header_branch
                %204 = sbr.rel (%p202) target = $region47
              $region44: #{dense_block_forward.3} parent=39 // loop_body
                %v208 = vld [vmem:[%s206] sm:$0xf]
                %209 = vst [vmem:[%s207] sm:$0xf] %v208
                %v210 = vld [vmem:[%s206 + $0x4] sm:$0xf]
                %211 = vst [vmem:[%s207 + $0x4] sm:$0xf] %v210
                %v212 = vld [vmem:[%s206 + $0x8] sm:$0xf]
                %213 = vst [vmem:[%s207 + $0x8] sm:$0xf] %v212
                %v214 = vld [vmem:[%s206 + $0xc] sm:$0xf]
                %215 = vst [vmem:[%s207 + $0xc] sm:$0xf] %v214
                %v216 = vld [vmem:[%s206 + $0x10] sm:$0xf]
                %217 = vst [vmem:[%s207 + $0x10] sm:$0xf] %v216
                %v218 = vld [vmem:[%s206 + $0x14] sm:$0xf]
                %219 = vst [vmem:[%s207 + $0x14] sm:$0xf] %v218
                %v220 = vld [vmem:[%s206 + $0x18] sm:$0xf]
                %221 = vst [vmem:[%s207 + $0x18] sm:$0xf] %v220
                %v222 = vld [vmem:[%s206 + $0x1c] sm:$0xf]
                %223 = vst [vmem:[%s207 + $0x1c] sm:$0xf] %v222
                %v224 = vld [vmem:[%s206 + $0x20] sm:$0xf]
                %225 = vst [vmem:[%s207 + $0x20] sm:$0xf] %v224
                %v226 = vld [vmem:[%s206 + $0x24] sm:$0xf]
                %227 = vst [vmem:[%s207 + $0x24] sm:$0xf] %v226
                %v228 = vld [vmem:[%s206 + $0x28] sm:$0xf]
                %229 = vst [vmem:[%s207 + $0x28] sm:$0xf] %v228
                %v230 = vld [vmem:[%s206 + $0x2c] sm:$0xf]
                %231 = vst [vmem:[%s207 + $0x2c] sm:$0xf] %v230
                %v232 = vld [vmem:[%s206 + $0x30] sm:$0xf]
                %233 = vst [vmem:[%s207 + $0x30] sm:$0xf] %v232
                %v234 = vld [vmem:[%s206 + $0x34] sm:$0xf]
                %235 = vst [vmem:[%s207 + $0x34] sm:$0xf] %v234
                %v236 = vld [vmem:[%s206 + $0x38] sm:$0xf]
                %237 = vst [vmem:[%s207 + $0x38] sm:$0xf] %v236
                %v238 = vld [vmem:[%s206 + $0x3c] sm:$0xf]
                %239 = vst [vmem:[%s207 + $0x3c] sm:$0xf] %v238
                %v240 = vld [vmem:[%s206 + $0x40] sm:$0xf]
                %241 = vst [vmem:[%s207 + $0x40] sm:$0xf] %v240
                %v242 = vld [vmem:[%s206 + $0x44] sm:$0xf]
                %243 = vst [vmem:[%s207 + $0x44] sm:$0xf] %v242
                %v244 = vld [vmem:[%s206 + $0x48] sm:$0xf]
                %245 = vst [vmem:[%s207 + $0x48] sm:$0xf] %v244
                %v246 = vld [vmem:[%s206 + $0x4c] sm:$0xf]
                %247 = vst [vmem:[%s207 + $0x4c] sm:$0xf] %v246
                %v248 = vld [vmem:[%s206 + $0x50] sm:$0xf]
                %249 = vst [vmem:[%s207 + $0x50] sm:$0xf] %v248
                %v250 = vld [vmem:[%s206 + $0x54] sm:$0xf]
                %251 = vst [vmem:[%s207 + $0x54] sm:$0xf] %v250
                %v252 = vld [vmem:[%s206 + $0x58] sm:$0xf]
                %253 = vst [vmem:[%s207 + $0x58] sm:$0xf] %v252
                %v254 = vld [vmem:[%s206 + $0x5c] sm:$0xf]
                %255 = vst [vmem:[%s207 + $0x5c] sm:$0xf] %v254
                %v256 = vld [vmem:[%s206 + $0xc0] sm:$0xf]
                %257 = vst [vmem:[%s207 + $0x60] sm:$0xf] %v256
                %v258 = vld [vmem:[%s206 + $0xc4] sm:$0xf]
                %259 = vst [vmem:[%s207 + $0x64] sm:$0xf] %v258
                %v260 = vld [vmem:[%s206 + $0xc8] sm:$0xf]
                %261 = vst [vmem:[%s207 + $0x68] sm:$0xf] %v260
                %v262 = vld [vmem:[%s206 + $0xcc] sm:$0xf]
                %263 = vst [vmem:[%s207 + $0x6c] sm:$0xf] %v262
                %v264 = vld [vmem:[%s206 + $0xd0] sm:$0xf]
                %265 = vst [vmem:[%s207 + $0x70] sm:$0xf] %v264
                %v266 = vld [vmem:[%s206 + $0xd4] sm:$0xf]
                %267 = vst [vmem:[%s207 + $0x74] sm:$0xf] %v266
                %v268 = vld [vmem:[%s206 + $0xd8] sm:$0xf]
                %269 = vst [vmem:[%s207 + $0x78] sm:$0xf] %v268
                %v270 = vld [vmem:[%s206 + $0xdc] sm:$0xf]
                %271 = vst [vmem:[%s207 + $0x7c] sm:$0xf] %v270
                %v272 = vld [vmem:[%s206 + $0xe0] sm:$0xf]
                %273 = vst [vmem:[%s207 + $0x80] sm:$0xf] %v272
                %v274 = vld [vmem:[%s206 + $0xe4] sm:$0xf]
                %275 = vst [vmem:[%s207 + $0x84] sm:$0xf] %v274
                %v276 = vld [vmem:[%s206 + $0xe8] sm:$0xf]
                %277 = vst [vmem:[%s207 + $0x88] sm:$0xf] %v276
                %v278 = vld [vmem:[%s206 + $0xec] sm:$0xf]
                %279 = vst [vmem:[%s207 + $0x8c] sm:$0xf] %v278
                %v280 = vld [vmem:[%s206 + $0xf0] sm:$0xf]
                %281 = vst [vmem:[%s207 + $0x90] sm:$0xf] %v280
                %v282 = vld [vmem:[%s206 + $0xf4] sm:$0xf]
                %283 = vst [vmem:[%s207 + $0x94] sm:$0xf] %v282
                %v284 = vld [vmem:[%s206 + $0xf8] sm:$0xf]
                %285 = vst [vmem:[%s207 + $0x98] sm:$0xf] %v284
                %v286 = vld [vmem:[%s206 + $0xfc] sm:$0xf]
                %287 = vst [vmem:[%s207 + $0x9c] sm:$0xf] %v286
                %v288 = vld [vmem:[%s206 + $0x100] sm:$0xf]
                %289 = vst [vmem:[%s207 + $0xa0] sm:$0xf] %v288
                %v290 = vld [vmem:[%s206 + $0x104] sm:$0xf]
                %291 = vst [vmem:[%s207 + $0xa4] sm:$0xf] %v290
                %v292 = vld [vmem:[%s206 + $0x108] sm:$0xf]
                %293 = vst [vmem:[%s207 + $0xa8] sm:$0xf] %v292
                %v294 = vld [vmem:[%s206 + $0x10c] sm:$0xf]
                %295 = vst [vmem:[%s207 + $0xac] sm:$0xf] %v294
                %v296 = vld [vmem:[%s206 + $0x110] sm:$0xf]
                %297 = vst [vmem:[%s207 + $0xb0] sm:$0xf] %v296
                %v298 = vld [vmem:[%s206 + $0x114] sm:$0xf]
                %299 = vst [vmem:[%s207 + $0xb4] sm:$0xf] %v298
                %v300 = vld [vmem:[%s206 + $0x118] sm:$0xf]
                %301 = vst [vmem:[%s207 + $0xb8] sm:$0xf] %v300
                %v302 = vld [vmem:[%s206 + $0x11c] sm:$0xf]
                %303 = vst [vmem:[%s207 + $0xbc] sm:$0xf] %v302
              $region45: #{dense_block_forward.3} parent=39 // loop_footer
                %s205 = sadd.s32 1, %s201
              $region46: #{dense_block_forward.3} parent=39 // loop_footer_branch
                %200 = sbr.rel target = $region42
              $region47: #{dense_block_forward.3} parent=39 // loop_exit
                _
            $region40: #{dense_block_forward.3} parent=31 // pred_fallthru
              _
          $region32: #{dense_block_forward.3} parent=27 // pred_fallthru
            _
          %419 = vnop
        $region28: #{dense_block_forward.3} parent=23 // pred_fallthru
          _
        // Predicated region
        $region66: #{dense_block_forward.3} parent=23 // pred_check
          %p420 = pneg %p57
        $region67: #{dense_block_forward.3} parent=23 // pred_check_branch
          %422 = sbr.rel (%p420) target = $region69
        $region68: #{dense_block_forward.3} parent=23 // pred_region
          %s423 = sand.u32 %s47, 1
          %s424 = sand.u32 %s47, 1
          %s425 = smul.addr %s424, 192
          %s426 = scalar_lea.vmem [#allocation3], %s425
          %s427 = smul.u32 8, %s11
          %s428 = smul.addr %s427, 3
          %s429 = smul.addr %s428, 4
          %s430 = scalar_lea.vmem %s1, %s429
          // Predicated region
          $region70: #{dense_block_forward.3} parent=68 // pred_check
            _
          $region71: #{dense_block_forward.3} parent=68 // pred_check_branch
            %432 = sbr.rel (0) target = $region73
          $region72: #{dense_block_forward.3} parent=68 // pred_region
            // Predicated region
            $region74: #{dense_block_forward.3} parent=72 // pred_check
              _
            $region75: #{dense_block_forward.3} parent=72 // pred_check_branch
              %434 = sbr.rel target = $region77
            $region76: #{dense_block_forward.3} parent=72 // pred_region
              // Predicated region
              $region89: #{dense_block_forward.3} parent=76 // pred_check
                _
              $region90: #{dense_block_forward.3} parent=76 // pred_check_branch
                %543 = sbr.rel (0) target = $region92
              $region91: #{dense_block_forward.3} parent=76 // pred_region
                loop: start=0, step=1, limit=1
                $region93: #{dense_block_forward.3} parent=91 // loop_pre_header
                  _
                $region94: #{dense_block_forward.3} parent=91 // loop_header
                  %s545 = sphi 0, %s549
                  %p546 = scmp.ge.s32.totalorder %s545, 1
                  %s550 = sphi %s430, %s430
                  %s551 = sphi %s426, %s426
                $region95: #{dense_block_forward.3} parent=91 // loop_header_branch
                  %548 = sbr.rel (%p546) target = $region99
                $region96: #{dense_block_forward.3} parent=91 // loop_body
                  _
                $region97: #{dense_block_forward.3} parent=91 // loop_footer
                  %s549 = sadd.s32 1, %s545
                $region98: #{dense_block_forward.3} parent=91 // loop_footer_branch
                  %544 = sbr.rel target = $region94
                $region99: #{dense_block_forward.3} parent=91 // loop_exit
                  _
                loop: start=0, step=1, limit=1
                $region100: #{dense_block_forward.3} parent=91 // loop_pre_header
                  _
                $region101: #{dense_block_forward.3} parent=91 // loop_header
                  %s554 = sphi 0, %s558
                  %p555 = scmp.ge.s32.totalorder %s554, 1
                  %s559 = sphi %s430, %s430
                  %s560 = sphi %s426, %s426
                $region102: #{dense_block_forward.3} parent=91 // loop_header_branch
                  %557 = sbr.rel (%p555) target = $region106
                $region103: #{dense_block_forward.3} parent=91 // loop_body
                  %v561 = vld [vmem:[%s559] sm:$0xf]
                  %562 = vst [vmem:[%s560] sm:$0xf] %v561
                  %v563 = vld [vmem:[%s559 + $0x4] sm:$0xf]
                  %564 = vst [vmem:[%s560 + $0x4] sm:$0xf] %v563
                  %v565 = vld [vmem:[%s559 + $0x8] sm:$0xf]
                  %566 = vst [vmem:[%s560 + $0x8] sm:$0xf] %v565
                  %v567 = vld [vmem:[%s559 + $0xc] sm:$0xf]
                  %568 = vst [vmem:[%s560 + $0xc] sm:$0xf] %v567
                  %v569 = vld [vmem:[%s559 + $0x10] sm:$0xf]
                  %570 = vst [vmem:[%s560 + $0x10] sm:$0xf] %v569
                  %v571 = vld [vmem:[%s559 + $0x14] sm:$0xf]
                  %572 = vst [vmem:[%s560 + $0x14] sm:$0xf] %v571
                  %v573 = vld [vmem:[%s559 + $0x18] sm:$0xf]
                  %574 = vst [vmem:[%s560 + $0x18] sm:$0xf] %v573
                  %v575 = vld [vmem:[%s559 + $0x1c] sm:$0xf]
                  %576 = vst [vmem:[%s560 + $0x1c] sm:$0xf] %v575
                  %v577 = vld [vmem:[%s559 + $0x20] sm:$0xf]
                  %578 = vst [vmem:[%s560 + $0x20] sm:$0xf] %v577
                  %v579 = vld [vmem:[%s559 + $0x24] sm:$0xf]
                  %580 = vst [vmem:[%s560 + $0x24] sm:$0xf] %v579
                  %v581 = vld [vmem:[%s559 + $0x28] sm:$0xf]
                  %582 = vst [vmem:[%s560 + $0x28] sm:$0xf] %v581
                  %v583 = vld [vmem:[%s559 + $0x2c] sm:$0xf]
                  %584 = vst [vmem:[%s560 + $0x2c] sm:$0xf] %v583
                  %v585 = vld [vmem:[%s559 + $0x30] sm:$0xf]
                  %586 = vst [vmem:[%s560 + $0x30] sm:$0xf] %v585
                  %v587 = vld [vmem:[%s559 + $0x34] sm:$0xf]
                  %588 = vst [vmem:[%s560 + $0x34] sm:$0xf] %v587
                  %v589 = vld [vmem:[%s559 + $0x38] sm:$0xf]
                  %590 = vst [vmem:[%s560 + $0x38] sm:$0xf] %v589
                  %v591 = vld [vmem:[%s559 + $0x3c] sm:$0xf]
                  %592 = vst [vmem:[%s560 + $0x3c] sm:$0xf] %v591
                  %v593 = vld [vmem:[%s559 + $0x40] sm:$0xf]
                  %594 = vst [vmem:[%s560 + $0x40] sm:$0xf] %v593
                  %v595 = vld [vmem:[%s559 + $0x44] sm:$0xf]
                  %596 = vst [vmem:[%s560 + $0x44] sm:$0xf] %v595
                  %v597 = vld [vmem:[%s559 + $0x48] sm:$0xf]
                  %598 = vst [vmem:[%s560 + $0x48] sm:$0xf] %v597
                  %v599 = vld [vmem:[%s559 + $0x4c] sm:$0xf]
                  %600 = vst [vmem:[%s560 + $0x4c] sm:$0xf] %v599
                  %v601 = vld [vmem:[%s559 + $0x50] sm:$0xf]
                  %602 = vst [vmem:[%s560 + $0x50] sm:$0xf] %v601
                  %v603 = vld [vmem:[%s559 + $0x54] sm:$0xf]
                  %604 = vst [vmem:[%s560 + $0x54] sm:$0xf] %v603
                  %v605 = vld [vmem:[%s559 + $0x58] sm:$0xf]
                  %606 = vst [vmem:[%s560 + $0x58] sm:$0xf] %v605
                  %v607 = vld [vmem:[%s559 + $0x5c] sm:$0xf]
                  %608 = vst [vmem:[%s560 + $0x5c] sm:$0xf] %v607
                  %v609 = vld [vmem:[%s559 + $0xc0] sm:$0xf]
                  %610 = vst [vmem:[%s560 + $0x60] sm:$0xf] %v609
                  %v611 = vld [vmem:[%s559 + $0xc4] sm:$0xf]
                  %612 = vst [vmem:[%s560 + $0x64] sm:$0xf] %v611
                  %v613 = vld [vmem:[%s559 + $0xc8] sm:$0xf]
                  %614 = vst [vmem:[%s560 + $0x68] sm:$0xf] %v613
                  %v615 = vld [vmem:[%s559 + $0xcc] sm:$0xf]
                  %616 = vst [vmem:[%s560 + $0x6c] sm:$0xf] %v615
                  %v617 = vld [vmem:[%s559 + $0xd0] sm:$0xf]
                  %618 = vst [vmem:[%s560 + $0x70] sm:$0xf] %v617
                  %v619 = vld [vmem:[%s559 + $0xd4] sm:$0xf]
                  %620 = vst [vmem:[%s560 + $0x74] sm:$0xf] %v619
                  %v621 = vld [vmem:[%s559 + $0xd8] sm:$0xf]
                  %622 = vst [vmem:[%s560 + $0x78] sm:$0xf] %v621
                  %v623 = vld [vmem:[%s559 + $0xdc] sm:$0xf]
                  %624 = vst [vmem:[%s560 + $0x7c] sm:$0xf] %v623
                  %v625 = vld [vmem:[%s559 + $0xe0] sm:$0xf]
                  %626 = vst [vmem:[%s560 + $0x80] sm:$0xf] %v625
                  %v627 = vld [vmem:[%s559 + $0xe4] sm:$0xf]
                  %628 = vst [vmem:[%s560 + $0x84] sm:$0xf] %v627
                  %v629 = vld [vmem:[%s559 + $0xe8] sm:$0xf]
                  %630 = vst [vmem:[%s560 + $0x88] sm:$0xf] %v629
                  %v631 = vld [vmem:[%s559 + $0xec] sm:$0xf]
                  %632 = vst [vmem:[%s560 + $0x8c] sm:$0xf] %v631
                  %v633 = vld [vmem:[%s559 + $0xf0] sm:$0xf]
                  %634 = vst [vmem:[%s560 + $0x90] sm:$0xf] %v633
                  %v635 = vld [vmem:[%s559 + $0xf4] sm:$0xf]
                  %636 = vst [vmem:[%s560 + $0x94] sm:$0xf] %v635
                  %v637 = vld [vmem:[%s559 + $0xf8] sm:$0xf]
                  %638 = vst [vmem:[%s560 + $0x98] sm:$0xf] %v637
                  %v639 = vld [vmem:[%s559 + $0xfc] sm:$0xf]
                  %640 = vst [vmem:[%s560 + $0x9c] sm:$0xf] %v639
                  %v641 = vld [vmem:[%s559 + $0x100] sm:$0xf]
                  %642 = vst [vmem:[%s560 + $0xa0] sm:$0xf] %v641
                  %v643 = vld [vmem:[%s559 + $0x104] sm:$0xf]
                  %644 = vst [vmem:[%s560 + $0xa4] sm:$0xf] %v643
                  %v645 = vld [vmem:[%s559 + $0x108] sm:$0xf]
                  %646 = vst [vmem:[%s560 + $0xa8] sm:$0xf] %v645
                  %v647 = vld [vmem:[%s559 + $0x10c] sm:$0xf]
                  %648 = vst [vmem:[%s560 + $0xac] sm:$0xf] %v647
                  %v649 = vld [vmem:[%s559 + $0x110] sm:$0xf]
                  %650 = vst [vmem:[%s560 + $0xb0] sm:$0xf] %v649
                  %v651 = vld [vmem:[%s559 + $0x114] sm:$0xf]
                  %652 = vst [vmem:[%s560 + $0xb4] sm:$0xf] %v651
                  %v653 = vld [vmem:[%s559 + $0x118] sm:$0xf]
                  %654 = vst [vmem:[%s560 + $0xb8] sm:$0xf] %v653
                  %v655 = vld [vmem:[%s559 + $0x11c] sm:$0xf]
                  %656 = vst [vmem:[%s560 + $0xbc] sm:$0xf] %v655
                $region104: #{dense_block_forward.3} parent=91 // loop_footer
                  %s558 = sadd.s32 1, %s554
                $region105: #{dense_block_forward.3} parent=91 // loop_footer_branch
                  %553 = sbr.rel target = $region101
                $region106: #{dense_block_forward.3} parent=91 // loop_exit
                  _
              $region92: #{dense_block_forward.3} parent=76 // pred_fallthru
                _
            $region77: #{dense_block_forward.3} parent=72 // pred_fallthru
              _
            // Predicated region
            $region78: #{dense_block_forward.3} parent=72 // pred_check
              _
            $region79: #{dense_block_forward.3} parent=72 // pred_check_branch
              %436 = sbr.rel (0) target = $region81
            $region80: #{dense_block_forward.3} parent=72 // pred_region
              loop: start=0, step=1, limit=1
              $region82: #{dense_block_forward.3} parent=80 // loop_pre_header
                _
              $region83: #{dense_block_forward.3} parent=80 // loop_header
                %s439 = sphi 0, %s443
                %p440 = scmp.ge.s32.totalorder %s439, 1
                %s444 = sphi %s430, %s430
                %s445 = sphi %s426, %s426
              $region84: #{dense_block_forward.3} parent=80 // loop_header_branch
                %442 = sbr.rel (%p440) target = $region88
              $region85: #{dense_block_forward.3} parent=80 // loop_body
                %v446 = vld [vmem:[%s444] sm:$0xf]
                %447 = vst [vmem:[%s445] sm:$0xf] %v446
                %v448 = vld [vmem:[%s444 + $0x4] sm:$0xf]
                %449 = vst [vmem:[%s445 + $0x4] sm:$0xf] %v448
                %v450 = vld [vmem:[%s444 + $0x8] sm:$0xf]
                %451 = vst [vmem:[%s445 + $0x8] sm:$0xf] %v450
                %v452 = vld [vmem:[%s444 + $0xc] sm:$0xf]
                %453 = vst [vmem:[%s445 + $0xc] sm:$0xf] %v452
                %v454 = vld [vmem:[%s444 + $0x10] sm:$0xf]
                %455 = vst [vmem:[%s445 + $0x10] sm:$0xf] %v454
                %v456 = vld [vmem:[%s444 + $0x14] sm:$0xf]
                %457 = vst [vmem:[%s445 + $0x14] sm:$0xf] %v456
                %v458 = vld [vmem:[%s444 + $0x18] sm:$0xf]
                %459 = vst [vmem:[%s445 + $0x18] sm:$0xf] %v458
                %v460 = vld [vmem:[%s444 + $0x1c] sm:$0xf]
                %461 = vst [vmem:[%s445 + $0x1c] sm:$0xf] %v460
                %v462 = vld [vmem:[%s444 + $0x20] sm:$0xf]
                %463 = vst [vmem:[%s445 + $0x20] sm:$0xf] %v462
                %v464 = vld [vmem:[%s444 + $0x24] sm:$0xf]
                %465 = vst [vmem:[%s445 + $0x24] sm:$0xf] %v464
                %v466 = vld [vmem:[%s444 + $0x28] sm:$0xf]
                %467 = vst [vmem:[%s445 + $0x28] sm:$0xf] %v466
                %v468 = vld [vmem:[%s444 + $0x2c] sm:$0xf]
                %469 = vst [vmem:[%s445 + $0x2c] sm:$0xf] %v468
                %v470 = vld [vmem:[%s444 + $0x30] sm:$0xf]
                %471 = vst [vmem:[%s445 + $0x30] sm:$0xf] %v470
                %v472 = vld [vmem:[%s444 + $0x34] sm:$0xf]
                %473 = vst [vmem:[%s445 + $0x34] sm:$0xf] %v472
                %v474 = vld [vmem:[%s444 + $0x38] sm:$0xf]
                %475 = vst [vmem:[%s445 + $0x38] sm:$0xf] %v474
                %v476 = vld [vmem:[%s444 + $0x3c] sm:$0xf]
                %477 = vst [vmem:[%s445 + $0x3c] sm:$0xf] %v476
                %v478 = vld [vmem:[%s444 + $0x40] sm:$0xf]
                %479 = vst [vmem:[%s445 + $0x40] sm:$0xf] %v478
                %v480 = vld [vmem:[%s444 + $0x44] sm:$0xf]
                %481 = vst [vmem:[%s445 + $0x44] sm:$0xf] %v480
                %v482 = vld [vmem:[%s444 + $0x48] sm:$0xf]
                %483 = vst [vmem:[%s445 + $0x48] sm:$0xf] %v482
                %v484 = vld [vmem:[%s444 + $0x4c] sm:$0xf]
                %485 = vst [vmem:[%s445 + $0x4c] sm:$0xf] %v484
                %v486 = vld [vmem:[%s444 + $0x50] sm:$0xf]
                %487 = vst [vmem:[%s445 + $0x50] sm:$0xf] %v486
                %v488 = vld [vmem:[%s444 + $0x54] sm:$0xf]
                %489 = vst [vmem:[%s445 + $0x54] sm:$0xf] %v488
                %v490 = vld [vmem:[%s444 + $0x58] sm:$0xf]
                %491 = vst [vmem:[%s445 + $0x58] sm:$0xf] %v490
                %v492 = vld [vmem:[%s444 + $0x5c] sm:$0xf]
                %493 = vst [vmem:[%s445 + $0x5c] sm:$0xf] %v492
                %v494 = vld [vmem:[%s444 + $0xc0] sm:$0xf]
                %495 = vst [vmem:[%s445 + $0x60] sm:$0xf] %v494
                %v496 = vld [vmem:[%s444 + $0xc4] sm:$0xf]
                %497 = vst [vmem:[%s445 + $0x64] sm:$0xf] %v496
                %v498 = vld [vmem:[%s444 + $0xc8] sm:$0xf]
                %499 = vst [vmem:[%s445 + $0x68] sm:$0xf] %v498
                %v500 = vld [vmem:[%s444 + $0xcc] sm:$0xf]
                %501 = vst [vmem:[%s445 + $0x6c] sm:$0xf] %v500
                %v502 = vld [vmem:[%s444 + $0xd0] sm:$0xf]
                %503 = vst [vmem:[%s445 + $0x70] sm:$0xf] %v502
                %v504 = vld [vmem:[%s444 + $0xd4] sm:$0xf]
                %505 = vst [vmem:[%s445 + $0x74] sm:$0xf] %v504
                %v506 = vld [vmem:[%s444 + $0xd8] sm:$0xf]
                %507 = vst [vmem:[%s445 + $0x78] sm:$0xf] %v506
                %v508 = vld [vmem:[%s444 + $0xdc] sm:$0xf]
                %509 = vst [vmem:[%s445 + $0x7c] sm:$0xf] %v508
                %v510 = vld [vmem:[%s444 + $0xe0] sm:$0xf]
                %511 = vst [vmem:[%s445 + $0x80] sm:$0xf] %v510
                %v512 = vld [vmem:[%s444 + $0xe4] sm:$0xf]
                %513 = vst [vmem:[%s445 + $0x84] sm:$0xf] %v512
                %v514 = vld [vmem:[%s444 + $0xe8] sm:$0xf]
                %515 = vst [vmem:[%s445 + $0x88] sm:$0xf] %v514
                %v516 = vld [vmem:[%s444 + $0xec] sm:$0xf]
                %517 = vst [vmem:[%s445 + $0x8c] sm:$0xf] %v516
                %v518 = vld [vmem:[%s444 + $0xf0] sm:$0xf]
                %519 = vst [vmem:[%s445 + $0x90] sm:$0xf] %v518
                %v520 = vld [vmem:[%s444 + $0xf4] sm:$0xf]
                %521 = vst [vmem:[%s445 + $0x94] sm:$0xf] %v520
                %v522 = vld [vmem:[%s444 + $0xf8] sm:$0xf]
                %523 = vst [vmem:[%s445 + $0x98] sm:$0xf] %v522
                %v524 = vld [vmem:[%s444 + $0xfc] sm:$0xf]
                %525 = vst [vmem:[%s445 + $0x9c] sm:$0xf] %v524
                %v526 = vld [vmem:[%s444 + $0x100] sm:$0xf]
                %527 = vst [vmem:[%s445 + $0xa0] sm:$0xf] %v526
                %v528 = vld [vmem:[%s444 + $0x104] sm:$0xf]
                %529 = vst [vmem:[%s445 + $0xa4] sm:$0xf] %v528
                %v530 = vld [vmem:[%s444 + $0x108] sm:$0xf]
                %531 = vst [vmem:[%s445 + $0xa8] sm:$0xf] %v530
                %v532 = vld [vmem:[%s444 + $0x10c] sm:$0xf]
                %533 = vst [vmem:[%s445 + $0xac] sm:$0xf] %v532
                %v534 = vld [vmem:[%s444 + $0x110] sm:$0xf]
                %535 = vst [vmem:[%s445 + $0xb0] sm:$0xf] %v534
                %v536 = vld [vmem:[%s444 + $0x114] sm:$0xf]
                %537 = vst [vmem:[%s445 + $0xb4] sm:$0xf] %v536
                %v538 = vld [vmem:[%s444 + $0x118] sm:$0xf]
                %539 = vst [vmem:[%s445 + $0xb8] sm:$0xf] %v538
                %v540 = vld [vmem:[%s444 + $0x11c] sm:$0xf]
                %541 = vst [vmem:[%s445 + $0xbc] sm:$0xf] %v540
              $region86: #{dense_block_forward.3} parent=80 // loop_footer
                %s443 = sadd.s32 1, %s439
              $region87: #{dense_block_forward.3} parent=80 // loop_footer_branch
                %438 = sbr.rel target = $region83
              $region88: #{dense_block_forward.3} parent=80 // loop_exit
                _
            $region81: #{dense_block_forward.3} parent=72 // pred_fallthru
              _
          $region73: #{dense_block_forward.3} parent=68 // pred_fallthru
            _
          %657 = vnop
        $region69: #{dense_block_forward.3} parent=23 // pred_fallthru
          _
        // Predicated region
        $region107: #{dense_block_forward.3} parent=23 // pred_check
          %p658 = pneg %p83
        $region108: #{dense_block_forward.3} parent=23 // pred_check_branch
          %660 = sbr.rel (%p658) target = $region110
        $region109: #{dense_block_forward.3} parent=23 // pred_region
          %s661 = sand.u32 %s73, 1
          %s662 = sand.u32 %s73, 1
          %s663 = smul.addr %s662, 192
          %s664 = scalar_lea.vmem [#allocation4], %s663
          %s665 = smul.u32 8, %s11
          %s666 = smul.addr %s665, 3
          %s667 = smul.addr %s666, 4
          %s668 = scalar_lea.vmem %s2, %s667
          // Predicated region
          $region111: #{dense_block_forward.3} parent=109 // pred_check
            _
          $region112: #{dense_block_forward.3} parent=109 // pred_check_branch
            %670 = sbr.rel (0) target = $region114
          $region113: #{dense_block_forward.3} parent=109 // pred_region
            // Predicated region
            $region115: #{dense_block_forward.3} parent=113 // pred_check
              _
            $region116: #{dense_block_forward.3} parent=113 // pred_check_branch
              %672 = sbr.rel target = $region118
            $region117: #{dense_block_forward.3} parent=113 // pred_region
              // Predicated region
              $region130: #{dense_block_forward.3} parent=117 // pred_check
                _
              $region131: #{dense_block_forward.3} parent=117 // pred_check_branch
                %781 = sbr.rel (0) target = $region133
              $region132: #{dense_block_forward.3} parent=117 // pred_region
                loop: start=0, step=1, limit=1
                $region134: #{dense_block_forward.3} parent=132 // loop_pre_header
                  _
                $region135: #{dense_block_forward.3} parent=132 // loop_header
                  %s783 = sphi 0, %s787
                  %p784 = scmp.ge.s32.totalorder %s783, 1
                  %s788 = sphi %s668, %s668
                  %s789 = sphi %s664, %s664
                $region136: #{dense_block_forward.3} parent=132 // loop_header_branch
                  %786 = sbr.rel (%p784) target = $region140
                $region137: #{dense_block_forward.3} parent=132 // loop_body
                  _
                $region138: #{dense_block_forward.3} parent=132 // loop_footer
                  %s787 = sadd.s32 1, %s783
                $region139: #{dense_block_forward.3} parent=132 // loop_footer_branch
                  %782 = sbr.rel target = $region135
                $region140: #{dense_block_forward.3} parent=132 // loop_exit
                  _
                loop: start=0, step=1, limit=1
                $region141: #{dense_block_forward.3} parent=132 // loop_pre_header
                  _
                $region142: #{dense_block_forward.3} parent=132 // loop_header
                  %s792 = sphi 0, %s796
                  %p793 = scmp.ge.s32.totalorder %s792, 1
                  %s797 = sphi %s668, %s668
                  %s798 = sphi %s664, %s664
                $region143: #{dense_block_forward.3} parent=132 // loop_header_branch
                  %795 = sbr.rel (%p793) target = $region147
                $region144: #{dense_block_forward.3} parent=132 // loop_body
                  %v799 = vld [vmem:[%s797] sm:$0xf]
                  %800 = vst [vmem:[%s798] sm:$0xf] %v799
                  %v801 = vld [vmem:[%s797 + $0x4] sm:$0xf]
                  %802 = vst [vmem:[%s798 + $0x4] sm:$0xf] %v801
                  %v803 = vld [vmem:[%s797 + $0x8] sm:$0xf]
                  %804 = vst [vmem:[%s798 + $0x8] sm:$0xf] %v803
                  %v805 = vld [vmem:[%s797 + $0xc] sm:$0xf]
                  %806 = vst [vmem:[%s798 + $0xc] sm:$0xf] %v805
                  %v807 = vld [vmem:[%s797 + $0x10] sm:$0xf]
                  %808 = vst [vmem:[%s798 + $0x10] sm:$0xf] %v807
                  %v809 = vld [vmem:[%s797 + $0x14] sm:$0xf]
                  %810 = vst [vmem:[%s798 + $0x14] sm:$0xf] %v809
                  %v811 = vld [vmem:[%s797 + $0x18] sm:$0xf]
                  %812 = vst [vmem:[%s798 + $0x18] sm:$0xf] %v811
                  %v813 = vld [vmem:[%s797 + $0x1c] sm:$0xf]
                  %814 = vst [vmem:[%s798 + $0x1c] sm:$0xf] %v813
                  %v815 = vld [vmem:[%s797 + $0x20] sm:$0xf]
                  %816 = vst [vmem:[%s798 + $0x20] sm:$0xf] %v815
                  %v817 = vld [vmem:[%s797 + $0x24] sm:$0xf]
                  %818 = vst [vmem:[%s798 + $0x24] sm:$0xf] %v817
                  %v819 = vld [vmem:[%s797 + $0x28] sm:$0xf]
                  %820 = vst [vmem:[%s798 + $0x28] sm:$0xf] %v819
                  %v821 = vld [vmem:[%s797 + $0x2c] sm:$0xf]
                  %822 = vst [vmem:[%s798 + $0x2c] sm:$0xf] %v821
                  %v823 = vld [vmem:[%s797 + $0x30] sm:$0xf]
                  %824 = vst [vmem:[%s798 + $0x30] sm:$0xf] %v823
                  %v825 = vld [vmem:[%s797 + $0x34] sm:$0xf]
                  %826 = vst [vmem:[%s798 + $0x34] sm:$0xf] %v825
                  %v827 = vld [vmem:[%s797 + $0x38] sm:$0xf]
                  %828 = vst [vmem:[%s798 + $0x38] sm:$0xf] %v827
                  %v829 = vld [vmem:[%s797 + $0x3c] sm:$0xf]
                  %830 = vst [vmem:[%s798 + $0x3c] sm:$0xf] %v829
                  %v831 = vld [vmem:[%s797 + $0x40] sm:$0xf]
                  %832 = vst [vmem:[%s798 + $0x40] sm:$0xf] %v831
                  %v833 = vld [vmem:[%s797 + $0x44] sm:$0xf]
                  %834 = vst [vmem:[%s798 + $0x44] sm:$0xf] %v833
                  %v835 = vld [vmem:[%s797 + $0x48] sm:$0xf]
                  %836 = vst [vmem:[%s798 + $0x48] sm:$0xf] %v835
                  %v837 = vld [vmem:[%s797 + $0x4c] sm:$0xf]
                  %838 = vst [vmem:[%s798 + $0x4c] sm:$0xf] %v837
                  %v839 = vld [vmem:[%s797 + $0x50] sm:$0xf]
                  %840 = vst [vmem:[%s798 + $0x50] sm:$0xf] %v839
                  %v841 = vld [vmem:[%s797 + $0x54] sm:$0xf]
                  %842 = vst [vmem:[%s798 + $0x54] sm:$0xf] %v841
                  %v843 = vld [vmem:[%s797 + $0x58] sm:$0xf]
                  %844 = vst [vmem:[%s798 + $0x58] sm:$0xf] %v843
                  %v845 = vld [vmem:[%s797 + $0x5c] sm:$0xf]
                  %846 = vst [vmem:[%s798 + $0x5c] sm:$0xf] %v845
                  %v847 = vld [vmem:[%s797 + $0xc0] sm:$0xf]
                  %848 = vst [vmem:[%s798 + $0x60] sm:$0xf] %v847
                  %v849 = vld [vmem:[%s797 + $0xc4] sm:$0xf]
                  %850 = vst [vmem:[%s798 + $0x64] sm:$0xf] %v849
                  %v851 = vld [vmem:[%s797 + $0xc8] sm:$0xf]
                  %852 = vst [vmem:[%s798 + $0x68] sm:$0xf] %v851
                  %v853 = vld [vmem:[%s797 + $0xcc] sm:$0xf]
                  %854 = vst [vmem:[%s798 + $0x6c] sm:$0xf] %v853
                  %v855 = vld [vmem:[%s797 + $0xd0] sm:$0xf]
                  %856 = vst [vmem:[%s798 + $0x70] sm:$0xf] %v855
                  %v857 = vld [vmem:[%s797 + $0xd4] sm:$0xf]
                  %858 = vst [vmem:[%s798 + $0x74] sm:$0xf] %v857
                  %v859 = vld [vmem:[%s797 + $0xd8] sm:$0xf]
                  %860 = vst [vmem:[%s798 + $0x78] sm:$0xf] %v859
                  %v861 = vld [vmem:[%s797 + $0xdc] sm:$0xf]
                  %862 = vst [vmem:[%s798 + $0x7c] sm:$0xf] %v861
                  %v863 = vld [vmem:[%s797 + $0xe0] sm:$0xf]
                  %864 = vst [vmem:[%s798 + $0x80] sm:$0xf] %v863
                  %v865 = vld [vmem:[%s797 + $0xe4] sm:$0xf]
                  %866 = vst [vmem:[%s798 + $0x84] sm:$0xf] %v865
                  %v867 = vld [vmem:[%s797 + $0xe8] sm:$0xf]
                  %868 = vst [vmem:[%s798 + $0x88] sm:$0xf] %v867
                  %v869 = vld [vmem:[%s797 + $0xec] sm:$0xf]
                  %870 = vst [vmem:[%s798 + $0x8c] sm:$0xf] %v869
                  %v871 = vld [vmem:[%s797 + $0xf0] sm:$0xf]
                  %872 = vst [vmem:[%s798 + $0x90] sm:$0xf] %v871
                  %v873 = vld [vmem:[%s797 + $0xf4] sm:$0xf]
                  %874 = vst [vmem:[%s798 + $0x94] sm:$0xf] %v873
                  %v875 = vld [vmem:[%s797 + $0xf8] sm:$0xf]
                  %876 = vst [vmem:[%s798 + $0x98] sm:$0xf] %v875
                  %v877 = vld [vmem:[%s797 + $0xfc] sm:$0xf]
                  %878 = vst [vmem:[%s798 + $0x9c] sm:$0xf] %v877
                  %v879 = vld [vmem:[%s797 + $0x100] sm:$0xf]
                  %880 = vst [vmem:[%s798 + $0xa0] sm:$0xf] %v879
                  %v881 = vld [vmem:[%s797 + $0x104] sm:$0xf]
                  %882 = vst [vmem:[%s798 + $0xa4] sm:$0xf] %v881
                  %v883 = vld [vmem:[%s797 + $0x108] sm:$0xf]
                  %884 = vst [vmem:[%s798 + $0xa8] sm:$0xf] %v883
                  %v885 = vld [vmem:[%s797 + $0x10c] sm:$0xf]
                  %886 = vst [vmem:[%s798 + $0xac] sm:$0xf] %v885
                  %v887 = vld [vmem:[%s797 + $0x110] sm:$0xf]
                  %888 = vst [vmem:[%s798 + $0xb0] sm:$0xf] %v887
                  %v889 = vld [vmem:[%s797 + $0x114] sm:$0xf]
                  %890 = vst [vmem:[%s798 + $0xb4] sm:$0xf] %v889
                  %v891 = vld [vmem:[%s797 + $0x118] sm:$0xf]
                  %892 = vst [vmem:[%s798 + $0xb8] sm:$0xf] %v891
                  %v893 = vld [vmem:[%s797 + $0x11c] sm:$0xf]
                  %894 = vst [vmem:[%s798 + $0xbc] sm:$0xf] %v893
                $region145: #{dense_block_forward.3} parent=132 // loop_footer
                  %s796 = sadd.s32 1, %s792
                $region146: #{dense_block_forward.3} parent=132 // loop_footer_branch
                  %791 = sbr.rel target = $region142
                $region147: #{dense_block_forward.3} parent=132 // loop_exit
                  _
              $region133: #{dense_block_forward.3} parent=117 // pred_fallthru
                _
            $region118: #{dense_block_forward.3} parent=113 // pred_fallthru
              _
            // Predicated region
            $region119: #{dense_block_forward.3} parent=113 // pred_check
              _
            $region120: #{dense_block_forward.3} parent=113 // pred_check_branch
              %674 = sbr.rel (0) target = $region122
            $region121: #{dense_block_forward.3} parent=113 // pred_region
              loop: start=0, step=1, limit=1
              $region123: #{dense_block_forward.3} parent=121 // loop_pre_header
                _
              $region124: #{dense_block_forward.3} parent=121 // loop_header
                %s677 = sphi 0, %s681
                %p678 = scmp.ge.s32.totalorder %s677, 1
                %s682 = sphi %s668, %s668
                %s683 = sphi %s664, %s664
              $region125: #{dense_block_forward.3} parent=121 // loop_header_branch
                %680 = sbr.rel (%p678) target = $region129
              $region126: #{dense_block_forward.3} parent=121 // loop_body
                %v684 = vld [vmem:[%s682] sm:$0xf]
                %685 = vst [vmem:[%s683] sm:$0xf] %v684
                %v686 = vld [vmem:[%s682 + $0x4] sm:$0xf]
                %687 = vst [vmem:[%s683 + $0x4] sm:$0xf] %v686
                %v688 = vld [vmem:[%s682 + $0x8] sm:$0xf]
                %689 = vst [vmem:[%s683 + $0x8] sm:$0xf] %v688
                %v690 = vld [vmem:[%s682 + $0xc] sm:$0xf]
                %691 = vst [vmem:[%s683 + $0xc] sm:$0xf] %v690
                %v692 = vld [vmem:[%s682 + $0x10] sm:$0xf]
                %693 = vst [vmem:[%s683 + $0x10] sm:$0xf] %v692
                %v694 = vld [vmem:[%s682 + $0x14] sm:$0xf]
                %695 = vst [vmem:[%s683 + $0x14] sm:$0xf] %v694
                %v696 = vld [vmem:[%s682 + $0x18] sm:$0xf]
                %697 = vst [vmem:[%s683 + $0x18] sm:$0xf] %v696
                %v698 = vld [vmem:[%s682 + $0x1c] sm:$0xf]
                %699 = vst [vmem:[%s683 + $0x1c] sm:$0xf] %v698
                %v700 = vld [vmem:[%s682 + $0x20] sm:$0xf]
                %701 = vst [vmem:[%s683 + $0x20] sm:$0xf] %v700
                %v702 = vld [vmem:[%s682 + $0x24] sm:$0xf]
                %703 = vst [vmem:[%s683 + $0x24] sm:$0xf] %v702
                %v704 = vld [vmem:[%s682 + $0x28] sm:$0xf]
                %705 = vst [vmem:[%s683 + $0x28] sm:$0xf] %v704
                %v706 = vld [vmem:[%s682 + $0x2c] sm:$0xf]
                %707 = vst [vmem:[%s683 + $0x2c] sm:$0xf] %v706
                %v708 = vld [vmem:[%s682 + $0x30] sm:$0xf]
                %709 = vst [vmem:[%s683 + $0x30] sm:$0xf] %v708
                %v710 = vld [vmem:[%s682 + $0x34] sm:$0xf]
                %711 = vst [vmem:[%s683 + $0x34] sm:$0xf] %v710
                %v712 = vld [vmem:[%s682 + $0x38] sm:$0xf]
                %713 = vst [vmem:[%s683 + $0x38] sm:$0xf] %v712
                %v714 = vld [vmem:[%s682 + $0x3c] sm:$0xf]
                %715 = vst [vmem:[%s683 + $0x3c] sm:$0xf] %v714
                %v716 = vld [vmem:[%s682 + $0x40] sm:$0xf]
                %717 = vst [vmem:[%s683 + $0x40] sm:$0xf] %v716
                %v718 = vld [vmem:[%s682 + $0x44] sm:$0xf]
                %719 = vst [vmem:[%s683 + $0x44] sm:$0xf] %v718
                %v720 = vld [vmem:[%s682 + $0x48] sm:$0xf]
                %721 = vst [vmem:[%s683 + $0x48] sm:$0xf] %v720
                %v722 = vld [vmem:[%s682 + $0x4c] sm:$0xf]
                %723 = vst [vmem:[%s683 + $0x4c] sm:$0xf] %v722
                %v724 = vld [vmem:[%s682 + $0x50] sm:$0xf]
                %725 = vst [vmem:[%s683 + $0x50] sm:$0xf] %v724
                %v726 = vld [vmem:[%s682 + $0x54] sm:$0xf]
                %727 = vst [vmem:[%s683 + $0x54] sm:$0xf] %v726
                %v728 = vld [vmem:[%s682 + $0x58] sm:$0xf]
                %729 = vst [vmem:[%s683 + $0x58] sm:$0xf] %v728
                %v730 = vld [vmem:[%s682 + $0x5c] sm:$0xf]
                %731 = vst [vmem:[%s683 + $0x5c] sm:$0xf] %v730
                %v732 = vld [vmem:[%s682 + $0xc0] sm:$0xf]
                %733 = vst [vmem:[%s683 + $0x60] sm:$0xf] %v732
                %v734 = vld [vmem:[%s682 + $0xc4] sm:$0xf]
                %735 = vst [vmem:[%s683 + $0x64] sm:$0xf] %v734
                %v736 = vld [vmem:[%s682 + $0xc8] sm:$0xf]
                %737 = vst [vmem:[%s683 + $0x68] sm:$0xf] %v736
                %v738 = vld [vmem:[%s682 + $0xcc] sm:$0xf]
                %739 = vst [vmem:[%s683 + $0x6c] sm:$0xf] %v738
                %v740 = vld [vmem:[%s682 + $0xd0] sm:$0xf]
                %741 = vst [vmem:[%s683 + $0x70] sm:$0xf] %v740
                %v742 = vld [vmem:[%s682 + $0xd4] sm:$0xf]
                %743 = vst [vmem:[%s683 + $0x74] sm:$0xf] %v742
                %v744 = vld [vmem:[%s682 + $0xd8] sm:$0xf]
                %745 = vst [vmem:[%s683 + $0x78] sm:$0xf] %v744
                %v746 = vld [vmem:[%s682 + $0xdc] sm:$0xf]
                %747 = vst [vmem:[%s683 + $0x7c] sm:$0xf] %v746
                %v748 = vld [vmem:[%s682 + $0xe0] sm:$0xf]
                %749 = vst [vmem:[%s683 + $0x80] sm:$0xf] %v748
                %v750 = vld [vmem:[%s682 + $0xe4] sm:$0xf]
                %751 = vst [vmem:[%s683 + $0x84] sm:$0xf] %v750
                %v752 = vld [vmem:[%s682 + $0xe8] sm:$0xf]
                %753 = vst [vmem:[%s683 + $0x88] sm:$0xf] %v752
                %v754 = vld [vmem:[%s682 + $0xec] sm:$0xf]
                %755 = vst [vmem:[%s683 + $0x8c] sm:$0xf] %v754
                %v756 = vld [vmem:[%s682 + $0xf0] sm:$0xf]
                %757 = vst [vmem:[%s683 + $0x90] sm:$0xf] %v756
                %v758 = vld [vmem:[%s682 + $0xf4] sm:$0xf]
                %759 = vst [vmem:[%s683 + $0x94] sm:$0xf] %v758
                %v760 = vld [vmem:[%s682 + $0xf8] sm:$0xf]
                %761 = vst [vmem:[%s683 + $0x98] sm:$0xf] %v760
                %v762 = vld [vmem:[%s682 + $0xfc] sm:$0xf]
                %763 = vst [vmem:[%s683 + $0x9c] sm:$0xf] %v762
                %v764 = vld [vmem:[%s682 + $0x100] sm:$0xf]
                %765 = vst [vmem:[%s683 + $0xa0] sm:$0xf] %v764
                %v766 = vld [vmem:[%s682 + $0x104] sm:$0xf]
                %767 = vst [vmem:[%s683 + $0xa4] sm:$0xf] %v766
                %v768 = vld [vmem:[%s682 + $0x108] sm:$0xf]
                %769 = vst [vmem:[%s683 + $0xa8] sm:$0xf] %v768
                %v770 = vld [vmem:[%s682 + $0x10c] sm:$0xf]
                %771 = vst [vmem:[%s683 + $0xac] sm:$0xf] %v770
                %v772 = vld [vmem:[%s682 + $0x110] sm:$0xf]
                %773 = vst [vmem:[%s683 + $0xb0] sm:$0xf] %v772
                %v774 = vld [vmem:[%s682 + $0x114] sm:$0xf]
                %775 = vst [vmem:[%s683 + $0xb4] sm:$0xf] %v774
                %v776 = vld [vmem:[%s682 + $0x118] sm:$0xf]
                %777 = vst [vmem:[%s683 + $0xb8] sm:$0xf] %v776
                %v778 = vld [vmem:[%s682 + $0x11c] sm:$0xf]
                %779 = vst [vmem:[%s683 + $0xbc] sm:$0xf] %v778
              $region127: #{dense_block_forward.3} parent=121 // loop_footer
                %s681 = sadd.s32 1, %s677
              $region128: #{dense_block_forward.3} parent=121 // loop_footer_branch
                %676 = sbr.rel target = $region124
              $region129: #{dense_block_forward.3} parent=121 // loop_exit
                _
            $region122: #{dense_block_forward.3} parent=113 // pred_fallthru
              _
          $region114: #{dense_block_forward.3} parent=109 // pred_fallthru
            _
          %895 = vnop
        $region110: #{dense_block_forward.3} parent=23 // pred_fallthru
          _
      $region24: #{dense_block_forward.3} parent=5 // pred_fallthru
        _
      %p896 = scmp.le.s32.totalorder 1, %s11
      %p897 = scmp.lt.s32.totalorder %s11, 3
      %p898 = pnand %p896, %p897
      %p899 = pneg %p898
      // Predicated region
      $region148: #{dense_block_forward.3} parent=5 // pred_check
        _
      $region149: #{dense_block_forward.3} parent=5 // pred_check_branch
        %901 = sbr.rel (%p898) target = $region151
      $region150: #{dense_block_forward.3} parent=5 // pred_region
        %s902 = ssub.s32 %s11, 1
        %s903 = sand.u32 %s24, 1
        %s904 = sand.u32 %s24, 1
        %s905 = smul.addr %s904, 192
        %s906 = scalar_lea.vmem [#allocation2], %s905
        // Predicated region
        $region152: #{dense_block_forward.3} parent=150 // pred_check
          %p907 = pneg %p37
        $region153: #{dense_block_forward.3} parent=150 // pred_check_branch
          %909 = sbr.rel (%p907) target = $region155
        $region154: #{dense_block_forward.3} parent=150 // pred_region
          _
        $region155: #{dense_block_forward.3} parent=150 // pred_fallthru
          _
        %s910 = sand.u32 %s50, 1
        %s911 = sand.u32 %s50, 1
        %s912 = smul.addr %s911, 192
        %s913 = scalar_lea.vmem [#allocation3], %s912
        // Predicated region
        $region156: #{dense_block_forward.3} parent=150 // pred_check
          %p914 = pneg %p63
        $region157: #{dense_block_forward.3} parent=150 // pred_check_branch
          %916 = sbr.rel (%p914) target = $region159
        $region158: #{dense_block_forward.3} parent=150 // pred_region
          _
        $region159: #{dense_block_forward.3} parent=150 // pred_fallthru
          _
        %s917 = sand.u32 %s76, 1
        %s918 = sand.u32 %s76, 1
        %s919 = smul.addr %s918, 192
        %s920 = scalar_lea.vmem [#allocation4], %s919
        // Predicated region
        $region160: #{dense_block_forward.3} parent=150 // pred_check
          %p921 = pneg %p89
        $region161: #{dense_block_forward.3} parent=150 // pred_check_branch
          %923 = sbr.rel (%p921) target = $region163
        $region162: #{dense_block_forward.3} parent=150 // pred_region
          _
        $region163: #{dense_block_forward.3} parent=150 // pred_fallthru
          _
        %s924 = sand.u32 %s24, 1
        %s925 = sand.u32 %s24, 1
        %s926 = smul.addr %s925, 192
        %s927 = scalar_lea.vmem [#allocation2], %s926
        %p928 = pneg %p37
        %p929 = pneg %p34
        %s930 = sand.u32 %s50, 1
        %s931 = sand.u32 %s50, 1
        %s932 = smul.addr %s931, 192
        %s933 = scalar_lea.vmem [#allocation3], %s932
        %p934 = pneg %p63
        %p935 = pneg %p60
        %s936 = sand.u32 %s76, 1
        %s937 = sand.u32 %s76, 1
        %s938 = smul.addr %s937, 192
        %s939 = scalar_lea.vmem [#allocation4], %s938
        %p940 = pneg %p89
        %p941 = pneg %p86
        %p942 = pneg %p110
        %p943 = pneg %p107
        %p944 = pneg %p131
        %p945 = pneg %p128
        %p946 = pneg %p157
        %p947 = pneg %p154
        %s948 = sand.u32 %s144, 1
        %s949 = sand.u32 %s144, 1
        %s950 = smul.addr %s949, 128
        %s951 = scalar_lea.vmem [#allocation5], %s950
        %s952 = smul.u32 8, %s16
        %s953 = smul.u32 8, %s16
        %s954 = smul.u32 8, %s16
        %s955 = smul.u32 8, %s16
        %v957 = vld [vmem:[%s906] sm:$0xf]
        %v958 = vld [vmem:[%s906 + $0x4] sm:$0xf]
        %v959 = vld [vmem:[%s906 + $0x8] sm:$0x1]
        %v960 = vld [vmem:[%s906 + $0xc] sm:$0xf]
        %v961 = vld [vmem:[%s906 + $0x10] sm:$0xf]
        %v962 = vld [vmem:[%s906 + $0x14] sm:$0x1]
        %v963 = vld [vmem:[%s906 + $0x18] sm:$0xf]
        %v964 = vld [vmem:[%s906 + $0x1c] sm:$0xf]
        %v965 = vld [vmem:[%s906 + $0x20] sm:$0x1]
        %v966 = vld [vmem:[%s906 + $0x24] sm:$0xf]
        %v967 = vld [vmem:[%s906 + $0x28] sm:$0xf]
        %v968 = vld [vmem:[%s906 + $0x2c] sm:$0x1]
        %v969 = vld [vmem:[%s906 + $0x30] sm:$0xf]
        %v970 = vld [vmem:[%s906 + $0x34] sm:$0xf]
        %v971 = vld [vmem:[%s906 + $0x38] sm:$0x1]
        %v972 = vld [vmem:[%s906 + $0x3c] sm:$0xf]
        %v973 = vld [vmem:[%s906 + $0x40] sm:$0xf]
        %v974 = vld [vmem:[%s906 + $0x44] sm:$0x1]
        %v975 = vld [vmem:[%s906 + $0x48] sm:$0xf]
        %v976 = vld [vmem:[%s906 + $0x4c] sm:$0xf]
        %v977 = vld [vmem:[%s906 + $0x50] sm:$0x1]
        %v978 = vld [vmem:[%s906 + $0x54] sm:$0xf]
        %v979 = vld [vmem:[%s906 + $0x58] sm:$0xf]
        %v980 = vld [vmem:[%s906 + $0x5c] sm:$0x1]
        %v981 = vld [vmem:[%s906 + $0x60] sm:$0xf]
        %v982 = vld [vmem:[%s906 + $0x64] sm:$0xf]
        %v983 = vld [vmem:[%s906 + $0x68] sm:$0x1]
        %v984 = vld [vmem:[%s906 + $0x6c] sm:$0xf]
        %v985 = vld [vmem:[%s906 + $0x70] sm:$0xf]
        %v986 = vld [vmem:[%s906 + $0x74] sm:$0x1]
        %v987 = vld [vmem:[%s906 + $0x78] sm:$0xf]
        %v988 = vld [vmem:[%s906 + $0x7c] sm:$0xf]
        %v989 = vld [vmem:[%s906 + $0x80] sm:$0x1]
        %v990 = vld [vmem:[%s906 + $0x84] sm:$0xf]
        %v991 = vld [vmem:[%s906 + $0x88] sm:$0xf]
        %v992 = vld [vmem:[%s906 + $0x8c] sm:$0x1]
        %v993 = vld [vmem:[%s906 + $0x90] sm:$0xf]
        %v994 = vld [vmem:[%s906 + $0x94] sm:$0xf]
        %v995 = vld [vmem:[%s906 + $0x98] sm:$0x1]
        %v996 = vld [vmem:[%s906 + $0x9c] sm:$0xf]
        %v997 = vld [vmem:[%s906 + $0xa0] sm:$0xf]
        %v998 = vld [vmem:[%s906 + $0xa4] sm:$0x1]
        %v999 = vld [vmem:[%s906 + $0xa8] sm:$0xf]
        %v1000 = vld [vmem:[%s906 + $0xac] sm:$0xf]
        %v1001 = vld [vmem:[%s906 + $0xb0] sm:$0x1]
        %v1002 = vld [vmem:[%s906 + $0xb4] sm:$0xf]
        %v1003 = vld [vmem:[%s906 + $0xb8] sm:$0xf]
        %v1004 = vld [vmem:[%s906 + $0xbc] sm:$0x1]
        %v1005 = vld [vmem:[%s913] sm:$0xf]
        %v1006 = vld [vmem:[%s913 + $0x4] sm:$0xf]
        %v1007 = vld [vmem:[%s913 + $0x8] sm:$0x1]
        %v1008 = vld [vmem:[%s913 + $0xc] sm:$0xf]
        %v1009 = vld [vmem:[%s913 + $0x10] sm:$0xf]
        %v1010 = vld [vmem:[%s913 + $0x14] sm:$0x1]
        %v1011 = vld [vmem:[%s913 + $0x18] sm:$0xf]
        %v1012 = vld [vmem:[%s913 + $0x1c] sm:$0xf]
        %v1013 = vld [vmem:[%s913 + $0x20] sm:$0x1]
        %v1014 = vld [vmem:[%s913 + $0x24] sm:$0xf]
        %v1015 = vld [vmem:[%s913 + $0x28] sm:$0xf]
        %v1016 = vld [vmem:[%s913 + $0x2c] sm:$0x1]
        %v1017 = vld [vmem:[%s913 + $0x30] sm:$0xf]
        %v1018 = vld [vmem:[%s913 + $0x34] sm:$0xf]
        %v1019 = vld [vmem:[%s913 + $0x38] sm:$0x1]
        %v1020 = vld [vmem:[%s913 + $0x3c] sm:$0xf]
        %v1021 = vld [vmem:[%s913 + $0x40] sm:$0xf]
        %v1022 = vld [vmem:[%s913 + $0x44] sm:$0x1]
        %v1023 = vld [vmem:[%s913 + $0x48] sm:$0xf]
        %v1024 = vld [vmem:[%s913 + $0x4c] sm:$0xf]
        %v1025 = vld [vmem:[%s913 + $0x50] sm:$0x1]
        %v1026 = vld [vmem:[%s913 + $0x54] sm:$0xf]
        %v1027 = vld [vmem:[%s913 + $0x58] sm:$0xf]
        %v1028 = vld [vmem:[%s913 + $0x5c] sm:$0x1]
        %v1029 = vld [vmem:[%s913 + $0x60] sm:$0xf]
        %v1030 = vld [vmem:[%s913 + $0x64] sm:$0xf]
        %v1031 = vld [vmem:[%s913 + $0x68] sm:$0x1]
        %v1032 = vld [vmem:[%s913 + $0x6c] sm:$0xf]
        %v1033 = vld [vmem:[%s913 + $0x70] sm:$0xf]
        %v1034 = vld [vmem:[%s913 + $0x74] sm:$0x1]
        %v1035 = vld [vmem:[%s913 + $0x78] sm:$0xf]
        %v1036 = vld [vmem:[%s913 + $0x7c] sm:$0xf]
        %v1037 = vld [vmem:[%s913 + $0x80] sm:$0x1]
        %v1038 = vld [vmem:[%s913 + $0x84] sm:$0xf]
        %v1039 = vld [vmem:[%s913 + $0x88] sm:$0xf]
        %v1040 = vld [vmem:[%s913 + $0x8c] sm:$0x1]
        %v1041 = vld [vmem:[%s913 + $0x90] sm:$0xf]
        %v1042 = vld [vmem:[%s913 + $0x94] sm:$0xf]
        %v1043 = vld [vmem:[%s913 + $0x98] sm:$0x1]
        %v1044 = vld [vmem:[%s913 + $0x9c] sm:$0xf]
        %v1045 = vld [vmem:[%s913 + $0xa0] sm:$0xf]
        %v1046 = vld [vmem:[%s913 + $0xa4] sm:$0x1]
        %v1047 = vld [vmem:[%s913 + $0xa8] sm:$0xf]
        %v1048 = vld [vmem:[%s913 + $0xac] sm:$0xf]
        %v1049 = vld [vmem:[%s913 + $0xb0] sm:$0x1]
        %v1050 = vld [vmem:[%s913 + $0xb4] sm:$0xf]
        %v1051 = vld [vmem:[%s913 + $0xb8] sm:$0xf]
        %v1052 = vld [vmem:[%s913 + $0xbc] sm:$0x1]
        %v1053 = vld [vmem:[%s920] sm:$0xf]
        %v1054 = vld [vmem:[%s920 + $0x4] sm:$0xf]
        %v1055 = vld [vmem:[%s920 + $0x8] sm:$0x1]
        %v1056 = vld [vmem:[%s920 + $0xc] sm:$0xf]
        %v1057 = vld [vmem:[%s920 + $0x10] sm:$0xf]
        %v1058 = vld [vmem:[%s920 + $0x14] sm:$0x1]
        %v1059 = vld [vmem:[%s920 + $0x18] sm:$0xf]
        %v1060 = vld [vmem:[%s920 + $0x1c] sm:$0xf]
        %v1061 = vld [vmem:[%s920 + $0x20] sm:$0x1]
        %v1062 = vld [vmem:[%s920 + $0x24] sm:$0xf]
        %v1063 = vld [vmem:[%s920 + $0x28] sm:$0xf]
        %v1064 = vld [vmem:[%s920 + $0x2c] sm:$0x1]
        %v1065 = vld [vmem:[%s920 + $0x30] sm:$0xf]
        %v1066 = vld [vmem:[%s920 + $0x34] sm:$0xf]
        %v1067 = vld [vmem:[%s920 + $0x38] sm:$0x1]
        %v1068 = vld [vmem:[%s920 + $0x3c] sm:$0xf]
        %v1069 = vld [vmem:[%s920 + $0x40] sm:$0xf]
        %v1070 = vld [vmem:[%s920 + $0x44] sm:$0x1]
        %v1071 = vld [vmem:[%s920 + $0x48] sm:$0xf]
        %v1072 = vld [vmem:[%s920 + $0x4c] sm:$0xf]
        %v1073 = vld [vmem:[%s920 + $0x50] sm:$0x1]
        %v1074 = vld [vmem:[%s920 + $0x54] sm:$0xf]
        %v1075 = vld [vmem:[%s920 + $0x58] sm:$0xf]
        %v1076 = vld [vmem:[%s920 + $0x5c] sm:$0x1]
        %v1077 = vld [vmem:[%s920 + $0x60] sm:$0xf]
        %v1078 = vld [vmem:[%s920 + $0x64] sm:$0xf]
        %v1079 = vld [vmem:[%s920 + $0x68] sm:$0x1]
        %v1080 = vld [vmem:[%s920 + $0x6c] sm:$0xf]
        %v1081 = vld [vmem:[%s920 + $0x70] sm:$0xf]
        %v1082 = vld [vmem:[%s920 + $0x74] sm:$0x1]
        %v1083 = vld [vmem:[%s920 + $0x78] sm:$0xf]
        %v1084 = vld [vmem:[%s920 + $0x7c] sm:$0xf]
        %v1085 = vld [vmem:[%s920 + $0x80] sm:$0x1]
        %v1086 = vld [vmem:[%s920 + $0x84] sm:$0xf]
        %v1087 = vld [vmem:[%s920 + $0x88] sm:$0xf]
        %v1088 = vld [vmem:[%s920 + $0x8c] sm:$0x1]
        %v1089 = vld [vmem:[%s920 + $0x90] sm:$0xf]
        %v1090 = vld [vmem:[%s920 + $0x94] sm:$0xf]
        %v1091 = vld [vmem:[%s920 + $0x98] sm:$0x1]
        %v1092 = vld [vmem:[%s920 + $0x9c] sm:$0xf]
        %v1093 = vld [vmem:[%s920 + $0xa0] sm:$0xf]
        %v1094 = vld [vmem:[%s920 + $0xa4] sm:$0x1]
        %v1095 = vld [vmem:[%s920 + $0xa8] sm:$0xf]
        %v1096 = vld [vmem:[%s920 + $0xac] sm:$0xf]
        %v1097 = vld [vmem:[%s920 + $0xb0] sm:$0x1]
        %v1098 = vld [vmem:[%s920 + $0xb4] sm:$0xf]
        %v1099 = vld [vmem:[%s920 + $0xb8] sm:$0xf]
        %v1100 = vld [vmem:[%s920 + $0xbc] sm:$0x1]
        %vm1101 = vsmask.f32 3328
        %vm1102 = vsmask.f32 7440
        %vm1103 = vmor %vm1101, %vm1102
        %v1105 = vshrl.u32 %v957, 16
        %v1107 = vrot.slane %v1105, 4
        %v1108 = vshll.u32 %v957, 16
        %v1110 = vrot.slane %v1108, 5
        %v1111 = vor.u32 %v1107, %v1110
        %v1112 = vrot.slane %v1111, 4
        %v1114 = vshll.u32 %v958, 16
        %v1116 = vrot.slane %v1114, 5
        %v1117 = vsel %vm1103, %v1112, %v1116
        %v1118 = vshrl.u32 %v958, 16
        %v1120 = vrot.slane %v1118, 4
        %v1121 = vor.u32 %v1120, %v1116
        %v1122 = vrot.slane %v1121, 4
        %v1124 = vshll.u32 %v959, 16
        %v1126 = vrot.slane %v1124, 5
        %v1127 = vsel %vm1103, %v1122, %v1126
        %v1129 = vshrl.u32 %v960, 16
        %v1131 = vrot.slane %v1129, 4
        %v1132 = vshll.u32 %v960, 16
        %v1134 = vrot.slane %v1132, 5
        %v1135 = vor.u32 %v1131, %v1134
        %v1136 = vrot.slane %v1135, 4
        %v1138 = vshll.u32 %v961, 16
        %v1140 = vrot.slane %v1138, 5
        %v1141 = vsel %vm1103, %v1136, %v1140
        %v1142 = vshrl.u32 %v961, 16
        %v1144 = vrot.slane %v1142, 4
        %v1145 = vor.u32 %v1144, %v1140
        %v1146 = vrot.slane %v1145, 4
        %v1148 = vshll.u32 %v962, 16
        %v1150 = vrot.slane %v1148, 5
        %v1151 = vsel %vm1103, %v1146, %v1150
        %v1153 = vshrl.u32 %v963, 16
        %v1155 = vrot.slane %v1153, 4
        %v1156 = vshll.u32 %v963, 16
        %v1158 = vrot.slane %v1156, 5
        %v1159 = vor.u32 %v1155, %v1158
        %v1160 = vrot.slane %v1159, 4
        %v1162 = vshll.u32 %v964, 16
        %v1164 = vrot.slane %v1162, 5
        %v1165 = vsel %vm1103, %v1160, %v1164
        %v1166 = vshrl.u32 %v964, 16
        %v1168 = vrot.slane %v1166, 4
        %v1169 = vor.u32 %v1168, %v1164
        %v1170 = vrot.slane %v1169, 4
        %v1172 = vshll.u32 %v965, 16
        %v1174 = vrot.slane %v1172, 5
        %v1175 = vsel %vm1103, %v1170, %v1174
        %v1177 = vshrl.u32 %v966, 16
        %v1179 = vrot.slane %v1177, 4
        %v1180 = vshll.u32 %v966, 16
        %v1182 = vrot.slane %v1180, 5
        %v1183 = vor.u32 %v1179, %v1182
        %v1184 = vrot.slane %v1183, 4
        %v1186 = vshll.u32 %v967, 16
        %v1188 = vrot.slane %v1186, 5
        %v1189 = vsel %vm1103, %v1184, %v1188
        %v1190 = vshrl.u32 %v967, 16
        %v1192 = vrot.slane %v1190, 4
        %v1193 = vor.u32 %v1192, %v1188
        %v1194 = vrot.slane %v1193, 4
        %v1196 = vshll.u32 %v968, 16
        %v1198 = vrot.slane %v1196, 5
        %v1199 = vsel %vm1103, %v1194, %v1198
        %v1201 = vshrl.u32 %v969, 16
        %v1203 = vrot.slane %v1201, 4
        %v1204 = vshll.u32 %v969, 16
        %v1206 = vrot.slane %v1204, 5
        %v1207 = vor.u32 %v1203, %v1206
        %v1208 = vrot.slane %v1207, 4
        %v1210 = vshll.u32 %v970, 16
        %v1212 = vrot.slane %v1210, 5
        %v1213 = vsel %vm1103, %v1208, %v1212
        %v1214 = vshrl.u32 %v970, 16
        %v1216 = vrot.slane %v1214, 4
        %v1217 = vor.u32 %v1216, %v1212
        %v1218 = vrot.slane %v1217, 4
        %v1220 = vshll.u32 %v971, 16
        %v1222 = vrot.slane %v1220, 5
        %v1223 = vsel %vm1103, %v1218, %v1222
        %v1225 = vshrl.u32 %v972, 16
        %v1227 = vrot.slane %v1225, 4
        %v1228 = vshll.u32 %v972, 16
        %v1230 = vrot.slane %v1228, 5
        %v1231 = vor.u32 %v1227, %v1230
        %v1232 = vrot.slane %v1231, 4
        %v1234 = vshll.u32 %v973, 16
        %v1236 = vrot.slane %v1234, 5
        %v1237 = vsel %vm1103, %v1232, %v1236
        %v1238 = vshrl.u32 %v973, 16
        %v1240 = vrot.slane %v1238, 4
        %v1241 = vor.u32 %v1240, %v1236
        %v1242 = vrot.slane %v1241, 4
        %v1244 = vshll.u32 %v974, 16
        %v1246 = vrot.slane %v1244, 5
        %v1247 = vsel %vm1103, %v1242, %v1246
        %v1249 = vshrl.u32 %v975, 16
        %v1251 = vrot.slane %v1249, 4
        %v1252 = vshll.u32 %v975, 16
        %v1254 = vrot.slane %v1252, 5
        %v1255 = vor.u32 %v1251, %v1254
        %v1256 = vrot.slane %v1255, 4
        %v1258 = vshll.u32 %v976, 16
        %v1260 = vrot.slane %v1258, 5
        %v1261 = vsel %vm1103, %v1256, %v1260
        %v1262 = vshrl.u32 %v976, 16
        %v1264 = vrot.slane %v1262, 4
        %v1265 = vor.u32 %v1264, %v1260
        %v1266 = vrot.slane %v1265, 4
        %v1268 = vshll.u32 %v977, 16
        %v1270 = vrot.slane %v1268, 5
        %v1271 = vsel %vm1103, %v1266, %v1270
        %v1273 = vshrl.u32 %v978, 16
        %v1275 = vrot.slane %v1273, 4
        %v1276 = vshll.u32 %v978, 16
        %v1278 = vrot.slane %v1276, 5
        %v1279 = vor.u32 %v1275, %v1278
        %v1280 = vrot.slane %v1279, 4
        %v1282 = vshll.u32 %v979, 16
        %v1284 = vrot.slane %v1282, 5
        %v1285 = vsel %vm1103, %v1280, %v1284
        %v1286 = vshrl.u32 %v979, 16
        %v1288 = vrot.slane %v1286, 4
        %v1289 = vor.u32 %v1288, %v1284
        %v1290 = vrot.slane %v1289, 4
        %v1292 = vshll.u32 %v980, 16
        %v1294 = vrot.slane %v1292, 5
        %v1295 = vsel %vm1103, %v1290, %v1294
        %v1297 = vshrl.u32 %v981, 16
        %v1299 = vrot.slane %v1297, 4
        %v1300 = vshll.u32 %v981, 16
        %v1302 = vrot.slane %v1300, 5
        %v1303 = vor.u32 %v1299, %v1302
        %v1304 = vrot.slane %v1303, 4
        %v1306 = vshll.u32 %v982, 16
        %v1308 = vrot.slane %v1306, 5
        %v1309 = vsel %vm1103, %v1304, %v1308
        %v1310 = vshrl.u32 %v982, 16
        %v1312 = vrot.slane %v1310, 4
        %v1313 = vor.u32 %v1312, %v1308
        %v1314 = vrot.slane %v1313, 4
        %v1316 = vshll.u32 %v983, 16
        %v1318 = vrot.slane %v1316, 5
        %v1319 = vsel %vm1103, %v1314, %v1318
        %v1321 = vshrl.u32 %v984, 16
        %v1323 = vrot.slane %v1321, 4
        %v1324 = vshll.u32 %v984, 16
        %v1326 = vrot.slane %v1324, 5
        %v1327 = vor.u32 %v1323, %v1326
        %v1328 = vrot.slane %v1327, 4
        %v1330 = vshll.u32 %v985, 16
        %v1332 = vrot.slane %v1330, 5
        %v1333 = vsel %vm1103, %v1328, %v1332
        %v1334 = vshrl.u32 %v985, 16
        %v1336 = vrot.slane %v1334, 4
        %v1337 = vor.u32 %v1336, %v1332
        %v1338 = vrot.slane %v1337, 4
        %v1340 = vshll.u32 %v986, 16
        %v1342 = vrot.slane %v1340, 5
        %v1343 = vsel %vm1103, %v1338, %v1342
        %v1345 = vshrl.u32 %v987, 16
        %v1347 = vrot.slane %v1345, 4
        %v1348 = vshll.u32 %v987, 16
        %v1350 = vrot.slane %v1348, 5
        %v1351 = vor.u32 %v1347, %v1350
        %v1352 = vrot.slane %v1351, 4
        %v1354 = vshll.u32 %v988, 16
        %v1356 = vrot.slane %v1354, 5
        %v1357 = vsel %vm1103, %v1352, %v1356
        %v1358 = vshrl.u32 %v988, 16
        %v1360 = vrot.slane %v1358, 4
        %v1361 = vor.u32 %v1360, %v1356
        %v1362 = vrot.slane %v1361, 4
        %v1364 = vshll.u32 %v989, 16
        %v1366 = vrot.slane %v1364, 5
        %v1367 = vsel %vm1103, %v1362, %v1366
        %v1369 = vshrl.u32 %v990, 16
        %v1371 = vrot.slane %v1369, 4
        %v1372 = vshll.u32 %v990, 16
        %v1374 = vrot.slane %v1372, 5
        %v1375 = vor.u32 %v1371, %v1374
        %v1376 = vrot.slane %v1375, 4
        %v1378 = vshll.u32 %v991, 16
        %v1380 = vrot.slane %v1378, 5
        %v1381 = vsel %vm1103, %v1376, %v1380
        %v1382 = vshrl.u32 %v991, 16
        %v1384 = vrot.slane %v1382, 4
        %v1385 = vor.u32 %v1384, %v1380
        %v1386 = vrot.slane %v1385, 4
        %v1388 = vshll.u32 %v992, 16
        %v1390 = vrot.slane %v1388, 5
        %v1391 = vsel %vm1103, %v1386, %v1390
        %v1393 = vshrl.u32 %v993, 16
        %v1395 = vrot.slane %v1393, 4
        %v1396 = vshll.u32 %v993, 16
        %v1398 = vrot.slane %v1396, 5
        %v1399 = vor.u32 %v1395, %v1398
        %v1400 = vrot.slane %v1399, 4
        %v1402 = vshll.u32 %v994, 16
        %v1404 = vrot.slane %v1402, 5
        %v1405 = vsel %vm1103, %v1400, %v1404
        %v1406 = vshrl.u32 %v994, 16
        %v1408 = vrot.slane %v1406, 4
        %v1409 = vor.u32 %v1408, %v1404
        %v1410 = vrot.slane %v1409, 4
        %v1412 = vshll.u32 %v995, 16
        %v1414 = vrot.slane %v1412, 5
        %v1415 = vsel %vm1103, %v1410, %v1414
        %v1417 = vshrl.u32 %v996, 16
        %v1419 = vrot.slane %v1417, 4
        %v1420 = vshll.u32 %v996, 16
        %v1422 = vrot.slane %v1420, 5
        %v1423 = vor.u32 %v1419, %v1422
        %v1424 = vrot.slane %v1423, 4
        %v1426 = vshll.u32 %v997, 16
        %v1428 = vrot.slane %v1426, 5
        %v1429 = vsel %vm1103, %v1424, %v1428
        %v1430 = vshrl.u32 %v997, 16
        %v1432 = vrot.slane %v1430, 4
        %v1433 = vor.u32 %v1432, %v1428
        %v1434 = vrot.slane %v1433, 4
        %v1436 = vshll.u32 %v998, 16
        %v1438 = vrot.slane %v1436, 5
        %v1439 = vsel %vm1103, %v1434, %v1438
        %v1441 = vshrl.u32 %v999, 16
        %v1443 = vrot.slane %v1441, 4
        %v1444 = vshll.u32 %v999, 16
        %v1446 = vrot.slane %v1444, 5
        %v1447 = vor.u32 %v1443, %v1446
        %v1448 = vrot.slane %v1447, 4
        %v1450 = vshll.u32 %v1000, 16
        %v1452 = vrot.slane %v1450, 5
        %v1453 = vsel %vm1103, %v1448, %v1452
        %v1454 = vshrl.u32 %v1000, 16
        %v1456 = vrot.slane %v1454, 4
        %v1457 = vor.u32 %v1456, %v1452
        %v1458 = vrot.slane %v1457, 4
        %v1460 = vshll.u32 %v1001, 16
        %v1462 = vrot.slane %v1460, 5
        %v1463 = vsel %vm1103, %v1458, %v1462
        %v1465 = vshrl.u32 %v1002, 16
        %v1467 = vrot.slane %v1465, 4
        %v1468 = vshll.u32 %v1002, 16
        %v1470 = vrot.slane %v1468, 5
        %v1471 = vor.u32 %v1467, %v1470
        %v1472 = vrot.slane %v1471, 4
        %v1474 = vshll.u32 %v1003, 16
        %v1476 = vrot.slane %v1474, 5
        %v1477 = vsel %vm1103, %v1472, %v1476
        %v1478 = vshrl.u32 %v1003, 16
        %v1480 = vrot.slane %v1478, 4
        %v1481 = vor.u32 %v1480, %v1476
        %v1482 = vrot.slane %v1481, 4
        %v1484 = vshll.u32 %v1004, 16
        %v1486 = vrot.slane %v1484, 5
        %v1487 = vsel %vm1103, %v1482, %v1486
        %vm1536 = vcmask 1042432
        %vm1537 = vcmask 1046532
        %vm1538 = vmor %vm1536, %vm1537
        %v1539 = vrot.slane %v957, 5
        %v1540 = vrot.slane %v1539, 4
        %v1541 = vrot.slane %v958, 5
        %v1542 = vsel %vm1538, %v1540, %v1541
        %v1543 = vrot.slane %v1541, 4
        %v1544 = vrot.slane %v959, 5
        %v1545 = vsel %vm1538, %v1543, %v1544
        %v1546 = vrot.slane %v960, 5
        %v1547 = vrot.slane %v1546, 4
        %v1548 = vrot.slane %v961, 5
        %v1549 = vsel %vm1538, %v1547, %v1548
        %v1550 = vrot.slane %v1548, 4
        %v1551 = vrot.slane %v962, 5
        %v1552 = vsel %vm1538, %v1550, %v1551
        %v1553 = vrot.slane %v963, 5
        %v1554 = vrot.slane %v1553, 4
        %v1555 = vrot.slane %v964, 5
        %v1556 = vsel %vm1538, %v1554, %v1555
        %v1557 = vrot.slane %v1555, 4
        %v1558 = vrot.slane %v965, 5
        %v1559 = vsel %vm1538, %v1557, %v1558
        %v1560 = vrot.slane %v966, 5
        %v1561 = vrot.slane %v1560, 4
        %v1562 = vrot.slane %v967, 5
        %v1563 = vsel %vm1538, %v1561, %v1562
        %v1564 = vrot.slane %v1562, 4
        %v1565 = vrot.slane %v968, 5
        %v1566 = vsel %vm1538, %v1564, %v1565
        %v1567 = vrot.slane %v969, 5
        %v1568 = vrot.slane %v1567, 4
        %v1569 = vrot.slane %v970, 5
        %v1570 = vsel %vm1538, %v1568, %v1569
        %v1571 = vrot.slane %v1569, 4
        %v1572 = vrot.slane %v971, 5
        %v1573 = vsel %vm1538, %v1571, %v1572
        %v1574 = vrot.slane %v972, 5
        %v1575 = vrot.slane %v1574, 4
        %v1576 = vrot.slane %v973, 5
        %v1577 = vsel %vm1538, %v1575, %v1576
        %v1578 = vrot.slane %v1576, 4
        %v1579 = vrot.slane %v974, 5
        %v1580 = vsel %vm1538, %v1578, %v1579
        %v1581 = vrot.slane %v975, 5
        %v1582 = vrot.slane %v1581, 4
        %v1583 = vrot.slane %v976, 5
        %v1584 = vsel %vm1538, %v1582, %v1583
        %v1585 = vrot.slane %v1583, 4
        %v1586 = vrot.slane %v977, 5
        %v1587 = vsel %vm1538, %v1585, %v1586
        %v1588 = vrot.slane %v978, 5
        %v1589 = vrot.slane %v1588, 4
        %v1590 = vrot.slane %v979, 5
        %v1591 = vsel %vm1538, %v1589, %v1590
        %v1592 = vrot.slane %v1590, 4
        %v1593 = vrot.slane %v980, 5
        %v1594 = vsel %vm1538, %v1592, %v1593
        %v1595 = vrot.slane %v981, 5
        %v1596 = vrot.slane %v1595, 4
        %v1597 = vrot.slane %v982, 5
        %v1598 = vsel %vm1538, %v1596, %v1597
        %v1599 = vrot.slane %v1597, 4
        %v1600 = vrot.slane %v983, 5
        %v1601 = vsel %vm1538, %v1599, %v1600
        %v1602 = vrot.slane %v984, 5
        %v1603 = vrot.slane %v1602, 4
        %v1604 = vrot.slane %v985, 5
        %v1605 = vsel %vm1538, %v1603, %v1604
        %v1606 = vrot.slane %v1604, 4
        %v1607 = vrot.slane %v986, 5
        %v1608 = vsel %vm1538, %v1606, %v1607
        %v1609 = vrot.slane %v987, 5
        %v1610 = vrot.slane %v1609, 4
        %v1611 = vrot.slane %v988, 5
        %v1612 = vsel %vm1538, %v1610, %v1611
        %v1613 = vrot.slane %v1611, 4
        %v1614 = vrot.slane %v989, 5
        %v1615 = vsel %vm1538, %v1613, %v1614
        %v1616 = vrot.slane %v990, 5
        %v1617 = vrot.slane %v1616, 4
        %v1618 = vrot.slane %v991, 5
        %v1619 = vsel %vm1538, %v1617, %v1618
        %v1620 = vrot.slane %v1618, 4
        %v1621 = vrot.slane %v992, 5
        %v1622 = vsel %vm1538, %v1620, %v1621
        %v1623 = vrot.slane %v993, 5
        %v1624 = vrot.slane %v1623, 4
        %v1625 = vrot.slane %v994, 5
        %v1626 = vsel %vm1538, %v1624, %v1625
        %v1627 = vrot.slane %v1625, 4
        %v1628 = vrot.slane %v995, 5
        %v1629 = vsel %vm1538, %v1627, %v1628
        %v1630 = vrot.slane %v996, 5
        %v1631 = vrot.slane %v1630, 4
        %v1632 = vrot.slane %v997, 5
        %v1633 = vsel %vm1538, %v1631, %v1632
        %v1634 = vrot.slane %v1632, 4
        %v1635 = vrot.slane %v998, 5
        %v1636 = vsel %vm1538, %v1634, %v1635
        %v1637 = vrot.slane %v999, 5
        %v1638 = vrot.slane %v1637, 4
        %v1639 = vrot.slane %v1000, 5
        %v1640 = vsel %vm1538, %v1638, %v1639
        %v1641 = vrot.slane %v1639, 4
        %v1642 = vrot.slane %v1001, 5
        %v1643 = vsel %vm1538, %v1641, %v1642
        %v1644 = vrot.slane %v1002, 5
        %v1645 = vrot.slane %v1644, 4
        %v1646 = vrot.slane %v1003, 5
        %v1647 = vsel %vm1538, %v1645, %v1646
        %v1648 = vrot.slane %v1646, 4
        %v1649 = vrot.slane %v1004, 5
        %v1650 = vsel %vm1538, %v1648, %v1649
        %v1652 = vshrl.u32 %v1005, 16
        %v1654 = vrot.slane %v1652, 4
        %v1655 = vshll.u32 %v1005, 16
        %v1657 = vrot.slane %v1655, 5
        %v1658 = vor.u32 %v1654, %v1657
        %v1659 = vrot.slane %v1658, 4
        %v1661 = vshll.u32 %v1006, 16
        %v1663 = vrot.slane %v1661, 5
        %v1664 = vsel %vm1103, %v1659, %v1663
        %v1665 = vshrl.u32 %v1006, 16
        %v1667 = vrot.slane %v1665, 4
        %v1668 = vor.u32 %v1667, %v1663
        %v1669 = vrot.slane %v1668, 4
        %v1671 = vshll.u32 %v1007, 16
        %v1673 = vrot.slane %v1671, 5
        %v1674 = vsel %vm1103, %v1669, %v1673
        %v1676 = vshrl.u32 %v1008, 16
        %v1678 = vrot.slane %v1676, 4
        %v1679 = vshll.u32 %v1008, 16
        %v1681 = vrot.slane %v1679, 5
        %v1682 = vor.u32 %v1678, %v1681
        %v1683 = vrot.slane %v1682, 4
        %v1685 = vshll.u32 %v1009, 16
        %v1687 = vrot.slane %v1685, 5
        %v1688 = vsel %vm1103, %v1683, %v1687
        %v1689 = vshrl.u32 %v1009, 16
        %v1691 = vrot.slane %v1689, 4
        %v1692 = vor.u32 %v1691, %v1687
        %v1693 = vrot.slane %v1692, 4
        %v1695 = vshll.u32 %v1010, 16
        %v1697 = vrot.slane %v1695, 5
        %v1698 = vsel %vm1103, %v1693, %v1697
        %v1700 = vshrl.u32 %v1011, 16
        %v1702 = vrot.slane %v1700, 4
        %v1703 = vshll.u32 %v1011, 16
        %v1705 = vrot.slane %v1703, 5
        %v1706 = vor.u32 %v1702, %v1705
        %v1707 = vrot.slane %v1706, 4
        %v1709 = vshll.u32 %v1012, 16
        %v1711 = vrot.slane %v1709, 5
        %v1712 = vsel %vm1103, %v1707, %v1711
        %v1713 = vshrl.u32 %v1012, 16
        %v1715 = vrot.slane %v1713, 4
        %v1716 = vor.u32 %v1715, %v1711
        %v1717 = vrot.slane %v1716, 4
        %v1719 = vshll.u32 %v1013, 16
        %v1721 = vrot.slane %v1719, 5
        %v1722 = vsel %vm1103, %v1717, %v1721
        %v1724 = vshrl.u32 %v1014, 16
        %v1726 = vrot.slane %v1724, 4
        %v1727 = vshll.u32 %v1014, 16
        %v1729 = vrot.slane %v1727, 5
        %v1730 = vor.u32 %v1726, %v1729
        %v1731 = vrot.slane %v1730, 4
        %v1733 = vshll.u32 %v1015, 16
        %v1735 = vrot.slane %v1733, 5
        %v1736 = vsel %vm1103, %v1731, %v1735
        %v1737 = vshrl.u32 %v1015, 16
        %v1739 = vrot.slane %v1737, 4
        %v1740 = vor.u32 %v1739, %v1735
        %v1741 = vrot.slane %v1740, 4
        %v1743 = vshll.u32 %v1016, 16
        %v1745 = vrot.slane %v1743, 5
        %v1746 = vsel %vm1103, %v1741, %v1745
        %v1748 = vshrl.u32 %v1017, 16
        %v1750 = vrot.slane %v1748, 4
        %v1751 = vshll.u32 %v1017, 16
        %v1753 = vrot.slane %v1751, 5
        %v1754 = vor.u32 %v1750, %v1753
        %v1755 = vrot.slane %v1754, 4
        %v1757 = vshll.u32 %v1018, 16
        %v1759 = vrot.slane %v1757, 5
        %v1760 = vsel %vm1103, %v1755, %v1759
        %v1761 = vshrl.u32 %v1018, 16
        %v1763 = vrot.slane %v1761, 4
        %v1764 = vor.u32 %v1763, %v1759
        %v1765 = vrot.slane %v1764, 4
        %v1767 = vshll.u32 %v1019, 16
        %v1769 = vrot.slane %v1767, 5
        %v1770 = vsel %vm1103, %v1765, %v1769
        %v1772 = vshrl.u32 %v1020, 16
        %v1774 = vrot.slane %v1772, 4
        %v1775 = vshll.u32 %v1020, 16
        %v1777 = vrot.slane %v1775, 5
        %v1778 = vor.u32 %v1774, %v1777
        %v1779 = vrot.slane %v1778, 4
        %v1781 = vshll.u32 %v1021, 16
        %v1783 = vrot.slane %v1781, 5
        %v1784 = vsel %vm1103, %v1779, %v1783
        %v1785 = vshrl.u32 %v1021, 16
        %v1787 = vrot.slane %v1785, 4
        %v1788 = vor.u32 %v1787, %v1783
        %v1789 = vrot.slane %v1788, 4
        %v1791 = vshll.u32 %v1022, 16
        %v1793 = vrot.slane %v1791, 5
        %v1794 = vsel %vm1103, %v1789, %v1793
        %v1796 = vshrl.u32 %v1023, 16
        %v1798 = vrot.slane %v1796, 4
        %v1799 = vshll.u32 %v1023, 16
        %v1801 = vrot.slane %v1799, 5
        %v1802 = vor.u32 %v1798, %v1801
        %v1803 = vrot.slane %v1802, 4
        %v1805 = vshll.u32 %v1024, 16
        %v1807 = vrot.slane %v1805, 5
        %v1808 = vsel %vm1103, %v1803, %v1807
        %v1809 = vshrl.u32 %v1024, 16
        %v1811 = vrot.slane %v1809, 4
        %v1812 = vor.u32 %v1811, %v1807
        %v1813 = vrot.slane %v1812, 4
        %v1815 = vshll.u32 %v1025, 16
        %v1817 = vrot.slane %v1815, 5
        %v1818 = vsel %vm1103, %v1813, %v1817
        %v1820 = vshrl.u32 %v1026, 16
        %v1822 = vrot.slane %v1820, 4
        %v1823 = vshll.u32 %v1026, 16
        %v1825 = vrot.slane %v1823, 5
        %v1826 = vor.u32 %v1822, %v1825
        %v1827 = vrot.slane %v1826, 4
        %v1829 = vshll.u32 %v1027, 16
        %v1831 = vrot.slane %v1829, 5
        %v1832 = vsel %vm1103, %v1827, %v1831
        %v1833 = vshrl.u32 %v1027, 16
        %v1835 = vrot.slane %v1833, 4
        %v1836 = vor.u32 %v1835, %v1831
        %v1837 = vrot.slane %v1836, 4
        %v1839 = vshll.u32 %v1028, 16
        %v1841 = vrot.slane %v1839, 5
        %v1842 = vsel %vm1103, %v1837, %v1841
        %v1844 = vshrl.u32 %v1029, 16
        %v1846 = vrot.slane %v1844, 4
        %v1847 = vshll.u32 %v1029, 16
        %v1849 = vrot.slane %v1847, 5
        %v1850 = vor.u32 %v1846, %v1849
        %v1851 = vrot.slane %v1850, 4
        %v1853 = vshll.u32 %v1030, 16
        %v1855 = vrot.slane %v1853, 5
        %v1856 = vsel %vm1103, %v1851, %v1855
        %v1857 = vshrl.u32 %v1030, 16
        %v1859 = vrot.slane %v1857, 4
        %v1860 = vor.u32 %v1859, %v1855
        %v1861 = vrot.slane %v1860, 4
        %v1863 = vshll.u32 %v1031, 16
        %v1865 = vrot.slane %v1863, 5
        %v1866 = vsel %vm1103, %v1861, %v1865
        %v1868 = vshrl.u32 %v1032, 16
        %v1870 = vrot.slane %v1868, 4
        %v1871 = vshll.u32 %v1032, 16
        %v1873 = vrot.slane %v1871, 5
        %v1874 = vor.u32 %v1870, %v1873
        %v1875 = vrot.slane %v1874, 4
        %v1877 = vshll.u32 %v1033, 16
        %v1879 = vrot.slane %v1877, 5
        %v1880 = vsel %vm1103, %v1875, %v1879
        %v1881 = vshrl.u32 %v1033, 16
        %v1883 = vrot.slane %v1881, 4
        %v1884 = vor.u32 %v1883, %v1879
        %v1885 = vrot.slane %v1884, 4
        %v1887 = vshll.u32 %v1034, 16
        %v1889 = vrot.slane %v1887, 5
        %v1890 = vsel %vm1103, %v1885, %v1889
        %v1892 = vshrl.u32 %v1035, 16
        %v1894 = vrot.slane %v1892, 4
        %v1895 = vshll.u32 %v1035, 16
        %v1897 = vrot.slane %v1895, 5
        %v1898 = vor.u32 %v1894, %v1897
        %v1899 = vrot.slane %v1898, 4
        %v1901 = vshll.u32 %v1036, 16
        %v1903 = vrot.slane %v1901, 5
        %v1904 = vsel %vm1103, %v1899, %v1903
        %v1905 = vshrl.u32 %v1036, 16
        %v1907 = vrot.slane %v1905, 4
        %v1908 = vor.u32 %v1907, %v1903
        %v1909 = vrot.slane %v1908, 4
        %v1911 = vshll.u32 %v1037, 16
        %v1913 = vrot.slane %v1911, 5
        %v1914 = vsel %vm1103, %v1909, %v1913
        %v1916 = vshrl.u32 %v1038, 16
        %v1918 = vrot.slane %v1916, 4
        %v1919 = vshll.u32 %v1038, 16
        %v1921 = vrot.slane %v1919, 5
        %v1922 = vor.u32 %v1918, %v1921
        %v1923 = vrot.slane %v1922, 4
        %v1925 = vshll.u32 %v1039, 16
        %v1927 = vrot.slane %v1925, 5
        %v1928 = vsel %vm1103, %v1923, %v1927
        %v1929 = vshrl.u32 %v1039, 16
        %v1931 = vrot.slane %v1929, 4
        %v1932 = vor.u32 %v1931, %v1927
        %v1933 = vrot.slane %v1932, 4
        %v1935 = vshll.u32 %v1040, 16
        %v1937 = vrot.slane %v1935, 5
        %v1938 = vsel %vm1103, %v1933, %v1937
        %v1940 = vshrl.u32 %v1041, 16
        %v1942 = vrot.slane %v1940, 4
        %v1943 = vshll.u32 %v1041, 16
        %v1945 = vrot.slane %v1943, 5
        %v1946 = vor.u32 %v1942, %v1945
        %v1947 = vrot.slane %v1946, 4
        %v1949 = vshll.u32 %v1042, 16
        %v1951 = vrot.slane %v1949, 5
        %v1952 = vsel %vm1103, %v1947, %v1951
        %v1953 = vshrl.u32 %v1042, 16
        %v1955 = vrot.slane %v1953, 4
        %v1956 = vor.u32 %v1955, %v1951
        %v1957 = vrot.slane %v1956, 4
        %v1959 = vshll.u32 %v1043, 16
        %v1961 = vrot.slane %v1959, 5
        %v1962 = vsel %vm1103, %v1957, %v1961
        %v1964 = vshrl.u32 %v1044, 16
        %v1966 = vrot.slane %v1964, 4
        %v1967 = vshll.u32 %v1044, 16
        %v1969 = vrot.slane %v1967, 5
        %v1970 = vor.u32 %v1966, %v1969
        %v1971 = vrot.slane %v1970, 4
        %v1973 = vshll.u32 %v1045, 16
        %v1975 = vrot.slane %v1973, 5
        %v1976 = vsel %vm1103, %v1971, %v1975
        %v1977 = vshrl.u32 %v1045, 16
        %v1979 = vrot.slane %v1977, 4
        %v1980 = vor.u32 %v1979, %v1975
        %v1981 = vrot.slane %v1980, 4
        %v1983 = vshll.u32 %v1046, 16
        %v1985 = vrot.slane %v1983, 5
        %v1986 = vsel %vm1103, %v1981, %v1985
        %v1988 = vshrl.u32 %v1047, 16
        %v1990 = vrot.slane %v1988, 4
        %v1991 = vshll.u32 %v1047, 16
        %v1993 = vrot.slane %v1991, 5
        %v1994 = vor.u32 %v1990, %v1993
        %v1995 = vrot.slane %v1994, 4
        %v1997 = vshll.u32 %v1048, 16
        %v1999 = vrot.slane %v1997, 5
        %v2000 = vsel %vm1103, %v1995, %v1999
        %v2001 = vshrl.u32 %v1048, 16
        %v2003 = vrot.slane %v2001, 4
        %v2004 = vor.u32 %v2003, %v1999
        %v2005 = vrot.slane %v2004, 4
        %v2007 = vshll.u32 %v1049, 16
        %v2009 = vrot.slane %v2007, 5
        %v2010 = vsel %vm1103, %v2005, %v2009
        %v2012 = vshrl.u32 %v1050, 16
        %v2014 = vrot.slane %v2012, 4
        %v2015 = vshll.u32 %v1050, 16
        %v2017 = vrot.slane %v2015, 5
        %v2018 = vor.u32 %v2014, %v2017
        %v2019 = vrot.slane %v2018, 4
        %v2021 = vshll.u32 %v1051, 16
        %v2023 = vrot.slane %v2021, 5
        %v2024 = vsel %vm1103, %v2019, %v2023
        %v2025 = vshrl.u32 %v1051, 16
        %v2027 = vrot.slane %v2025, 4
        %v2028 = vor.u32 %v2027, %v2023
        %v2029 = vrot.slane %v2028, 4
        %v2031 = vshll.u32 %v1052, 16
        %v2033 = vrot.slane %v2031, 5
        %v2034 = vsel %vm1103, %v2029, %v2033
        %v2083 = vrot.slane %v1005, 5
        %v2084 = vrot.slane %v2083, 4
        %v2085 = vrot.slane %v1006, 5
        %v2086 = vsel %vm1538, %v2084, %v2085
        %v2087 = vrot.slane %v2085, 4
        %v2088 = vrot.slane %v1007, 5
        %v2089 = vsel %vm1538, %v2087, %v2088
        %v2090 = vrot.slane %v1008, 5
        %v2091 = vrot.slane %v2090, 4
        %v2092 = vrot.slane %v1009, 5
        %v2093 = vsel %vm1538, %v2091, %v2092
        %v2094 = vrot.slane %v2092, 4
        %v2095 = vrot.slane %v1010, 5
        %v2096 = vsel %vm1538, %v2094, %v2095
        %v2097 = vrot.slane %v1011, 5
        %v2098 = vrot.slane %v2097, 4
        %v2099 = vrot.slane %v1012, 5
        %v2100 = vsel %vm1538, %v2098, %v2099
        %v2101 = vrot.slane %v2099, 4
        %v2102 = vrot.slane %v1013, 5
        %v2103 = vsel %vm1538, %v2101, %v2102
        %v2104 = vrot.slane %v1014, 5
        %v2105 = vrot.slane %v2104, 4
        %v2106 = vrot.slane %v1015, 5
        %v2107 = vsel %vm1538, %v2105, %v2106
        %v2108 = vrot.slane %v2106, 4
        %v2109 = vrot.slane %v1016, 5
        %v2110 = vsel %vm1538, %v2108, %v2109
        %v2111 = vrot.slane %v1017, 5
        %v2112 = vrot.slane %v2111, 4
        %v2113 = vrot.slane %v1018, 5
        %v2114 = vsel %vm1538, %v2112, %v2113
        %v2115 = vrot.slane %v2113, 4
        %v2116 = vrot.slane %v1019, 5
        %v2117 = vsel %vm1538, %v2115, %v2116
        %v2118 = vrot.slane %v1020, 5
        %v2119 = vrot.slane %v2118, 4
        %v2120 = vrot.slane %v1021, 5
        %v2121 = vsel %vm1538, %v2119, %v2120
        %v2122 = vrot.slane %v2120, 4
        %v2123 = vrot.slane %v1022, 5
        %v2124 = vsel %vm1538, %v2122, %v2123
        %v2125 = vrot.slane %v1023, 5
        %v2126 = vrot.slane %v2125, 4
        %v2127 = vrot.slane %v1024, 5
        %v2128 = vsel %vm1538, %v2126, %v2127
        %v2129 = vrot.slane %v2127, 4
        %v2130 = vrot.slane %v1025, 5
        %v2131 = vsel %vm1538, %v2129, %v2130
        %v2132 = vrot.slane %v1026, 5
        %v2133 = vrot.slane %v2132, 4
        %v2134 = vrot.slane %v1027, 5
        %v2135 = vsel %vm1538, %v2133, %v2134
        %v2136 = vrot.slane %v2134, 4
        %v2137 = vrot.slane %v1028, 5
        %v2138 = vsel %vm1538, %v2136, %v2137
        %v2139 = vrot.slane %v1029, 5
        %v2140 = vrot.slane %v2139, 4
        %v2141 = vrot.slane %v1030, 5
        %v2142 = vsel %vm1538, %v2140, %v2141
        %v2143 = vrot.slane %v2141, 4
        %v2144 = vrot.slane %v1031, 5
        %v2145 = vsel %vm1538, %v2143, %v2144
        %v2146 = vrot.slane %v1032, 5
        %v2147 = vrot.slane %v2146, 4
        %v2148 = vrot.slane %v1033, 5
        %v2149 = vsel %vm1538, %v2147, %v2148
        %v2150 = vrot.slane %v2148, 4
        %v2151 = vrot.slane %v1034, 5
        %v2152 = vsel %vm1538, %v2150, %v2151
        %v2153 = vrot.slane %v1035, 5
        %v2154 = vrot.slane %v2153, 4
        %v2155 = vrot.slane %v1036, 5
        %v2156 = vsel %vm1538, %v2154, %v2155
        %v2157 = vrot.slane %v2155, 4
        %v2158 = vrot.slane %v1037, 5
        %v2159 = vsel %vm1538, %v2157, %v2158
        %v2160 = vrot.slane %v1038, 5
        %v2161 = vrot.slane %v2160, 4
        %v2162 = vrot.slane %v1039, 5
        %v2163 = vsel %vm1538, %v2161, %v2162
        %v2164 = vrot.slane %v2162, 4
        %v2165 = vrot.slane %v1040, 5
        %v2166 = vsel %vm1538, %v2164, %v2165
        %v2167 = vrot.slane %v1041, 5
        %v2168 = vrot.slane %v2167, 4
        %v2169 = vrot.slane %v1042, 5
        %v2170 = vsel %vm1538, %v2168, %v2169
        %v2171 = vrot.slane %v2169, 4
        %v2172 = vrot.slane %v1043, 5
        %v2173 = vsel %vm1538, %v2171, %v2172
        %v2174 = vrot.slane %v1044, 5
        %v2175 = vrot.slane %v2174, 4
        %v2176 = vrot.slane %v1045, 5
        %v2177 = vsel %vm1538, %v2175, %v2176
        %v2178 = vrot.slane %v2176, 4
        %v2179 = vrot.slane %v1046, 5
        %v2180 = vsel %vm1538, %v2178, %v2179
        %v2181 = vrot.slane %v1047, 5
        %v2182 = vrot.slane %v2181, 4
        %v2183 = vrot.slane %v1048, 5
        %v2184 = vsel %vm1538, %v2182, %v2183
        %v2185 = vrot.slane %v2183, 4
        %v2186 = vrot.slane %v1049, 5
        %v2187 = vsel %vm1538, %v2185, %v2186
        %v2188 = vrot.slane %v1050, 5
        %v2189 = vrot.slane %v2188, 4
        %v2190 = vrot.slane %v1051, 5
        %v2191 = vsel %vm1538, %v2189, %v2190
        %v2192 = vrot.slane %v2190, 4
        %v2193 = vrot.slane %v1052, 5
        %v2194 = vsel %vm1538, %v2192, %v2193
        %v2196 = vshrl.u32 %v1053, 16
        %v2198 = vrot.slane %v2196, 4
        %v2199 = vshll.u32 %v1053, 16
        %v2201 = vrot.slane %v2199, 5
        %v2202 = vor.u32 %v2198, %v2201
        %v2203 = vrot.slane %v2202, 4
        %v2205 = vshll.u32 %v1054, 16
        %v2207 = vrot.slane %v2205, 5
        %v2208 = vsel %vm1103, %v2203, %v2207
        %v2209 = vshrl.u32 %v1054, 16
        %v2211 = vrot.slane %v2209, 4
        %v2212 = vor.u32 %v2211, %v2207
        %v2213 = vrot.slane %v2212, 4
        %v2215 = vshll.u32 %v1055, 16
        %v2217 = vrot.slane %v2215, 5
        %v2218 = vsel %vm1103, %v2213, %v2217
        %v2220 = vshrl.u32 %v1056, 16
        %v2222 = vrot.slane %v2220, 4
        %v2223 = vshll.u32 %v1056, 16
        %v2225 = vrot.slane %v2223, 5
        %v2226 = vor.u32 %v2222, %v2225
        %v2227 = vrot.slane %v2226, 4
        %v2229 = vshll.u32 %v1057, 16
        %v2231 = vrot.slane %v2229, 5
        %v2232 = vsel %vm1103, %v2227, %v2231
        %v2233 = vshrl.u32 %v1057, 16
        %v2235 = vrot.slane %v2233, 4
        %v2236 = vor.u32 %v2235, %v2231
        %v2237 = vrot.slane %v2236, 4
        %v2239 = vshll.u32 %v1058, 16
        %v2241 = vrot.slane %v2239, 5
        %v2242 = vsel %vm1103, %v2237, %v2241
        %v2244 = vshrl.u32 %v1059, 16
        %v2246 = vrot.slane %v2244, 4
        %v2247 = vshll.u32 %v1059, 16
        %v2249 = vrot.slane %v2247, 5
        %v2250 = vor.u32 %v2246, %v2249
        %v2251 = vrot.slane %v2250, 4
        %v2253 = vshll.u32 %v1060, 16
        %v2255 = vrot.slane %v2253, 5
        %v2256 = vsel %vm1103, %v2251, %v2255
        %v2257 = vshrl.u32 %v1060, 16
        %v2259 = vrot.slane %v2257, 4
        %v2260 = vor.u32 %v2259, %v2255
        %v2261 = vrot.slane %v2260, 4
        %v2263 = vshll.u32 %v1061, 16
        %v2265 = vrot.slane %v2263, 5
        %v2266 = vsel %vm1103, %v2261, %v2265
        %v2268 = vshrl.u32 %v1062, 16
        %v2270 = vrot.slane %v2268, 4
        %v2271 = vshll.u32 %v1062, 16
        %v2273 = vrot.slane %v2271, 5
        %v2274 = vor.u32 %v2270, %v2273
        %v2275 = vrot.slane %v2274, 4
        %v2277 = vshll.u32 %v1063, 16
        %v2279 = vrot.slane %v2277, 5
        %v2280 = vsel %vm1103, %v2275, %v2279
        %v2281 = vshrl.u32 %v1063, 16
        %v2283 = vrot.slane %v2281, 4
        %v2284 = vor.u32 %v2283, %v2279
        %v2285 = vrot.slane %v2284, 4
        %v2287 = vshll.u32 %v1064, 16
        %v2289 = vrot.slane %v2287, 5
        %v2290 = vsel %vm1103, %v2285, %v2289
        %v2292 = vshrl.u32 %v1065, 16
        %v2294 = vrot.slane %v2292, 4
        %v2295 = vshll.u32 %v1065, 16
        %v2297 = vrot.slane %v2295, 5
        %v2298 = vor.u32 %v2294, %v2297
        %v2299 = vrot.slane %v2298, 4
        %v2301 = vshll.u32 %v1066, 16
        %v2303 = vrot.slane %v2301, 5
        %v2304 = vsel %vm1103, %v2299, %v2303
        %v2305 = vshrl.u32 %v1066, 16
        %v2307 = vrot.slane %v2305, 4
        %v2308 = vor.u32 %v2307, %v2303
        %v2309 = vrot.slane %v2308, 4
        %v2311 = vshll.u32 %v1067, 16
        %v2313 = vrot.slane %v2311, 5
        %v2314 = vsel %vm1103, %v2309, %v2313
        %v2316 = vshrl.u32 %v1068, 16
        %v2318 = vrot.slane %v2316, 4
        %v2319 = vshll.u32 %v1068, 16
        %v2321 = vrot.slane %v2319, 5
        %v2322 = vor.u32 %v2318, %v2321
        %v2323 = vrot.slane %v2322, 4
        %v2325 = vshll.u32 %v1069, 16
        %v2327 = vrot.slane %v2325, 5
        %v2328 = vsel %vm1103, %v2323, %v2327
        %v2329 = vshrl.u32 %v1069, 16
        %v2331 = vrot.slane %v2329, 4
        %v2332 = vor.u32 %v2331, %v2327
        %v2333 = vrot.slane %v2332, 4
        %v2335 = vshll.u32 %v1070, 16
        %v2337 = vrot.slane %v2335, 5
        %v2338 = vsel %vm1103, %v2333, %v2337
        %v2340 = vshrl.u32 %v1071, 16
        %v2342 = vrot.slane %v2340, 4
        %v2343 = vshll.u32 %v1071, 16
        %v2345 = vrot.slane %v2343, 5
        %v2346 = vor.u32 %v2342, %v2345
        %v2347 = vrot.slane %v2346, 4
        %v2349 = vshll.u32 %v1072, 16
        %v2351 = vrot.slane %v2349, 5
        %v2352 = vsel %vm1103, %v2347, %v2351
        %v2353 = vshrl.u32 %v1072, 16
        %v2355 = vrot.slane %v2353, 4
        %v2356 = vor.u32 %v2355, %v2351
        %v2357 = vrot.slane %v2356, 4
        %v2359 = vshll.u32 %v1073, 16
        %v2361 = vrot.slane %v2359, 5
        %v2362 = vsel %vm1103, %v2357, %v2361
        %v2364 = vshrl.u32 %v1074, 16
        %v2366 = vrot.slane %v2364, 4
        %v2367 = vshll.u32 %v1074, 16
        %v2369 = vrot.slane %v2367, 5
        %v2370 = vor.u32 %v2366, %v2369
        %v2371 = vrot.slane %v2370, 4
        %v2373 = vshll.u32 %v1075, 16
        %v2375 = vrot.slane %v2373, 5
        %v2376 = vsel %vm1103, %v2371, %v2375
        %v2377 = vshrl.u32 %v1075, 16
        %v2379 = vrot.slane %v2377, 4
        %v2380 = vor.u32 %v2379, %v2375
        %v2381 = vrot.slane %v2380, 4
        %v2383 = vshll.u32 %v1076, 16
        %v2385 = vrot.slane %v2383, 5
        %v2386 = vsel %vm1103, %v2381, %v2385
        %v2388 = vshrl.u32 %v1077, 16
        %v2390 = vrot.slane %v2388, 4
        %v2391 = vshll.u32 %v1077, 16
        %v2393 = vrot.slane %v2391, 5
        %v2394 = vor.u32 %v2390, %v2393
        %v2395 = vrot.slane %v2394, 4
        %v2397 = vshll.u32 %v1078, 16
        %v2399 = vrot.slane %v2397, 5
        %v2400 = vsel %vm1103, %v2395, %v2399
        %v2401 = vshrl.u32 %v1078, 16
        %v2403 = vrot.slane %v2401, 4
        %v2404 = vor.u32 %v2403, %v2399
        %v2405 = vrot.slane %v2404, 4
        %v2407 = vshll.u32 %v1079, 16
        %v2409 = vrot.slane %v2407, 5
        %v2410 = vsel %vm1103, %v2405, %v2409
        %v2412 = vshrl.u32 %v1080, 16
        %v2414 = vrot.slane %v2412, 4
        %v2415 = vshll.u32 %v1080, 16
        %v2417 = vrot.slane %v2415, 5
        %v2418 = vor.u32 %v2414, %v2417
        %v2419 = vrot.slane %v2418, 4
        %v2421 = vshll.u32 %v1081, 16
        %v2423 = vrot.slane %v2421, 5
        %v2424 = vsel %vm1103, %v2419, %v2423
        %v2425 = vshrl.u32 %v1081, 16
        %v2427 = vrot.slane %v2425, 4
        %v2428 = vor.u32 %v2427, %v2423
        %v2429 = vrot.slane %v2428, 4
        %v2431 = vshll.u32 %v1082, 16
        %v2433 = vrot.slane %v2431, 5
        %v2434 = vsel %vm1103, %v2429, %v2433
        %v2436 = vshrl.u32 %v1083, 16
        %v2438 = vrot.slane %v2436, 4
        %v2439 = vshll.u32 %v1083, 16
        %v2441 = vrot.slane %v2439, 5
        %v2442 = vor.u32 %v2438, %v2441
        %v2443 = vrot.slane %v2442, 4
        %v2445 = vshll.u32 %v1084, 16
        %v2447 = vrot.slane %v2445, 5
        %v2448 = vsel %vm1103, %v2443, %v2447
        %v2449 = vshrl.u32 %v1084, 16
        %v2451 = vrot.slane %v2449, 4
        %v2452 = vor.u32 %v2451, %v2447
        %v2453 = vrot.slane %v2452, 4
        %v2455 = vshll.u32 %v1085, 16
        %v2457 = vrot.slane %v2455, 5
        %v2458 = vsel %vm1103, %v2453, %v2457
        %v2460 = vshrl.u32 %v1086, 16
        %v2462 = vrot.slane %v2460, 4
        %v2463 = vshll.u32 %v1086, 16
        %v2465 = vrot.slane %v2463, 5
        %v2466 = vor.u32 %v2462, %v2465
        %v2467 = vrot.slane %v2466, 4
        %v2469 = vshll.u32 %v1087, 16
        %v2471 = vrot.slane %v2469, 5
        %v2472 = vsel %vm1103, %v2467, %v2471
        %v2473 = vshrl.u32 %v1087, 16
        %v2475 = vrot.slane %v2473, 4
        %v2476 = vor.u32 %v2475, %v2471
        %v2477 = vrot.slane %v2476, 4
        %v2479 = vshll.u32 %v1088, 16
        %v2481 = vrot.slane %v2479, 5
        %v2482 = vsel %vm1103, %v2477, %v2481
        %v2484 = vshrl.u32 %v1089, 16
        %v2486 = vrot.slane %v2484, 4
        %v2487 = vshll.u32 %v1089, 16
        %v2489 = vrot.slane %v2487, 5
        %v2490 = vor.u32 %v2486, %v2489
        %v2491 = vrot.slane %v2490, 4
        %v2493 = vshll.u32 %v1090, 16
        %v2495 = vrot.slane %v2493, 5
        %v2496 = vsel %vm1103, %v2491, %v2495
        %v2497 = vshrl.u32 %v1090, 16
        %v2499 = vrot.slane %v2497, 4
        %v2500 = vor.u32 %v2499, %v2495
        %v2501 = vrot.slane %v2500, 4
        %v2503 = vshll.u32 %v1091, 16
        %v2505 = vrot.slane %v2503, 5
        %v2506 = vsel %vm1103, %v2501, %v2505
        %v2508 = vshrl.u32 %v1092, 16
        %v2510 = vrot.slane %v2508, 4
        %v2511 = vshll.u32 %v1092, 16
        %v2513 = vrot.slane %v2511, 5
        %v2514 = vor.u32 %v2510, %v2513
        %v2515 = vrot.slane %v2514, 4
        %v2517 = vshll.u32 %v1093, 16
        %v2519 = vrot.slane %v2517, 5
        %v2520 = vsel %vm1103, %v2515, %v2519
        %v2521 = vshrl.u32 %v1093, 16
        %v2523 = vrot.slane %v2521, 4
        %v2524 = vor.u32 %v2523, %v2519
        %v2525 = vrot.slane %v2524, 4
        %v2527 = vshll.u32 %v1094, 16
        %v2529 = vrot.slane %v2527, 5
        %v2530 = vsel %vm1103, %v2525, %v2529
        %v2532 = vshrl.u32 %v1095, 16
        %v2534 = vrot.slane %v2532, 4
        %v2535 = vshll.u32 %v1095, 16
        %v2537 = vrot.slane %v2535, 5
        %v2538 = vor.u32 %v2534, %v2537
        %v2539 = vrot.slane %v2538, 4
        %v2541 = vshll.u32 %v1096, 16
        %v2543 = vrot.slane %v2541, 5
        %v2544 = vsel %vm1103, %v2539, %v2543
        %v2545 = vshrl.u32 %v1096, 16
        %v2547 = vrot.slane %v2545, 4
        %v2548 = vor.u32 %v2547, %v2543
        %v2549 = vrot.slane %v2548, 4
        %v2551 = vshll.u32 %v1097, 16
        %v2553 = vrot.slane %v2551, 5
        %v2554 = vsel %vm1103, %v2549, %v2553
        %v2556 = vshrl.u32 %v1098, 16
        %v2558 = vrot.slane %v2556, 4
        %v2559 = vshll.u32 %v1098, 16
        %v2561 = vrot.slane %v2559, 5
        %v2562 = vor.u32 %v2558, %v2561
        %v2563 = vrot.slane %v2562, 4
        %v2565 = vshll.u32 %v1099, 16
        %v2567 = vrot.slane %v2565, 5
        %v2568 = vsel %vm1103, %v2563, %v2567
        %v2569 = vshrl.u32 %v1099, 16
        %v2571 = vrot.slane %v2569, 4
        %v2572 = vor.u32 %v2571, %v2567
        %v2573 = vrot.slane %v2572, 4
        %v2575 = vshll.u32 %v1100, 16
        %v2577 = vrot.slane %v2575, 5
        %v2578 = vsel %vm1103, %v2573, %v2577
        %v2627 = vrot.slane %v1053, 5
        %v2628 = vrot.slane %v2627, 4
        %v2629 = vrot.slane %v1054, 5
        %v2630 = vsel %vm1538, %v2628, %v2629
        %v2631 = vrot.slane %v2629, 4
        %v2632 = vrot.slane %v1055, 5
        %v2633 = vsel %vm1538, %v2631, %v2632
        %v2634 = vrot.slane %v1056, 5
        %v2635 = vrot.slane %v2634, 4
        %v2636 = vrot.slane %v1057, 5
        %v2637 = vsel %vm1538, %v2635, %v2636
        %v2638 = vrot.slane %v2636, 4
        %v2639 = vrot.slane %v1058, 5
        %v2640 = vsel %vm1538, %v2638, %v2639
        %v2641 = vrot.slane %v1059, 5
        %v2642 = vrot.slane %v2641, 4
        %v2643 = vrot.slane %v1060, 5
        %v2644 = vsel %vm1538, %v2642, %v2643
        %v2645 = vrot.slane %v2643, 4
        %v2646 = vrot.slane %v1061, 5
        %v2647 = vsel %vm1538, %v2645, %v2646
        %v2648 = vrot.slane %v1062, 5
        %v2649 = vrot.slane %v2648, 4
        %v2650 = vrot.slane %v1063, 5
        %v2651 = vsel %vm1538, %v2649, %v2650
        %v2652 = vrot.slane %v2650, 4
        %v2653 = vrot.slane %v1064, 5
        %v2654 = vsel %vm1538, %v2652, %v2653
        %v2655 = vrot.slane %v1065, 5
        %v2656 = vrot.slane %v2655, 4
        %v2657 = vrot.slane %v1066, 5
        %v2658 = vsel %vm1538, %v2656, %v2657
        %v2659 = vrot.slane %v2657, 4
        %v2660 = vrot.slane %v1067, 5
        %v2661 = vsel %vm1538, %v2659, %v2660
        %v2662 = vrot.slane %v1068, 5
        %v2663 = vrot.slane %v2662, 4
        %v2664 = vrot.slane %v1069, 5
        %v2665 = vsel %vm1538, %v2663, %v2664
        %v2666 = vrot.slane %v2664, 4
        %v2667 = vrot.slane %v1070, 5
        %v2668 = vsel %vm1538, %v2666, %v2667
        %v2669 = vrot.slane %v1071, 5
        %v2670 = vrot.slane %v2669, 4
        %v2671 = vrot.slane %v1072, 5
        %v2672 = vsel %vm1538, %v2670, %v2671
        %v2673 = vrot.slane %v2671, 4
        %v2674 = vrot.slane %v1073, 5
        %v2675 = vsel %vm1538, %v2673, %v2674
        %v2676 = vrot.slane %v1074, 5
        %v2677 = vrot.slane %v2676, 4
        %v2678 = vrot.slane %v1075, 5
        %v2679 = vsel %vm1538, %v2677, %v2678
        %v2680 = vrot.slane %v2678, 4
        %v2681 = vrot.slane %v1076, 5
        %v2682 = vsel %vm1538, %v2680, %v2681
        %v2683 = vrot.slane %v1077, 5
        %v2684 = vrot.slane %v2683, 4
        %v2685 = vrot.slane %v1078, 5
        %v2686 = vsel %vm1538, %v2684, %v2685
        %v2687 = vrot.slane %v2685, 4
        %v2688 = vrot.slane %v1079, 5
        %v2689 = vsel %vm1538, %v2687, %v2688
        %v2690 = vrot.slane %v1080, 5
        %v2691 = vrot.slane %v2690, 4
        %v2692 = vrot.slane %v1081, 5
        %v2693 = vsel %vm1538, %v2691, %v2692
        %v2694 = vrot.slane %v2692, 4
        %v2695 = vrot.slane %v1082, 5
        %v2696 = vsel %vm1538, %v2694, %v2695
        %v2697 = vrot.slane %v1083, 5
        %v2698 = vrot.slane %v2697, 4
        %v2699 = vrot.slane %v1084, 5
        %v2700 = vsel %vm1538, %v2698, %v2699
        %v2701 = vrot.slane %v2699, 4
        %v2702 = vrot.slane %v1085, 5
        %v2703 = vsel %vm1538, %v2701, %v2702
        %v2704 = vrot.slane %v1086, 5
        %v2705 = vrot.slane %v2704, 4
        %v2706 = vrot.slane %v1087, 5
        %v2707 = vsel %vm1538, %v2705, %v2706
        %v2708 = vrot.slane %v2706, 4
        %v2709 = vrot.slane %v1088, 5
        %v2710 = vsel %vm1538, %v2708, %v2709
        %v2711 = vrot.slane %v1089, 5
        %v2712 = vrot.slane %v2711, 4
        %v2713 = vrot.slane %v1090, 5
        %v2714 = vsel %vm1538, %v2712, %v2713
        %v2715 = vrot.slane %v2713, 4
        %v2716 = vrot.slane %v1091, 5
        %v2717 = vsel %vm1538, %v2715, %v2716
        %v2718 = vrot.slane %v1092, 5
        %v2719 = vrot.slane %v2718, 4
        %v2720 = vrot.slane %v1093, 5
        %v2721 = vsel %vm1538, %v2719, %v2720
        %v2722 = vrot.slane %v2720, 4
        %v2723 = vrot.slane %v1094, 5
        %v2724 = vsel %vm1538, %v2722, %v2723
        %v2725 = vrot.slane %v1095, 5
        %v2726 = vrot.slane %v2725, 4
        %v2727 = vrot.slane %v1096, 5
        %v2728 = vsel %vm1538, %v2726, %v2727
        %v2729 = vrot.slane %v2727, 4
        %v2730 = vrot.slane %v1097, 5
        %v2731 = vsel %vm1538, %v2729, %v2730
        %v2732 = vrot.slane %v1098, 5
        %v2733 = vrot.slane %v2732, 4
        %v2734 = vrot.slane %v1099, 5
        %v2735 = vsel %vm1538, %v2733, %v2734
        %v2736 = vrot.slane %v2734, 4
        %v2737 = vrot.slane %v1100, 5
        %v2738 = vsel %vm1538, %v2736, %v2737
        %v2739 = vunpack.c.l.b16 %v957
        %v2740 = vunpack.c.l.b16 %v958
        %v2741 = vunpack.c.l.b16 %v960
        %v2742 = vunpack.c.l.b16 %v961
        %v2743 = vunpack.c.l.b16 %v963
        %v2744 = vunpack.c.l.b16 %v964
        %v2745 = vunpack.c.l.b16 %v966
        %v2746 = vunpack.c.l.b16 %v967
        %v2747 = vunpack.c.l.b16 %v969
        %v2748 = vunpack.c.l.b16 %v970
        %v2749 = vunpack.c.l.b16 %v972
        %v2750 = vunpack.c.l.b16 %v973
        %v2751 = vunpack.c.l.b16 %v975
        %v2752 = vunpack.c.l.b16 %v976
        %v2753 = vunpack.c.l.b16 %v978
        %v2754 = vunpack.c.l.b16 %v979
        %v2755 = vunpack.c.l.b16 %v981
        %v2756 = vunpack.c.l.b16 %v982
        %v2757 = vunpack.c.l.b16 %v984
        %v2758 = vunpack.c.l.b16 %v985
        %v2759 = vunpack.c.l.b16 %v987
        %v2760 = vunpack.c.l.b16 %v988
        %v2761 = vunpack.c.l.b16 %v990
        %v2762 = vunpack.c.l.b16 %v991
        %v2763 = vunpack.c.l.b16 %v993
        %v2764 = vunpack.c.l.b16 %v994
        %v2765 = vunpack.c.l.b16 %v996
        %v2766 = vunpack.c.l.b16 %v997
        %v2767 = vunpack.c.l.b16 %v999
        %v2768 = vunpack.c.l.b16 %v1000
        %v2769 = vunpack.c.l.b16 %v1002
        %v2770 = vunpack.c.l.b16 %v1003
        %v2771 = vpack.c.b16 %v2740, %v2739
        %v2772 = vpack.c.b16 %v2742, %v2741
        %v2773 = vpack.c.b16 %v2744, %v2743
        %v2774 = vpack.c.b16 %v2746, %v2745
        %v2775 = vpack.c.b16 %v2748, %v2747
        %v2776 = vpack.c.b16 %v2750, %v2749
        %v2777 = vpack.c.b16 %v2752, %v2751
        %v2778 = vpack.c.b16 %v2754, %v2753
        %v2779 = vpack.c.b16 %v2756, %v2755
        %v2780 = vpack.c.b16 %v2758, %v2757
        %v2781 = vpack.c.b16 %v2760, %v2759
        %v2782 = vpack.c.b16 %v2762, %v2761
        %v2783 = vpack.c.b16 %v2764, %v2763
        %v2784 = vpack.c.b16 %v2766, %v2765
        %v2785 = vpack.c.b16 %v2768, %v2767
        %v2786 = vpack.c.b16 %v2770, %v2769
        %v2787 = vunpack.c.l.b16 %v1117
        %v2788 = vunpack.c.l.b16 %v1127
        %v2789 = vunpack.c.l.b16 %v1141
        %v2790 = vunpack.c.l.b16 %v1151
        %v2791 = vunpack.c.l.b16 %v1165
        %v2792 = vunpack.c.l.b16 %v1175
        %v2793 = vunpack.c.l.b16 %v1189
        %v2794 = vunpack.c.l.b16 %v1199
        %v2795 = vunpack.c.l.b16 %v1213
        %v2796 = vunpack.c.l.b16 %v1223
        %v2797 = vunpack.c.l.b16 %v1237
        %v2798 = vunpack.c.l.b16 %v1247
        %v2799 = vunpack.c.l.b16 %v1261
        %v2800 = vunpack.c.l.b16 %v1271
        %v2801 = vunpack.c.l.b16 %v1285
        %v2802 = vunpack.c.l.b16 %v1295
        %v2803 = vunpack.c.l.b16 %v1309
        %v2804 = vunpack.c.l.b16 %v1319
        %v2805 = vunpack.c.l.b16 %v1333
        %v2806 = vunpack.c.l.b16 %v1343
        %v2807 = vunpack.c.l.b16 %v1357
        %v2808 = vunpack.c.l.b16 %v1367
        %v2809 = vunpack.c.l.b16 %v1381
        %v2810 = vunpack.c.l.b16 %v1391
        %v2811 = vunpack.c.l.b16 %v1405
        %v2812 = vunpack.c.l.b16 %v1415
        %v2813 = vunpack.c.l.b16 %v1429
        %v2814 = vunpack.c.l.b16 %v1439
        %v2815 = vunpack.c.l.b16 %v1453
        %v2816 = vunpack.c.l.b16 %v1463
        %v2817 = vunpack.c.l.b16 %v1477
        %v2818 = vunpack.c.l.b16 %v1487
        %v2819 = vpack.c.b16 %v2788, %v2787
        %v2820 = vpack.c.b16 %v2790, %v2789
        %v2821 = vpack.c.b16 %v2792, %v2791
        %v2822 = vpack.c.b16 %v2794, %v2793
        %v2823 = vpack.c.b16 %v2796, %v2795
        %v2824 = vpack.c.b16 %v2798, %v2797
        %v2825 = vpack.c.b16 %v2800, %v2799
        %v2826 = vpack.c.b16 %v2802, %v2801
        %v2827 = vpack.c.b16 %v2804, %v2803
        %v2828 = vpack.c.b16 %v2806, %v2805
        %v2829 = vpack.c.b16 %v2808, %v2807
        %v2830 = vpack.c.b16 %v2810, %v2809
        %v2831 = vpack.c.b16 %v2812, %v2811
        %v2832 = vpack.c.b16 %v2814, %v2813
        %v2833 = vpack.c.b16 %v2816, %v2815
        %v2834 = vpack.c.b16 %v2818, %v2817
        %2835 = vrot.lane.b32.xlu0 %v2819, 8
        %v2836 = vpop.permute.xlu0 %2835
        %2837 = vrot.lane.b32.xlu0 %v2820, 8
        %v2838 = vpop.permute.xlu0 %2837
        %2839 = vrot.lane.b32.xlu0 %v2821, 8
        %v2840 = vpop.permute.xlu0 %2839
        %2841 = vrot.lane.b32.xlu0 %v2822, 8
        %v2842 = vpop.permute.xlu0 %2841
        %2843 = vrot.lane.b32.xlu0 %v2823, 8
        %v2844 = vpop.permute.xlu0 %2843
        %2845 = vrot.lane.b32.xlu0 %v2824, 8
        %v2846 = vpop.permute.xlu0 %2845
        %2847 = vrot.lane.b32.xlu0 %v2825, 8
        %v2848 = vpop.permute.xlu0 %2847
        %2849 = vrot.lane.b32.xlu0 %v2826, 8
        %v2850 = vpop.permute.xlu0 %2849
        %2851 = vrot.lane.b32.xlu0 %v2827, 8
        %v2852 = vpop.permute.xlu0 %2851
        %2853 = vrot.lane.b32.xlu0 %v2828, 8
        %v2854 = vpop.permute.xlu0 %2853
        %2855 = vrot.lane.b32.xlu0 %v2829, 8
        %v2856 = vpop.permute.xlu0 %2855
        %2857 = vrot.lane.b32.xlu0 %v2830, 8
        %v2858 = vpop.permute.xlu0 %2857
        %2859 = vrot.lane.b32.xlu0 %v2831, 8
        %v2860 = vpop.permute.xlu0 %2859
        %2861 = vrot.lane.b32.xlu0 %v2832, 8
        %v2862 = vpop.permute.xlu0 %2861
        %2863 = vrot.lane.b32.xlu0 %v2833, 8
        %v2864 = vpop.permute.xlu0 %2863
        %2865 = vrot.lane.b32.xlu0 %v2834, 8
        %v2866 = vpop.permute.xlu0 %2865
        %v2867 = vunpack.c.l.b16 %v1542
        %v2868 = vunpack.c.l.b16 %v1545
        %v2869 = vunpack.c.l.b16 %v1549
        %v2870 = vunpack.c.l.b16 %v1552
        %v2871 = vunpack.c.l.b16 %v1556
        %v2872 = vunpack.c.l.b16 %v1559
        %v2873 = vunpack.c.l.b16 %v1563
        %v2874 = vunpack.c.l.b16 %v1566
        %v2875 = vunpack.c.l.b16 %v1570
        %v2876 = vunpack.c.l.b16 %v1573
        %v2877 = vunpack.c.l.b16 %v1577
        %v2878 = vunpack.c.l.b16 %v1580
        %v2879 = vunpack.c.l.b16 %v1584
        %v2880 = vunpack.c.l.b16 %v1587
        %v2881 = vunpack.c.l.b16 %v1591
        %v2882 = vunpack.c.l.b16 %v1594
        %v2883 = vunpack.c.l.b16 %v1598
        %v2884 = vunpack.c.l.b16 %v1601
        %v2885 = vunpack.c.l.b16 %v1605
        %v2886 = vunpack.c.l.b16 %v1608
        %v2887 = vunpack.c.l.b16 %v1612
        %v2888 = vunpack.c.l.b16 %v1615
        %v2889 = vunpack.c.l.b16 %v1619
        %v2890 = vunpack.c.l.b16 %v1622
        %v2891 = vunpack.c.l.b16 %v1626
        %v2892 = vunpack.c.l.b16 %v1629
        %v2893 = vunpack.c.l.b16 %v1633
        %v2894 = vunpack.c.l.b16 %v1636
        %v2895 = vunpack.c.l.b16 %v1640
        %v2896 = vunpack.c.l.b16 %v1643
        %v2897 = vunpack.c.l.b16 %v1647
        %v2898 = vunpack.c.l.b16 %v1650
        %v2899 = vpack.c.b16 %v2868, %v2867
        %v2900 = vpack.c.b16 %v2870, %v2869
        %v2901 = vpack.c.b16 %v2872, %v2871
        %v2902 = vpack.c.b16 %v2874, %v2873
        %v2903 = vpack.c.b16 %v2876, %v2875
        %v2904 = vpack.c.b16 %v2878, %v2877
        %v2905 = vpack.c.b16 %v2880, %v2879
        %v2906 = vpack.c.b16 %v2882, %v2881
        %v2907 = vpack.c.b16 %v2884, %v2883
        %v2908 = vpack.c.b16 %v2886, %v2885
        %v2909 = vpack.c.b16 %v2888, %v2887
        %v2910 = vpack.c.b16 %v2890, %v2889
        %v2911 = vpack.c.b16 %v2892, %v2891
        %v2912 = vpack.c.b16 %v2894, %v2893
        %v2913 = vpack.c.b16 %v2896, %v2895
        %v2914 = vpack.c.b16 %v2898, %v2897
        %2915 = vrot.lane.b32.xlu0 %v2899, 16
        %v2916 = vpop.permute.xlu0 %2915
        %2917 = vrot.lane.b32.xlu0 %v2900, 16
        %v2918 = vpop.permute.xlu0 %2917
        %2919 = vrot.lane.b32.xlu0 %v2901, 16
        %v2920 = vpop.permute.xlu0 %2919
        %2921 = vrot.lane.b32.xlu0 %v2902, 16
        %v2922 = vpop.permute.xlu0 %2921
        %2923 = vrot.lane.b32.xlu0 %v2903, 16
        %v2924 = vpop.permute.xlu0 %2923
        %2925 = vrot.lane.b32.xlu0 %v2904, 16
        %v2926 = vpop.permute.xlu0 %2925
        %2927 = vrot.lane.b32.xlu0 %v2905, 16
        %v2928 = vpop.permute.xlu0 %2927
        %2929 = vrot.lane.b32.xlu0 %v2906, 16
        %v2930 = vpop.permute.xlu0 %2929
        %2931 = vrot.lane.b32.xlu0 %v2907, 16
        %v2932 = vpop.permute.xlu0 %2931
        %2933 = vrot.lane.b32.xlu0 %v2908, 16
        %v2934 = vpop.permute.xlu0 %2933
        %2935 = vrot.lane.b32.xlu0 %v2909, 16
        %v2936 = vpop.permute.xlu0 %2935
        %2937 = vrot.lane.b32.xlu0 %v2910, 16
        %v2938 = vpop.permute.xlu0 %2937
        %2939 = vrot.lane.b32.xlu0 %v2911, 16
        %v2940 = vpop.permute.xlu0 %2939
        %2941 = vrot.lane.b32.xlu0 %v2912, 16
        %v2942 = vpop.permute.xlu0 %2941
        %2943 = vrot.lane.b32.xlu0 %v2913, 16
        %v2944 = vpop.permute.xlu0 %2943
        %2945 = vrot.lane.b32.xlu0 %v2914, 16
        %v2946 = vpop.permute.xlu0 %2945
        %v2947 = vunpack.c.l.b16 %v1005
        %v2948 = vunpack.c.l.b16 %v1006
        %v2949 = vunpack.c.l.b16 %v1008
        %v2950 = vunpack.c.l.b16 %v1009
        %v2951 = vunpack.c.l.b16 %v1011
        %v2952 = vunpack.c.l.b16 %v1012
        %v2953 = vunpack.c.l.b16 %v1014
        %v2954 = vunpack.c.l.b16 %v1015
        %v2955 = vunpack.c.l.b16 %v1017
        %v2956 = vunpack.c.l.b16 %v1018
        %v2957 = vunpack.c.l.b16 %v1020
        %v2958 = vunpack.c.l.b16 %v1021
        %v2959 = vunpack.c.l.b16 %v1023
        %v2960 = vunpack.c.l.b16 %v1024
        %v2961 = vunpack.c.l.b16 %v1026
        %v2962 = vunpack.c.l.b16 %v1027
        %v2963 = vunpack.c.l.b16 %v1029
        %v2964 = vunpack.c.l.b16 %v1030
        %v2965 = vunpack.c.l.b16 %v1032
        %v2966 = vunpack.c.l.b16 %v1033
        %v2967 = vunpack.c.l.b16 %v1035
        %v2968 = vunpack.c.l.b16 %v1036
        %v2969 = vunpack.c.l.b16 %v1038
        %v2970 = vunpack.c.l.b16 %v1039
        %v2971 = vunpack.c.l.b16 %v1041
        %v2972 = vunpack.c.l.b16 %v1042
        %v2973 = vunpack.c.l.b16 %v1044
        %v2974 = vunpack.c.l.b16 %v1045
        %v2975 = vunpack.c.l.b16 %v1047
        %v2976 = vunpack.c.l.b16 %v1048
        %v2977 = vunpack.c.l.b16 %v1050
        %v2978 = vunpack.c.l.b16 %v1051
        %v2979 = vpack.c.b16 %v2948, %v2947
        %v2980 = vpack.c.b16 %v2950, %v2949
        %v2981 = vpack.c.b16 %v2952, %v2951
        %v2982 = vpack.c.b16 %v2954, %v2953
        %v2983 = vpack.c.b16 %v2956, %v2955
        %v2984 = vpack.c.b16 %v2958, %v2957
        %v2985 = vpack.c.b16 %v2960, %v2959
        %v2986 = vpack.c.b16 %v2962, %v2961
        %v2987 = vpack.c.b16 %v2964, %v2963
        %v2988 = vpack.c.b16 %v2966, %v2965
        %v2989 = vpack.c.b16 %v2968, %v2967
        %v2990 = vpack.c.b16 %v2970, %v2969
        %v2991 = vpack.c.b16 %v2972, %v2971
        %v2992 = vpack.c.b16 %v2974, %v2973
        %v2993 = vpack.c.b16 %v2976, %v2975
        %v2994 = vpack.c.b16 %v2978, %v2977
        %2995 = vrot.lane.b32.xlu0 %v2979, 24
        %v2996 = vpop.permute.xlu0 %2995
        %2997 = vrot.lane.b32.xlu0 %v2980, 24
        %v2998 = vpop.permute.xlu0 %2997
        %2999 = vrot.lane.b32.xlu0 %v2981, 24
        %v3000 = vpop.permute.xlu0 %2999
        %3001 = vrot.lane.b32.xlu0 %v2982, 24
        %v3002 = vpop.permute.xlu0 %3001
        %3003 = vrot.lane.b32.xlu0 %v2983, 24
        %v3004 = vpop.permute.xlu0 %3003
        %3005 = vrot.lane.b32.xlu0 %v2984, 24
        %v3006 = vpop.permute.xlu0 %3005
        %3007 = vrot.lane.b32.xlu0 %v2985, 24
        %v3008 = vpop.permute.xlu0 %3007
        %3009 = vrot.lane.b32.xlu0 %v2986, 24
        %v3010 = vpop.permute.xlu0 %3009
        %3011 = vrot.lane.b32.xlu0 %v2987, 24
        %v3012 = vpop.permute.xlu0 %3011
        %3013 = vrot.lane.b32.xlu0 %v2988, 24
        %v3014 = vpop.permute.xlu0 %3013
        %3015 = vrot.lane.b32.xlu0 %v2989, 24
        %v3016 = vpop.permute.xlu0 %3015
        %3017 = vrot.lane.b32.xlu0 %v2990, 24
        %v3018 = vpop.permute.xlu0 %3017
        %3019 = vrot.lane.b32.xlu0 %v2991, 24
        %v3020 = vpop.permute.xlu0 %3019
        %3021 = vrot.lane.b32.xlu0 %v2992, 24
        %v3022 = vpop.permute.xlu0 %3021
        %3023 = vrot.lane.b32.xlu0 %v2993, 24
        %v3024 = vpop.permute.xlu0 %3023
        %3025 = vrot.lane.b32.xlu0 %v2994, 24
        %v3026 = vpop.permute.xlu0 %3025
        %v3027 = vunpack.c.l.b16 %v1664
        %v3028 = vunpack.c.l.b16 %v1674
        %v3029 = vunpack.c.l.b16 %v1688
        %v3030 = vunpack.c.l.b16 %v1698
        %v3031 = vunpack.c.l.b16 %v1712
        %v3032 = vunpack.c.l.b16 %v1722
        %v3033 = vunpack.c.l.b16 %v1736
        %v3034 = vunpack.c.l.b16 %v1746
        %v3035 = vunpack.c.l.b16 %v1760
        %v3036 = vunpack.c.l.b16 %v1770
        %v3037 = vunpack.c.l.b16 %v1784
        %v3038 = vunpack.c.l.b16 %v1794
        %v3039 = vunpack.c.l.b16 %v1808
        %v3040 = vunpack.c.l.b16 %v1818
        %v3041 = vunpack.c.l.b16 %v1832
        %v3042 = vunpack.c.l.b16 %v1842
        %v3043 = vunpack.c.l.b16 %v1856
        %v3044 = vunpack.c.l.b16 %v1866
        %v3045 = vunpack.c.l.b16 %v1880
        %v3046 = vunpack.c.l.b16 %v1890
        %v3047 = vunpack.c.l.b16 %v1904
        %v3048 = vunpack.c.l.b16 %v1914
        %v3049 = vunpack.c.l.b16 %v1928
        %v3050 = vunpack.c.l.b16 %v1938
        %v3051 = vunpack.c.l.b16 %v1952
        %v3052 = vunpack.c.l.b16 %v1962
        %v3053 = vunpack.c.l.b16 %v1976
        %v3054 = vunpack.c.l.b16 %v1986
        %v3055 = vunpack.c.l.b16 %v2000
        %v3056 = vunpack.c.l.b16 %v2010
        %v3057 = vunpack.c.l.b16 %v2024
        %v3058 = vunpack.c.l.b16 %v2034
        %v3059 = vpack.c.b16 %v3028, %v3027
        %v3060 = vpack.c.b16 %v3030, %v3029
        %v3061 = vpack.c.b16 %v3032, %v3031
        %v3062 = vpack.c.b16 %v3034, %v3033
        %v3063 = vpack.c.b16 %v3036, %v3035
        %v3064 = vpack.c.b16 %v3038, %v3037
        %v3065 = vpack.c.b16 %v3040, %v3039
        %v3066 = vpack.c.b16 %v3042, %v3041
        %v3067 = vpack.c.b16 %v3044, %v3043
        %v3068 = vpack.c.b16 %v3046, %v3045
        %v3069 = vpack.c.b16 %v3048, %v3047
        %v3070 = vpack.c.b16 %v3050, %v3049
        %v3071 = vpack.c.b16 %v3052, %v3051
        %v3072 = vpack.c.b16 %v3054, %v3053
        %v3073 = vpack.c.b16 %v3056, %v3055
        %v3074 = vpack.c.b16 %v3058, %v3057
        %3075 = vrot.lane.b32.xlu0 %v3059, 32
        %v3076 = vpop.permute.xlu0 %3075
        %3077 = vrot.lane.b32.xlu0 %v3060, 32
        %v3078 = vpop.permute.xlu0 %3077
        %3079 = vrot.lane.b32.xlu0 %v3061, 32
        %v3080 = vpop.permute.xlu0 %3079
        %3081 = vrot.lane.b32.xlu0 %v3062, 32
        %v3082 = vpop.permute.xlu0 %3081
        %3083 = vrot.lane.b32.xlu0 %v3063, 32
        %v3084 = vpop.permute.xlu0 %3083
        %3085 = vrot.lane.b32.xlu0 %v3064, 32
        %v3086 = vpop.permute.xlu0 %3085
        %3087 = vrot.lane.b32.xlu0 %v3065, 32
        %v3088 = vpop.permute.xlu0 %3087
        %3089 = vrot.lane.b32.xlu0 %v3066, 32
        %v3090 = vpop.permute.xlu0 %3089
        %3091 = vrot.lane.b32.xlu0 %v3067, 32
        %v3092 = vpop.permute.xlu0 %3091
        %3093 = vrot.lane.b32.xlu0 %v3068, 32
        %v3094 = vpop.permute.xlu0 %3093
        %3095 = vrot.lane.b32.xlu0 %v3069, 32
        %v3096 = vpop.permute.xlu0 %3095
        %3097 = vrot.lane.b32.xlu0 %v3070, 32
        %v3098 = vpop.permute.xlu0 %3097
        %3099 = vrot.lane.b32.xlu0 %v3071, 32
        %v3100 = vpop.permute.xlu0 %3099
        %3101 = vrot.lane.b32.xlu0 %v3072, 32
        %v3102 = vpop.permute.xlu0 %3101
        %3103 = vrot.lane.b32.xlu0 %v3073, 32
        %v3104 = vpop.permute.xlu0 %3103
        %3105 = vrot.lane.b32.xlu0 %v3074, 32
        %v3106 = vpop.permute.xlu0 %3105
        %v3107 = vunpack.c.l.b16 %v2086
        %v3108 = vunpack.c.l.b16 %v2089
        %v3109 = vunpack.c.l.b16 %v2093
        %v3110 = vunpack.c.l.b16 %v2096
        %v3111 = vunpack.c.l.b16 %v2100
        %v3112 = vunpack.c.l.b16 %v2103
        %v3113 = vunpack.c.l.b16 %v2107
        %v3114 = vunpack.c.l.b16 %v2110
        %v3115 = vunpack.c.l.b16 %v2114
        %v3116 = vunpack.c.l.b16 %v2117
        %v3117 = vunpack.c.l.b16 %v2121
        %v3118 = vunpack.c.l.b16 %v2124
        %v3119 = vunpack.c.l.b16 %v2128
        %v3120 = vunpack.c.l.b16 %v2131
        %v3121 = vunpack.c.l.b16 %v2135
        %v3122 = vunpack.c.l.b16 %v2138
        %v3123 = vunpack.c.l.b16 %v2142
        %v3124 = vunpack.c.l.b16 %v2145
        %v3125 = vunpack.c.l.b16 %v2149
        %v3126 = vunpack.c.l.b16 %v2152
        %v3127 = vunpack.c.l.b16 %v2156
        %v3128 = vunpack.c.l.b16 %v2159
        %v3129 = vunpack.c.l.b16 %v2163
        %v3130 = vunpack.c.l.b16 %v2166
        %v3131 = vunpack.c.l.b16 %v2170
        %v3132 = vunpack.c.l.b16 %v2173
        %v3133 = vunpack.c.l.b16 %v2177
        %v3134 = vunpack.c.l.b16 %v2180
        %v3135 = vunpack.c.l.b16 %v2184
        %v3136 = vunpack.c.l.b16 %v2187
        %v3137 = vunpack.c.l.b16 %v2191
        %v3138 = vunpack.c.l.b16 %v2194
        %v3139 = vpack.c.b16 %v3108, %v3107
        %v3140 = vpack.c.b16 %v3110, %v3109
        %v3141 = vpack.c.b16 %v3112, %v3111
        %v3142 = vpack.c.b16 %v3114, %v3113
        %v3143 = vpack.c.b16 %v3116, %v3115
        %v3144 = vpack.c.b16 %v3118, %v3117
        %v3145 = vpack.c.b16 %v3120, %v3119
        %v3146 = vpack.c.b16 %v3122, %v3121
        %v3147 = vpack.c.b16 %v3124, %v3123
        %v3148 = vpack.c.b16 %v3126, %v3125
        %v3149 = vpack.c.b16 %v3128, %v3127
        %v3150 = vpack.c.b16 %v3130, %v3129
        %v3151 = vpack.c.b16 %v3132, %v3131
        %v3152 = vpack.c.b16 %v3134, %v3133
        %v3153 = vpack.c.b16 %v3136, %v3135
        %v3154 = vpack.c.b16 %v3138, %v3137
        %3155 = vrot.lane.b32.xlu0 %v3139, 40
        %v3156 = vpop.permute.xlu0 %3155
        %3157 = vrot.lane.b32.xlu0 %v3140, 40
        %v3158 = vpop.permute.xlu0 %3157
        %3159 = vrot.lane.b32.xlu0 %v3141, 40
        %v3160 = vpop.permute.xlu0 %3159
        %3161 = vrot.lane.b32.xlu0 %v3142, 40
        %v3162 = vpop.permute.xlu0 %3161
        %3163 = vrot.lane.b32.xlu0 %v3143, 40
        %v3164 = vpop.permute.xlu0 %3163
        %3165 = vrot.lane.b32.xlu0 %v3144, 40
        %v3166 = vpop.permute.xlu0 %3165
        %3167 = vrot.lane.b32.xlu0 %v3145, 40
        %v3168 = vpop.permute.xlu0 %3167
        %3169 = vrot.lane.b32.xlu0 %v3146, 40
        %v3170 = vpop.permute.xlu0 %3169
        %3171 = vrot.lane.b32.xlu0 %v3147, 40
        %v3172 = vpop.permute.xlu0 %3171
        %3173 = vrot.lane.b32.xlu0 %v3148, 40
        %v3174 = vpop.permute.xlu0 %3173
        %3175 = vrot.lane.b32.xlu0 %v3149, 40
        %v3176 = vpop.permute.xlu0 %3175
        %3177 = vrot.lane.b32.xlu0 %v3150, 40
        %v3178 = vpop.permute.xlu0 %3177
        %3179 = vrot.lane.b32.xlu0 %v3151, 40
        %v3180 = vpop.permute.xlu0 %3179
        %3181 = vrot.lane.b32.xlu0 %v3152, 40
        %v3182 = vpop.permute.xlu0 %3181
        %3183 = vrot.lane.b32.xlu0 %v3153, 40
        %v3184 = vpop.permute.xlu0 %3183
        %3185 = vrot.lane.b32.xlu0 %v3154, 40
        %v3186 = vpop.permute.xlu0 %3185
        %v3187 = vunpack.c.l.b16 %v1053
        %v3188 = vunpack.c.l.b16 %v1054
        %v3189 = vunpack.c.l.b16 %v1056
        %v3190 = vunpack.c.l.b16 %v1057
        %v3191 = vunpack.c.l.b16 %v1059
        %v3192 = vunpack.c.l.b16 %v1060
        %v3193 = vunpack.c.l.b16 %v1062
        %v3194 = vunpack.c.l.b16 %v1063
        %v3195 = vunpack.c.l.b16 %v1065
        %v3196 = vunpack.c.l.b16 %v1066
        %v3197 = vunpack.c.l.b16 %v1068
        %v3198 = vunpack.c.l.b16 %v1069
        %v3199 = vunpack.c.l.b16 %v1071
        %v3200 = vunpack.c.l.b16 %v1072
        %v3201 = vunpack.c.l.b16 %v1074
        %v3202 = vunpack.c.l.b16 %v1075
        %v3203 = vunpack.c.l.b16 %v1077
        %v3204 = vunpack.c.l.b16 %v1078
        %v3205 = vunpack.c.l.b16 %v1080
        %v3206 = vunpack.c.l.b16 %v1081
        %v3207 = vunpack.c.l.b16 %v1083
        %v3208 = vunpack.c.l.b16 %v1084
        %v3209 = vunpack.c.l.b16 %v1086
        %v3210 = vunpack.c.l.b16 %v1087
        %v3211 = vunpack.c.l.b16 %v1089
        %v3212 = vunpack.c.l.b16 %v1090
        %v3213 = vunpack.c.l.b16 %v1092
        %v3214 = vunpack.c.l.b16 %v1093
        %v3215 = vunpack.c.l.b16 %v1095
        %v3216 = vunpack.c.l.b16 %v1096
        %v3217 = vunpack.c.l.b16 %v1098
        %v3218 = vunpack.c.l.b16 %v1099
        %v3219 = vpack.c.b16 %v3188, %v3187
        %v3220 = vpack.c.b16 %v3190, %v3189
        %v3221 = vpack.c.b16 %v3192, %v3191
        %v3222 = vpack.c.b16 %v3194, %v3193
        %v3223 = vpack.c.b16 %v3196, %v3195
        %v3224 = vpack.c.b16 %v3198, %v3197
        %v3225 = vpack.c.b16 %v3200, %v3199
        %v3226 = vpack.c.b16 %v3202, %v3201
        %v3227 = vpack.c.b16 %v3204, %v3203
        %v3228 = vpack.c.b16 %v3206, %v3205
        %v3229 = vpack.c.b16 %v3208, %v3207
        %v3230 = vpack.c.b16 %v3210, %v3209
        %v3231 = vpack.c.b16 %v3212, %v3211
        %v3232 = vpack.c.b16 %v3214, %v3213
        %v3233 = vpack.c.b16 %v3216, %v3215
        %v3234 = vpack.c.b16 %v3218, %v3217
        %3235 = vrot.lane.b32.xlu0 %v3219, 48
        %v3236 = vpop.permute.xlu0 %3235
        %3237 = vrot.lane.b32.xlu0 %v3220, 48
        %v3238 = vpop.permute.xlu0 %3237
        %3239 = vrot.lane.b32.xlu0 %v3221, 48
        %v3240 = vpop.permute.xlu0 %3239
        %3241 = vrot.lane.b32.xlu0 %v3222, 48
        %v3242 = vpop.permute.xlu0 %3241
        %3243 = vrot.lane.b32.xlu0 %v3223, 48
        %v3244 = vpop.permute.xlu0 %3243
        %3245 = vrot.lane.b32.xlu0 %v3224, 48
        %v3246 = vpop.permute.xlu0 %3245
        %3247 = vrot.lane.b32.xlu0 %v3225, 48
        %v3248 = vpop.permute.xlu0 %3247
        %3249 = vrot.lane.b32.xlu0 %v3226, 48
        %v3250 = vpop.permute.xlu0 %3249
        %3251 = vrot.lane.b32.xlu0 %v3227, 48
        %v3252 = vpop.permute.xlu0 %3251
        %3253 = vrot.lane.b32.xlu0 %v3228, 48
        %v3254 = vpop.permute.xlu0 %3253
        %3255 = vrot.lane.b32.xlu0 %v3229, 48
        %v3256 = vpop.permute.xlu0 %3255
        %3257 = vrot.lane.b32.xlu0 %v3230, 48
        %v3258 = vpop.permute.xlu0 %3257
        %3259 = vrot.lane.b32.xlu0 %v3231, 48
        %v3260 = vpop.permute.xlu0 %3259
        %3261 = vrot.lane.b32.xlu0 %v3232, 48
        %v3262 = vpop.permute.xlu0 %3261
        %3263 = vrot.lane.b32.xlu0 %v3233, 48
        %v3264 = vpop.permute.xlu0 %3263
        %3265 = vrot.lane.b32.xlu0 %v3234, 48
        %v3266 = vpop.permute.xlu0 %3265
        %v3267 = vunpack.c.l.b16 %v2208
        %v3268 = vunpack.c.l.b16 %v2218
        %v3269 = vunpack.c.l.b16 %v2232
        %v3270 = vunpack.c.l.b16 %v2242
        %v3271 = vunpack.c.l.b16 %v2256
        %v3272 = vunpack.c.l.b16 %v2266
        %v3273 = vunpack.c.l.b16 %v2280
        %v3274 = vunpack.c.l.b16 %v2290
        %v3275 = vunpack.c.l.b16 %v2304
        %v3276 = vunpack.c.l.b16 %v2314
        %v3277 = vunpack.c.l.b16 %v2328
        %v3278 = vunpack.c.l.b16 %v2338
        %v3279 = vunpack.c.l.b16 %v2352
        %v3280 = vunpack.c.l.b16 %v2362
        %v3281 = vunpack.c.l.b16 %v2376
        %v3282 = vunpack.c.l.b16 %v2386
        %v3283 = vunpack.c.l.b16 %v2400
        %v3284 = vunpack.c.l.b16 %v2410
        %v3285 = vunpack.c.l.b16 %v2424
        %v3286 = vunpack.c.l.b16 %v2434
        %v3287 = vunpack.c.l.b16 %v2448
        %v3288 = vunpack.c.l.b16 %v2458
        %v3289 = vunpack.c.l.b16 %v2472
        %v3290 = vunpack.c.l.b16 %v2482
        %v3291 = vunpack.c.l.b16 %v2496
        %v3292 = vunpack.c.l.b16 %v2506
        %v3293 = vunpack.c.l.b16 %v2520
        %v3294 = vunpack.c.l.b16 %v2530
        %v3295 = vunpack.c.l.b16 %v2544
        %v3296 = vunpack.c.l.b16 %v2554
        %v3297 = vunpack.c.l.b16 %v2568
        %v3298 = vunpack.c.l.b16 %v2578
        %v3299 = vpack.c.b16 %v3268, %v3267
        %v3300 = vpack.c.b16 %v3270, %v3269
        %v3301 = vpack.c.b16 %v3272, %v3271
        %v3302 = vpack.c.b16 %v3274, %v3273
        %v3303 = vpack.c.b16 %v3276, %v3275
        %v3304 = vpack.c.b16 %v3278, %v3277
        %v3305 = vpack.c.b16 %v3280, %v3279
        %v3306 = vpack.c.b16 %v3282, %v3281
        %v3307 = vpack.c.b16 %v3284, %v3283
        %v3308 = vpack.c.b16 %v3286, %v3285
        %v3309 = vpack.c.b16 %v3288, %v3287
        %v3310 = vpack.c.b16 %v3290, %v3289
        %v3311 = vpack.c.b16 %v3292, %v3291
        %v3312 = vpack.c.b16 %v3294, %v3293
        %v3313 = vpack.c.b16 %v3296, %v3295
        %v3314 = vpack.c.b16 %v3298, %v3297
        %3315 = vrot.lane.b32.xlu0 %v3299, 56
        %v3316 = vpop.permute.xlu0 %3315
        %3317 = vrot.lane.b32.xlu0 %v3300, 56
        %v3318 = vpop.permute.xlu0 %3317
        %3319 = vrot.lane.b32.xlu0 %v3301, 56
        %v3320 = vpop.permute.xlu0 %3319
        %3321 = vrot.lane.b32.xlu0 %v3302, 56
        %v3322 = vpop.permute.xlu0 %3321
        %3323 = vrot.lane.b32.xlu0 %v3303, 56
        %v3324 = vpop.permute.xlu0 %3323
        %3325 = vrot.lane.b32.xlu0 %v3304, 56
        %v3326 = vpop.permute.xlu0 %3325
        %3327 = vrot.lane.b32.xlu0 %v3305, 56
        %v3328 = vpop.permute.xlu0 %3327
        %3329 = vrot.lane.b32.xlu0 %v3306, 56
        %v3330 = vpop.permute.xlu0 %3329
        %3331 = vrot.lane.b32.xlu0 %v3307, 56
        %v3332 = vpop.permute.xlu0 %3331
        %3333 = vrot.lane.b32.xlu0 %v3308, 56
        %v3334 = vpop.permute.xlu0 %3333
        %3335 = vrot.lane.b32.xlu0 %v3309, 56
        %v3336 = vpop.permute.xlu0 %3335
        %3337 = vrot.lane.b32.xlu0 %v3310, 56
        %v3338 = vpop.permute.xlu0 %3337
        %3339 = vrot.lane.b32.xlu0 %v3311, 56
        %v3340 = vpop.permute.xlu0 %3339
        %3341 = vrot.lane.b32.xlu0 %v3312, 56
        %v3342 = vpop.permute.xlu0 %3341
        %3343 = vrot.lane.b32.xlu0 %v3313, 56
        %v3344 = vpop.permute.xlu0 %3343
        %3345 = vrot.lane.b32.xlu0 %v3314, 56
        %v3346 = vpop.permute.xlu0 %3345
        %v3347 = vunpack.c.l.b16 %v2630
        %v3348 = vunpack.c.l.b16 %v2633
        %v3349 = vunpack.c.l.b16 %v2637
        %v3350 = vunpack.c.l.b16 %v2640
        %v3351 = vunpack.c.l.b16 %v2644
        %v3352 = vunpack.c.l.b16 %v2647
        %v3353 = vunpack.c.l.b16 %v2651
        %v3354 = vunpack.c.l.b16 %v2654
        %v3355 = vunpack.c.l.b16 %v2658
        %v3356 = vunpack.c.l.b16 %v2661
        %v3357 = vunpack.c.l.b16 %v2665
        %v3358 = vunpack.c.l.b16 %v2668
        %v3359 = vunpack.c.l.b16 %v2672
        %v3360 = vunpack.c.l.b16 %v2675
        %v3361 = vunpack.c.l.b16 %v2679
        %v3362 = vunpack.c.l.b16 %v2682
        %v3363 = vunpack.c.l.b16 %v2686
        %v3364 = vunpack.c.l.b16 %v2689
        %v3365 = vunpack.c.l.b16 %v2693
        %v3366 = vunpack.c.l.b16 %v2696
        %v3367 = vunpack.c.l.b16 %v2700
        %v3368 = vunpack.c.l.b16 %v2703
        %v3369 = vunpack.c.l.b16 %v2707
        %v3370 = vunpack.c.l.b16 %v2710
        %v3371 = vunpack.c.l.b16 %v2714
        %v3372 = vunpack.c.l.b16 %v2717
        %v3373 = vunpack.c.l.b16 %v2721
        %v3374 = vunpack.c.l.b16 %v2724
        %v3375 = vunpack.c.l.b16 %v2728
        %v3376 = vunpack.c.l.b16 %v2731
        %v3377 = vunpack.c.l.b16 %v2735
        %v3378 = vunpack.c.l.b16 %v2738
        %v3379 = vpack.c.b16 %v3348, %v3347
        %v3380 = vpack.c.b16 %v3350, %v3349
        %v3381 = vpack.c.b16 %v3352, %v3351
        %v3382 = vpack.c.b16 %v3354, %v3353
        %v3383 = vpack.c.b16 %v3356, %v3355
        %v3384 = vpack.c.b16 %v3358, %v3357
        %v3385 = vpack.c.b16 %v3360, %v3359
        %v3386 = vpack.c.b16 %v3362, %v3361
        %v3387 = vpack.c.b16 %v3364, %v3363
        %v3388 = vpack.c.b16 %v3366, %v3365
        %v3389 = vpack.c.b16 %v3368, %v3367
        %v3390 = vpack.c.b16 %v3370, %v3369
        %v3391 = vpack.c.b16 %v3372, %v3371
        %v3392 = vpack.c.b16 %v3374, %v3373
        %v3393 = vpack.c.b16 %v3376, %v3375
        %v3394 = vpack.c.b16 %v3378, %v3377
        %3395 = vrot.lane.b32.xlu0 %v3379, 64
        %v3396 = vpop.permute.xlu0 %3395
        %3397 = vrot.lane.b32.xlu0 %v3380, 64
        %v3398 = vpop.permute.xlu0 %3397
        %3399 = vrot.lane.b32.xlu0 %v3381, 64
        %v3400 = vpop.permute.xlu0 %3399
        %3401 = vrot.lane.b32.xlu0 %v3382, 64
        %v3402 = vpop.permute.xlu0 %3401
        %3403 = vrot.lane.b32.xlu0 %v3383, 64
        %v3404 = vpop.permute.xlu0 %3403
        %3405 = vrot.lane.b32.xlu0 %v3384, 64
        %v3406 = vpop.permute.xlu0 %3405
        %3407 = vrot.lane.b32.xlu0 %v3385, 64
        %v3408 = vpop.permute.xlu0 %3407
        %3409 = vrot.lane.b32.xlu0 %v3386, 64
        %v3410 = vpop.permute.xlu0 %3409
        %3411 = vrot.lane.b32.xlu0 %v3387, 64
        %v3412 = vpop.permute.xlu0 %3411
        %3413 = vrot.lane.b32.xlu0 %v3388, 64
        %v3414 = vpop.permute.xlu0 %3413
        %3415 = vrot.lane.b32.xlu0 %v3389, 64
        %v3416 = vpop.permute.xlu0 %3415
        %3417 = vrot.lane.b32.xlu0 %v3390, 64
        %v3418 = vpop.permute.xlu0 %3417
        %3419 = vrot.lane.b32.xlu0 %v3391, 64
        %v3420 = vpop.permute.xlu0 %3419
        %3421 = vrot.lane.b32.xlu0 %v3392, 64
        %v3422 = vpop.permute.xlu0 %3421
        %3423 = vrot.lane.b32.xlu0 %v3393, 64
        %v3424 = vpop.permute.xlu0 %3423
        %3425 = vrot.lane.b32.xlu0 %v3394, 64
        %v3426 = vpop.permute.xlu0 %3425
        %vm3427 = vcmask 64512
        %v3430 = vsel %vm3427, %v2771, %v2836
        %v3433 = vsel %vm3427, %v2772, %v2838
        %v3436 = vsel %vm3427, %v2773, %v2840
        %v3439 = vsel %vm3427, %v2774, %v2842
        %v3442 = vsel %vm3427, %v2775, %v2844
        %v3445 = vsel %vm3427, %v2776, %v2846
        %v3448 = vsel %vm3427, %v2777, %v2848
        %v3451 = vsel %vm3427, %v2778, %v2850
        %v3454 = vsel %vm3427, %v2779, %v2852
        %v3457 = vsel %vm3427, %v2780, %v2854
        %v3460 = vsel %vm3427, %v2781, %v2856
        %v3463 = vsel %vm3427, %v2782, %v2858
        %v3466 = vsel %vm3427, %v2783, %v2860
        %v3469 = vsel %vm3427, %v2784, %v2862
        %v3472 = vsel %vm3427, %v2785, %v2864
        %v3475 = vsel %vm3427, %v2786, %v2866
        %vm3476 = vcmask 130048
        %v3478 = vsel %vm3476, %v3430, %v2916
        %v3480 = vsel %vm3476, %v3433, %v2918
        %v3482 = vsel %vm3476, %v3436, %v2920
        %v3484 = vsel %vm3476, %v3439, %v2922
        %v3486 = vsel %vm3476, %v3442, %v2924
        %v3488 = vsel %vm3476, %v3445, %v2926
        %v3490 = vsel %vm3476, %v3448, %v2928
        %v3492 = vsel %vm3476, %v3451, %v2930
        %v3494 = vsel %vm3476, %v3454, %v2932
        %v3496 = vsel %vm3476, %v3457, %v2934
        %v3498 = vsel %vm3476, %v3460, %v2936
        %v3500 = vsel %vm3476, %v3463, %v2938
        %v3502 = vsel %vm3476, %v3466, %v2940
        %v3504 = vsel %vm3476, %v3469, %v2942
        %v3506 = vsel %vm3476, %v3472, %v2944
        %v3508 = vsel %vm3476, %v3475, %v2946
        %vm3509 = vcmask 195584
        %v3511 = vsel %vm3509, %v3478, %v2996
        %v3513 = vsel %vm3509, %v3480, %v2998
        %v3515 = vsel %vm3509, %v3482, %v3000
        %v3517 = vsel %vm3509, %v3484, %v3002
        %v3519 = vsel %vm3509, %v3486, %v3004
        %v3521 = vsel %vm3509, %v3488, %v3006
        %v3523 = vsel %vm3509, %v3490, %v3008
        %v3525 = vsel %vm3509, %v3492, %v3010
        %v3527 = vsel %vm3509, %v3494, %v3012
        %v3529 = vsel %vm3509, %v3496, %v3014
        %v3531 = vsel %vm3509, %v3498, %v3016
        %v3533 = vsel %vm3509, %v3500, %v3018
        %v3535 = vsel %vm3509, %v3502, %v3020
        %v3537 = vsel %vm3509, %v3504, %v3022
        %v3539 = vsel %vm3509, %v3506, %v3024
        %v3541 = vsel %vm3509, %v3508, %v3026
        %vm3542 = vcmask 261120
        %v3544 = vsel %vm3542, %v3511, %v3076
        %v3546 = vsel %vm3542, %v3513, %v3078
        %v3548 = vsel %vm3542, %v3515, %v3080
        %v3550 = vsel %vm3542, %v3517, %v3082
        %v3552 = vsel %vm3542, %v3519, %v3084
        %v3554 = vsel %vm3542, %v3521, %v3086
        %v3556 = vsel %vm3542, %v3523, %v3088
        %v3558 = vsel %vm3542, %v3525, %v3090
        %v3560 = vsel %vm3542, %v3527, %v3092
        %v3562 = vsel %vm3542, %v3529, %v3094
        %v3564 = vsel %vm3542, %v3531, %v3096
        %v3566 = vsel %vm3542, %v3533, %v3098
        %v3568 = vsel %vm3542, %v3535, %v3100
        %v3570 = vsel %vm3542, %v3537, %v3102
        %v3572 = vsel %vm3542, %v3539, %v3104
        %v3574 = vsel %vm3542, %v3541, %v3106
        %vm3575 = vcmask 326656
        %v3577 = vsel %vm3575, %v3544, %v3156
        %v3579 = vsel %vm3575, %v3546, %v3158
        %v3581 = vsel %vm3575, %v3548, %v3160
        %v3583 = vsel %vm3575, %v3550, %v3162
        %v3585 = vsel %vm3575, %v3552, %v3164
        %v3587 = vsel %vm3575, %v3554, %v3166
        %v3589 = vsel %vm3575, %v3556, %v3168
        %v3591 = vsel %vm3575, %v3558, %v3170
        %v3593 = vsel %vm3575, %v3560, %v3172
        %v3595 = vsel %vm3575, %v3562, %v3174
        %v3597 = vsel %vm3575, %v3564, %v3176
        %v3599 = vsel %vm3575, %v3566, %v3178
        %v3601 = vsel %vm3575, %v3568, %v3180
        %v3603 = vsel %vm3575, %v3570, %v3182
        %v3605 = vsel %vm3575, %v3572, %v3184
        %v3607 = vsel %vm3575, %v3574, %v3186
        %vm3608 = vcmask 392192
        %v3610 = vsel %vm3608, %v3577, %v3236
        %v3612 = vsel %vm3608, %v3579, %v3238
        %v3614 = vsel %vm3608, %v3581, %v3240
        %v3616 = vsel %vm3608, %v3583, %v3242
        %v3618 = vsel %vm3608, %v3585, %v3244
        %v3620 = vsel %vm3608, %v3587, %v3246
        %v3622 = vsel %vm3608, %v3589, %v3248
        %v3624 = vsel %vm3608, %v3591, %v3250
        %v3626 = vsel %vm3608, %v3593, %v3252
        %v3628 = vsel %vm3608, %v3595, %v3254
        %v3630 = vsel %vm3608, %v3597, %v3256
        %v3632 = vsel %vm3608, %v3599, %v3258
        %v3634 = vsel %vm3608, %v3601, %v3260
        %v3636 = vsel %vm3608, %v3603, %v3262
        %v3638 = vsel %vm3608, %v3605, %v3264
        %v3640 = vsel %vm3608, %v3607, %v3266
        %vm3641 = vcmask 457728
        %v3643 = vsel %vm3641, %v3610, %v3316
        %v3645 = vsel %vm3641, %v3612, %v3318
        %v3647 = vsel %vm3641, %v3614, %v3320
        %v3649 = vsel %vm3641, %v3616, %v3322
        %v3651 = vsel %vm3641, %v3618, %v3324
        %v3653 = vsel %vm3641, %v3620, %v3326
        %v3655 = vsel %vm3641, %v3622, %v3328
        %v3657 = vsel %vm3641, %v3624, %v3330
        %v3659 = vsel %vm3641, %v3626, %v3332
        %v3661 = vsel %vm3641, %v3628, %v3334
        %v3663 = vsel %vm3641, %v3630, %v3336
        %v3665 = vsel %vm3641, %v3632, %v3338
        %v3667 = vsel %vm3641, %v3634, %v3340
        %v3669 = vsel %vm3641, %v3636, %v3342
        %v3671 = vsel %vm3641, %v3638, %v3344
        %v3673 = vsel %vm3641, %v3640, %v3346
        %vm3674 = vcmask 523264
        %v3676 = vsel %vm3674, %v3643, %v3396
        %v3678 = vsel %vm3674, %v3645, %v3398
        %v3680 = vsel %vm3674, %v3647, %v3400
        %v3682 = vsel %vm3674, %v3649, %v3402
        %v3684 = vsel %vm3674, %v3651, %v3404
        %v3686 = vsel %vm3674, %v3653, %v3406
        %v3688 = vsel %vm3674, %v3655, %v3408
        %v3690 = vsel %vm3674, %v3657, %v3410
        %v3692 = vsel %vm3674, %v3659, %v3412
        %v3694 = vsel %vm3674, %v3661, %v3414
        %v3696 = vsel %vm3674, %v3663, %v3416
        %v3698 = vsel %vm3674, %v3665, %v3418
        %v3700 = vsel %vm3674, %v3667, %v3420
        %v3702 = vsel %vm3674, %v3669, %v3422
        %v3704 = vsel %vm3674, %v3671, %v3424
        %v3706 = vsel %vm3674, %v3673, %v3426
        %v3707 = vld [vmem:[%s3] sm:$0xf]
        %v3708 = vld [vmem:[%s3 + $0x4] sm:$0xf]
        %v3709 = vld [vmem:[%s3 + $0x8] sm:$0xf]
        %v3710 = vld [vmem:[%s3 + $0xc] sm:$0xf]
        %v3711 = vld [vmem:[%s3 + $0x10] sm:$0xf]
        %v3712 = vld [vmem:[%s3 + $0x14] sm:$0xf]
        %v3713 = vld [vmem:[%s3 + $0x18] sm:$0xf]
        %v3714 = vld [vmem:[%s3 + $0x1c] sm:$0xf]
        %v3715 = vld [vmem:[%s3 + $0x20] sm:$0xf]
        %v3716 = vld [vmem:[%s4] sm:$0x1]
        %v3718 = vlaneseq
        %v3719 = vshrl.u32 %v3718, 7
        %v3720 = vsub.s32 0, %v3719
        %v3721 = vrot.slane %v3716, %v3720
        %v3732 = vunpack.c.l.b16 %v3707
        %v3733 = vunpack.c.l.b16 %v3708
        %v3734 = vunpack.c.l.b16 %v3709
        %v3735 = vunpack.c.l.b16 %v3710
        %v3736 = vunpack.c.l.b16 %v3711
        %v3737 = vunpack.c.l.b16 %v3712
        %v3738 = vunpack.c.l.b16 %v3713
        %v3739 = vunpack.c.l.b16 %v3714
        %v3740 = vunpack.c.l.b16 %v3715
        %v3741 = vpack.c.b16 %v3733, %v3732
        %v3742 = vpack.c.b16 %v3735, %v3734
        %v3743 = vpack.c.b16 %v3737, %v3736
        %v3744 = vpack.c.b16 %v3739, %v3738
        %v3745 = vpack.c.b16 %v3740, %v3740
        %vm3750 = vcmask 588800
        %v3751 = vsel %vm3750, %v3676, 0
        %v3753 = vsel %vm3750, %v3678, 0
        %v3755 = vsel %vm3750, %v3680, 0
        %v3757 = vsel %vm3750, %v3682, 0
        %v3759 = vsel %vm3750, %v3684, 0
        %v3761 = vsel %vm3750, %v3686, 0
        %v3763 = vsel %vm3750, %v3688, 0
        %v3765 = vsel %vm3750, %v3690, 0
        %v3767 = vsel %vm3750, %v3692, 0
        %v3769 = vsel %vm3750, %v3694, 0
        %v3771 = vsel %vm3750, %v3696, 0
        %v3773 = vsel %vm3750, %v3698, 0
        %v3775 = vsel %vm3750, %v3700, 0
        %v3777 = vsel %vm3750, %v3702, 0
        %v3779 = vsel %vm3750, %v3704, 0
        %v3781 = vsel %vm3750, %v3706, 0
        %vm3783 = vcmask 1043456
        %v3785 = vsel %vm3783, %v3745, 0
        %3787 = vmatprep.subr.bf16.mxu0 0
        %3788 = vmatpush1.bf16.msra.mxu0 %v3741
        %3789 = vmatprep.subr.bf16.mxu0 0
        %3790 = vmatpush1.bf16.msra.mxu0 %v3742
        %3791 = vmatprep.subr.bf16.mxu0 0
        %3792 = vmatpush1.bf16.msra.mxu0 %v3743
        %3793 = vmatprep.subr.bf16.mxu0 0
        %3794 = vmatpush1.bf16.msra.mxu0 %v3744
        %3795 = vmatprep.subr.bf16.mxu0 0
        %3796 = vmatpush1.bf16.msra.mxu0 %v3785
        %3797 = vmatprep.subr.bf16.mxu0 0
        %3798 = vmatpush1.bf16.msra.mxu0 0
        %3799 = vmatprep.subr.bf16.mxu0 0
        %3800 = vmatpush1.bf16.msra.mxu0 0
        %3801 = vmatprep.subr.bf16.mxu0 0
        %3802 = vmatpush1.bf16.msra.mxu0 0
        %3803 = vmatprep.subr.bf16.mxu0 0
        %3804 = vmatpush1.bf16.msra.mxu0 0
        %3805 = vmatprep.subr.bf16.mxu0 0
        %3806 = vmatpush1.bf16.msra.mxu0 0
        %3807 = vmatprep.subr.bf16.mxu0 0
        %3808 = vmatpush1.bf16.msra.mxu0 0
        %3809 = vmatprep.subr.bf16.mxu0 0
        %3810 = vmatpush1.bf16.msra.mxu0 0
        %3811 = vmatprep.subr.bf16.mxu0 0
        %3812 = vmatpush1.bf16.msra.mxu0 0
        %3813 = vmatprep.subr.bf16.mxu0 0
        %3814 = vmatpush1.bf16.msra.mxu0 0
        %3815 = vmatprep.subr.bf16.mxu0 0
        %3816 = vmatpush1.bf16.msra.mxu0 0
        %3817 = vmatprep.subr.bf16.mxu0 0
        %3818 = vmatpush1.bf16.msra.mxu0 0
        %3819 = vmatprep.mubr.bf16.mxu0 0
        %3820 = vmatmul.mubr.bf16.gmra.mrb[0].mxu0 %v3751
        %v3821 = vpop.f32.mrb[0].mxu0
        %v3822 = vadd.f32 %v3721, %v3821
        %v3823 = vpop.f32.mrb[0].mxu0
        %v3824 = vpop.f32.mrb[0].mxu0
        %v3825 = vadd.f32 %v3721, %v3824
        %v3826 = vpop.f32.mrb[0].mxu0
        %3827 = vmatprep.mubr.bf16.mxu0 0
        %3828 = vmatmul.mubr.bf16.gmra.mrb[0].mxu0 %v3753
        %v3829 = vpop.f32.mrb[0].mxu0
        %v3830 = vadd.f32 %v3721, %v3829
        %v3831 = vpop.f32.mrb[0].mxu0
        %v3832 = vpop.f32.mrb[0].mxu0
        %v3833 = vadd.f32 %v3721, %v3832
        %v3834 = vpop.f32.mrb[0].mxu0
        %3835 = vmatprep.mubr.bf16.mxu0 0
        %3836 = vmatmul.mubr.bf16.gmra.mrb[0].mxu0 %v3755
        %v3837 = vpop.f32.mrb[0].mxu0
        %v3838 = vadd.f32 %v3721, %v3837
        %v3839 = vpop.f32.mrb[0].mxu0
        %v3840 = vpop.f32.mrb[0].mxu0
        %v3841 = vadd.f32 %v3721, %v3840
        %v3842 = vpop.f32.mrb[0].mxu0
        %3843 = vmatprep.mubr.bf16.mxu0 0
        %3844 = vmatmul.mubr.bf16.gmra.mrb[0].mxu0 %v3757
        %v3845 = vpop.f32.mrb[0].mxu0
        %v3846 = vadd.f32 %v3721, %v3845
        %v3847 = vpop.f32.mrb[0].mxu0
        %v3848 = vpop.f32.mrb[0].mxu0
        %v3849 = vadd.f32 %v3721, %v3848
        %v3850 = vpop.f32.mrb[0].mxu0
        %3851 = vmatprep.mubr.bf16.mxu0 0
        %3852 = vmatmul.mubr.bf16.gmra.mrb[0].mxu0 %v3759
        %v3853 = vpop.f32.mrb[0].mxu0
        %v3854 = vadd.f32 %v3721, %v3853
        %v3855 = vpop.f32.mrb[0].mxu0
        %v3856 = vpop.f32.mrb[0].mxu0
        %v3857 = vadd.f32 %v3721, %v3856
        %v3858 = vpop.f32.mrb[0].mxu0
        %3859 = vmatprep.mubr.bf16.mxu0 0
        %3860 = vmatmul.mubr.bf16.gmra.mrb[0].mxu0 %v3761
        %v3861 = vpop.f32.mrb[0].mxu0
        %v3862 = vadd.f32 %v3721, %v3861
        %v3863 = vpop.f32.mrb[0].mxu0
        %v3864 = vpop.f32.mrb[0].mxu0
        %v3865 = vadd.f32 %v3721, %v3864
        %v3866 = vpop.f32.mrb[0].mxu0
        %3867 = vmatprep.mubr.bf16.mxu0 0
        %3868 = vmatmul.mubr.bf16.gmra.mrb[0].mxu0 %v3763
        %v3869 = vpop.f32.mrb[0].mxu0
        %v3870 = vadd.f32 %v3721, %v3869
        %v3871 = vpop.f32.mrb[0].mxu0
        %v3872 = vpop.f32.mrb[0].mxu0
        %v3873 = vadd.f32 %v3721, %v3872
        %v3874 = vpop.f32.mrb[0].mxu0
        %3875 = vmatprep.mubr.bf16.mxu0 0
        %3876 = vmatmul.mubr.bf16.gmra.mrb[0].mxu0 %v3765
        %v3877 = vpop.f32.mrb[0].mxu0
        %v3878 = vadd.f32 %v3721, %v3877
        %v3879 = vpop.f32.mrb[0].mxu0
        %v3880 = vpop.f32.mrb[0].mxu0
        %v3881 = vadd.f32 %v3721, %v3880
        %v3882 = vpop.f32.mrb[0].mxu0
        %3883 = vmatprep.mubr.bf16.mxu0 0
        %3884 = vmatmul.mubr.bf16.gmra.mrb[0].mxu0 %v3767
        %v3885 = vpop.f32.mrb[0].mxu0
        %v3886 = vadd.f32 %v3721, %v3885
        %v3887 = vpop.f32.mrb[0].mxu0
        %v3888 = vpop.f32.mrb[0].mxu0
        %v3889 = vadd.f32 %v3721, %v3888
        %v3890 = vpop.f32.mrb[0].mxu0
        %3891 = vmatprep.mubr.bf16.mxu0 0
        %3892 = vmatmul.mubr.bf16.gmra.mrb[0].mxu0 %v3769
        %v3893 = vpop.f32.mrb[0].mxu0
        %v3894 = vadd.f32 %v3721, %v3893
        %v3895 = vpop.f32.mrb[0].mxu0
        %v3896 = vpop.f32.mrb[0].mxu0
        %v3897 = vadd.f32 %v3721, %v3896
        %v3898 = vpop.f32.mrb[0].mxu0
        %3899 = vmatprep.mubr.bf16.mxu0 0
        %3900 = vmatmul.mubr.bf16.gmra.mrb[0].mxu0 %v3771
        %v3901 = vpop.f32.mrb[0].mxu0
        %v3902 = vadd.f32 %v3721, %v3901
        %v3903 = vpop.f32.mrb[0].mxu0
        %v3904 = vpop.f32.mrb[0].mxu0
        %v3905 = vadd.f32 %v3721, %v3904
        %v3906 = vpop.f32.mrb[0].mxu0
        %3907 = vmatprep.mubr.bf16.mxu0 0
        %3908 = vmatmul.mubr.bf16.gmra.mrb[0].mxu0 %v3773
        %v3909 = vpop.f32.mrb[0].mxu0
        %v3910 = vadd.f32 %v3721, %v3909
        %v3911 = vpop.f32.mrb[0].mxu0
        %v3912 = vpop.f32.mrb[0].mxu0
        %v3913 = vadd.f32 %v3721, %v3912
        %v3914 = vpop.f32.mrb[0].mxu0
        %3915 = vmatprep.mubr.bf16.mxu0 0
        %3916 = vmatmul.mubr.bf16.gmra.mrb[0].mxu0 %v3775
        %v3917 = vpop.f32.mrb[0].mxu0
        %v3918 = vadd.f32 %v3721, %v3917
        %v3919 = vpop.f32.mrb[0].mxu0
        %v3920 = vpop.f32.mrb[0].mxu0
        %v3921 = vadd.f32 %v3721, %v3920
        %v3922 = vpop.f32.mrb[0].mxu0
        %3923 = vmatprep.mubr.bf16.mxu0 0
        %3924 = vmatmul.mubr.bf16.gmra.mrb[0].mxu0 %v3777
        %v3925 = vpop.f32.mrb[0].mxu0
        %v3926 = vadd.f32 %v3721, %v3925
        %v3927 = vpop.f32.mrb[0].mxu0
        %v3928 = vpop.f32.mrb[0].mxu0
        %v3929 = vadd.f32 %v3721, %v3928
        %v3930 = vpop.f32.mrb[0].mxu0
        %3931 = vmatprep.mubr.bf16.mxu0 0
        %3932 = vmatmul.mubr.bf16.gmra.mrb[0].mxu0 %v3779
        %v3933 = vpop.f32.mrb[0].mxu0
        %v3934 = vadd.f32 %v3721, %v3933
        %v3935 = vpop.f32.mrb[0].mxu0
        %v3936 = vpop.f32.mrb[0].mxu0
        %v3937 = vadd.f32 %v3721, %v3936
        %v3938 = vpop.f32.mrb[0].mxu0
        %3939 = vmatprep.mubr.bf16.mxu0 0
        %3940 = vmatmul.mubr.bf16.gmra.mrb[0].mxu0 %v3781
        %v3941 = vpop.f32.mrb[0].mxu0
        %v3942 = vadd.f32 %v3721, %v3941
        %v3943 = vpop.f32.mrb[0].mxu0
        %v3944 = vpop.f32.mrb[0].mxu0
        %v3945 = vadd.f32 %v3721, %v3944
        %v3946 = vpop.f32.mrb[0].mxu0
        %3947 = vdwg.mxu0
        %v3948 = vpack.c.bf16 %v3825, %v3822
        %v3949 = vpack.c.bf16 %v3833, %v3830
        %v3950 = vpack.c.bf16 %v3841, %v3838
        %v3951 = vpack.c.bf16 %v3849, %v3846
        %v3952 = vpack.c.bf16 %v3857, %v3854
        %v3953 = vpack.c.bf16 %v3865, %v3862
        %v3954 = vpack.c.bf16 %v3873, %v3870
        %v3955 = vpack.c.bf16 %v3881, %v3878
        %v3956 = vpack.c.bf16 %v3889, %v3886
        %v3957 = vpack.c.bf16 %v3897, %v3894
        %v3958 = vpack.c.bf16 %v3905, %v3902
        %v3959 = vpack.c.bf16 %v3913, %v3910
        %v3960 = vpack.c.bf16 %v3921, %v3918
        %v3961 = vpack.c.bf16 %v3929, %v3926
        %v3962 = vpack.c.bf16 %v3937, %v3934
        %v3963 = vpack.c.bf16 %v3945, %v3942
        %v3980 = vunpack.c.l.b16 %v3948
        %v3981 = vunpack.c.h.b16 %v3948
        %v3982 = vunpack.c.l.b16 %v3949
        %v3983 = vunpack.c.h.b16 %v3949
        %v3984 = vunpack.c.l.b16 %v3950
        %v3985 = vunpack.c.h.b16 %v3950
        %v3986 = vunpack.c.l.b16 %v3951
        %v3987 = vunpack.c.h.b16 %v3951
        %v3988 = vunpack.c.l.b16 %v3952
        %v3989 = vunpack.c.h.b16 %v3952
        %v3990 = vunpack.c.l.b16 %v3953
        %v3991 = vunpack.c.h.b16 %v3953
        %v3992 = vunpack.c.l.b16 %v3954
        %v3993 = vunpack.c.h.b16 %v3954
        %v3994 = vunpack.c.l.b16 %v3955
        %v3995 = vunpack.c.h.b16 %v3955
        %v3996 = vunpack.c.l.b16 %v3956
        %v3997 = vunpack.c.h.b16 %v3956
        %v3998 = vunpack.c.l.b16 %v3957
        %v3999 = vunpack.c.h.b16 %v3957
        %v4000 = vunpack.c.l.b16 %v3958
        %v4001 = vunpack.c.h.b16 %v3958
        %v4002 = vunpack.c.l.b16 %v3959
        %v4003 = vunpack.c.h.b16 %v3959
        %v4004 = vunpack.c.l.b16 %v3960
        %v4005 = vunpack.c.h.b16 %v3960
        %v4006 = vunpack.c.l.b16 %v3961
        %v4007 = vunpack.c.h.b16 %v3961
        %v4008 = vunpack.c.l.b16 %v3962
        %v4009 = vunpack.c.h.b16 %v3962
        %v4010 = vunpack.c.l.b16 %v3963
        %v4011 = vunpack.c.h.b16 %v3963
        %v4012 = vpack.c.b16 %v3980, %v3980
        %v4013 = vpack.c.b16 %v3981, %v3981
        %v4014 = vpack.c.b16 %v3982, %v3982
        %v4015 = vpack.c.b16 %v3983, %v3983
        %v4016 = vpack.c.b16 %v3984, %v3984
        %v4017 = vpack.c.b16 %v3985, %v3985
        %v4018 = vpack.c.b16 %v3986, %v3986
        %v4019 = vpack.c.b16 %v3987, %v3987
        %v4020 = vpack.c.b16 %v3988, %v3988
        %v4021 = vpack.c.b16 %v3989, %v3989
        %v4022 = vpack.c.b16 %v3990, %v3990
        %v4023 = vpack.c.b16 %v3991, %v3991
        %v4024 = vpack.c.b16 %v3992, %v3992
        %v4025 = vpack.c.b16 %v3993, %v3993
        %v4026 = vpack.c.b16 %v3994, %v3994
        %v4027 = vpack.c.b16 %v3995, %v3995
        %v4028 = vpack.c.b16 %v3996, %v3996
        %v4029 = vpack.c.b16 %v3997, %v3997
        %v4030 = vpack.c.b16 %v3998, %v3998
        %v4031 = vpack.c.b16 %v3999, %v3999
        %v4032 = vpack.c.b16 %v4000, %v4000
        %v4033 = vpack.c.b16 %v4001, %v4001
        %v4034 = vpack.c.b16 %v4002, %v4002
        %v4035 = vpack.c.b16 %v4003, %v4003
        %v4036 = vpack.c.b16 %v4004, %v4004
        %v4037 = vpack.c.b16 %v4005, %v4005
        %v4038 = vpack.c.b16 %v4006, %v4006
        %v4039 = vpack.c.b16 %v4007, %v4007
        %v4040 = vpack.c.b16 %v4008, %v4008
        %v4041 = vpack.c.b16 %v4009, %v4009
        %v4042 = vpack.c.b16 %v4010, %v4010
        %v4043 = vpack.c.b16 %v4011, %v4011
        %vm4076 = vcmask 27648
        %4077 = vst.msk [vmem:[%s951] sm:$0xf] %vm4076, %v4012
        %4078 = vst.msk [vmem:[%s951 + $0x4] sm:$0xf] %vm4076, %v4013
        %4079 = vst.msk [vmem:[%s951 + $0x8] sm:$0xf] %vm4076, %v4014
        %4080 = vst.msk [vmem:[%s951 + $0xc] sm:$0xf] %vm4076, %v4015
        %4081 = vst.msk [vmem:[%s951 + $0x10] sm:$0xf] %vm4076, %v4016
        %4082 = vst.msk [vmem:[%s951 + $0x14] sm:$0xf] %vm4076, %v4017
        %4083 = vst.msk [vmem:[%s951 + $0x18] sm:$0xf] %vm4076, %v4018
        %4084 = vst.msk [vmem:[%s951 + $0x1c] sm:$0xf] %vm4076, %v4019
        %4085 = vst.msk [vmem:[%s951 + $0x20] sm:$0xf] %vm4076, %v4020
        %4086 = vst.msk [vmem:[%s951 + $0x24] sm:$0xf] %vm4076, %v4021
        %4087 = vst.msk [vmem:[%s951 + $0x28] sm:$0xf] %vm4076, %v4022
        %4088 = vst.msk [vmem:[%s951 + $0x2c] sm:$0xf] %vm4076, %v4023
        %4089 = vst.msk [vmem:[%s951 + $0x30] sm:$0xf] %vm4076, %v4024
        %4090 = vst.msk [vmem:[%s951 + $0x34] sm:$0xf] %vm4076, %v4025
        %4091 = vst.msk [vmem:[%s951 + $0x38] sm:$0xf] %vm4076, %v4026
        %4092 = vst.msk [vmem:[%s951 + $0x3c] sm:$0xf] %vm4076, %v4027
        %4093 = vst.msk [vmem:[%s951 + $0x40] sm:$0xf] %vm4076, %v4028
        %4094 = vst.msk [vmem:[%s951 + $0x44] sm:$0xf] %vm4076, %v4029
        %4095 = vst.msk [vmem:[%s951 + $0x48] sm:$0xf] %vm4076, %v4030
        %4096 = vst.msk [vmem:[%s951 + $0x4c] sm:$0xf] %vm4076, %v4031
        %4097 = vst.msk [vmem:[%s951 + $0x50] sm:$0xf] %vm4076, %v4032
        %4098 = vst.msk [vmem:[%s951 + $0x54] sm:$0xf] %vm4076, %v4033
        %4099 = vst.msk [vmem:[%s951 + $0x58] sm:$0xf] %vm4076, %v4034
        %4100 = vst.msk [vmem:[%s951 + $0x5c] sm:$0xf] %vm4076, %v4035
        %4101 = vst.msk [vmem:[%s951 + $0x60] sm:$0xf] %vm4076, %v4036
        %4102 = vst.msk [vmem:[%s951 + $0x64] sm:$0xf] %vm4076, %v4037
        %4103 = vst.msk [vmem:[%s951 + $0x68] sm:$0xf] %vm4076, %v4038
        %4104 = vst.msk [vmem:[%s951 + $0x6c] sm:$0xf] %vm4076, %v4039
        %4105 = vst.msk [vmem:[%s951 + $0x70] sm:$0xf] %vm4076, %v4040
        %4106 = vst.msk [vmem:[%s951 + $0x74] sm:$0xf] %vm4076, %v4041
        %4107 = vst.msk [vmem:[%s951 + $0x78] sm:$0xf] %vm4076, %v4042
        %4108 = vst.msk [vmem:[%s951 + $0x7c] sm:$0xf] %vm4076, %v4043
        %s4109 = sand.u32 %s144, 1
        %s4110 = sand.u32 %s144, 1
        %s4111 = smul.addr %s4110, 128
        %s4112 = scalar_lea.vmem [#allocation5], %s4111
        // Predicated region
        $region164: #{dense_block_forward.3} parent=150 // pred_check
          %p4113 = pneg %p154
        $region165: #{dense_block_forward.3} parent=150 // pred_check_branch
          %4115 = sbr.rel (%p4113) target = $region167
        $region166: #{dense_block_forward.3} parent=150 // pred_region
          %s4116 = smul.u32 8, %s16
          %s4117 = smul.addr %s4116, 2
          %s4118 = smul.addr %s4117, 4
          %s4119 = scalar_lea.vmem %s5, %s4118
          // Predicated region
          $region168: #{dense_block_forward.3} parent=166 // pred_check
            _
          $region169: #{dense_block_forward.3} parent=166 // pred_check_branch
            %4121 = sbr.rel (0) target = $region171
          $region170: #{dense_block_forward.3} parent=166 // pred_region
            // Predicated region
            $region172: #{dense_block_forward.3} parent=170 // pred_check
              _
            $region173: #{dense_block_forward.3} parent=170 // pred_check_branch
              %4123 = sbr.rel target = $region175
            $region174: #{dense_block_forward.3} parent=170 // pred_region
              // Predicated region
              $region187: #{dense_block_forward.3} parent=174 // pred_check
                _
              $region188: #{dense_block_forward.3} parent=174 // pred_check_branch
                %4200 = sbr.rel (0) target = $region190
              $region189: #{dense_block_forward.3} parent=174 // pred_region
                loop: start=0, step=1, limit=1
                $region191: #{dense_block_forward.3} parent=189 // loop_pre_header
                  _
                $region192: #{dense_block_forward.3} parent=189 // loop_header
                  %s4202 = sphi 0, %s4206
                  %p4203 = scmp.ge.s32.totalorder %s4202, 1
                  %s4207 = sphi %s4112, %s4112
                  %s4208 = sphi %s4119, %s4119
                $region193: #{dense_block_forward.3} parent=189 // loop_header_branch
                  %4205 = sbr.rel (%p4203) target = $region197
                $region194: #{dense_block_forward.3} parent=189 // loop_body
                  _
                $region195: #{dense_block_forward.3} parent=189 // loop_footer
                  %s4206 = sadd.s32 1, %s4202
                $region196: #{dense_block_forward.3} parent=189 // loop_footer_branch
                  %4201 = sbr.rel target = $region192
                $region197: #{dense_block_forward.3} parent=189 // loop_exit
                  _
                loop: start=0, step=1, limit=1
                $region198: #{dense_block_forward.3} parent=189 // loop_pre_header
                  _
                $region199: #{dense_block_forward.3} parent=189 // loop_header
                  %s4211 = sphi 0, %s4215
                  %p4212 = scmp.ge.s32.totalorder %s4211, 1
                  %s4216 = sphi %s4112, %s4112
                  %s4217 = sphi %s4119, %s4119
                $region200: #{dense_block_forward.3} parent=189 // loop_header_branch
                  %4214 = sbr.rel (%p4212) target = $region204
                $region201: #{dense_block_forward.3} parent=189 // loop_body
                  %v4218 = vld [vmem:[%s4216] sm:$0xf]
                  %4219 = vst [vmem:[%s4217] sm:$0xf] %v4218
                  %v4220 = vld [vmem:[%s4216 + $0x4] sm:$0xf]
                  %4221 = vst [vmem:[%s4217 + $0x4] sm:$0xf] %v4220
                  %v4222 = vld [vmem:[%s4216 + $0x8] sm:$0xf]
                  %4223 = vst [vmem:[%s4217 + $0x8] sm:$0xf] %v4222
                  %v4224 = vld [vmem:[%s4216 + $0xc] sm:$0xf]
                  %4225 = vst [vmem:[%s4217 + $0xc] sm:$0xf] %v4224
                  %v4226 = vld [vmem:[%s4216 + $0x10] sm:$0xf]
                  %4227 = vst [vmem:[%s4217 + $0x10] sm:$0xf] %v4226
                  %v4228 = vld [vmem:[%s4216 + $0x14] sm:$0xf]
                  %4229 = vst [vmem:[%s4217 + $0x14] sm:$0xf] %v4228
                  %v4230 = vld [vmem:[%s4216 + $0x18] sm:$0xf]
                  %4231 = vst [vmem:[%s4217 + $0x18] sm:$0xf] %v4230
                  %v4232 = vld [vmem:[%s4216 + $0x1c] sm:$0xf]
                  %4233 = vst [vmem:[%s4217 + $0x1c] sm:$0xf] %v4232
                  %v4234 = vld [vmem:[%s4216 + $0x20] sm:$0xf]
                  %4235 = vst [vmem:[%s4217 + $0x20] sm:$0xf] %v4234
                  %v4236 = vld [vmem:[%s4216 + $0x24] sm:$0xf]
                  %4237 = vst [vmem:[%s4217 + $0x24] sm:$0xf] %v4236
                  %v4238 = vld [vmem:[%s4216 + $0x28] sm:$0xf]
                  %4239 = vst [vmem:[%s4217 + $0x28] sm:$0xf] %v4238
                  %v4240 = vld [vmem:[%s4216 + $0x2c] sm:$0xf]
                  %4241 = vst [vmem:[%s4217 + $0x2c] sm:$0xf] %v4240
                  %v4242 = vld [vmem:[%s4216 + $0x30] sm:$0xf]
                  %4243 = vst [vmem:[%s4217 + $0x30] sm:$0xf] %v4242
                  %v4244 = vld [vmem:[%s4216 + $0x34] sm:$0xf]
                  %4245 = vst [vmem:[%s4217 + $0x34] sm:$0xf] %v4244
                  %v4246 = vld [vmem:[%s4216 + $0x38] sm:$0xf]
                  %4247 = vst [vmem:[%s4217 + $0x38] sm:$0xf] %v4246
                  %v4248 = vld [vmem:[%s4216 + $0x3c] sm:$0xf]
                  %4249 = vst [vmem:[%s4217 + $0x3c] sm:$0xf] %v4248
                  %v4250 = vld [vmem:[%s4216 + $0x40] sm:$0xf]
                  %4251 = vst [vmem:[%s4217 + $0x80] sm:$0xf] %v4250
                  %v4252 = vld [vmem:[%s4216 + $0x44] sm:$0xf]
                  %4253 = vst [vmem:[%s4217 + $0x84] sm:$0xf] %v4252
                  %v4254 = vld [vmem:[%s4216 + $0x48] sm:$0xf]
                  %4255 = vst [vmem:[%s4217 + $0x88] sm:$0xf] %v4254
                  %v4256 = vld [vmem:[%s4216 + $0x4c] sm:$0xf]
                  %4257 = vst [vmem:[%s4217 + $0x8c] sm:$0xf] %v4256
                  %v4258 = vld [vmem:[%s4216 + $0x50] sm:$0xf]
                  %4259 = vst [vmem:[%s4217 + $0x90] sm:$0xf] %v4258
                  %v4260 = vld [vmem:[%s4216 + $0x54] sm:$0xf]
                  %4261 = vst [vmem:[%s4217 + $0x94] sm:$0xf] %v4260
                  %v4262 = vld [vmem:[%s4216 + $0x58] sm:$0xf]
                  %4263 = vst [vmem:[%s4217 + $0x98] sm:$0xf] %v4262
                  %v4264 = vld [vmem:[%s4216 + $0x5c] sm:$0xf]
                  %4265 = vst [vmem:[%s4217 + $0x9c] sm:$0xf] %v4264
                  %v4266 = vld [vmem:[%s4216 + $0x60] sm:$0xf]
                  %4267 = vst [vmem:[%s4217 + $0xa0] sm:$0xf] %v4266
                  %v4268 = vld [vmem:[%s4216 + $0x64] sm:$0xf]
                  %4269 = vst [vmem:[%s4217 + $0xa4] sm:$0xf] %v4268
                  %v4270 = vld [vmem:[%s4216 + $0x68] sm:$0xf]
                  %4271 = vst [vmem:[%s4217 + $0xa8] sm:$0xf] %v4270
                  %v4272 = vld [vmem:[%s4216 + $0x6c] sm:$0xf]
                  %4273 = vst [vmem:[%s4217 + $0xac] sm:$0xf] %v4272
                  %v4274 = vld [vmem:[%s4216 + $0x70] sm:$0xf]
                  %4275 = vst [vmem:[%s4217 + $0xb0] sm:$0xf] %v4274
                  %v4276 = vld [vmem:[%s4216 + $0x74] sm:$0xf]
                  %4277 = vst [vmem:[%s4217 + $0xb4] sm:$0xf] %v4276
                  %v4278 = vld [vmem:[%s4216 + $0x78] sm:$0xf]
                  %4279 = vst [vmem:[%s4217 + $0xb8] sm:$0xf] %v4278
                  %v4280 = vld [vmem:[%s4216 + $0x7c] sm:$0xf]
                  %4281 = vst [vmem:[%s4217 + $0xbc] sm:$0xf] %v4280
                $region202: #{dense_block_forward.3} parent=189 // loop_footer
                  %s4215 = sadd.s32 1, %s4211
                $region203: #{dense_block_forward.3} parent=189 // loop_footer_branch
                  %4210 = sbr.rel target = $region199
                $region204: #{dense_block_forward.3} parent=189 // loop_exit
                  _
              $region190: #{dense_block_forward.3} parent=174 // pred_fallthru
                _
            $region175: #{dense_block_forward.3} parent=170 // pred_fallthru
              _
            // Predicated region
            $region176: #{dense_block_forward.3} parent=170 // pred_check
              _
            $region177: #{dense_block_forward.3} parent=170 // pred_check_branch
              %4125 = sbr.rel (0) target = $region179
            $region178: #{dense_block_forward.3} parent=170 // pred_region
              loop: start=0, step=1, limit=1
              $region180: #{dense_block_forward.3} parent=178 // loop_pre_header
                _
              $region181: #{dense_block_forward.3} parent=178 // loop_header
                %s4128 = sphi 0, %s4132
                %p4129 = scmp.ge.s32.totalorder %s4128, 1
                %s4133 = sphi %s4112, %s4112
                %s4134 = sphi %s4119, %s4119
              $region182: #{dense_block_forward.3} parent=178 // loop_header_branch
                %4131 = sbr.rel (%p4129) target = $region186
              $region183: #{dense_block_forward.3} parent=178 // loop_body
                %v4135 = vld [vmem:[%s4133] sm:$0xf]
                %4136 = vst [vmem:[%s4134] sm:$0xf] %v4135
                %v4137 = vld [vmem:[%s4133 + $0x4] sm:$0xf]
                %4138 = vst [vmem:[%s4134 + $0x4] sm:$0xf] %v4137
                %v4139 = vld [vmem:[%s4133 + $0x8] sm:$0xf]
                %4140 = vst [vmem:[%s4134 + $0x8] sm:$0xf] %v4139
                %v4141 = vld [vmem:[%s4133 + $0xc] sm:$0xf]
                %4142 = vst [vmem:[%s4134 + $0xc] sm:$0xf] %v4141
                %v4143 = vld [vmem:[%s4133 + $0x10] sm:$0xf]
                %4144 = vst [vmem:[%s4134 + $0x10] sm:$0xf] %v4143
                %v4145 = vld [vmem:[%s4133 + $0x14] sm:$0xf]
                %4146 = vst [vmem:[%s4134 + $0x14] sm:$0xf] %v4145
                %v4147 = vld [vmem:[%s4133 + $0x18] sm:$0xf]
                %4148 = vst [vmem:[%s4134 + $0x18] sm:$0xf] %v4147
                %v4149 = vld [vmem:[%s4133 + $0x1c] sm:$0xf]
                %4150 = vst [vmem:[%s4134 + $0x1c] sm:$0xf] %v4149
                %v4151 = vld [vmem:[%s4133 + $0x20] sm:$0xf]
                %4152 = vst [vmem:[%s4134 + $0x20] sm:$0xf] %v4151
                %v4153 = vld [vmem:[%s4133 + $0x24] sm:$0xf]
                %4154 = vst [vmem:[%s4134 + $0x24] sm:$0xf] %v4153
                %v4155 = vld [vmem:[%s4133 + $0x28] sm:$0xf]
                %4156 = vst [vmem:[%s4134 + $0x28] sm:$0xf] %v4155
                %v4157 = vld [vmem:[%s4133 + $0x2c] sm:$0xf]
                %4158 = vst [vmem:[%s4134 + $0x2c] sm:$0xf] %v4157
                %v4159 = vld [vmem:[%s4133 + $0x30] sm:$0xf]
                %4160 = vst [vmem:[%s4134 + $0x30] sm:$0xf] %v4159
                %v4161 = vld [vmem:[%s4133 + $0x34] sm:$0xf]
                %4162 = vst [vmem:[%s4134 + $0x34] sm:$0xf] %v4161
                %v4163 = vld [vmem:[%s4133 + $0x38] sm:$0xf]
                %4164 = vst [vmem:[%s4134 + $0x38] sm:$0xf] %v4163
                %v4165 = vld [vmem:[%s4133 + $0x3c] sm:$0xf]
                %4166 = vst [vmem:[%s4134 + $0x3c] sm:$0xf] %v4165
                %v4167 = vld [vmem:[%s4133 + $0x40] sm:$0xf]
                %4168 = vst [vmem:[%s4134 + $0x80] sm:$0xf] %v4167
                %v4169 = vld [vmem:[%s4133 + $0x44] sm:$0xf]
                %4170 = vst [vmem:[%s4134 + $0x84] sm:$0xf] %v4169
                %v4171 = vld [vmem:[%s4133 + $0x48] sm:$0xf]
                %4172 = vst [vmem:[%s4134 + $0x88] sm:$0xf] %v4171
                %v4173 = vld [vmem:[%s4133 + $0x4c] sm:$0xf]
                %4174 = vst [vmem:[%s4134 + $0x8c] sm:$0xf] %v4173
                %v4175 = vld [vmem:[%s4133 + $0x50] sm:$0xf]
                %4176 = vst [vmem:[%s4134 + $0x90] sm:$0xf] %v4175
                %v4177 = vld [vmem:[%s4133 + $0x54] sm:$0xf]
                %4178 = vst [vmem:[%s4134 + $0x94] sm:$0xf] %v4177
                %v4179 = vld [vmem:[%s4133 + $0x58] sm:$0xf]
                %4180 = vst [vmem:[%s4134 + $0x98] sm:$0xf] %v4179
                %v4181 = vld [vmem:[%s4133 + $0x5c] sm:$0xf]
                %4182 = vst [vmem:[%s4134 + $0x9c] sm:$0xf] %v4181
                %v4183 = vld [vmem:[%s4133 + $0x60] sm:$0xf]
                %4184 = vst [vmem:[%s4134 + $0xa0] sm:$0xf] %v4183
                %v4185 = vld [vmem:[%s4133 + $0x64] sm:$0xf]
                %4186 = vst [vmem:[%s4134 + $0xa4] sm:$0xf] %v4185
                %v4187 = vld [vmem:[%s4133 + $0x68] sm:$0xf]
                %4188 = vst [vmem:[%s4134 + $0xa8] sm:$0xf] %v4187
                %v4189 = vld [vmem:[%s4133 + $0x6c] sm:$0xf]
                %4190 = vst [vmem:[%s4134 + $0xac] sm:$0xf] %v4189
                %v4191 = vld [vmem:[%s4133 + $0x70] sm:$0xf]
                %4192 = vst [vmem:[%s4134 + $0xb0] sm:$0xf] %v4191
                %v4193 = vld [vmem:[%s4133 + $0x74] sm:$0xf]
                %4194 = vst [vmem:[%s4134 + $0xb4] sm:$0xf] %v4193
                %v4195 = vld [vmem:[%s4133 + $0x78] sm:$0xf]
                %4196 = vst [vmem:[%s4134 + $0xb8] sm:$0xf] %v4195
                %v4197 = vld [vmem:[%s4133 + $0x7c] sm:$0xf]
                %4198 = vst [vmem:[%s4134 + $0xbc] sm:$0xf] %v4197
              $region184: #{dense_block_forward.3} parent=178 // loop_footer
                %s4132 = sadd.s32 1, %s4128
              $region185: #{dense_block_forward.3} parent=178 // loop_footer_branch
                %4127 = sbr.rel target = $region181
              $region186: #{dense_block_forward.3} parent=178 // loop_exit
                _
            $region179: #{dense_block_forward.3} parent=170 // pred_fallthru
              _
          $region171: #{dense_block_forward.3} parent=166 // pred_fallthru
            _
          %4282 = vnop
        $region167: #{dense_block_forward.3} parent=150 // pred_fallthru
          _
      $region151: #{dense_block_forward.3} parent=5 // pred_fallthru
        _
      %p4283 = scmp.le.s32.totalorder 2, %s11
      // Predicated region
      $region205: #{dense_block_forward.3} parent=5 // pred_check
        %p4284 = pneg %p4283
      $region206: #{dense_block_forward.3} parent=5 // pred_check_branch
        %4286 = sbr.rel (%p4284) target = $region208
      $region207: #{dense_block_forward.3} parent=5 // pred_region
        %s4287 = ssub.s32 %s11, 2
        // Predicated region
        $region209: #{dense_block_forward.3} parent=207 // pred_check
          %p4288 = pneg %p160
        $region210: #{dense_block_forward.3} parent=207 // pred_check_branch
          %4290 = sbr.rel (%p4288) target = $region212
        $region211: #{dense_block_forward.3} parent=207 // pred_region
          %s4291 = sand.u32 %s145, 1
          %s4292 = sand.u32 %s145, 1
          %s4293 = smul.addr %s4292, 128
          %s4294 = scalar_lea.vmem [#allocation5], %s4293
        $region212: #{dense_block_forward.3} parent=207 // pred_fallthru
          _
      $region208: #{dense_block_forward.3} parent=5 // pred_fallthru
        _
    $region6: #{dense_block_forward.3} parent=1 // loop_footer
      %s15 = sadd.s32 1, %s11
    $region7: #{dense_block_forward.3} parent=1 // loop_footer_branch
      %10 = sbr.rel target = $region3
    $region8: #{dense_block_forward.3} parent=1 // loop_exit
      _

</llo_original>
